<compile_context>
chip_gen: v6e
topology: v6e:2x2x1
jax: 0.10.0
libtpu: 0.0.40
codegen_flags: <defaults>
</compile_context>

<pallas_src>
import functools

import jax
import jax.numpy as jnp
from jax import lax
from jax.experimental import pallas as pl
from jax.experimental.pallas import tpu as pltpu


# ----------------------------------------------------------------------------
# Small helpers
# ----------------------------------------------------------------------------
_VMEM_LIMIT = 32 * 1024 * 1024


def _cparams(*sems):
    cp = getattr(pltpu, "CompilerParams", None)
    if cp is None:                                  # fallback for older jax
        cp = getattr(pltpu, "TPUCompilerParams")
    return cp(dimension_semantics=tuple(sems), vmem_limit_bytes=_VMEM_LIMIT)


def _row_block(m, target=512):
    """Row-tile: full extent for small M, else a multiple-of-8 tile (target)."""
    return m if m <= target else target


def _rows_spec(rb, *feat):
    nd = 1 + len(feat)
    return pl.BlockSpec((rb,) + tuple(feat), lambda i: (i,) + (0,) * (nd - 1))


def _rep_spec(shape):
    nd = len(shape)
    return pl.BlockSpec(tuple(shape), lambda *args: (0,) * nd)


def _bdot(a, b):
    """MXU matmul with bf16 operands, f32 accumulation."""
    return jnp.dot(a.astype(jnp.bfloat16), b.astype(jnp.bfloat16),
                   preferred_element_type=jnp.float32)


def _recip(x):
    if hasattr(pl, "reciprocal"):
        return pl.reciprocal(x, approx=True)
    return 1.0 / x


# ----------------------------------------------------------------------------
# Pallas kernels (all row-tiled unless noted)
# ----------------------------------------------------------------------------
def _ln_linear_kernel(x_ref, g_ref, b_ref, w_ref, bw_ref, o_ref):
    x = x_ref[...]
    mu = jnp.mean(x, axis=-1, keepdims=True)
    var = jnp.mean(jnp.square(x - mu), axis=-1, keepdims=True)
    xn = (x - mu) * lax.rsqrt(var + 1e-5) * g_ref[...] + b_ref[...]
    o_ref[...] = _bdot(xn, w_ref[...]) + bw_ref[...]


def pallas_ln_linear(x, g, b, w, bw):
    m, c = x.shape
    n = w.shape[1]
    rb = _row_block(m)
    return pl.pallas_call(
        _ln_linear_kernel,
        grid=(pl.cdiv(m, rb),),
        in_specs=[_rows_spec(rb, c), _rep_spec((1, c)), _rep_spec((1, c)),
                  _rep_spec((c, n)), _rep_spec((1, n))],
        out_specs=_rows_spec(rb, n),
        out_shape=jax.ShapeDtypeStruct((m, n), jnp.float32),
        compiler_params=_cparams("parallel"),
    )(x, g, b, w, bw)


def _linear_kernel(x_ref, w_ref, b_ref, o_ref, *, act):
    y = _bdot(x_ref[...], w_ref[...]) + b_ref[...]
    if act == "relu":
        y = jnp.maximum(y, 0.0)
    o_ref[...] = y


def pallas_linear(x, w, b, act=None):
    m, c = x.shape
    n = w.shape[1]
    rb = _row_block(m)
    return pl.pallas_call(
        functools.partial(_linear_kernel, act=act),
        grid=(pl.cdiv(m, rb),),
        in_specs=[_rows_spec(rb, c), _rep_spec((c, n)), _rep_spec((1, n))],
        out_specs=_rows_spec(rb, n),
        out_shape=jax.ShapeDtypeStruct((m, n), jnp.float32),
        compiler_params=_cparams("parallel"),
    )(x, w, b)


def _lin_res_ln_kernel(h_ref, w_ref, b_ref, r_ref, g_ref, be_ref, o_ref):
    y = _bdot(h_ref[...], w_ref[...]) + b_ref[...] + r_ref[...]
    mu = jnp.mean(y, axis=-1, keepdims=True)
    var = jnp.mean(jnp.square(y - mu), axis=-1, keepdims=True)
    o_ref[...] = (y - mu) * lax.rsqrt(var + 1e-5) * g_ref[...] + be_ref[...]


def pallas_lin_res_ln(h, w, b, res, g, be):
    m, c = h.shape
    n = w.shape[1]
    rb = _row_block(m)
    return pl.pallas_call(
        _lin_res_ln_kernel,
        grid=(pl.cdiv(m, rb),),
        in_specs=[_rows_spec(rb, c), _rep_spec((c, n)), _rep_spec((1, n)),
                  _rows_spec(rb, n), _rep_spec((1, n)), _rep_spec((1, n))],
        out_specs=_rows_spec(rb, n),
        out_shape=jax.ShapeDtypeStruct((m, n), jnp.float32),
        input_output_aliases={3: 0},              # residual buffer reused for output
        compiler_params=_cparams("parallel"),
    )(h, w, b, res, g, be)


def _ln_add_kernel(x_ref, r_ref, g_ref, b_ref, o_ref):
    x = x_ref[...]
    mu = jnp.mean(x, axis=-1, keepdims=True)
    var = jnp.mean(jnp.square(x - mu), axis=-1, keepdims=True)
    o_ref[...] = (x - mu) * lax.rsqrt(var + 1e-5) * g_ref[...] + b_ref[...] + r_ref[...]


def pallas_ln_add(x, res, g, b):
    m, n = x.shape
    rb = _row_block(m)
    return pl.pallas_call(
        _ln_add_kernel,
        grid=(pl.cdiv(m, rb),),
        in_specs=[_rows_spec(rb, n), _rows_spec(rb, n),
                  _rep_spec((1, n)), _rep_spec((1, n))],
        out_specs=_rows_spec(rb, n),
        out_shape=jax.ShapeDtypeStruct((m, n), jnp.float32),
        input_output_aliases={1: 0},
        compiler_params=_cparams("parallel"),
    )(x, res, g, b)


def _bilstm_kernel(x_ref, wih_ref, whh_ref, b_ref, o_ref, gx_ref, h_ref, c_ref):
    T, M, N = x_ref.shape
    H = h_ref.shape[1]
    d = pl.program_id(0)                 # 0 = forward, 1 = backward direction

    # Hoisted input projection: one [T*M, N] x [N, 4H] MXU matmul outside the loop.
    gx = _bdot(x_ref[...].reshape(T * M, N), wih_ref[...]) + b_ref[...]
    gx_ref[...] = gx.reshape(T, M, 4 * H)

    h_ref[...] = jnp.zeros_like(h_ref)
    c_ref[...] = jnp.zeros_like(c_ref)
    whh = whh_ref[...].astype(jnp.bfloat16)

    def step(t, carry):
        idx = jnp.where(d == 0, t, T - 1 - t)
        gates = gx_ref[idx] + jnp.dot(h_ref[...].astype(jnp.bfloat16), whh,
                                      preferred_element_type=jnp.float32)
        i = jax.nn.sigmoid(gates[:, 0 * H:1 * H])
        f = jax.nn.sigmoid(gates[:, 1 * H:2 * H])
        g = jnp.tanh(gates[:, 2 * H:3 * H])
        o = jax.nn.sigmoid(gates[:, 3 * H:4 * H])
        c = f * c_ref[...] + i * g
        h = o * jnp.tanh(c)
        h_ref[...] = h
        c_ref[...] = c
        o_ref[idx] = h
        return carry

    lax.fori_loop(0, T, step, 0)


def pallas_bilstm(x_tm, wih2, whh2, b2):
    """x_tm: [T, M, N]; weights stacked per direction; returns [2, T, M, H]."""
    T, M, N = x_tm.shape
    H = whh2.shape[1]
    return pl.pallas_call(
        _bilstm_kernel,
        grid=(2,),
        in_specs=[pl.BlockSpec((T, M, N), lambda d: (0, 0, 0)),
                  pl.BlockSpec((None, N, 4 * H), lambda d: (d, 0, 0)),
                  pl.BlockSpec((None, H, 4 * H), lambda d: (d, 0, 0)),
                  pl.BlockSpec((None, 1, 4 * H), lambda d: (d, 0, 0))],
        out_specs=pl.BlockSpec((None, T, M, H), lambda d: (d, 0, 0, 0)),
        out_shape=jax.ShapeDtypeStruct((2, T, M, H), jnp.float32),
        scratch_shapes=[pltpu.VMEM((T, M, 4 * H), jnp.float32),
                        pltpu.VMEM((M, H), jnp.float32),
                        pltpu.VMEM((M, H), jnp.float32)],
        compiler_params=_cparams("parallel"),
    )(x_tm, wih2, whh2, b2)


def _dw_down_kernel(x_ref, w_ref, b_ref, o_ref):
    x = x_ref[...]                        # [rb, k, N]
    w = w_ref[...]                        # [k, N]
    acc = x[:, 0, :] * w[0:1, :]
    for j in range(1, x.shape[1]):
        acc = acc + x[:, j, :] * w[j:j + 1, :]
    o_ref[...] = acc + b_ref[...]


def pallas_dw_down(x, w, b):
    """Depthwise Conv1d with kernel == stride == k, channels-last, lane-dense out."""
    m, k, n = x.shape
    rb = _row_block(m)
    return pl.pallas_call(
        _dw_down_kernel,
        grid=(pl.cdiv(m, rb),),
        in_specs=[_rows_spec(rb, k, n), _rep_spec((k, n)), _rep_spec((1, n))],
        out_specs=_rows_spec(rb, n),
        out_shape=jax.ShapeDtypeStruct((m, n), jnp.float32),
        compiler_params=_cparams("parallel"),
    )(x, w, b)


def _cma_kernel(s_ref, v_ref, wqkv_ref, bqkv_ref, wo_ref, bo_ref, g_ref, be_ref,
                so_ref, vo_ref, *, num_heads):
    # TODO(synk): CrossModalAttention source unavailable; standard cross-modal MHA
    # (+residual+LayerNorm) over the inter-chunk axis is used as a stand-in.
    N = s_ref.shape[-1]
    dh = N // num_heads
    scale = 1.0 / float(dh) ** 0.5

    s_blk = s_ref[...]                    # [Sd, N]
    v_blk = v_ref[...]

    ps = _bdot(s_blk, wqkv_ref[0]) + bqkv_ref[0]     # packed q | k | v
    pv = _bdot(v_blk, wqkv_ref[1]) + bqkv_ref[1]

    def attend(q, k, v):
        outs = []
        for h in range(num_heads):
            lo, hi = h * dh, (h + 1) * dh
            sc = lax.dot_general(q[:, lo:hi].astype(jnp.bfloat16),
                                 k[:, lo:hi].astype(jnp.bfloat16),
                                 (((1,), (1,)), ((), ())),
                                 preferred_element_type=jnp.float32) * scale
            sc = sc - jnp.max(sc, axis=-1, keepdims=True)
            p = jnp.exp(sc)
            p = p * _recip(jnp.sum(p, axis=-1, keepdims=True))
            outs.append(_bdot(p, v[:, lo:hi]))
        return jnp.concatenate(outs, axis=-1)

    att_s = attend(ps[:, :N], pv[:, N:2 * N], pv[:, 2 * N:])
    att_v = attend(pv[:, :N], ps[:, N:2 * N], ps[:, 2 * N:])

    y_s = _bdot(att_s, wo_ref[0]) + bo_ref[0] + s_blk
    y_v = _bdot(att_v, wo_ref[1]) + bo_ref[1] + v_blk

    def ln(x, gg, bb):
        mu = jnp.mean(x, axis=-1, keepdims=True)
        var = jnp.mean(jnp.square(x - mu), axis=-1, keepdims=True)
        return (x - mu) * lax.rsqrt(var + 1e-5) * gg + bb

    so_ref[...] = ln(y_s, g_ref[0], be_ref[0])
    vo_ref[...] = ln(y_v, g_ref[1], be_ref[1])


def pallas_cma(s, v, p, num_heads):
    """s, v: [B, K, Sd, N] -> same shapes; fused dual-stream cross attention."""
    B, K, Sd, N = s.shape
    data_spec = pl.BlockSpec((None, None, Sd, N), lambda b, kk: (b, kk, 0, 0))
    return pl.pallas_call(
        functools.partial(_cma_kernel, num_heads=num_heads),
        grid=(B, K),
        in_specs=[data_spec, data_spec,
                  _rep_spec((2, N, 3 * N)), _rep_spec((2, 1, 3 * N)),
                  _rep_spec((2, N, N)), _rep_spec((2, 1, N)),
                  _rep_spec((2, 1, N)), _rep_spec((2, 1, N))],
        out_specs=(data_spec, data_spec),
        out_shape=(jax.ShapeDtypeStruct((B, K, Sd, N), jnp.float32),
                   jax.ShapeDtypeStruct((B, K, Sd, N), jnp.float32)),
        compiler_params=_cparams("parallel", "parallel"),
    )(s, v, p["w_qkv"], p["b_qkv"], p["w_o"], p["b_o"], p["ln_g"], p["ln_b"])


def _prelu_linear_kernel(x_ref, a_ref, w_ref, b_ref, o_ref):
    x = x_ref[...]
    xa = jnp.where(x > 0.0, x, a_ref[...] * x)
    o_ref[...] = _bdot(xa, w_ref[...]) + b_ref[...]


def pallas_prelu_linear(x, alpha, w, b):
    m, n = x.shape
    c = w.shape[1]
    rb = _row_block(m)
    return pl.pallas_call(
        _prelu_linear_kernel,
        grid=(pl.cdiv(m, rb),),
        in_specs=[_rows_spec(rb, n), _rep_spec((1, 1)),
                  _rep_spec((n, c)), _rep_spec((1, c))],
        out_specs=_rows_spec(rb, c),
        out_shape=jax.ShapeDtypeStruct((m, c), jnp.float32),
        compiler_params=_cparams("parallel"),
    )(x, alpha, w, b)


def _output_kernel(x_ref, wo_ref, bo_ref, wg_ref, bg_ref, wb_ref, o_ref):
    x = x_ref[...]
    t = jnp.tanh(_bdot(x, wo_ref[...]) + bo_ref[...])
    g = jax.nn.sigmoid(x * wg_ref[...] + bg_ref[...])
    o_ref[...] = jnp.maximum(_bdot(t * g, wb_ref[...]), 0.0)


def pallas_output(x, p):
    m, n = x.shape
    cout = p["w_bott"].shape[1]
    rb = _row_block(m)
    return pl.pallas_call(
        _output_kernel,
        grid=(pl.cdiv(m, rb),),
        in_specs=[_rows_spec(rb, n), _rep_spec((n, n)), _rep_spec((1, n)),
                  _rep_spec((1, n)), _rep_spec((1, n)), _rep_spec((n, cout))],
        out_specs=_rows_spec(rb, cout),
        out_shape=jax.ShapeDtypeStruct((m, cout), jnp.float32),
        compiler_params=_cparams("parallel"),
    )(x, p["w_out"], p["b_out"], p["w_gate"], p["b_gate"], p["w_bott"])


# ----------------------------------------------------------------------------
# Model glue (channels-last, [B, K, S, N] canonical layout)
# ----------------------------------------------------------------------------
def segmentation_cl(x, Kc):
    """[B, L, N] -> ([B, Kc, S, N], gap); channels-last Segementation."""
    B, L, N = x.shape
    P = Kc // 2
    gap = Kc - L % P
    xp = jnp.pad(x, ((0, 0), (P, gap + P), (0, 0)))
    nb = (xp.shape[1] - P) // Kc
    left = xp[:, :nb * Kc].reshape(B, nb, Kc, N)
    right = xp[:, P:P + nb * Kc].reshape(B, nb, Kc, N)
    seg = jnp.stack([left, right], axis=2).reshape(B, 2 * nb, Kc, N)   # [B, S, K, N]
    return jnp.transpose(seg, (0, 2, 1, 3)), gap                        # [B, K, S, N]


def overlap_add_cl(x, gap):
    """[B2, S, K, N] -> [B2, L, N]; channels-last _overlap_add."""
    B2, S, K, N = x.shape
    P = K // 2
    x = x.reshape(B2, S // 2, 2, K, N)
    left = x[:, :, 0].reshape(B2, -1, N)[:, P:]
    right = x[:, :, 1].reshape(B2, -1, N)[:, :-P]
    return (left + right)[:, :-gap]


def locally_recurrent(x, p):
    """[B, K, S, N] -> [B, K, S, N]; BiLSTM over K, Linear + residual + LayerNorm."""
    B, K, S, N = x.shape
    M = B * S
    H = p["whh"].shape[1]
    x_tm = jnp.transpose(x, (1, 0, 2, 3)).reshape(K, M, N)      # time-major (cheap permute)
    h2 = pallas_bilstm(x_tm, p["wih"], p["whh"], p["b"])         # [2, K, M, H]
    h = jnp.concatenate([h2[0], h2[1]], axis=-1).reshape(K * M, 2 * H)
    res = x_tm.reshape(K * M, N)
    y = pallas_lin_res_ln(h, p["w_lin"], p["b_lin"], res, p["ln_g"], p["ln_b"])
    return jnp.transpose(y.reshape(K, B, S, N), (1, 0, 2, 3))


def sandglasset_block(s, v, p, k, num_heads):
    """s, v: [B, K, S, N]  (channels-last view of the reference [B, N, K, S])."""
    B, K, S, N = s.shape
    Sd = S // k
    res_s, res_v = s, v
    s_lr = locally_recurrent(s, p["lr_a"])
    v_lr = locally_recurrent(v, p["lr_v"])
    s1 = pallas_ln_add(s_lr.reshape(-1, N), res_s.reshape(-1, N),
                       p["ln_a_g"], p["ln_a_b"]).reshape(B, K, S, N)
    v1 = pallas_ln_add(v_lr.reshape(-1, N), res_v.reshape(-1, N),
                       p["ln_v_g"], p["ln_v_b"]).reshape(B, K, S, N)
    # depthwise strided downsample along S (kernel == stride == k)
    s2 = pallas_dw_down(s1.reshape(B * K * Sd, k, N),
                        p["down_a_w"], p["down_a_b"]).reshape(B, K, Sd, N)
    v2 = pallas_dw_down(v1.reshape(B * K * Sd, k, N),
                        p["down_v_w"], p["down_v_b"]).reshape(B, K, Sd, N)
    # fused cross-modal attention (both streams in one kernel)
    s3, v3 = pallas_cma(s2, v2, p["cma"], num_heads)
    # ConvTranspose1d (kernel == stride == k) as a lane-dense row matmul
    s4 = pallas_linear(s3.reshape(B * K * Sd, N), p["up_a_w"], p["up_a_b"]).reshape(B, K, S, N)
    v4 = pallas_linear(v3.reshape(B * K * Sd, N), p["up_v_w"], p["up_v_b"]).reshape(B, K, S, N)
    return s4, v4


def separation_forward(s, v, params, cfg):
    B, Cin, L = s.shape
    N = cfg["out_channels"]
    Kc = cfg["length"]
    spk = cfg["speakers"]
    depth = cfg["depth"]
    nh = cfg["num_heads"]

    # --- audio encoder: LayerNorm(channels) + Linear ---
    st = jnp.transpose(s, (0, 2, 1)).reshape(B * L, Cin)
    se = pallas_ln_linear(st, params["ln_g"], params["ln_b"],
                          params["lin_w"], params["lin_b"])
    x, gap = segmentation_cl(se.reshape(B, L, N), Kc)             # [B, K, S, N]

    # --- video branch ---
    # TODO(synk): VideoNet / VideoRencoder / VideoSegementation sources not provided;
    # 1x1 projection + ReLU resampled to the audio length + identical segmentation.
    Bv, Cv, Lv = v.shape
    vt = jnp.transpose(v, (0, 2, 1)).reshape(Bv * Lv, Cv)
    ve = pallas_linear(vt, params["vre_w"], params["vre_b"], act="relu").reshape(Bv, Lv, N)
    if Lv != L:
        idx = jnp.clip((jnp.arange(L) * Lv) // L, 0, Lv - 1)
        ve = ve[:, idx]
    vx, _ = segmentation_cl(ve, Kc)

    # --- sandglasset blocks with cross-scale residuals ---
    res_s, res_v = [], []
    for i in range(2 * depth):
        x, vx = sandglasset_block(x, vx, params["blocks"][i], cfg["ks"][i], nh)
        if i < depth:
            res_s.append(x)
            res_v.append(vx)
        else:
            x = x + res_s[2 * depth - 1 - i]
            vx = vx + res_v[2 * depth - 1 - i]

    # --- speaker head: PReLU + grouped 1x1 Conv2d (lane-dense [R, N*spk] output) ---
    def head(x4, hp):
        B_, K_, S_, N_ = x4.shape
        y = pallas_prelu_linear(x4.reshape(-1, N_), hp["alpha"], hp["w"], hp["b"])
        # mirror PyTorch's view(B*spk, N, K, S) channel regrouping exactly
        y = y.reshape(B_, K_, S_, spk, N_)
        y = jnp.transpose(y, (0, 3, 2, 1, 4)).reshape(B_ * spk, S_, K_, N_)
        return y

    xh = overlap_add_cl(head(x, params["head_a"]), gap)           # [B*spk, L, N]
    vh = overlap_add_cl(head(vx, params["head_v"]), gap)

    # --- fused output stage: tanh(conv) * sigmoid(dw conv) -> bottleneck -> ReLU ---
    def out_branch(y, op):
        B2, L_, N_ = y.shape
        z = pallas_output(y.reshape(B2 * L_, N_), op)             # [B2*L, Cin]
        z = z.reshape(B, spk, L_, Cin)
        return jnp.transpose(z, (1, 0, 3, 2))                     # [spk, B, Cin, L]

    return out_branch(xh, params["out_a"]), out_branch(vh, params["out_v"])


# ----------------------------------------------------------------------------
# Deterministic parameter initialisation
# ----------------------------------------------------------------------------
class ParamGen:
    def __init__(self, key):
        self.key = key
        self.i = 0

    def normal(self, shape, scale=0.1):
        self.i += 1
        return scale * jax.random.normal(jax.random.fold_in(self.key, self.i),
                                         shape, jnp.float32)

    def zeros(self, shape):
        return jnp.zeros(shape, jnp.float32)

    def ones(self, shape):
        return jnp.ones(shape, jnp.float32)


def init_lr(pg, N, H):
    return dict(
        wih=pg.normal((2, N, 4 * H)), whh=pg.normal((2, H, 4 * H)),
        b=pg.normal((2, 1, 4 * H), 0.05),
        w_lin=pg.normal((2 * H, N)), b_lin=pg.normal((1, N), 0.05),
        ln_g=pg.ones((1, N)), ln_b=pg.zeros((1, N)),
    )


def init_cma(pg, N):
    return dict(
        w_qkv=pg.normal((2, N, 3 * N)), b_qkv=pg.normal((2, 1, 3 * N), 0.05),
        w_o=pg.normal((2, N, N)), b_o=pg.normal((2, 1, N), 0.05),
        ln_g=pg.ones((2, 1, N)), ln_b=pg.zeros((2, 1, N)),
    )


def init_block(pg, N, H, k):
    def up():
        w = pg.normal((N, N, k))                                  # [c_in, c_out, j]
        w2 = jnp.transpose(w, (0, 2, 1)).reshape(N, k * N)        # col = j*N + c_out
        bias = pg.normal((N,), 0.05)
        return w2, jnp.tile(bias, k).reshape(1, k * N)

    up_a_w, up_a_b = up()
    up_v_w, up_v_b = up()
    return dict(
        lr_a=init_lr(pg, N, H), lr_v=init_lr(pg, N, H),
        ln_a_g=pg.ones((1, N)), ln_a_b=pg.zeros((1, N)),
        ln_v_g=pg.ones((1, N)), ln_v_b=pg.zeros((1, N)),
        down_a_w=pg.normal((k, N)), down_a_b=pg.normal((1, N), 0.05),
        down_v_w=pg.normal((k, N)), down_v_b=pg.normal((1, N), 0.05),
        cma=init_cma(pg, N),
        up_a_w=up_a_w, up_a_b=up_a_b, up_v_w=up_v_w, up_v_b=up_v_b,
    )


def init_head(pg, N, spk):
    w = pg.normal((N, spk))                                       # grouped 1x1 conv weights
    b = pg.normal((N, spk), 0.05)
    # expand to a dense [N, N*spk] matrix with conv-channel ordering c = n*spk + p
    w_exp = (jnp.eye(N, dtype=jnp.float32)[:, :, None] * w[None, :, :]).reshape(N, N * spk)
    return dict(alpha=jnp.full((1, 1), 0.25, jnp.float32),
                w=w_exp, b=b.reshape(1, N * spk))


def init_params(key, cfg):
    pg = ParamGen(key)
    Cin, N, H = cfg["in_channels"], cfg["out_channels"], cfg["hidden_channels"]
    Cv, spk = cfg["video_inchannels"], cfg["speakers"]
    return dict(
        ln_g=pg.ones((1, Cin)), ln_b=pg.zeros((1, Cin)),
        lin_w=pg.normal((Cin, N)), lin_b=pg.normal((1, N), 0.05),
        vre_w=pg.normal((Cv, N)), vre_b=pg.normal((1, N), 0.05),
        blocks=[init_block(pg, N, H, cfg["ks"][i]) for i in range(2 * cfg["depth"])],
        head_a=init_head(pg, N, spk), head_v=init_head(pg, N, spk),
        out_a=dict(w_out=pg.normal((N, N)), b_out=pg.normal((1, N), 0.05),
                   w_gate=pg.normal((1, N)), b_gate=pg.normal((1, N), 0.05),
                   w_bott=pg.normal((N, Cin))),
        out_v=dict(w_out=pg.normal((N, N)), b_out=pg.normal((1, N), 0.05),
                   w_gate=pg.normal((1, N)), b_gate=pg.normal((1, N), 0.05),
                   w_bott=pg.normal((N, Cin))),
    )


# ----------------------------------------------------------------------------
# Main
# ----------------------------------------------------------------------------
if __name__ == "__main__":
    cfg = dict(
        in_channels=16, out_channels=16, length=8, video_inchannels=8,
        hidden_channels=16, num_heads=4, depth=2, speakers=2,
    )
    cfg["ks"] = ([4 ** i for i in range(cfg["depth"])]
                 + [4 ** i for i in reversed(range(cfg["depth"]))])   # [1, 4, 4, 1]

    key = jax.random.PRNGKey(0)
    ks_in, kv_in, kp = jax.random.split(key, 3)

    B, L, Lv = 2, 20, 20     # L chosen so S = 8 (divisible by the max stride 4)
    s = jax.random.normal(ks_in, (B, cfg["in_channels"], L), jnp.float32)
    v = jax.random.normal(kv_in, (B, cfg["video_inchannels"], Lv), jnp.float32)

    params = init_params(kp, cfg)

    fwd = jax.jit(lambda a, b: separation_forward(a, b, params, cfg))
    out_a, out_v = fwd(s, v)
    jax.block_until_ready((out_a, out_v))

    assert out_a.shape == (cfg["speakers"], B, cfg["in_channels"], L), out_a.shape
    assert out_v.shape == (cfg["speakers"], B, cfg["in_channels"], L), out_v.shape
    assert bool(jnp.all(jnp.isfinite(out_a))) and bool(jnp.all(jnp.isfinite(out_v)))
    print("KERNEL_OK")
</pallas_src>

<mosaic_0001>
module attributes {stable_mosaic.version = 11 : i64} {
  func.func @_ln_linear_kernel(%arg0: i32, %arg1: memref<40x16xf32, #tpu.memory_space<vmem>>, %arg2: memref<1x16xf32, #tpu.memory_space<vmem>>, %arg3: memref<1x16xf32, #tpu.memory_space<vmem>>, %arg4: memref<16x16xf32, #tpu.memory_space<vmem>>, %arg5: memref<1x16xf32, #tpu.memory_space<vmem>>, %arg6: memref<40x16xf32, #tpu.memory_space<vmem>>) attributes {dimension_semantics = [#tpu.dimension_semantics<parallel>], iteration_bounds = array<i64: 1>, scalar_prefetch = 0 : i64, scratch_operands = 0 : i64, tpu.core_type = #tpu.core_type<tc>, window_params = [{transform_indices = @transform_0, window_bounds = array<i64: 40, 16>}, {pipeline_mode = #tpu.pipeline_mode<synchronous>, transform_indices = @transform_1, window_bounds = array<i64: 1, 16>}, {pipeline_mode = #tpu.pipeline_mode<synchronous>, transform_indices = @transform_2, window_bounds = array<i64: 1, 16>}, {pipeline_mode = #tpu.pipeline_mode<synchronous>, transform_indices = @transform_3, window_bounds = array<i64: 16, 16>}, {pipeline_mode = #tpu.pipeline_mode<synchronous>, transform_indices = @transform_4, window_bounds = array<i64: 1, 16>}, {transform_indices = @transform_5, window_bounds = array<i64: 40, 16>}]} {
    %c0 = arith.constant 0 : index
    %c0_0 = arith.constant 0 : index
    %0 = vector.load %arg1[%c0, %c0_0] : memref<40x16xf32, #tpu.memory_space<vmem>>, vector<40x16xf32>
    %cst = arith.constant dense<0.000000e+00> : vector<40xf32>
    %1 = vector.multi_reduction <add>, %0, %cst [1] : vector<40x16xf32> to vector<40xf32>
    %2 = vector.shape_cast %1 : vector<40xf32> to vector<40x1xf32>
    %cst_1 = arith.constant 1.600000e+01 : f32
    %3 = vector.broadcast %cst_1 : f32 to vector<40x1xf32>
    %4 = arith.divf %2, %3 : vector<40x1xf32>
    %5 = vector.broadcast %4 : vector<40x1xf32> to vector<40x16xf32>
    %6 = arith.subf %0, %5 : vector<40x16xf32>
    %7 = arith.mulf %6, %6 : vector<40x16xf32>
    %cst_2 = arith.constant dense<0.000000e+00> : vector<40xf32>
    %8 = vector.multi_reduction <add>, %7, %cst_2 [1] : vector<40x16xf32> to vector<40xf32>
    %9 = vector.shape_cast %8 : vector<40xf32> to vector<40x1xf32>
    %cst_3 = arith.constant 1.600000e+01 : f32
    %10 = vector.broadcast %cst_3 : f32 to vector<40x1xf32>
    %11 = arith.divf %9, %10 : vector<40x1xf32>
    %12 = vector.broadcast %4 : vector<40x1xf32> to vector<40x16xf32>
    %13 = arith.subf %0, %12 : vector<40x16xf32>
    %cst_4 = arith.constant 9.99999974E-6 : f32
    %14 = vector.broadcast %cst_4 : f32 to vector<40x1xf32>
    %15 = arith.addf %11, %14 : vector<40x1xf32>
    %16 = math.rsqrt %15 : vector<40x1xf32>
    %17 = vector.broadcast %16 : vector<40x1xf32> to vector<40x16xf32>
    %18 = arith.mulf %13, %17 : vector<40x16xf32>
    %c0_5 = arith.constant 0 : index
    %c0_6 = arith.constant 0 : index
    %19 = vector.load %arg2[%c0_5, %c0_6] : memref<1x16xf32, #tpu.memory_space<vmem>>, vector<1x16xf32>
    %20 = vector.broadcast %19 : vector<1x16xf32> to vector<40x16xf32>
    %21 = arith.mulf %18, %20 : vector<40x16xf32>
    %c0_7 = arith.constant 0 : index
    %c0_8 = arith.constant 0 : index
    %22 = vector.load %arg3[%c0_7, %c0_8] : memref<1x16xf32, #tpu.memory_space<vmem>>, vector<1x16xf32>
    %23 = vector.broadcast %22 : vector<1x16xf32> to vector<40x16xf32>
    %24 = arith.addf %21, %23 : vector<40x16xf32>
    %c0_9 = arith.constant 0 : index
    %c0_10 = arith.constant 0 : index
    %25 = vector.load %arg4[%c0_9, %c0_10] : memref<16x16xf32, #tpu.memory_space<vmem>>, vector<16x16xf32>
    %26 = arith.truncf %24 : vector<40x16xf32> to vector<40x16xbf16>
    %27 = arith.truncf %25 : vector<16x16xf32> to vector<16x16xbf16>
    %cst_11 = arith.constant dense<0.000000e+00> : vector<40x16xf32>
    %28 = tpu.matmul %26, %27, %cst_11 {dimension_numbers = #tpu.dot_dimension_numbers<[1], [0], [0], [1], [0, 0, 1, 1], [], []>} : vector<40x16xbf16>, vector<16x16xbf16>, vector<40x16xf32> -> vector<40x16xf32>
    %c0_12 = arith.constant 0 : index
    %c0_13 = arith.constant 0 : index
    %29 = vector.load %arg5[%c0_12, %c0_13] : memref<1x16xf32, #tpu.memory_space<vmem>>, vector<1x16xf32>
    %30 = vector.broadcast %29 : vector<1x16xf32> to vector<40x16xf32>
    %31 = arith.addf %28, %30 : vector<40x16xf32>
    %c0_14 = arith.constant 0 : index
    %c0_15 = arith.constant 0 : index
    %32 = vector.load %arg6[%c0_14, %c0_15] : memref<40x16xf32, #tpu.memory_space<vmem>>, vector<40x16xf32>
    tpu.vector_store %arg6[%c0_14, %c0_15], %31 {strides = array<i32>} : memref<40x16xf32, #tpu.memory_space<vmem>>, vector<40x16xf32>,
    return
  }
  func.func @transform_0(%arg0: i32) -> (i32, i32) {
    %c0_i32 = arith.constant 0 : i32
    %c0_i32_0 = arith.constant 0 : i32
    return %arg0, %c0_i32 : i32, i32
  }
  func.func @transform_1(%arg0: i32) -> (i32, i32) {
    %c0_i32 = arith.constant 0 : i32
    %c0_i32_0 = arith.constant 0 : i32
    %c0_i32_1 = arith.constant 0 : i32
    return %c0_i32, %c0_i32_0 : i32, i32
  }
  func.func @transform_2(%arg0: i32) -> (i32, i32) {
    %c0_i32 = arith.constant 0 : i32
    %c0_i32_0 = arith.constant 0 : i32
    %c0_i32_1 = arith.constant 0 : i32
    return %c0_i32, %c0_i32_0 : i32, i32
  }
  func.func @transform_3(%arg0: i32) -> (i32, i32) {
    %c0_i32 = arith.constant 0 : i32
    %c0_i32_0 = arith.constant 0 : i32
    %c0_i32_1 = arith.constant 0 : i32
    return %c0_i32, %c0_i32_0 : i32, i32
  }
  func.func @transform_4(%arg0: i32) -> (i32, i32) {
    %c0_i32 = arith.constant 0 : i32
    %c0_i32_0 = arith.constant 0 : i32
    %c0_i32_1 = arith.constant 0 : i32
    return %c0_i32, %c0_i32_0 : i32, i32
  }
  func.func @transform_5(%arg0: i32) -> (i32, i32) {
    %c0_i32 = arith.constant 0 : i32
    %c0_i32_0 = arith.constant 0 : i32
    return %arg0, %c0_i32 : i32, i32
  }
}

module attributes {stable_mosaic.version = 11 : i64} {
  func.func @_bilstm_kernel(%arg0: i32, %arg1: memref<8x16x16xf32, #tpu.memory_space<vmem>>, %arg2: memref<1x16x64xf32, #tpu.memory_space<vmem>>, %arg3: memref<1x16x64xf32, #tpu.memory_space<vmem>>, %arg4: memref<1x1x64xf32, #tpu.memory_space<vmem>>, %arg5: memref<1x8x16x16xf32, #tpu.memory_space<vmem>>, %arg6: memref<8x16x64xf32, #tpu.memory_space<vmem>>, %arg7: memref<16x16xf32, #tpu.memory_space<vmem>>, %arg8: memref<16x16xf32, #tpu.memory_space<vmem>>) attributes {dimension_semantics = [#tpu.dimension_semantics<parallel>], iteration_bounds = array<i64: 2>, scalar_prefetch = 0 : i64, scratch_operands = 3 : i64, tpu.core_type = #tpu.core_type<tc>, window_params = [{pipeline_mode = #tpu.pipeline_mode<synchronous>, transform_indices = @transform_0, window_bounds = array<i64: 8, 16, 16>}, {transform_indices = @transform_1, window_bounds = array<i64: 1, 16, 64>}, {transform_indices = @transform_2, window_bounds = array<i64: 1, 16, 64>}, {transform_indices = @transform_3, window_bounds = array<i64: 1, 1, 64>}, {transform_indices = @transform_4, window_bounds = array<i64: 1, 8, 16, 16>}]} {
    %c0 = arith.constant 0 : index
    %c0_0 = arith.constant 0 : index
    %c0_1 = arith.constant 0 : index
    %0 = vector.load %arg1[%c0, %c0_0, %c0_1] : memref<8x16x16xf32, #tpu.memory_space<vmem>>, vector<8x16x16xf32>
    %1 = vector.shape_cast %0 : vector<8x16x16xf32> to vector<128x16xf32>
    %c0_2 = arith.constant 0 : index
    %c0_3 = arith.constant 0 : index
    %c0_4 = arith.constant 0 : index
    %2 = vector.load %arg2[%c0_2, %c0_3, %c0_4] : memref<1x16x64xf32, #tpu.memory_space<vmem>>, vector<1x16x64xf32>
    %3 = vector.shape_cast %2 : vector<1x16x64xf32> to vector<16x64xf32>
    %4 = arith.truncf %1 : vector<128x16xf32> to vector<128x16xbf16>
    %5 = arith.truncf %3 : vector<16x64xf32> to vector<16x64xbf16>
    %cst = arith.constant dense<0.000000e+00> : vector<128x64xf32>
    %6 = tpu.matmul %4, %5, %cst {dimension_numbers = #tpu.dot_dimension_numbers<[1], [0], [0], [1], [0, 0, 1, 1], [], []>} : vector<128x16xbf16>, vector<16x64xbf16>, vector<128x64xf32> -> vector<128x64xf32>
    %c0_5 = arith.constant 0 : index
    %c0_6 = arith.constant 0 : index
    %c0_7 = arith.constant 0 : index
    %7 = vector.load %arg4[%c0_5, %c0_6, %c0_7] : memref<1x1x64xf32, #tpu.memory_space<vmem>>, vector<1x1x64xf32>
    %8 = vector.shape_cast %7 : vector<1x1x64xf32> to vector<1x64xf32>
    %9 = vector.broadcast %8 : vector<1x64xf32> to vector<128x64xf32>
    %10 = arith.addf %6, %9 : vector<128x64xf32>
    %11 = vector.shape_cast %10 : vector<128x64xf32> to vector<8x16x64xf32>
    %c0_8 = arith.constant 0 : index
    %c0_9 = arith.constant 0 : index
    %c0_10 = arith.constant 0 : index
    %12 = vector.load %arg6[%c0_8, %c0_9, %c0_10] : memref<8x16x64xf32, #tpu.memory_space<vmem>>, vector<8x16x64xf32>
    tpu.vector_store %arg6[%c0_8, %c0_9, %c0_10], %11 {strides = array<i32>} : memref<8x16x64xf32, #tpu.memory_space<vmem>>, vector<8x16x64xf32>,
    %cst_11 = arith.constant 0.000000e+00 : f32
    %13 = vector.broadcast %cst_11 : f32 to vector<16x16xf32>
    %c0_12 = arith.constant 0 : index
    %c0_13 = arith.constant 0 : index
    %14 = vector.load %arg7[%c0_12, %c0_13] : memref<16x16xf32, #tpu.memory_space<vmem>>, vector<16x16xf32>
    tpu.vector_store %arg7[%c0_12, %c0_13], %13 {strides = array<i32>} : memref<16x16xf32, #tpu.memory_space<vmem>>, vector<16x16xf32>,
    %cst_14 = arith.constant 0.000000e+00 : f32
    %15 = vector.broadcast %cst_14 : f32 to vector<16x16xf32>
    %c0_15 = arith.constant 0 : index
    %c0_16 = arith.constant 0 : index
    %16 = vector.load %arg8[%c0_15, %c0_16] : memref<16x16xf32, #tpu.memory_space<vmem>>, vector<16x16xf32>
    tpu.vector_store %arg8[%c0_15, %c0_16], %15 {strides = array<i32>} : memref<16x16xf32, #tpu.memory_space<vmem>>, vector<16x16xf32>,
    %c0_17 = arith.constant 0 : index
    %c0_18 = arith.constant 0 : index
    %c0_19 = arith.constant 0 : index
    %17 = vector.load %arg3[%c0_17, %c0_18, %c0_19] : memref<1x16x64xf32, #tpu.memory_space<vmem>>, vector<1x16x64xf32>
    %18 = vector.shape_cast %17 : vector<1x16x64xf32> to vector<16x64xf32>
    %19 = arith.truncf %18 : vector<16x64xf32> to vector<16x64xbf16>
    %c0_i32 = arith.constant 0 : i32
    %c8_i32 = arith.constant 8 : i32
    %20 = arith.addi %c0_i32, %c8_i32 : i32
    %c1_i32 = arith.constant 1 : i32
    scf.for %arg9 = %c0_i32 to %20 step %c1_i32  : i32 {
      %c0_i32_21 = arith.constant 0 : i32
      %21 = arith.cmpi eq, %arg0, %c0_i32_21 : i32
      %c7_i32 = arith.constant 7 : i32
      %22 = arith.subi %c7_i32, %arg9 : i32
      %23 = arith.select %21, %arg9, %22 : i32
      %24 = arith.index_cast %23 : i32 to index
      %c0_22 = arith.constant 0 : index
      %c0_23 = arith.constant 0 : index
      %25 = vector.load %arg6[%24, %c0_22, %c0_23] : memref<8x16x64xf32, #tpu.memory_space<vmem>>, vector<1x16x64xf32>
      %26 = vector.shape_cast %25 : vector<1x16x64xf32> to vector<16x64xf32>
      %c0_24 = arith.constant 0 : index
      %c0_25 = arith.constant 0 : index
      %27 = vector.load %arg7[%c0_24, %c0_25] : memref<16x16xf32, #tpu.memory_space<vmem>>, vector<16x16xf32>
      %28 = arith.truncf %27 : vector<16x16xf32> to vector<16x16xbf16>
      %cst_26 = arith.constant dense<0.000000e+00> : vector<16x64xf32>
      %29 = tpu.matmul %28, %19, %cst_26 {dimension_numbers = #tpu.dot_dimension_numbers<[1], [0], [0], [1], [0, 0, 1, 1], [], []>} : vector<16x16xbf16>, vector<16x64xbf16>, vector<16x64xf32> -> vector<16x64xf32>
      %30 = arith.addf %26, %29 : vector<16x64xf32>
      %31 = vector.extract_strided_slice %30 {offsets = [0, 0], sizes = [16, 16], strides = [1, 1]} : vector<16x64xf32> to vector<16x16xf32>
      %32 = arith.negf %31 : vector<16x16xf32>
      %33 = math.exp %32 : vector<16x16xf32>
      %cst_27 = arith.constant 1.000000e+00 : f32
      %34 = vector.broadcast %cst_27 : f32 to vector<16x16xf32>
      %35 = arith.addf %34, %33 : vector<16x16xf32>
      %36 = arith.divf %34, %35 : vector<16x16xf32>
      %37 = vector.extract_strided_slice %30 {offsets = [0, 16], sizes = [16, 16], strides = [1, 1]} : vector<16x64xf32> to vector<16x16xf32>
      %38 = arith.negf %37 : vector<16x16xf32>
      %39 = math.exp %38 : vector<16x16xf32>
      %cst_28 = arith.constant 1.000000e+00 : f32
      %40 = vector.broadcast %cst_28 : f32 to vector<16x16xf32>
      %41 = arith.addf %40, %39 : vector<16x16xf32>
      %42 = arith.divf %40, %41 : vector<16x16xf32>
      %43 = vector.extract_strided_slice %30 {offsets = [0, 32], sizes = [16, 16], strides = [1, 1]} : vector<16x64xf32> to vector<16x16xf32>
      %44 = math.tanh %43 : vector<16x16xf32>
      %45 = vector.extract_strided_slice %30 {offsets = [0, 48], sizes = [16, 16], strides = [1, 1]} : vector<16x64xf32> to vector<16x16xf32>
      %46 = arith.negf %45 : vector<16x16xf32>
      %47 = math.exp %46 : vector<16x16xf32>
      %cst_29 = arith.constant 1.000000e+00 : f32
      %48 = vector.broadcast %cst_29 : f32 to vector<16x16xf32>
      %49 = arith.addf %48, %47 : vector<16x16xf32>
      %50 = arith.divf %48, %49 : vector<16x16xf32>
      %c0_30 = arith.constant 0 : index
      %c0_31 = arith.constant 0 : index
      %51 = vector.load %arg8[%c0_30, %c0_31] : memref<16x16xf32, #tpu.memory_space<vmem>>, vector<16x16xf32>
      %52 = arith.mulf %42, %51 : vector<16x16xf32>
      %53 = arith.mulf %36, %44 : vector<16x16xf32>
      %54 = arith.addf %52, %53 : vector<16x16xf32>
      %55 = math.tanh %54 : vector<16x16xf32>
      %56 = arith.mulf %50, %55 : vector<16x16xf32>
      %c0_32 = arith.constant 0 : index
      %c0_33 = arith.constant 0 : index
      %57 = vector.load %arg7[%c0_32, %c0_33] : memref<16x16xf32, #tpu.memory_space<vmem>>, vector<16x16xf32>
      tpu.vector_store %arg7[%c0_32, %c0_33], %56 {strides = array<i32>} : memref<16x16xf32, #tpu.memory_space<vmem>>, vector<16x16xf32>,
      %c0_34 = arith.constant 0 : index
      %c0_35 = arith.constant 0 : index
      %58 = vector.load %arg8[%c0_34, %c0_35] : memref<16x16xf32, #tpu.memory_space<vmem>>, vector<16x16xf32>
      tpu.vector_store %arg8[%c0_34, %c0_35], %54 {strides = array<i32>} : memref<16x16xf32, #tpu.memory_space<vmem>>, vector<16x16xf32>,
      %c0_36 = arith.constant 0 : index
      %59 = arith.index_cast %23 : i32 to index
      %c0_37 = arith.constant 0 : index
      %c0_38 = arith.constant 0 : index
      %60 = vector.load %arg5[%c0_36, %59, %c0_37, %c0_38] : memref<1x8x16x16xf32, #tpu.memory_space<vmem>>, vector<1x1x16x16xf32>
      %61 = vector.shape_cast %60 : vector<1x1x16x16xf32> to vector<16x16xf32>
      %62 = vector.shape_cast %56 : vector<16x16xf32> to vector<1x1x16x16xf32>
      tpu.vector_store %arg5[%c0_36, %59, %c0_37, %c0_38], %62 {strides = array<i32>} : memref<1x8x16x16xf32, #tpu.memory_space<vmem>>, vector<1x1x16x16xf32>,
    }
    %c8_i32_20 = arith.constant 8 : i32
    return
  }
  func.func @transform_0(%arg0: i32) -> (i32, i32, i32) {
    %c0_i32 = arith.constant 0 : i32
    %c0_i32_0 = arith.constant 0 : i32
    %c0_i32_1 = arith.constant 0 : i32
    %c0_i32_2 = arith.constant 0 : i32
    return %c0_i32, %c0_i32_0, %c0_i32_1 : i32, i32, i32
  }
  func.func @transform_1(%arg0: i32) -> (i32, i32, i32) {
    %c0_i32 = arith.constant 0 : i32
    %c0_i32_0 = arith.constant 0 : i32
    %c0_i32_1 = arith.constant 0 : i32
    return %arg0, %c0_i32, %c0_i32_0 : i32, i32, i32
  }
  func.func @transform_2(%arg0: i32) -> (i32, i32, i32) {
    %c0_i32 = arith.constant 0 : i32
    %c0_i32_0 = arith.constant 0 : i32
    %c0_i32_1 = arith.constant 0 : i32
    return %arg0, %c0_i32, %c0_i32_0 : i32, i32, i32
  }
  func.func @transform_3(%arg0: i32) -> (i32, i32, i32) {
    %c0_i32 = arith.constant 0 : i32
    %c0_i32_0 = arith.constant 0 : i32
    %c0_i32_1 = arith.constant 0 : i32
    return %arg0, %c0_i32, %c0_i32_0 : i32, i32, i32
  }
  func.func @transform_4(%arg0: i32) -> (i32, i32, i32, i32) {
    %c0_i32 = arith.constant 0 : i32
    %c0_i32_0 = arith.constant 0 : i32
    %c0_i32_1 = arith.constant 0 : i32
    %c0_i32_2 = arith.constant 0 : i32
    return %arg0, %c0_i32, %c0_i32_0, %c0_i32_1 : i32, i32, i32, i32
  }
}

module attributes {stable_mosaic.version = 11 : i64} {
  func.func @_lin_res_ln_kernel(%arg0: i32, %arg1: memref<128x32xf32, #tpu.memory_space<vmem>>, %arg2: memref<32x16xf32, #tpu.memory_space<vmem>>, %arg3: memref<1x16xf32, #tpu.memory_space<vmem>>, %arg4: memref<128x16xf32, #tpu.memory_space<vmem>>, %arg5: memref<1x16xf32, #tpu.memory_space<vmem>>, %arg6: memref<1x16xf32, #tpu.memory_space<vmem>>, %arg7: memref<128x16xf32, #tpu.memory_space<vmem>>) attributes {dimension_semantics = [#tpu.dimension_semantics<parallel>], iteration_bounds = array<i64: 1>, scalar_prefetch = 0 : i64, scratch_operands = 0 : i64, tpu.core_type = #tpu.core_type<tc>, window_params = [{transform_indices = @transform_0, window_bounds = array<i64: 128, 32>}, {pipeline_mode = #tpu.pipeline_mode<synchronous>, transform_indices = @transform_1, window_bounds = array<i64: 32, 16>}, {pipeline_mode = #tpu.pipeline_mode<synchronous>, transform_indices = @transform_2, window_bounds = array<i64: 1, 16>}, {transform_indices = @transform_3, window_bounds = array<i64: 128, 16>}, {pipeline_mode = #tpu.pipeline_mode<synchronous>, transform_indices = @transform_4, window_bounds = array<i64: 1, 16>}, {pipeline_mode = #tpu.pipeline_mode<synchronous>, transform_indices = @transform_5, window_bounds = array<i64: 1, 16>}, {transform_indices = @transform_6, window_bounds = array<i64: 128, 16>}]} {
    %c0 = arith.constant 0 : index
    %c0_0 = arith.constant 0 : index
    %0 = vector.load %arg1[%c0, %c0_0] : memref<128x32xf32, #tpu.memory_space<vmem>>, vector<128x32xf32>
    %c0_1 = arith.constant 0 : index
    %c0_2 = arith.constant 0 : index
    %1 = vector.load %arg2[%c0_1, %c0_2] : memref<32x16xf32, #tpu.memory_space<vmem>>, vector<32x16xf32>
    %2 = arith.truncf %0 : vector<128x32xf32> to vector<128x32xbf16>
    %3 = arith.truncf %1 : vector<32x16xf32> to vector<32x16xbf16>
    %cst = arith.constant dense<0.000000e+00> : vector<128x16xf32>
    %4 = tpu.matmul %2, %3, %cst {dimension_numbers = #tpu.dot_dimension_numbers<[1], [0], [0], [1], [0, 0, 1, 1], [], []>} : vector<128x32xbf16>, vector<32x16xbf16>, vector<128x16xf32> -> vector<128x16xf32>
    %c0_3 = arith.constant 0 : index
    %c0_4 = arith.constant 0 : index
    %5 = vector.load %arg3[%c0_3, %c0_4] : memref<1x16xf32, #tpu.memory_space<vmem>>, vector<1x16xf32>
    %6 = vector.broadcast %5 : vector<1x16xf32> to vector<128x16xf32>
    %7 = arith.addf %4, %6 : vector<128x16xf32>
    %c0_5 = arith.constant 0 : index
    %c0_6 = arith.constant 0 : index
    %8 = vector.load %arg4[%c0_5, %c0_6] : memref<128x16xf32, #tpu.memory_space<vmem>>, vector<128x16xf32>
    %9 = arith.addf %7, %8 : vector<128x16xf32>
    %cst_7 = arith.constant dense<0.000000e+00> : vector<128xf32>
    %10 = vector.multi_reduction <add>, %9, %cst_7 [1] : vector<128x16xf32> to vector<128xf32>
    %11 = vector.shape_cast %10 : vector<128xf32> to vector<128x1xf32>
    %cst_8 = arith.constant 1.600000e+01 : f32
    %12 = vector.broadcast %cst_8 : f32 to vector<128x1xf32>
    %13 = arith.divf %11, %12 : vector<128x1xf32>
    %14 = vector.broadcast %13 : vector<128x1xf32> to vector<128x16xf32>
    %15 = arith.subf %9, %14 : vector<128x16xf32>
    %16 = arith.mulf %15, %15 : vector<128x16xf32>
    %cst_9 = arith.constant dense<0.000000e+00> : vector<128xf32>
    %17 = vector.multi_reduction <add>, %16, %cst_9 [1] : vector<128x16xf32> to vector<128xf32>
    %18 = vector.shape_cast %17 : vector<128xf32> to vector<128x1xf32>
    %cst_10 = arith.constant 1.600000e+01 : f32
    %19 = vector.broadcast %cst_10 : f32 to vector<128x1xf32>
    %20 = arith.divf %18, %19 : vector<128x1xf32>
    %21 = vector.broadcast %13 : vector<128x1xf32> to vector<128x16xf32>
    %22 = arith.subf %9, %21 : vector<128x16xf32>
    %cst_11 = arith.constant 9.99999974E-6 : f32
    %23 = vector.broadcast %cst_11 : f32 to vector<128x1xf32>
    %24 = arith.addf %20, %23 : vector<128x1xf32>
    %25 = math.rsqrt %24 : vector<128x1xf32>
    %26 = vector.broadcast %25 : vector<128x1xf32> to vector<128x16xf32>
    %27 = arith.mulf %22, %26 : vector<128x16xf32>
    %c0_12 = arith.constant 0 : index
    %c0_13 = arith.constant 0 : index
    %28 = vector.load %arg5[%c0_12, %c0_13] : memref<1x16xf32, #tpu.memory_space<vmem>>, vector<1x16xf32>
    %29 = vector.broadcast %28 : vector<1x16xf32> to vector<128x16xf32>
    %30 = arith.mulf %27, %29 : vector<128x16xf32>
    %c0_14 = arith.constant 0 : index
    %c0_15 = arith.constant 0 : index
    %31 = vector.load %arg6[%c0_14, %c0_15] : memref<1x16xf32, #tpu.memory_space<vmem>>, vector<1x16xf32>
    %32 = vector.broadcast %31 : vector<1x16xf32> to vector<128x16xf32>
    %33 = arith.addf %30, %32 : vector<128x16xf32>
    %c0_16 = arith.constant 0 : index
    %c0_17 = arith.constant 0 : index
    %34 = vector.load %arg7[%c0_16, %c0_17] : memref<128x16xf32, #tpu.memory_space<vmem>>, vector<128x16xf32>
    tpu.vector_store %arg7[%c0_16, %c0_17], %33 {strides = array<i32>} : memref<128x16xf32, #tpu.memory_space<vmem>>, vector<128x16xf32>,
    return
  }
  func.func @transform_0(%arg0: i32) -> (i32, i32) {
    %c0_i32 = arith.constant 0 : i32
    %c0_i32_0 = arith.constant 0 : i32
    return %arg0, %c0_i32 : i32, i32
  }
  func.func @transform_1(%arg0: i32) -> (i32, i32) {
    %c0_i32 = arith.constant 0 : i32
    %c0_i32_0 = arith.constant 0 : i32
    %c0_i32_1 = arith.constant 0 : i32
    return %c0_i32, %c0_i32_0 : i32, i32
  }
  func.func @transform_2(%arg0: i32) -> (i32, i32) {
    %c0_i32 = arith.constant 0 : i32
    %c0_i32_0 = arith.constant 0 : i32
    %c0_i32_1 = arith.constant 0 : i32
    return %c0_i32, %c0_i32_0 : i32, i32
  }
  func.func @transform_3(%arg0: i32) -> (i32, i32) {
    %c0_i32 = arith.constant 0 : i32
    %c0_i32_0 = arith.constant 0 : i32
    return %arg0, %c0_i32 : i32, i32
  }
  func.func @transform_4(%arg0: i32) -> (i32, i32) {
    %c0_i32 = arith.constant 0 : i32
    %c0_i32_0 = arith.constant 0 : i32
    %c0_i32_1 = arith.constant 0 : i32
    return %c0_i32, %c0_i32_0 : i32, i32
  }
  func.func @transform_5(%arg0: i32) -> (i32, i32) {
    %c0_i32 = arith.constant 0 : i32
    %c0_i32_0 = arith.constant 0 : i32
    %c0_i32_1 = arith.constant 0 : i32
    return %c0_i32, %c0_i32_0 : i32, i32
  }
  func.func @transform_6(%arg0: i32) -> (i32, i32) {
    %c0_i32 = arith.constant 0 : i32
    %c0_i32_0 = arith.constant 0 : i32
    return %arg0, %c0_i32 : i32, i32
  }
}

module attributes {stable_mosaic.version = 11 : i64} {
  func.func @_ln_add_kernel(%arg0: i32, %arg1: memref<128x16xf32, #tpu.memory_space<vmem>>, %arg2: memref<128x16xf32, #tpu.memory_space<vmem>>, %arg3: memref<1x16xf32, #tpu.memory_space<vmem>>, %arg4: memref<1x16xf32, #tpu.memory_space<vmem>>, %arg5: memref<128x16xf32, #tpu.memory_space<vmem>>) attributes {dimension_semantics = [#tpu.dimension_semantics<parallel>], iteration_bounds = array<i64: 1>, scalar_prefetch = 0 : i64, scratch_operands = 0 : i64, tpu.core_type = #tpu.core_type<tc>, window_params = [{transform_indices = @transform_0, window_bounds = array<i64: 128, 16>}, {transform_indices = @transform_1, window_bounds = array<i64: 128, 16>}, {pipeline_mode = #tpu.pipeline_mode<synchronous>, transform_indices = @transform_2, window_bounds = array<i64: 1, 16>}, {pipeline_mode = #tpu.pipeline_mode<synchronous>, transform_indices = @transform_3, window_bounds = array<i64: 1, 16>}, {transform_indices = @transform_4, window_bounds = array<i64: 128, 16>}]} {
    %c0 = arith.constant 0 : index
    %c0_0 = arith.constant 0 : index
    %0 = vector.load %arg1[%c0, %c0_0] : memref<128x16xf32, #tpu.memory_space<vmem>>, vector<128x16xf32>
    %cst = arith.constant dense<0.000000e+00> : vector<128xf32>
    %1 = vector.multi_reduction <add>, %0, %cst [1] : vector<128x16xf32> to vector<128xf32>
    %2 = vector.shape_cast %1 : vector<128xf32> to vector<128x1xf32>
    %cst_1 = arith.constant 1.600000e+01 : f32
    %3 = vector.broadcast %cst_1 : f32 to vector<128x1xf32>
    %4 = arith.divf %2, %3 : vector<128x1xf32>
    %5 = vector.broadcast %4 : vector<128x1xf32> to vector<128x16xf32>
    %6 = arith.subf %0, %5 : vector<128x16xf32>
    %7 = arith.mulf %6, %6 : vector<128x16xf32>
    %cst_2 = arith.constant dense<0.000000e+00> : vector<128xf32>
    %8 = vector.multi_reduction <add>, %7, %cst_2 [1] : vector<128x16xf32> to vector<128xf32>
    %9 = vector.shape_cast %8 : vector<128xf32> to vector<128x1xf32>
    %cst_3 = arith.constant 1.600000e+01 : f32
    %10 = vector.broadcast %cst_3 : f32 to vector<128x1xf32>
    %11 = arith.divf %9, %10 : vector<128x1xf32>
    %12 = vector.broadcast %4 : vector<128x1xf32> to vector<128x16xf32>
    %13 = arith.subf %0, %12 : vector<128x16xf32>
    %cst_4 = arith.constant 9.99999974E-6 : f32
    %14 = vector.broadcast %cst_4 : f32 to vector<128x1xf32>
    %15 = arith.addf %11, %14 : vector<128x1xf32>
    %16 = math.rsqrt %15 : vector<128x1xf32>
    %17 = vector.broadcast %16 : vector<128x1xf32> to vector<128x16xf32>
    %18 = arith.mulf %13, %17 : vector<128x16xf32>
    %c0_5 = arith.constant 0 : index
    %c0_6 = arith.constant 0 : index
    %19 = vector.load %arg3[%c0_5, %c0_6] : memref<1x16xf32, #tpu.memory_space<vmem>>, vector<1x16xf32>
    %20 = vector.broadcast %19 : vector<1x16xf32> to vector<128x16xf32>
    %21 = arith.mulf %18, %20 : vector<128x16xf32>
    %c0_7 = arith.constant 0 : index
    %c0_8 = arith.constant 0 : index
    %22 = vector.load %arg4[%c0_7, %c0_8] : memref<1x16xf32, #tpu.memory_space<vmem>>, vector<1x16xf32>
    %23 = vector.broadcast %22 : vector<1x16xf32> to vector<128x16xf32>
    %24 = arith.addf %21, %23 : vector<128x16xf32>
    %c0_9 = arith.constant 0 : index
    %c0_10 = arith.constant 0 : index
    %25 = vector.load %arg2[%c0_9, %c0_10] : memref<128x16xf32, #tpu.memory_space<vmem>>, vector<128x16xf32>
    %26 = arith.addf %24, %25 : vector<128x16xf32>
    %c0_11 = arith.constant 0 : index
    %c0_12 = arith.constant 0 : index
    %27 = vector.load %arg5[%c0_11, %c0_12] : memref<128x16xf32, #tpu.memory_space<vmem>>, vector<128x16xf32>
    tpu.vector_store %arg5[%c0_11, %c0_12], %26 {strides = array<i32>} : memref<128x16xf32, #tpu.memory_space<vmem>>, vector<128x16xf32>,
    return
  }
  func.func @transform_0(%arg0: i32) -> (i32, i32) {
    %c0_i32 = arith.constant 0 : i32
    %c0_i32_0 = arith.constant 0 : i32
    return %arg0, %c0_i32 : i32, i32
  }
  func.func @transform_1(%arg0: i32) -> (i32, i32) {
    %c0_i32 = arith.constant 0 : i32
    %c0_i32_0 = arith.constant 0 : i32
    return %arg0, %c0_i32 : i32, i32
  }
  func.func @transform_2(%arg0: i32) -> (i32, i32) {
    %c0_i32 = arith.constant 0 : i32
    %c0_i32_0 = arith.constant 0 : i32
    %c0_i32_1 = arith.constant 0 : i32
    return %c0_i32, %c0_i32_0 : i32, i32
  }
  func.func @transform_3(%arg0: i32) -> (i32, i32) {
    %c0_i32 = arith.constant 0 : i32
    %c0_i32_0 = arith.constant 0 : i32
    %c0_i32_1 = arith.constant 0 : i32
    return %c0_i32, %c0_i32_0 : i32, i32
  }
  func.func @transform_4(%arg0: i32) -> (i32, i32) {
    %c0_i32 = arith.constant 0 : i32
    %c0_i32_0 = arith.constant 0 : i32
    return %arg0, %c0_i32 : i32, i32
  }
}

module attributes {stable_mosaic.version = 11 : i64} {
  func.func @_dw_down_kernel(%arg0: i32, %arg1: memref<128x1x16xf32, #tpu.memory_space<vmem>>, %arg2: memref<1x16xf32, #tpu.memory_space<vmem>>, %arg3: memref<1x16xf32, #tpu.memory_space<vmem>>, %arg4: memref<128x16xf32, #tpu.memory_space<vmem>>) attributes {dimension_semantics = [#tpu.dimension_semantics<parallel>], iteration_bounds = array<i64: 1>, scalar_prefetch = 0 : i64, scratch_operands = 0 : i64, tpu.core_type = #tpu.core_type<tc>, window_params = [{transform_indices = @transform_0, window_bounds = array<i64: 128, 1, 16>}, {pipeline_mode = #tpu.pipeline_mode<synchronous>, transform_indices = @transform_1, window_bounds = array<i64: 1, 16>}, {pipeline_mode = #tpu.pipeline_mode<synchronous>, transform_indices = @transform_2, window_bounds = array<i64: 1, 16>}, {transform_indices = @transform_3, window_bounds = array<i64: 128, 16>}]} {
    %c0 = arith.constant 0 : index
    %c0_0 = arith.constant 0 : index
    %c0_1 = arith.constant 0 : index
    %0 = vector.load %arg1[%c0, %c0_0, %c0_1] : memref<128x1x16xf32, #tpu.memory_space<vmem>>, vector<128x1x16xf32>
    %c0_2 = arith.constant 0 : index
    %c0_3 = arith.constant 0 : index
    %1 = vector.load %arg2[%c0_2, %c0_3] : memref<1x16xf32, #tpu.memory_space<vmem>>, vector<1x16xf32>
    %2 = vector.shape_cast %0 : vector<128x1x16xf32> to vector<128x16xf32>
    %3 = vector.broadcast %1 : vector<1x16xf32> to vector<128x16xf32>
    %4 = arith.mulf %2, %3 : vector<128x16xf32>
    %c0_4 = arith.constant 0 : index
    %c0_5 = arith.constant 0 : index
    %5 = vector.load %arg3[%c0_4, %c0_5] : memref<1x16xf32, #tpu.memory_space<vmem>>, vector<1x16xf32>
    %6 = vector.broadcast %5 : vector<1x16xf32> to vector<128x16xf32>
    %7 = arith.addf %4, %6 : vector<128x16xf32>
    %c0_6 = arith.constant 0 : index
    %c0_7 = arith.constant 0 : index
    %8 = vector.load %arg4[%c0_6, %c0_7] : memref<128x16xf32, #tpu.memory_space<vmem>>, vector<128x16xf32>
    tpu.vector_store %arg4[%c0_6, %c0_7], %7 {strides = array<i32>} : memref<128x16xf32, #tpu.memory_space<vmem>>, vector<128x16xf32>,
    return
  }
  func.func @transform_0(%arg0: i32) -> (i32, i32, i32) {
    %c0_i32 = arith.constant 0 : i32
    %c0_i32_0 = arith.constant 0 : i32
    %c0_i32_1 = arith.constant 0 : i32
    return %arg0, %c0_i32, %c0_i32_0 : i32, i32, i32
  }
  func.func @transform_1(%arg0: i32) -> (i32, i32) {
    %c0_i32 = arith.constant 0 : i32
    %c0_i32_0 = arith.constant 0 : i32
    %c0_i32_1 = arith.constant 0 : i32
    return %c0_i32, %c0_i32_0 : i32, i32
  }
  func.func @transform_2(%arg0: i32) -> (i32, i32) {
    %c0_i32 = arith.constant 0 : i32
    %c0_i32_0 = arith.constant 0 : i32
    %c0_i32_1 = arith.constant 0 : i32
    return %c0_i32, %c0_i32_0 : i32, i32
  }
  func.func @transform_3(%arg0: i32) -> (i32, i32) {
    %c0_i32 = arith.constant 0 : i32
    %c0_i32_0 = arith.constant 0 : i32
    return %arg0, %c0_i32 : i32, i32
  }
}

module attributes {stable_mosaic.version = 11 : i64} {
  func.func @_linear_kernel(%arg0: i32, %arg1: memref<40x8xf32, #tpu.memory_space<vmem>>, %arg2: memref<8x16xf32, #tpu.memory_space<vmem>>, %arg3: memref<1x16xf32, #tpu.memory_space<vmem>>, %arg4: memref<40x16xf32, #tpu.memory_space<vmem>>) attributes {dimension_semantics = [#tpu.dimension_semantics<parallel>], iteration_bounds = array<i64: 1>, scalar_prefetch = 0 : i64, scratch_operands = 0 : i64, tpu.core_type = #tpu.core_type<tc>, window_params = [{transform_indices = @transform_0, window_bounds = array<i64: 40, 8>}, {pipeline_mode = #tpu.pipeline_mode<synchronous>, transform_indices = @transform_1, window_bounds = array<i64: 8, 16>}, {pipeline_mode = #tpu.pipeline_mode<synchronous>, transform_indices = @transform_2, window_bounds = array<i64: 1, 16>}, {transform_indices = @transform_3, window_bounds = array<i64: 40, 16>}]} {
    %c0 = arith.constant 0 : index
    %c0_0 = arith.constant 0 : index
    %0 = vector.load %arg1[%c0, %c0_0] : memref<40x8xf32, #tpu.memory_space<vmem>>, vector<40x8xf32>
    %c0_1 = arith.constant 0 : index
    %c0_2 = arith.constant 0 : index
    %1 = vector.load %arg2[%c0_1, %c0_2] : memref<8x16xf32, #tpu.memory_space<vmem>>, vector<8x16xf32>
    %2 = arith.truncf %0 : vector<40x8xf32> to vector<40x8xbf16>
    %3 = arith.truncf %1 : vector<8x16xf32> to vector<8x16xbf16>
    %cst = arith.constant dense<0.000000e+00> : vector<40x16xf32>
    %4 = tpu.matmul %2, %3, %cst {dimension_numbers = #tpu.dot_dimension_numbers<[1], [0], [0], [1], [0, 0, 1, 1], [], []>} : vector<40x8xbf16>, vector<8x16xbf16>, vector<40x16xf32> -> vector<40x16xf32>
    %c0_3 = arith.constant 0 : index
    %c0_4 = arith.constant 0 : index
    %5 = vector.load %arg3[%c0_3, %c0_4] : memref<1x16xf32, #tpu.memory_space<vmem>>, vector<1x16xf32>
    %6 = vector.broadcast %5 : vector<1x16xf32> to vector<40x16xf32>
    %7 = arith.addf %4, %6 : vector<40x16xf32>
    %cst_5 = arith.constant 0.000000e+00 : f32
    %8 = vector.broadcast %cst_5 : f32 to vector<40x16xf32>
    %9 = arith.maximumf %7, %8 : vector<40x16xf32>
    %c0_6 = arith.constant 0 : index
    %c0_7 = arith.constant 0 : index
    %10 = vector.load %arg4[%c0_6, %c0_7] : memref<40x16xf32, #tpu.memory_space<vmem>>, vector<40x16xf32>
    tpu.vector_store %arg4[%c0_6, %c0_7], %9 {strides = array<i32>} : memref<40x16xf32, #tpu.memory_space<vmem>>, vector<40x16xf32>,
    return
  }
  func.func @transform_0(%arg0: i32) -> (i32, i32) {
    %c0_i32 = arith.constant 0 : i32
    %c0_i32_0 = arith.constant 0 : i32
    return %arg0, %c0_i32 : i32, i32
  }
  func.func @transform_1(%arg0: i32) -> (i32, i32) {
    %c0_i32 = arith.constant 0 : i32
    %c0_i32_0 = arith.constant 0 : i32
    %c0_i32_1 = arith.constant 0 : i32
    return %c0_i32, %c0_i32_0 : i32, i32
  }
  func.func @transform_2(%arg0: i32) -> (i32, i32) {
    %c0_i32 = arith.constant 0 : i32
    %c0_i32_0 = arith.constant 0 : i32
    %c0_i32_1 = arith.constant 0 : i32
    return %c0_i32, %c0_i32_0 : i32, i32
  }
  func.func @transform_3(%arg0: i32) -> (i32, i32) {
    %c0_i32 = arith.constant 0 : i32
    %c0_i32_0 = arith.constant 0 : i32
    return %arg0, %c0_i32 : i32, i32
  }
}

module attributes {stable_mosaic.version = 11 : i64} {
  func.func @_cma_kernel(%arg0: i32, %arg1: i32, %arg2: memref<1x1x8x16xf32, #tpu.memory_space<vmem>>, %arg3: memref<1x1x8x16xf32, #tpu.memory_space<vmem>>, %arg4: memref<2x16x48xf32, #tpu.memory_space<vmem>>, %arg5: memref<2x1x48xf32, #tpu.memory_space<vmem>>, %arg6: memref<2x16x16xf32, #tpu.memory_space<vmem>>, %arg7: memref<2x1x16xf32, #tpu.memory_space<vmem>>, %arg8: memref<2x1x16xf32, #tpu.memory_space<vmem>>, %arg9: memref<2x1x16xf32, #tpu.memory_space<vmem>>, %arg10: memref<1x1x8x16xf32, #tpu.memory_space<vmem>>, %arg11: memref<1x1x8x16xf32, #tpu.memory_space<vmem>>) attributes {dimension_semantics = [#tpu.dimension_semantics<parallel>, #tpu.dimension_semantics<parallel>], iteration_bounds = array<i64: 2, 8>, scalar_prefetch = 0 : i64, scratch_operands = 0 : i64, tpu.core_type = #tpu.core_type<tc>, window_params = [{transform_indices = @transform_0, window_bounds = array<i64: 1, 1, 8, 16>}, {transform_indices = @transform_1, window_bounds = array<i64: 1, 1, 8, 16>}, {pipeline_mode = #tpu.pipeline_mode<synchronous>, transform_indices = @transform_2, window_bounds = array<i64: 2, 16, 48>}, {pipeline_mode = #tpu.pipeline_mode<synchronous>, transform_indices = @transform_3, window_bounds = array<i64: 2, 1, 48>}, {pipeline_mode = #tpu.pipeline_mode<synchronous>, transform_indices = @transform_4, window_bounds = array<i64: 2, 16, 16>}, {pipeline_mode = #tpu.pipeline_mode<synchronous>, transform_indices = @transform_5, window_bounds = array<i64: 2, 1, 16>}, {pipeline_mode = #tpu.pipeline_mode<synchronous>, transform_indices = @transform_6, window_bounds = array<i64: 2, 1, 16>}, {pipeline_mode = #tpu.pipeline_mode<synchronous>, transform_indices = @transform_7, window_bounds = array<i64: 2, 1, 16>}, {transform_indices = @transform_8, window_bounds = array<i64: 1, 1, 8, 16>}, {transform_indices = @transform_9, window_bounds = array<i64: 1, 1, 8, 16>}]} {
    %c0 = arith.constant 0 : index
    %c0_0 = arith.constant 0 : index
    %c0_1 = arith.constant 0 : index
    %c0_2 = arith.constant 0 : index
    %0 = vector.load %arg2[%c0, %c0_0, %c0_1, %c0_2] : memref<1x1x8x16xf32, #tpu.memory_space<vmem>>, vector<1x1x8x16xf32>
    %1 = vector.shape_cast %0 : vector<1x1x8x16xf32> to vector<8x16xf32>
    %c0_3 = arith.constant 0 : index
    %c0_4 = arith.constant 0 : index
    %c0_5 = arith.constant 0 : index
    %c0_6 = arith.constant 0 : index
    %2 = vector.load %arg3[%c0_3, %c0_4, %c0_5, %c0_6] : memref<1x1x8x16xf32, #tpu.memory_space<vmem>>, vector<1x1x8x16xf32>
    %3 = vector.shape_cast %2 : vector<1x1x8x16xf32> to vector<8x16xf32>
    %c0_7 = arith.constant 0 : index
    %c0_8 = arith.constant 0 : index
    %c0_9 = arith.constant 0 : index
    %4 = vector.load %arg4[%c0_7, %c0_8, %c0_9] : memref<2x16x48xf32, #tpu.memory_space<vmem>>, vector<1x16x48xf32>
    %5 = vector.shape_cast %4 : vector<1x16x48xf32> to vector<16x48xf32>
    %6 = arith.truncf %1 : vector<8x16xf32> to vector<8x16xbf16>
    %7 = arith.truncf %5 : vector<16x48xf32> to vector<16x48xbf16>
    %cst = arith.constant dense<0.000000e+00> : vector<8x48xf32>
    %8 = tpu.matmul %6, %7, %cst {dimension_numbers = #tpu.dot_dimension_numbers<[1], [0], [0], [1], [0, 0, 1, 1], [], []>} : vector<8x16xbf16>, vector<16x48xbf16>, vector<8x48xf32> -> vector<8x48xf32>
    %c0_10 = arith.constant 0 : index
    %c0_11 = arith.constant 0 : index
    %c0_12 = arith.constant 0 : index
    %9 = vector.load %arg5[%c0_10, %c0_11, %c0_12] : memref<2x1x48xf32, #tpu.memory_space<vmem>>, vector<1x1x48xf32>
    %10 = vector.shape_cast %9 : vector<1x1x48xf32> to vector<1x48xf32>
    %11 = vector.broadcast %10 : vector<1x48xf32> to vector<8x48xf32>
    %12 = arith.addf %8, %11 : vector<8x48xf32>
    %c1 = arith.constant 1 : index
    %c0_13 = arith.constant 0 : index
    %c0_14 = arith.constant 0 : index
    %13 = vector.load %arg4[%c1, %c0_13, %c0_14] : memref<2x16x48xf32, #tpu.memory_space<vmem>>, vector<1x16x48xf32>
    %14 = vector.shape_cast %13 : vector<1x16x48xf32> to vector<16x48xf32>
    %15 = arith.truncf %3 : vector<8x16xf32> to vector<8x16xbf16>
    %16 = arith.truncf %14 : vector<16x48xf32> to vector<16x48xbf16>
    %cst_15 = arith.constant dense<0.000000e+00> : vector<8x48xf32>
    %17 = tpu.matmul %15, %16, %cst_15 {dimension_numbers = #tpu.dot_dimension_numbers<[1], [0], [0], [1], [0, 0, 1, 1], [], []>} : vector<8x16xbf16>, vector<16x48xbf16>, vector<8x48xf32> -> vector<8x48xf32>
    %c1_16 = arith.constant 1 : index
    %c0_17 = arith.constant 0 : index
    %c0_18 = arith.constant 0 : index
    %18 = vector.load %arg5[%c1_16, %c0_17, %c0_18] : memref<2x1x48xf32, #tpu.memory_space<vmem>>, vector<1x1x48xf32>
    %19 = vector.shape_cast %18 : vector<1x1x48xf32> to vector<1x48xf32>
    %20 = vector.broadcast %19 : vector<1x48xf32> to vector<8x48xf32>
    %21 = arith.addf %17, %20 : vector<8x48xf32>
    %22 = vector.extract_strided_slice %12 {offsets = [0, 0], sizes = [8, 16], strides = [1, 1]} : vector<8x48xf32> to vector<8x16xf32>
    %23 = vector.extract_strided_slice %21 {offsets = [0, 16], sizes = [8, 16], strides = [1, 1]} : vector<8x48xf32> to vector<8x16xf32>
    %24 = vector.extract_strided_slice %21 {offsets = [0, 32], sizes = [8, 16], strides = [1, 1]} : vector<8x48xf32> to vector<8x16xf32>
    %25 = vector.extract_strided_slice %22 {offsets = [0, 0], sizes = [8, 4], strides = [1, 1]} : vector<8x16xf32> to vector<8x4xf32>
    %26 = arith.truncf %25 : vector<8x4xf32> to vector<8x4xbf16>
    %27 = vector.extract_strided_slice %23 {offsets = [0, 0], sizes = [8, 4], strides = [1, 1]} : vector<8x16xf32> to vector<8x4xf32>
    %28 = arith.truncf %27 : vector<8x4xf32> to vector<8x4xbf16>
    %cst_19 = arith.constant dense<0.000000e+00> : vector<8x8xf32>
    %29 = tpu.matmul %26, %28, %cst_19 {dimension_numbers = #tpu.dot_dimension_numbers<[1], [1], [0], [0], [0, 0, 1, 0], [], []>} : vector<8x4xbf16>, vector<8x4xbf16>, vector<8x8xf32> -> vector<8x8xf32>
    %cst_20 = arith.constant 5.000000e-01 : f32
    %30 = vector.broadcast %cst_20 : f32 to vector<8x8xf32>
    %31 = arith.mulf %29, %30 : vector<8x8xf32>
    %cst_21 = arith.constant dense<0xFF800000> : vector<8xf32>
    %32 = vector.multi_reduction <maximumf>, %31, %cst_21 [1] : vector<8x8xf32> to vector<8xf32>
    %33 = vector.shape_cast %32 : vector<8xf32> to vector<8x1xf32>
    %34 = vector.broadcast %33 : vector<8x1xf32> to vector<8x8xf32>
    %35 = arith.subf %31, %34 : vector<8x8xf32>
    %36 = math.exp %35 : vector<8x8xf32>
    %cst_22 = arith.constant dense<0.000000e+00> : vector<8xf32>
    %37 = vector.multi_reduction <add>, %36, %cst_22 [1] : vector<8x8xf32> to vector<8xf32>
    %38 = vector.shape_cast %37 : vector<8xf32> to vector<8x1xf32>
    %39 = tpu.reciprocal %38 {approx = true} : vector<8x1xf32> -> vector<8x1xf32>
    %40 = vector.broadcast %39 : vector<8x1xf32> to vector<8x8xf32>
    %41 = arith.mulf %36, %40 : vector<8x8xf32>
    %42 = vector.extract_strided_slice %24 {offsets = [0, 0], sizes = [8, 4], strides = [1, 1]} : vector<8x16xf32> to vector<8x4xf32>
    %43 = arith.truncf %41 : vector<8x8xf32> to vector<8x8xbf16>
    %44 = arith.truncf %42 : vector<8x4xf32> to vector<8x4xbf16>
    %cst_23 = arith.constant dense<0.000000e+00> : vector<8x4xf32>
    %45 = tpu.matmul %43, %44, %cst_23 {dimension_numbers = #tpu.dot_dimension_numbers<[1], [0], [0], [1], [0, 0, 1, 1], [], []>} : vector<8x8xbf16>, vector<8x4xbf16>, vector<8x4xf32> -> vector<8x4xf32>
    %46 = vector.extract_strided_slice %22 {offsets = [0, 4], sizes = [8, 4], strides = [1, 1]} : vector<8x16xf32> to vector<8x4xf32>
    %47 = arith.truncf %46 : vector<8x4xf32> to vector<8x4xbf16>
    %48 = vector.extract_strided_slice %23 {offsets = [0, 4], sizes = [8, 4], strides = [1, 1]} : vector<8x16xf32> to vector<8x4xf32>
    %49 = arith.truncf %48 : vector<8x4xf32> to vector<8x4xbf16>
    %cst_24 = arith.constant dense<0.000000e+00> : vector<8x8xf32>
    %50 = tpu.matmul %47, %49, %cst_24 {dimension_numbers = #tpu.dot_dimension_numbers<[1], [1], [0], [0], [0, 0, 1, 0], [], []>} : vector<8x4xbf16>, vector<8x4xbf16>, vector<8x8xf32> -> vector<8x8xf32>
    %cst_25 = arith.constant 5.000000e-01 : f32
    %51 = vector.broadcast %cst_25 : f32 to vector<8x8xf32>
    %52 = arith.mulf %50, %51 : vector<8x8xf32>
    %cst_26 = arith.constant dense<0xFF800000> : vector<8xf32>
    %53 = vector.multi_reduction <maximumf>, %52, %cst_26 [1] : vector<8x8xf32> to vector<8xf32>
    %54 = vector.shape_cast %53 : vector<8xf32> to vector<8x1xf32>
    %55 = vector.broadcast %54 : vector<8x1xf32> to vector<8x8xf32>
    %56 = arith.subf %52, %55 : vector<8x8xf32>
    %57 = math.exp %56 : vector<8x8xf32>
    %cst_27 = arith.constant dense<0.000000e+00> : vector<8xf32>
    %58 = vector.multi_reduction <add>, %57, %cst_27 [1] : vector<8x8xf32> to vector<8xf32>
    %59 = vector.shape_cast %58 : vector<8xf32> to vector<8x1xf32>
    %60 = tpu.reciprocal %59 {approx = true} : vector<8x1xf32> -> vector<8x1xf32>
    %61 = vector.broadcast %60 : vector<8x1xf32> to vector<8x8xf32>
    %62 = arith.mulf %57, %61 : vector<8x8xf32>
    %63 = vector.extract_strided_slice %24 {offsets = [0, 4], sizes = [8, 4], strides = [1, 1]} : vector<8x16xf32> to vector<8x4xf32>
    %64 = arith.truncf %62 : vector<8x8xf32> to vector<8x8xbf16>
    %65 = arith.truncf %63 : vector<8x4xf32> to vector<8x4xbf16>
    %cst_28 = arith.constant dense<0.000000e+00> : vector<8x4xf32>
    %66 = tpu.matmul %64, %65, %cst_28 {dimension_numbers = #tpu.dot_dimension_numbers<[1], [0], [0], [1], [0, 0, 1, 1], [], []>} : vector<8x8xbf16>, vector<8x4xbf16>, vector<8x4xf32> -> vector<8x4xf32>
    %67 = vector.extract_strided_slice %22 {offsets = [0, 8], sizes = [8, 4], strides = [1, 1]} : vector<8x16xf32> to vector<8x4xf32>
    %68 = arith.truncf %67 : vector<8x4xf32> to vector<8x4xbf16>
    %69 = vector.extract_strided_slice %23 {offsets = [0, 8], sizes = [8, 4], strides = [1, 1]} : vector<8x16xf32> to vector<8x4xf32>
    %70 = arith.truncf %69 : vector<8x4xf32> to vector<8x4xbf16>
    %cst_29 = arith.constant dense<0.000000e+00> : vector<8x8xf32>
    %71 = tpu.matmul %68, %70, %cst_29 {dimension_numbers = #tpu.dot_dimension_numbers<[1], [1], [0], [0], [0, 0, 1, 0], [], []>} : vector<8x4xbf16>, vector<8x4xbf16>, vector<8x8xf32> -> vector<8x8xf32>
    %cst_30 = arith.constant 5.000000e-01 : f32
    %72 = vector.broadcast %cst_30 : f32 to vector<8x8xf32>
    %73 = arith.mulf %71, %72 : vector<8x8xf32>
    %cst_31 = arith.constant dense<0xFF800000> : vector<8xf32>
    %74 = vector.multi_reduction <maximumf>, %73, %cst_31 [1] : vector<8x8xf32> to vector<8xf32>
    %75 = vector.shape_cast %74 : vector<8xf32> to vector<8x1xf32>
    %76 = vector.broadcast %75 : vector<8x1xf32> to vector<8x8xf32>
    %77 = arith.subf %73, %76 : vector<8x8xf32>
    %78 = math.exp %77 : vector<8x8xf32>
    %cst_32 = arith.constant dense<0.000000e+00> : vector<8xf32>
    %79 = vector.multi_reduction <add>, %78, %cst_32 [1] : vector<8x8xf32> to vector<8xf32>
    %80 = vector.shape_cast %79 : vector<8xf32> to vector<8x1xf32>
    %81 = tpu.reciprocal %80 {approx = true} : vector<8x1xf32> -> vector<8x1xf32>
    %82 = vector.broadcast %81 : vector<8x1xf32> to vector<8x8xf32>
    %83 = arith.mulf %78, %82 : vector<8x8xf32>
    %84 = vector.extract_strided_slice %24 {offsets = [0, 8], sizes = [8, 4], strides = [1, 1]} : vector<8x16xf32> to vector<8x4xf32>
    %85 = arith.truncf %83 : vector<8x8xf32> to vector<8x8xbf16>
    %86 = arith.truncf %84 : vector<8x4xf32> to vector<8x4xbf16>
    %cst_33 = arith.constant dense<0.000000e+00> : vector<8x4xf32>
    %87 = tpu.matmul %85, %86, %cst_33 {dimension_numbers = #tpu.dot_dimension_numbers<[1], [0], [0], [1], [0, 0, 1, 1], [], []>} : vector<8x8xbf16>, vector<8x4xbf16>, vector<8x4xf32> -> vector<8x4xf32>
    %88 = vector.extract_strided_slice %22 {offsets = [0, 12], sizes = [8, 4], strides = [1, 1]} : vector<8x16xf32> to vector<8x4xf32>
    %89 = arith.truncf %88 : vector<8x4xf32> to vector<8x4xbf16>
    %90 = vector.extract_strided_slice %23 {offsets = [0, 12], sizes = [8, 4], strides = [1, 1]} : vector<8x16xf32> to vector<8x4xf32>
    %91 = arith.truncf %90 : vector<8x4xf32> to vector<8x4xbf16>
    %cst_34 = arith.constant dense<0.000000e+00> : vector<8x8xf32>
    %92 = tpu.matmul %89, %91, %cst_34 {dimension_numbers = #tpu.dot_dimension_numbers<[1], [1], [0], [0], [0, 0, 1, 0], [], []>} : vector<8x4xbf16>, vector<8x4xbf16>, vector<8x8xf32> -> vector<8x8xf32>
    %cst_35 = arith.constant 5.000000e-01 : f32
    %93 = vector.broadcast %cst_35 : f32 to vector<8x8xf32>
    %94 = arith.mulf %92, %93 : vector<8x8xf32>
    %cst_36 = arith.constant dense<0xFF800000> : vector<8xf32>
    %95 = vector.multi_reduction <maximumf>, %94, %cst_36 [1] : vector<8x8xf32> to vector<8xf32>
    %96 = vector.shape_cast %95 : vector<8xf32> to vector<8x1xf32>
    %97 = vector.broadcast %96 : vector<8x1xf32> to vector<8x8xf32>
    %98 = arith.subf %94, %97 : vector<8x8xf32>
    %99 = math.exp %98 : vector<8x8xf32>
    %cst_37 = arith.constant dense<0.000000e+00> : vector<8xf32>
    %100 = vector.multi_reduction <add>, %99, %cst_37 [1] : vector<8x8xf32> to vector<8xf32>
    %101 = vector.shape_cast %100 : vector<8xf32> to vector<8x1xf32>
    %102 = tpu.reciprocal %101 {approx = true} : vector<8x1xf32> -> vector<8x1xf32>
    %103 = vector.broadcast %102 : vector<8x1xf32> to vector<8x8xf32>
    %104 = arith.mulf %99, %103 : vector<8x8xf32>
    %105 = vector.extract_strided_slice %24 {offsets = [0, 12], sizes = [8, 4], strides = [1, 1]} : vector<8x16xf32> to vector<8x4xf32>
    %106 = arith.truncf %104 : vector<8x8xf32> to vector<8x8xbf16>
    %107 = arith.truncf %105 : vector<8x4xf32> to vector<8x4xbf16>
    %cst_38 = arith.constant dense<0.000000e+00> : vector<8x4xf32>
    %108 = tpu.matmul %106, %107, %cst_38 {dimension_numbers = #tpu.dot_dimension_numbers<[1], [0], [0], [1], [0, 0, 1, 1], [], []>} : vector<8x8xbf16>, vector<8x4xbf16>, vector<8x4xf32> -> vector<8x4xf32>
    %109 = tpu.concatenate %45, %66, %87, %108 in 1 : vector<8x4xf32>, vector<8x4xf32>, vector<8x4xf32>, vector<8x4xf32> -> vector<8x16xf32>
    %110 = vector.extract_strided_slice %21 {offsets = [0, 0], sizes = [8, 16], strides = [1, 1]} : vector<8x48xf32> to vector<8x16xf32>
    %111 = vector.extract_strided_slice %12 {offsets = [0, 16], sizes = [8, 16], strides = [1, 1]} : vector<8x48xf32> to vector<8x16xf32>
    %112 = vector.extract_strided_slice %12 {offsets = [0, 32], sizes = [8, 16], strides = [1, 1]} : vector<8x48xf32> to vector<8x16xf32>
    %113 = vector.extract_strided_slice %110 {offsets = [0, 0], sizes = [8, 4], strides = [1, 1]} : vector<8x16xf32> to vector<8x4xf32>
    %114 = arith.truncf %113 : vector<8x4xf32> to vector<8x4xbf16>
    %115 = vector.extract_strided_slice %111 {offsets = [0, 0], sizes = [8, 4], strides = [1, 1]} : vector<8x16xf32> to vector<8x4xf32>
    %116 = arith.truncf %115 : vector<8x4xf32> to vector<8x4xbf16>
    %cst_39 = arith.constant dense<0.000000e+00> : vector<8x8xf32>
    %117 = tpu.matmul %114, %116, %cst_39 {dimension_numbers = #tpu.dot_dimension_numbers<[1], [1], [0], [0], [0, 0, 1, 0], [], []>} : vector<8x4xbf16>, vector<8x4xbf16>, vector<8x8xf32> -> vector<8x8xf32>
    %cst_40 = arith.constant 5.000000e-01 : f32
    %118 = vector.broadcast %cst_40 : f32 to vector<8x8xf32>
    %119 = arith.mulf %117, %118 : vector<8x8xf32>
    %cst_41 = arith.constant dense<0xFF800000> : vector<8xf32>
    %120 = vector.multi_reduction <maximumf>, %119, %cst_41 [1] : vector<8x8xf32> to vector<8xf32>
    %121 = vector.shape_cast %120 : vector<8xf32> to vector<8x1xf32>
    %122 = vector.broadcast %121 : vector<8x1xf32> to vector<8x8xf32>
    %123 = arith.subf %119, %122 : vector<8x8xf32>
    %124 = math.exp %123 : vector<8x8xf32>
    %cst_42 = arith.constant dense<0.000000e+00> : vector<8xf32>
    %125 = vector.multi_reduction <add>, %124, %cst_42 [1] : vector<8x8xf32> to vector<8xf32>
    %126 = vector.shape_cast %125 : vector<8xf32> to vector<8x1xf32>
    %127 = tpu.reciprocal %126 {approx = true} : vector<8x1xf32> -> vector<8x1xf32>
    %128 = vector.broadcast %127 : vector<8x1xf32> to vector<8x8xf32>
    %129 = arith.mulf %124, %128 : vector<8x8xf32>
    %130 = vector.extract_strided_slice %112 {offsets = [0, 0], sizes = [8, 4], strides = [1, 1]} : vector<8x16xf32> to vector<8x4xf32>
    %131 = arith.truncf %129 : vector<8x8xf32> to vector<8x8xbf16>
    %132 = arith.truncf %130 : vector<8x4xf32> to vector<8x4xbf16>
    %cst_43 = arith.constant dense<0.000000e+00> : vector<8x4xf32>
    %133 = tpu.matmul %131, %132, %cst_43 {dimension_numbers = #tpu.dot_dimension_numbers<[1], [0], [0], [1], [0, 0, 1, 1], [], []>} : vector<8x8xbf16>, vector<8x4xbf16>, vector<8x4xf32> -> vector<8x4xf32>
    %134 = vector.extract_strided_slice %110 {offsets = [0, 4], sizes = [8, 4], strides = [1, 1]} : vector<8x16xf32> to vector<8x4xf32>
    %135 = arith.truncf %134 : vector<8x4xf32> to vector<8x4xbf16>
    %136 = vector.extract_strided_slice %111 {offsets = [0, 4], sizes = [8, 4], strides = [1, 1]} : vector<8x16xf32> to vector<8x4xf32>
    %137 = arith.truncf %136 : vector<8x4xf32> to vector<8x4xbf16>
    %cst_44 = arith.constant dense<0.000000e+00> : vector<8x8xf32>
    %138 = tpu.matmul %135, %137, %cst_44 {dimension_numbers = #tpu.dot_dimension_numbers<[1], [1], [0], [0], [0, 0, 1, 0], [], []>} : vector<8x4xbf16>, vector<8x4xbf16>, vector<8x8xf32> -> vector<8x8xf32>
    %cst_45 = arith.constant 5.000000e-01 : f32
    %139 = vector.broadcast %cst_45 : f32 to vector<8x8xf32>
    %140 = arith.mulf %138, %139 : vector<8x8xf32>
    %cst_46 = arith.constant dense<0xFF800000> : vector<8xf32>
    %141 = vector.multi_reduction <maximumf>, %140, %cst_46 [1] : vector<8x8xf32> to vector<8xf32>
    %142 = vector.shape_cast %141 : vector<8xf32> to vector<8x1xf32>
    %143 = vector.broadcast %142 : vector<8x1xf32> to vector<8x8xf32>
    %144 = arith.subf %140, %143 : vector<8x8xf32>
    %145 = math.exp %144 : vector<8x8xf32>
    %cst_47 = arith.constant dense<0.000000e+00> : vector<8xf32>
    %146 = vector.multi_reduction <add>, %145, %cst_47 [1] : vector<8x8xf32> to vector<8xf32>
    %147 = vector.shape_cast %146 : vector<8xf32> to vector<8x1xf32>
    %148 = tpu.reciprocal %147 {approx = true} : vector<8x1xf32> -> vector<8x1xf32>
    %149 = vector.broadcast %148 : vector<8x1xf32> to vector<8x8xf32>
    %150 = arith.mulf %145, %149 : vector<8x8xf32>
    %151 = vector.extract_strided_slice %112 {offsets = [0, 4], sizes = [8, 4], strides = [1, 1]} : vector<8x16xf32> to vector<8x4xf32>
    %152 = arith.truncf %150 : vector<8x8xf32> to vector<8x8xbf16>
    %153 = arith.truncf %151 : vector<8x4xf32> to vector<8x4xbf16>
    %cst_48 = arith.constant dense<0.000000e+00> : vector<8x4xf32>
    %154 = tpu.matmul %152, %153, %cst_48 {dimension_numbers = #tpu.dot_dimension_numbers<[1], [0], [0], [1], [0, 0, 1, 1], [], []>} : vector<8x8xbf16>, vector<8x4xbf16>, vector<8x4xf32> -> vector<8x4xf32>
    %155 = vector.extract_strided_slice %110 {offsets = [0, 8], sizes = [8, 4], strides = [1, 1]} : vector<8x16xf32> to vector<8x4xf32>
    %156 = arith.truncf %155 : vector<8x4xf32> to vector<8x4xbf16>
    %157 = vector.extract_strided_slice %111 {offsets = [0, 8], sizes = [8, 4], strides = [1, 1]} : vector<8x16xf32> to vector<8x4xf32>
    %158 = arith.truncf %157 : vector<8x4xf32> to vector<8x4xbf16>
    %cst_49 = arith.constant dense<0.000000e+00> : vector<8x8xf32>
    %159 = tpu.matmul %156, %158, %cst_49 {dimension_numbers = #tpu.dot_dimension_numbers<[1], [1], [0], [0], [0, 0, 1, 0], [], []>} : vector<8x4xbf16>, vector<8x4xbf16>, vector<8x8xf32> -> vector<8x8xf32>
    %cst_50 = arith.constant 5.000000e-01 : f32
    %160 = vector.broadcast %cst_50 : f32 to vector<8x8xf32>
    %161 = arith.mulf %159, %160 : vector<8x8xf32>
    %cst_51 = arith.constant dense<0xFF800000> : vector<8xf32>
    %162 = vector.multi_reduction <maximumf>, %161, %cst_51 [1] : vector<8x8xf32> to vector<8xf32>
    %163 = vector.shape_cast %162 : vector<8xf32> to vector<8x1xf32>
    %164 = vector.broadcast %163 : vector<8x1xf32> to vector<8x8xf32>
    %165 = arith.subf %161, %164 : vector<8x8xf32>
    %166 = math.exp %165 : vector<8x8xf32>
    %cst_52 = arith.constant dense<0.000000e+00> : vector<8xf32>
    %167 = vector.multi_reduction <add>, %166, %cst_52 [1] : vector<8x8xf32> to vector<8xf32>
    %168 = vector.shape_cast %167 : vector<8xf32> to vector<8x1xf32>
    %169 = tpu.reciprocal %168 {approx = true} : vector<8x1xf32> -> vector<8x1xf32>
    %170 = vector.broadcast %169 : vector<8x1xf32> to vector<8x8xf32>
    %171 = arith.mulf %166, %170 : vector<8x8xf32>
    %172 = vector.extract_strided_slice %112 {offsets = [0, 8], sizes = [8, 4], strides = [1, 1]} : vector<8x16xf32> to vector<8x4xf32>
    %173 = arith.truncf %171 : vector<8x8xf32> to vector<8x8xbf16>
    %174 = arith.truncf %172 : vector<8x4xf32> to vector<8x4xbf16>
    %cst_53 = arith.constant dense<0.000000e+00> : vector<8x4xf32>
    %175 = tpu.matmul %173, %174, %cst_53 {dimension_numbers = #tpu.dot_dimension_numbers<[1], [0], [0], [1], [0, 0, 1, 1], [], []>} : vector<8x8xbf16>, vector<8x4xbf16>, vector<8x4xf32> -> vector<8x4xf32>
    %176 = vector.extract_strided_slice %110 {offsets = [0, 12], sizes = [8, 4], strides = [1, 1]} : vector<8x16xf32> to vector<8x4xf32>
    %177 = arith.truncf %176 : vector<8x4xf32> to vector<8x4xbf16>
    %178 = vector.extract_strided_slice %111 {offsets = [0, 12], sizes = [8, 4], strides = [1, 1]} : vector<8x16xf32> to vector<8x4xf32>
    %179 = arith.truncf %178 : vector<8x4xf32> to vector<8x4xbf16>
    %cst_54 = arith.constant dense<0.000000e+00> : vector<8x8xf32>
    %180 = tpu.matmul %177, %179, %cst_54 {dimension_numbers = #tpu.dot_dimension_numbers<[1], [1], [0], [0], [0, 0, 1, 0], [], []>} : vector<8x4xbf16>, vector<8x4xbf16>, vector<8x8xf32> -> vector<8x8xf32>
    %cst_55 = arith.constant 5.000000e-01 : f32
    %181 = vector.broadcast %cst_55 : f32 to vector<8x8xf32>
    %182 = arith.mulf %180, %181 : vector<8x8xf32>
    %cst_56 = arith.constant dense<0xFF800000> : vector<8xf32>
    %183 = vector.multi_reduction <maximumf>, %182, %cst_56 [1] : vector<8x8xf32> to vector<8xf32>
    %184 = vector.shape_cast %183 : vector<8xf32> to vector<8x1xf32>
    %185 = vector.broadcast %184 : vector<8x1xf32> to vector<8x8xf32>
    %186 = arith.subf %182, %185 : vector<8x8xf32>
    %187 = math.exp %186 : vector<8x8xf32>
    %cst_57 = arith.constant dense<0.000000e+00> : vector<8xf32>
    %188 = vector.multi_reduction <add>, %187, %cst_57 [1] : vector<8x8xf32> to vector<8xf32>
    %189 = vector.shape_cast %188 : vector<8xf32> to vector<8x1xf32>
    %190 = tpu.reciprocal %189 {approx = true} : vector<8x1xf32> -> vector<8x1xf32>
    %191 = vector.broadcast %190 : vector<8x1xf32> to vector<8x8xf32>
    %192 = arith.mulf %187, %191 : vector<8x8xf32>
    %193 = vector.extract_strided_slice %112 {offsets = [0, 12], sizes = [8, 4], strides = [1, 1]} : vector<8x16xf32> to vector<8x4xf32>
    %194 = arith.truncf %192 : vector<8x8xf32> to vector<8x8xbf16>
    %195 = arith.truncf %193 : vector<8x4xf32> to vector<8x4xbf16>
    %cst_58 = arith.constant dense<0.000000e+00> : vector<8x4xf32>
    %196 = tpu.matmul %194, %195, %cst_58 {dimension_numbers = #tpu.dot_dimension_numbers<[1], [0], [0], [1], [0, 0, 1, 1], [], []>} : vector<8x8xbf16>, vector<8x4xbf16>, vector<8x4xf32> -> vector<8x4xf32>
    %197 = tpu.concatenate %133, %154, %175, %196 in 1 : vector<8x4xf32>, vector<8x4xf32>, vector<8x4xf32>, vector<8x4xf32> -> vector<8x16xf32>
    %c0_59 = arith.constant 0 : index
    %c0_60 = arith.constant 0 : index
    %c0_61 = arith.constant 0 : index
    %198 = vector.load %arg6[%c0_59, %c0_60, %c0_61] : memref<2x16x16xf32, #tpu.memory_space<vmem>>, vector<1x16x16xf32>
    %199 = vector.shape_cast %198 : vector<1x16x16xf32> to vector<16x16xf32>
    %200 = arith.truncf %109 : vector<8x16xf32> to vector<8x16xbf16>
    %201 = arith.truncf %199 : vector<16x16xf32> to vector<16x16xbf16>
    %cst_62 = arith.constant dense<0.000000e+00> : vector<8x16xf32>
    %202 = tpu.matmul %200, %201, %cst_62 {dimension_numbers = #tpu.dot_dimension_numbers<[1], [0], [0], [1], [0, 0, 1, 1], [], []>} : vector<8x16xbf16>, vector<16x16xbf16>, vector<8x16xf32> -> vector<8x16xf32>
    %c0_63 = arith.constant 0 : index
    %c0_64 = arith.constant 0 : index
    %c0_65 = arith.constant 0 : index
    %203 = vector.load %arg7[%c0_63, %c0_64, %c0_65] : memref<2x1x16xf32, #tpu.memory_space<vmem>>, vector<1x1x16xf32>
    %204 = vector.shape_cast %203 : vector<1x1x16xf32> to vector<1x16xf32>
    %205 = vector.broadcast %204 : vector<1x16xf32> to vector<8x16xf32>
    %206 = arith.addf %202, %205 : vector<8x16xf32>
    %207 = arith.addf %206, %1 : vector<8x16xf32>
    %c1_66 = arith.constant 1 : index
    %c0_67 = arith.constant 0 : index
    %c0_68 = arith.constant 0 : index
    %208 = vector.load %arg6[%c1_66, %c0_67, %c0_68] : memref<2x16x16xf32, #tpu.memory_space<vmem>>, vector<1x16x16xf32>
    %209 = vector.shape_cast %208 : vector<1x16x16xf32> to vector<16x16xf32>
    %210 = arith.truncf %197 : vector<8x16xf32> to vector<8x16xbf16>
    %211 = arith.truncf %209 : vector<16x16xf32> to vector<16x16xbf16>
    %cst_69 = arith.constant dense<0.000000e+00> : vector<8x16xf32>
    %212 = tpu.matmul %210, %211, %cst_69 {dimension_numbers = #tpu.dot_dimension_numbers<[1], [0], [0], [1], [0, 0, 1, 1], [], []>} : vector<8x16xbf16>, vector<16x16xbf16>, vector<8x16xf32> -> vector<8x16xf32>
    %c1_70 = arith.constant 1 : index
    %c0_71 = arith.constant 0 : index
    %c0_72 = arith.constant 0 : index
    %213 = vector.load %arg7[%c1_70, %c0_71, %c0_72] : memref<2x1x16xf32, #tpu.memory_space<vmem>>, vector<1x1x16xf32>
    %214 = vector.shape_cast %213 : vector<1x1x16xf32> to vector<1x16xf32>
    %215 = vector.broadcast %214 : vector<1x16xf32> to vector<8x16xf32>
    %216 = arith.addf %212, %215 : vector<8x16xf32>
    %217 = arith.addf %216, %3 : vector<8x16xf32>
    %c0_73 = arith.constant 0 : index
    %c0_74 = arith.constant 0 : index
    %c0_75 = arith.constant 0 : index
    %218 = vector.load %arg8[%c0_73, %c0_74, %c0_75] : memref<2x1x16xf32, #tpu.memory_space<vmem>>, vector<1x1x16xf32>
    %219 = vector.shape_cast %218 : vector<1x1x16xf32> to vector<1x16xf32>
    %c0_76 = arith.constant 0 : index
    %c0_77 = arith.constant 0 : index
    %c0_78 = arith.constant 0 : index
    %220 = vector.load %arg9[%c0_76, %c0_77, %c0_78] : memref<2x1x16xf32, #tpu.memory_space<vmem>>, vector<1x1x16xf32>
    %221 = vector.shape_cast %220 : vector<1x1x16xf32> to vector<1x16xf32>
    %cst_79 = arith.constant dense<0.000000e+00> : vector<8xf32>
    %222 = vector.multi_reduction <add>, %207, %cst_79 [1] : vector<8x16xf32> to vector<8xf32>
    %223 = vector.shape_cast %222 : vector<8xf32> to vector<8x1xf32>
    %cst_80 = arith.constant 1.600000e+01 : f32
    %224 = vector.broadcast %cst_80 : f32 to vector<8x1xf32>
    %225 = arith.divf %223, %224 : vector<8x1xf32>
    %226 = vector.broadcast %225 : vector<8x1xf32> to vector<8x16xf32>
    %227 = arith.subf %207, %226 : vector<8x16xf32>
    %228 = arith.mulf %227, %227 : vector<8x16xf32>
    %cst_81 = arith.constant dense<0.000000e+00> : vector<8xf32>
    %229 = vector.multi_reduction <add>, %228, %cst_81 [1] : vector<8x16xf32> to vector<8xf32>
    %230 = vector.shape_cast %229 : vector<8xf32> to vector<8x1xf32>
    %cst_82 = arith.constant 1.600000e+01 : f32
    %231 = vector.broadcast %cst_82 : f32 to vector<8x1xf32>
    %232 = arith.divf %230, %231 : vector<8x1xf32>
    %233 = vector.broadcast %225 : vector<8x1xf32> to vector<8x16xf32>
    %234 = arith.subf %207, %233 : vector<8x16xf32>
    %cst_83 = arith.constant 9.99999974E-6 : f32
    %235 = vector.broadcast %cst_83 : f32 to vector<8x1xf32>
    %236 = arith.addf %232, %235 : vector<8x1xf32>
    %237 = math.rsqrt %236 : vector<8x1xf32>
    %238 = vector.broadcast %237 : vector<8x1xf32> to vector<8x16xf32>
    %239 = arith.mulf %234, %238 : vector<8x16xf32>
    %240 = vector.broadcast %219 : vector<1x16xf32> to vector<8x16xf32>
    %241 = arith.mulf %239, %240 : vector<8x16xf32>
    %242 = vector.broadcast %221 : vector<1x16xf32> to vector<8x16xf32>
    %243 = arith.addf %241, %242 : vector<8x16xf32>
    %c0_84 = arith.constant 0 : index
    %c0_85 = arith.constant 0 : index
    %c0_86 = arith.constant 0 : index
    %c0_87 = arith.constant 0 : index
    %244 = vector.load %arg10[%c0_84, %c0_85, %c0_86, %c0_87] : memref<1x1x8x16xf32, #tpu.memory_space<vmem>>, vector<1x1x8x16xf32>
    %245 = vector.shape_cast %244 : vector<1x1x8x16xf32> to vector<8x16xf32>
    %246 = vector.shape_cast %243 : vector<8x16xf32> to vector<1x1x8x16xf32>
    tpu.vector_store %arg10[%c0_84, %c0_85, %c0_86, %c0_87], %246 {strides = array<i32>} : memref<1x1x8x16xf32, #tpu.memory_space<vmem>>, vector<1x1x8x16xf32>,
    %c1_88 = arith.constant 1 : index
    %c0_89 = arith.constant 0 : index
    %c0_90 = arith.constant 0 : index
    %247 = vector.load %arg8[%c1_88, %c0_89, %c0_90] : memref<2x1x16xf32, #tpu.memory_space<vmem>>, vector<1x1x16xf32>
    %248 = vector.shape_cast %247 : vector<1x1x16xf32> to vector<1x16xf32>
    %c1_91 = arith.constant 1 : index
    %c0_92 = arith.constant 0 : index
    %c0_93 = arith.constant 0 : index
    %249 = vector.load %arg9[%c1_91, %c0_92, %c0_93] : memref<2x1x16xf32, #tpu.memory_space<vmem>>, vector<1x1x16xf32>
    %250 = vector.shape_cast %249 : vector<1x1x16xf32> to vector<1x16xf32>
    %cst_94 = arith.constant dense<0.000000e+00> : vector<8xf32>
    %251 = vector.multi_reduction <add>, %217, %cst_94 [1] : vector<8x16xf32> to vector<8xf32>
    %252 = vector.shape_cast %251 : vector<8xf32> to vector<8x1xf32>
    %cst_95 = arith.constant 1.600000e+01 : f32
    %253 = vector.broadcast %cst_95 : f32 to vector<8x1xf32>
    %254 = arith.divf %252, %253 : vector<8x1xf32>
    %255 = vector.broadcast %254 : vector<8x1xf32> to vector<8x16xf32>
    %256 = arith.subf %217, %255 : vector<8x16xf32>
    %257 = arith.mulf %256, %256 : vector<8x16xf32>
    %cst_96 = arith.constant dense<0.000000e+00> : vector<8xf32>
    %258 = vector.multi_reduction <add>, %257, %cst_96 [1] : vector<8x16xf32> to vector<8xf32>
    %259 = vector.shape_cast %258 : vector<8xf32> to vector<8x1xf32>
    %cst_97 = arith.constant 1.600000e+01 : f32
    %260 = vector.broadcast %cst_97 : f32 to vector<8x1xf32>
    %261 = arith.divf %259, %260 : vector<8x1xf32>
    %262 = vector.broadcast %254 : vector<8x1xf32> to vector<8x16xf32>
    %263 = arith.subf %217, %262 : vector<8x16xf32>
    %cst_98 = arith.constant 9.99999974E-6 : f32
    %264 = vector.broadcast %cst_98 : f32 to vector<8x1xf32>
    %265 = arith.addf %261, %264 : vector<8x1xf32>
    %266 = math.rsqrt %265 : vector<8x1xf32>
    %267 = vector.broadcast %266 : vector<8x1xf32> to vector<8x16xf32>
    %268 = arith.mulf %263, %267 : vector<8x16xf32>
    %269 = vector.broadcast %248 : vector<1x16xf32> to vector<8x16xf32>
    %270 = arith.mulf %268, %269 : vector<8x16xf32>
    %271 = vector.broadcast %250 : vector<1x16xf32> to vector<8x16xf32>
    %272 = arith.addf %270, %271 : vector<8x16xf32>
    %c0_99 = arith.constant 0 : index
    %c0_100 = arith.constant 0 : index
    %c0_101 = arith.constant 0 : index
    %c0_102 = arith.constant 0 : index
    %273 = vector.load %arg11[%c0_99, %c0_100, %c0_101, %c0_102] : memref<1x1x8x16xf32, #tpu.memory_space<vmem>>, vector<1x1x8x16xf32>
    %274 = vector.shape_cast %273 : vector<1x1x8x16xf32> to vector<8x16xf32>
    %275 = vector.shape_cast %272 : vector<8x16xf32> to vector<1x1x8x16xf32>
    tpu.vector_store %arg11[%c0_99, %c0_100, %c0_101, %c0_102], %275 {strides = array<i32>} : memref<1x1x8x16xf32, #tpu.memory_space<vmem>>, vector<1x1x8x16xf32>,
    return
  }
  func.func @transform_0(%arg0: i32, %arg1: i32) -> (i32, i32, i32, i32) {
    %c0_i32 = arith.constant 0 : i32
    %c0_i32_0 = arith.constant 0 : i32
    %c0_i32_1 = arith.constant 0 : i32
    return %arg0, %arg1, %c0_i32, %c0_i32_0 : i32, i32, i32, i32
  }
  func.func @transform_1(%arg0: i32, %arg1: i32) -> (i32, i32, i32, i32) {
    %c0_i32 = arith.constant 0 : i32
    %c0_i32_0 = arith.constant 0 : i32
    %c0_i32_1 = arith.constant 0 : i32
    return %arg0, %arg1, %c0_i32, %c0_i32_0 : i32, i32, i32, i32
  }
  func.func @transform_2(%arg0: i32, %arg1: i32) -> (i32, i32, i32) {
    %c0_i32 = arith.constant 0 : i32
    %c0_i32_0 = arith.constant 0 : i32
    %c0_i32_1 = arith.constant 0 : i32
    %c0_i32_2 = arith.constant 0 : i32
    return %c0_i32, %c0_i32_0, %c0_i32_1 : i32, i32, i32
  }
  func.func @transform_3(%arg0: i32, %arg1: i32) -> (i32, i32, i32) {
    %c0_i32 = arith.constant 0 : i32
    %c0_i32_0 = arith.constant 0 : i32
    %c0_i32_1 = arith.constant 0 : i32
    %c0_i32_2 = arith.constant 0 : i32
    return %c0_i32, %c0_i32_0, %c0_i32_1 : i32, i32, i32
  }
  func.func @transform_4(%arg0: i32, %arg1: i32) -> (i32, i32, i32) {
    %c0_i32 = arith.constant 0 : i32
    %c0_i32_0 = arith.constant 0 : i32
    %c0_i32_1 = arith.constant 0 : i32
    %c0_i32_2 = arith.constant 0 : i32
    return %c0_i32, %c0_i32_0, %c0_i32_1 : i32, i32, i32
  }
  func.func @transform_5(%arg0: i32, %arg1: i32) -> (i32, i32, i32) {
    %c0_i32 = arith.constant 0 : i32
    %c0_i32_0 = arith.constant 0 : i32
    %c0_i32_1 = arith.constant 0 : i32
    %c0_i32_2 = arith.constant 0 : i32
    return %c0_i32, %c0_i32_0, %c0_i32_1 : i32, i32, i32
  }
  func.func @transform_6(%arg0: i32, %arg1: i32) -> (i32, i32, i32) {
    %c0_i32 = arith.constant 0 : i32
    %c0_i32_0 = arith.constant 0 : i32
    %c0_i32_1 = arith.constant 0 : i32
    %c0_i32_2 = arith.constant 0 : i32
    return %c0_i32, %c0_i32_0, %c0_i32_1 : i32, i32, i32
  }
  func.func @transform_7(%arg0: i32, %arg1: i32) -> (i32, i32, i32) {
    %c0_i32 = arith.constant 0 : i32
    %c0_i32_0 = arith.constant 0 : i32
    %c0_i32_1 = arith.constant 0 : i32
    %c0_i32_2 = arith.constant 0 : i32
    return %c0_i32, %c0_i32_0, %c0_i32_1 : i32, i32, i32
  }
  func.func @transform_8(%arg0: i32, %arg1: i32) -> (i32, i32, i32, i32) {
    %c0_i32 = arith.constant 0 : i32
    %c0_i32_0 = arith.constant 0 : i32
    %c0_i32_1 = arith.constant 0 : i32
    return %arg0, %arg1, %c0_i32, %c0_i32_0 : i32, i32, i32, i32
  }
  func.func @transform_9(%arg0: i32, %arg1: i32) -> (i32, i32, i32, i32) {
    %c0_i32 = arith.constant 0 : i32
    %c0_i32_0 = arith.constant 0 : i32
    %c0_i32_1 = arith.constant 0 : i32
    return %arg0, %arg1, %c0_i32, %c0_i32_0 : i32, i32, i32, i32
  }
}

module attributes {stable_mosaic.version = 11 : i64} {
  func.func @_linear_kernel(%arg0: i32, %arg1: memref<128x16xf32, #tpu.memory_space<vmem>>, %arg2: memref<16x16xf32, #tpu.memory_space<vmem>>, %arg3: memref<1x16xf32, #tpu.memory_space<vmem>>, %arg4: memref<128x16xf32, #tpu.memory_space<vmem>>) attributes {dimension_semantics = [#tpu.dimension_semantics<parallel>], iteration_bounds = array<i64: 1>, scalar_prefetch = 0 : i64, scratch_operands = 0 : i64, tpu.core_type = #tpu.core_type<tc>, window_params = [{transform_indices = @transform_0, window_bounds = array<i64: 128, 16>}, {pipeline_mode = #tpu.pipeline_mode<synchronous>, transform_indices = @transform_1, window_bounds = array<i64: 16, 16>}, {pipeline_mode = #tpu.pipeline_mode<synchronous>, transform_indices = @transform_2, window_bounds = array<i64: 1, 16>}, {transform_indices = @transform_3, window_bounds = array<i64: 128, 16>}]} {
    %c0 = arith.constant 0 : index
    %c0_0 = arith.constant 0 : index
    %0 = vector.load %arg1[%c0, %c0_0] : memref<128x16xf32, #tpu.memory_space<vmem>>, vector<128x16xf32>
    %c0_1 = arith.constant 0 : index
    %c0_2 = arith.constant 0 : index
    %1 = vector.load %arg2[%c0_1, %c0_2] : memref<16x16xf32, #tpu.memory_space<vmem>>, vector<16x16xf32>
    %2 = arith.truncf %0 : vector<128x16xf32> to vector<128x16xbf16>
    %3 = arith.truncf %1 : vector<16x16xf32> to vector<16x16xbf16>
    %cst = arith.constant dense<0.000000e+00> : vector<128x16xf32>
    %4 = tpu.matmul %2, %3, %cst {dimension_numbers = #tpu.dot_dimension_numbers<[1], [0], [0], [1], [0, 0, 1, 1], [], []>} : vector<128x16xbf16>, vector<16x16xbf16>, vector<128x16xf32> -> vector<128x16xf32>
    %c0_3 = arith.constant 0 : index
    %c0_4 = arith.constant 0 : index
    %5 = vector.load %arg3[%c0_3, %c0_4] : memref<1x16xf32, #tpu.memory_space<vmem>>, vector<1x16xf32>
    %6 = vector.broadcast %5 : vector<1x16xf32> to vector<128x16xf32>
    %7 = arith.addf %4, %6 : vector<128x16xf32>
    %c0_5 = arith.constant 0 : index
    %c0_6 = arith.constant 0 : index
    %8 = vector.load %arg4[%c0_5, %c0_6] : memref<128x16xf32, #tpu.memory_space<vmem>>, vector<128x16xf32>
    tpu.vector_store %arg4[%c0_5, %c0_6], %7 {strides = array<i32>} : memref<128x16xf32, #tpu.memory_space<vmem>>, vector<128x16xf32>,
    return
  }
  func.func @transform_0(%arg0: i32) -> (i32, i32) {
    %c0_i32 = arith.constant 0 : i32
    %c0_i32_0 = arith.constant 0 : i32
    return %arg0, %c0_i32 : i32, i32
  }
  func.func @transform_1(%arg0: i32) -> (i32, i32) {
    %c0_i32 = arith.constant 0 : i32
    %c0_i32_0 = arith.constant 0 : i32
    %c0_i32_1 = arith.constant 0 : i32
    return %c0_i32, %c0_i32_0 : i32, i32
  }
  func.func @transform_2(%arg0: i32) -> (i32, i32) {
    %c0_i32 = arith.constant 0 : i32
    %c0_i32_0 = arith.constant 0 : i32
    %c0_i32_1 = arith.constant 0 : i32
    return %c0_i32, %c0_i32_0 : i32, i32
  }
  func.func @transform_3(%arg0: i32) -> (i32, i32) {
    %c0_i32 = arith.constant 0 : i32
    %c0_i32_0 = arith.constant 0 : i32
    return %arg0, %c0_i32 : i32, i32
  }
}

module attributes {stable_mosaic.version = 11 : i64} {
  func.func @_dw_down_kernel(%arg0: i32, %arg1: memref<32x4x16xf32, #tpu.memory_space<vmem>>, %arg2: memref<4x16xf32, #tpu.memory_space<vmem>>, %arg3: memref<1x16xf32, #tpu.memory_space<vmem>>, %arg4: memref<32x16xf32, #tpu.memory_space<vmem>>) attributes {dimension_semantics = [#tpu.dimension_semantics<parallel>], iteration_bounds = array<i64: 1>, scalar_prefetch = 0 : i64, scratch_operands = 0 : i64, tpu.core_type = #tpu.core_type<tc>, window_params = [{transform_indices = @transform_0, window_bounds = array<i64: 32, 4, 16>}, {pipeline_mode = #tpu.pipeline_mode<synchronous>, transform_indices = @transform_1, window_bounds = array<i64: 4, 16>}, {pipeline_mode = #tpu.pipeline_mode<synchronous>, transform_indices = @transform_2, window_bounds = array<i64: 1, 16>}, {transform_indices = @transform_3, window_bounds = array<i64: 32, 16>}]} {
    %c0 = arith.constant 0 : index
    %c0_0 = arith.constant 0 : index
    %c0_1 = arith.constant 0 : index
    %0 = vector.load %arg1[%c0, %c0_0, %c0_1] : memref<32x4x16xf32, #tpu.memory_space<vmem>>, vector<32x4x16xf32>
    %c0_2 = arith.constant 0 : index
    %c0_3 = arith.constant 0 : index
    %1 = vector.load %arg2[%c0_2, %c0_3] : memref<4x16xf32, #tpu.memory_space<vmem>>, vector<4x16xf32>
    %2 = vector.extract_strided_slice %0 {offsets = [0, 0, 0], sizes = [32, 1, 16], strides = [1, 1, 1]} : vector<32x4x16xf32> to vector<32x1x16xf32>
    %3 = vector.shape_cast %2 : vector<32x1x16xf32> to vector<32x16xf32>
    %4 = vector.extract_strided_slice %1 {offsets = [0, 0], sizes = [1, 16], strides = [1, 1]} : vector<4x16xf32> to vector<1x16xf32>
    %5 = vector.broadcast %4 : vector<1x16xf32> to vector<32x16xf32>
    %6 = arith.mulf %3, %5 : vector<32x16xf32>
    %7 = vector.extract_strided_slice %0 {offsets = [0, 1, 0], sizes = [32, 1, 16], strides = [1, 1, 1]} : vector<32x4x16xf32> to vector<32x1x16xf32>
    %8 = vector.shape_cast %7 : vector<32x1x16xf32> to vector<32x16xf32>
    %9 = vector.extract_strided_slice %1 {offsets = [1, 0], sizes = [1, 16], strides = [1, 1]} : vector<4x16xf32> to vector<1x16xf32>
    %10 = vector.broadcast %9 : vector<1x16xf32> to vector<32x16xf32>
    %11 = arith.mulf %8, %10 : vector<32x16xf32>
    %12 = arith.addf %6, %11 : vector<32x16xf32>
    %13 = vector.extract_strided_slice %0 {offsets = [0, 2, 0], sizes = [32, 1, 16], strides = [1, 1, 1]} : vector<32x4x16xf32> to vector<32x1x16xf32>
    %14 = vector.shape_cast %13 : vector<32x1x16xf32> to vector<32x16xf32>
    %15 = vector.extract_strided_slice %1 {offsets = [2, 0], sizes = [1, 16], strides = [1, 1]} : vector<4x16xf32> to vector<1x16xf32>
    %16 = vector.broadcast %15 : vector<1x16xf32> to vector<32x16xf32>
    %17 = arith.mulf %14, %16 : vector<32x16xf32>
    %18 = arith.addf %12, %17 : vector<32x16xf32>
    %19 = vector.extract_strided_slice %0 {offsets = [0, 3, 0], sizes = [32, 1, 16], strides = [1, 1, 1]} : vector<32x4x16xf32> to vector<32x1x16xf32>
    %20 = vector.shape_cast %19 : vector<32x1x16xf32> to vector<32x16xf32>
    %21 = vector.extract_strided_slice %1 {offsets = [3, 0], sizes = [1, 16], strides = [1, 1]} : vector<4x16xf32> to vector<1x16xf32>
    %22 = vector.broadcast %21 : vector<1x16xf32> to vector<32x16xf32>
    %23 = arith.mulf %20, %22 : vector<32x16xf32>
    %24 = arith.addf %18, %23 : vector<32x16xf32>
    %c0_4 = arith.constant 0 : index
    %c0_5 = arith.constant 0 : index
    %25 = vector.load %arg3[%c0_4, %c0_5] : memref<1x16xf32, #tpu.memory_space<vmem>>, vector<1x16xf32>
    %26 = vector.broadcast %25 : vector<1x16xf32> to vector<32x16xf32>
    %27 = arith.addf %24, %26 : vector<32x16xf32>
    %c0_6 = arith.constant 0 : index
    %c0_7 = arith.constant 0 : index
    %28 = vector.load %arg4[%c0_6, %c0_7] : memref<32x16xf32, #tpu.memory_space<vmem>>, vector<32x16xf32>
    tpu.vector_store %arg4[%c0_6, %c0_7], %27 {strides = array<i32>} : memref<32x16xf32, #tpu.memory_space<vmem>>, vector<32x16xf32>,
    return
  }
  func.func @transform_0(%arg0: i32) -> (i32, i32, i32) {
    %c0_i32 = arith.constant 0 : i32
    %c0_i32_0 = arith.constant 0 : i32
    %c0_i32_1 = arith.constant 0 : i32
    return %arg0, %c0_i32, %c0_i32_0 : i32, i32, i32
  }
  func.func @transform_1(%arg0: i32) -> (i32, i32) {
    %c0_i32 = arith.constant 0 : i32
    %c0_i32_0 = arith.constant 0 : i32
    %c0_i32_1 = arith.constant 0 : i32
    return %c0_i32, %c0_i32_0 : i32, i32
  }
  func.func @transform_2(%arg0: i32) -> (i32, i32) {
    %c0_i32 = arith.constant 0 : i32
    %c0_i32_0 = arith.constant 0 : i32
    %c0_i32_1 = arith.constant 0 : i32
    return %c0_i32, %c0_i32_0 : i32, i32
  }
  func.func @transform_3(%arg0: i32) -> (i32, i32) {
    %c0_i32 = arith.constant 0 : i32
    %c0_i32_0 = arith.constant 0 : i32
    return %arg0, %c0_i32 : i32, i32
  }
}

module attributes {stable_mosaic.version = 11 : i64} {
  func.func @_linear_kernel(%arg0: i32, %arg1: memref<32x16xf32, #tpu.memory_space<vmem>>, %arg2: memref<16x64xf32, #tpu.memory_space<vmem>>, %arg3: memref<1x64xf32, #tpu.memory_space<vmem>>, %arg4: memref<32x64xf32, #tpu.memory_space<vmem>>) attributes {dimension_semantics = [#tpu.dimension_semantics<parallel>], iteration_bounds = array<i64: 1>, scalar_prefetch = 0 : i64, scratch_operands = 0 : i64, tpu.core_type = #tpu.core_type<tc>, window_params = [{transform_indices = @transform_0, window_bounds = array<i64: 32, 16>}, {pipeline_mode = #tpu.pipeline_mode<synchronous>, transform_indices = @transform_1, window_bounds = array<i64: 16, 64>}, {pipeline_mode = #tpu.pipeline_mode<synchronous>, transform_indices = @transform_2, window_bounds = array<i64: 1, 64>}, {transform_indices = @transform_3, window_bounds = array<i64: 32, 64>}]} {
    %c0 = arith.constant 0 : index
    %c0_0 = arith.constant 0 : index
    %0 = vector.load %arg1[%c0, %c0_0] : memref<32x16xf32, #tpu.memory_space<vmem>>, vector<32x16xf32>
    %c0_1 = arith.constant 0 : index
    %c0_2 = arith.constant 0 : index
    %1 = vector.load %arg2[%c0_1, %c0_2] : memref<16x64xf32, #tpu.memory_space<vmem>>, vector<16x64xf32>
    %2 = arith.truncf %0 : vector<32x16xf32> to vector<32x16xbf16>
    %3 = arith.truncf %1 : vector<16x64xf32> to vector<16x64xbf16>
    %cst = arith.constant dense<0.000000e+00> : vector<32x64xf32>
    %4 = tpu.matmul %2, %3, %cst {dimension_numbers = #tpu.dot_dimension_numbers<[1], [0], [0], [1], [0, 0, 1, 1], [], []>} : vector<32x16xbf16>, vector<16x64xbf16>, vector<32x64xf32> -> vector<32x64xf32>
    %c0_3 = arith.constant 0 : index
    %c0_4 = arith.constant 0 : index
    %5 = vector.load %arg3[%c0_3, %c0_4] : memref<1x64xf32, #tpu.memory_space<vmem>>, vector<1x64xf32>
    %6 = vector.broadcast %5 : vector<1x64xf32> to vector<32x64xf32>
    %7 = arith.addf %4, %6 : vector<32x64xf32>
    %c0_5 = arith.constant 0 : index
    %c0_6 = arith.constant 0 : index
    %8 = vector.load %arg4[%c0_5, %c0_6] : memref<32x64xf32, #tpu.memory_space<vmem>>, vector<32x64xf32>
    tpu.vector_store %arg4[%c0_5, %c0_6], %7 {strides = array<i32>} : memref<32x64xf32, #tpu.memory_space<vmem>>, vector<32x64xf32>,
    return
  }
  func.func @transform_0(%arg0: i32) -> (i32, i32) {
    %c0_i32 = arith.constant 0 : i32
    %c0_i32_0 = arith.constant 0 : i32
    return %arg0, %c0_i32 : i32, i32
  }
  func.func @transform_1(%arg0: i32) -> (i32, i32) {
    %c0_i32 = arith.constant 0 : i32
    %c0_i32_0 = arith.constant 0 : i32
    %c0_i32_1 = arith.constant 0 : i32
    return %c0_i32, %c0_i32_0 : i32, i32
  }
  func.func @transform_2(%arg0: i32) -> (i32, i32) {
    %c0_i32 = arith.constant 0 : i32
    %c0_i32_0 = arith.constant 0 : i32
    %c0_i32_1 = arith.constant 0 : i32
    return %c0_i32, %c0_i32_0 : i32, i32
  }
  func.func @transform_3(%arg0: i32) -> (i32, i32) {
    %c0_i32 = arith.constant 0 : i32
    %c0_i32_0 = arith.constant 0 : i32
    return %arg0, %c0_i32 : i32, i32
  }
}

module attributes {stable_mosaic.version = 11 : i64} {
  func.func @_cma_kernel(%arg0: i32, %arg1: i32, %arg2: memref<1x1x2x16xf32, #tpu.memory_space<vmem>>, %arg3: memref<1x1x2x16xf32, #tpu.memory_space<vmem>>, %arg4: memref<2x16x48xf32, #tpu.memory_space<vmem>>, %arg5: memref<2x1x48xf32, #tpu.memory_space<vmem>>, %arg6: memref<2x16x16xf32, #tpu.memory_space<vmem>>, %arg7: memref<2x1x16xf32, #tpu.memory_space<vmem>>, %arg8: memref<2x1x16xf32, #tpu.memory_space<vmem>>, %arg9: memref<2x1x16xf32, #tpu.memory_space<vmem>>, %arg10: memref<1x1x2x16xf32, #tpu.memory_space<vmem>>, %arg11: memref<1x1x2x16xf32, #tpu.memory_space<vmem>>) attributes {dimension_semantics = [#tpu.dimension_semantics<parallel>, #tpu.dimension_semantics<parallel>], iteration_bounds = array<i64: 2, 8>, scalar_prefetch = 0 : i64, scratch_operands = 0 : i64, tpu.core_type = #tpu.core_type<tc>, window_params = [{transform_indices = @transform_0, window_bounds = array<i64: 1, 1, 2, 16>}, {transform_indices = @transform_1, window_bounds = array<i64: 1, 1, 2, 16>}, {pipeline_mode = #tpu.pipeline_mode<synchronous>, transform_indices = @transform_2, window_bounds = array<i64: 2, 16, 48>}, {pipeline_mode = #tpu.pipeline_mode<synchronous>, transform_indices = @transform_3, window_bounds = array<i64: 2, 1, 48>}, {pipeline_mode = #tpu.pipeline_mode<synchronous>, transform_indices = @transform_4, window_bounds = array<i64: 2, 16, 16>}, {pipeline_mode = #tpu.pipeline_mode<synchronous>, transform_indices = @transform_5, window_bounds = array<i64: 2, 1, 16>}, {pipeline_mode = #tpu.pipeline_mode<synchronous>, transform_indices = @transform_6, window_bounds = array<i64: 2, 1, 16>}, {pipeline_mode = #tpu.pipeline_mode<synchronous>, transform_indices = @transform_7, window_bounds = array<i64: 2, 1, 16>}, {transform_indices = @transform_8, window_bounds = array<i64: 1, 1, 2, 16>}, {transform_indices = @transform_9, window_bounds = array<i64: 1, 1, 2, 16>}]} {
    %c0 = arith.constant 0 : index
    %c0_0 = arith.constant 0 : index
    %c0_1 = arith.constant 0 : index
    %c0_2 = arith.constant 0 : index
    %0 = vector.load %arg2[%c0, %c0_0, %c0_1, %c0_2] : memref<1x1x2x16xf32, #tpu.memory_space<vmem>>, vector<1x1x2x16xf32>
    %1 = vector.shape_cast %0 : vector<1x1x2x16xf32> to vector<2x16xf32>
    %c0_3 = arith.constant 0 : index
    %c0_4 = arith.constant 0 : index
    %c0_5 = arith.constant 0 : index
    %c0_6 = arith.constant 0 : index
    %2 = vector.load %arg3[%c0_3, %c0_4, %c0_5, %c0_6] : memref<1x1x2x16xf32, #tpu.memory_space<vmem>>, vector<1x1x2x16xf32>
    %3 = vector.shape_cast %2 : vector<1x1x2x16xf32> to vector<2x16xf32>
    %c0_7 = arith.constant 0 : index
    %c0_8 = arith.constant 0 : index
    %c0_9 = arith.constant 0 : index
    %4 = vector.load %arg4[%c0_7, %c0_8, %c0_9] : memref<2x16x48xf32, #tpu.memory_space<vmem>>, vector<1x16x48xf32>
    %5 = vector.shape_cast %4 : vector<1x16x48xf32> to vector<16x48xf32>
    %6 = arith.truncf %1 : vector<2x16xf32> to vector<2x16xbf16>
    %7 = arith.truncf %5 : vector<16x48xf32> to vector<16x48xbf16>
    %cst = arith.constant dense<0.000000e+00> : vector<2x48xf32>
    %8 = tpu.matmul %6, %7, %cst {dimension_numbers = #tpu.dot_dimension_numbers<[1], [0], [0], [1], [0, 0, 1, 1], [], []>} : vector<2x16xbf16>, vector<16x48xbf16>, vector<2x48xf32> -> vector<2x48xf32>
    %c0_10 = arith.constant 0 : index
    %c0_11 = arith.constant 0 : index
    %c0_12 = arith.constant 0 : index
    %9 = vector.load %arg5[%c0_10, %c0_11, %c0_12] : memref<2x1x48xf32, #tpu.memory_space<vmem>>, vector<1x1x48xf32>
    %10 = vector.shape_cast %9 : vector<1x1x48xf32> to vector<1x48xf32>
    %11 = vector.broadcast %10 : vector<1x48xf32> to vector<2x48xf32>
    %12 = arith.addf %8, %11 : vector<2x48xf32>
    %c1 = arith.constant 1 : index
    %c0_13 = arith.constant 0 : index
    %c0_14 = arith.constant 0 : index
    %13 = vector.load %arg4[%c1, %c0_13, %c0_14] : memref<2x16x48xf32, #tpu.memory_space<vmem>>, vector<1x16x48xf32>
    %14 = vector.shape_cast %13 : vector<1x16x48xf32> to vector<16x48xf32>
    %15 = arith.truncf %3 : vector<2x16xf32> to vector<2x16xbf16>
    %16 = arith.truncf %14 : vector<16x48xf32> to vector<16x48xbf16>
    %cst_15 = arith.constant dense<0.000000e+00> : vector<2x48xf32>
    %17 = tpu.matmul %15, %16, %cst_15 {dimension_numbers = #tpu.dot_dimension_numbers<[1], [0], [0], [1], [0, 0, 1, 1], [], []>} : vector<2x16xbf16>, vector<16x48xbf16>, vector<2x48xf32> -> vector<2x48xf32>
    %c1_16 = arith.constant 1 : index
    %c0_17 = arith.constant 0 : index
    %c0_18 = arith.constant 0 : index
    %18 = vector.load %arg5[%c1_16, %c0_17, %c0_18] : memref<2x1x48xf32, #tpu.memory_space<vmem>>, vector<1x1x48xf32>
    %19 = vector.shape_cast %18 : vector<1x1x48xf32> to vector<1x48xf32>
    %20 = vector.broadcast %19 : vector<1x48xf32> to vector<2x48xf32>
    %21 = arith.addf %17, %20 : vector<2x48xf32>
    %22 = vector.extract_strided_slice %12 {offsets = [0, 0], sizes = [2, 16], strides = [1, 1]} : vector<2x48xf32> to vector<2x16xf32>
    %23 = vector.extract_strided_slice %21 {offsets = [0, 16], sizes = [2, 16], strides = [1, 1]} : vector<2x48xf32> to vector<2x16xf32>
    %24 = vector.extract_strided_slice %21 {offsets = [0, 32], sizes = [2, 16], strides = [1, 1]} : vector<2x48xf32> to vector<2x16xf32>
    %25 = vector.extract_strided_slice %22 {offsets = [0, 0], sizes = [2, 4], strides = [1, 1]} : vector<2x16xf32> to vector<2x4xf32>
    %26 = arith.truncf %25 : vector<2x4xf32> to vector<2x4xbf16>
    %27 = vector.extract_strided_slice %23 {offsets = [0, 0], sizes = [2, 4], strides = [1, 1]} : vector<2x16xf32> to vector<2x4xf32>
    %28 = arith.truncf %27 : vector<2x4xf32> to vector<2x4xbf16>
    %cst_19 = arith.constant dense<0.000000e+00> : vector<2x2xf32>
    %29 = tpu.matmul %26, %28, %cst_19 {dimension_numbers = #tpu.dot_dimension_numbers<[1], [1], [0], [0], [0, 0, 1, 0], [], []>} : vector<2x4xbf16>, vector<2x4xbf16>, vector<2x2xf32> -> vector<2x2xf32>
    %cst_20 = arith.constant 5.000000e-01 : f32
    %30 = vector.broadcast %cst_20 : f32 to vector<2x2xf32>
    %31 = arith.mulf %29, %30 : vector<2x2xf32>
    %cst_21 = arith.constant dense<0xFF800000> : vector<2xf32>
    %32 = vector.multi_reduction <maximumf>, %31, %cst_21 [1] : vector<2x2xf32> to vector<2xf32>
    %33 = vector.shape_cast %32 : vector<2xf32> to vector<2x1xf32>
    %34 = vector.broadcast %33 : vector<2x1xf32> to vector<2x2xf32>
    %35 = arith.subf %31, %34 : vector<2x2xf32>
    %36 = math.exp %35 : vector<2x2xf32>
    %cst_22 = arith.constant dense<0.000000e+00> : vector<2xf32>
    %37 = vector.multi_reduction <add>, %36, %cst_22 [1] : vector<2x2xf32> to vector<2xf32>
    %38 = vector.shape_cast %37 : vector<2xf32> to vector<2x1xf32>
    %39 = tpu.reciprocal %38 {approx = true} : vector<2x1xf32> -> vector<2x1xf32>
    %40 = vector.broadcast %39 : vector<2x1xf32> to vector<2x2xf32>
    %41 = arith.mulf %36, %40 : vector<2x2xf32>
    %42 = vector.extract_strided_slice %24 {offsets = [0, 0], sizes = [2, 4], strides = [1, 1]} : vector<2x16xf32> to vector<2x4xf32>
    %43 = arith.truncf %41 : vector<2x2xf32> to vector<2x2xbf16>
    %44 = arith.truncf %42 : vector<2x4xf32> to vector<2x4xbf16>
    %cst_23 = arith.constant dense<0.000000e+00> : vector<2x4xf32>
    %45 = tpu.matmul %43, %44, %cst_23 {dimension_numbers = #tpu.dot_dimension_numbers<[1], [0], [0], [1], [0, 0, 1, 1], [], []>} : vector<2x2xbf16>, vector<2x4xbf16>, vector<2x4xf32> -> vector<2x4xf32>
    %46 = vector.extract_strided_slice %22 {offsets = [0, 4], sizes = [2, 4], strides = [1, 1]} : vector<2x16xf32> to vector<2x4xf32>
    %47 = arith.truncf %46 : vector<2x4xf32> to vector<2x4xbf16>
    %48 = vector.extract_strided_slice %23 {offsets = [0, 4], sizes = [2, 4], strides = [1, 1]} : vector<2x16xf32> to vector<2x4xf32>
    %49 = arith.truncf %48 : vector<2x4xf32> to vector<2x4xbf16>
    %cst_24 = arith.constant dense<0.000000e+00> : vector<2x2xf32>
    %50 = tpu.matmul %47, %49, %cst_24 {dimension_numbers = #tpu.dot_dimension_numbers<[1], [1], [0], [0], [0, 0, 1, 0], [], []>} : vector<2x4xbf16>, vector<2x4xbf16>, vector<2x2xf32> -> vector<2x2xf32>
    %cst_25 = arith.constant 5.000000e-01 : f32
    %51 = vector.broadcast %cst_25 : f32 to vector<2x2xf32>
    %52 = arith.mulf %50, %51 : vector<2x2xf32>
    %cst_26 = arith.constant dense<0xFF800000> : vector<2xf32>
    %53 = vector.multi_reduction <maximumf>, %52, %cst_26 [1] : vector<2x2xf32> to vector<2xf32>
    %54 = vector.shape_cast %53 : vector<2xf32> to vector<2x1xf32>
    %55 = vector.broadcast %54 : vector<2x1xf32> to vector<2x2xf32>
    %56 = arith.subf %52, %55 : vector<2x2xf32>
    %57 = math.exp %56 : vector<2x2xf32>
    %cst_27 = arith.constant dense<0.000000e+00> : vector<2xf32>
    %58 = vector.multi_reduction <add>, %57, %cst_27 [1] : vector<2x2xf32> to vector<2xf32>
    %59 = vector.shape_cast %58 : vector<2xf32> to vector<2x1xf32>
    %60 = tpu.reciprocal %59 {approx = true} : vector<2x1xf32> -> vector<2x1xf32>
    %61 = vector.broadcast %60 : vector<2x1xf32> to vector<2x2xf32>
    %62 = arith.mulf %57, %61 : vector<2x2xf32>
    %63 = vector.extract_strided_slice %24 {offsets = [0, 4], sizes = [2, 4], strides = [1, 1]} : vector<2x16xf32> to vector<2x4xf32>
    %64 = arith.truncf %62 : vector<2x2xf32> to vector<2x2xbf16>
    %65 = arith.truncf %63 : vector<2x4xf32> to vector<2x4xbf16>
    %cst_28 = arith.constant dense<0.000000e+00> : vector<2x4xf32>
    %66 = tpu.matmul %64, %65, %cst_28 {dimension_numbers = #tpu.dot_dimension_numbers<[1], [0], [0], [1], [0, 0, 1, 1], [], []>} : vector<2x2xbf16>, vector<2x4xbf16>, vector<2x4xf32> -> vector<2x4xf32>
    %67 = vector.extract_strided_slice %22 {offsets = [0, 8], sizes = [2, 4], strides = [1, 1]} : vector<2x16xf32> to vector<2x4xf32>
    %68 = arith.truncf %67 : vector<2x4xf32> to vector<2x4xbf16>
    %69 = vector.extract_strided_slice %23 {offsets = [0, 8], sizes = [2, 4], strides = [1, 1]} : vector<2x16xf32> to vector<2x4xf32>
    %70 = arith.truncf %69 : vector<2x4xf32> to vector<2x4xbf16>
    %cst_29 = arith.constant dense<0.000000e+00> : vector<2x2xf32>
    %71 = tpu.matmul %68, %70, %cst_29 {dimension_numbers = #tpu.dot_dimension_numbers<[1], [1], [0], [0], [0, 0, 1, 0], [], []>} : vector<2x4xbf16>, vector<2x4xbf16>, vector<2x2xf32> -> vector<2x2xf32>
    %cst_30 = arith.constant 5.000000e-01 : f32
    %72 = vector.broadcast %cst_30 : f32 to vector<2x2xf32>
    %73 = arith.mulf %71, %72 : vector<2x2xf32>
    %cst_31 = arith.constant dense<0xFF800000> : vector<2xf32>
    %74 = vector.multi_reduction <maximumf>, %73, %cst_31 [1] : vector<2x2xf32> to vector<2xf32>
    %75 = vector.shape_cast %74 : vector<2xf32> to vector<2x1xf32>
    %76 = vector.broadcast %75 : vector<2x1xf32> to vector<2x2xf32>
    %77 = arith.subf %73, %76 : vector<2x2xf32>
    %78 = math.exp %77 : vector<2x2xf32>
    %cst_32 = arith.constant dense<0.000000e+00> : vector<2xf32>
    %79 = vector.multi_reduction <add>, %78, %cst_32 [1] : vector<2x2xf32> to vector<2xf32>
    %80 = vector.shape_cast %79 : vector<2xf32> to vector<2x1xf32>
    %81 = tpu.reciprocal %80 {approx = true} : vector<2x1xf32> -> vector<2x1xf32>
    %82 = vector.broadcast %81 : vector<2x1xf32> to vector<2x2xf32>
    %83 = arith.mulf %78, %82 : vector<2x2xf32>
    %84 = vector.extract_strided_slice %24 {offsets = [0, 8], sizes = [2, 4], strides = [1, 1]} : vector<2x16xf32> to vector<2x4xf32>
    %85 = arith.truncf %83 : vector<2x2xf32> to vector<2x2xbf16>
    %86 = arith.truncf %84 : vector<2x4xf32> to vector<2x4xbf16>
    %cst_33 = arith.constant dense<0.000000e+00> : vector<2x4xf32>
    %87 = tpu.matmul %85, %86, %cst_33 {dimension_numbers = #tpu.dot_dimension_numbers<[1], [0], [0], [1], [0, 0, 1, 1], [], []>} : vector<2x2xbf16>, vector<2x4xbf16>, vector<2x4xf32> -> vector<2x4xf32>
    %88 = vector.extract_strided_slice %22 {offsets = [0, 12], sizes = [2, 4], strides = [1, 1]} : vector<2x16xf32> to vector<2x4xf32>
    %89 = arith.truncf %88 : vector<2x4xf32> to vector<2x4xbf16>
    %90 = vector.extract_strided_slice %23 {offsets = [0, 12], sizes = [2, 4], strides = [1, 1]} : vector<2x16xf32> to vector<2x4xf32>
    %91 = arith.truncf %90 : vector<2x4xf32> to vector<2x4xbf16>
    %cst_34 = arith.constant dense<0.000000e+00> : vector<2x2xf32>
    %92 = tpu.matmul %89, %91, %cst_34 {dimension_numbers = #tpu.dot_dimension_numbers<[1], [1], [0], [0], [0, 0, 1, 0], [], []>} : vector<2x4xbf16>, vector<2x4xbf16>, vector<2x2xf32> -> vector<2x2xf32>
    %cst_35 = arith.constant 5.000000e-01 : f32
    %93 = vector.broadcast %cst_35 : f32 to vector<2x2xf32>
    %94 = arith.mulf %92, %93 : vector<2x2xf32>
    %cst_36 = arith.constant dense<0xFF800000> : vector<2xf32>
    %95 = vector.multi_reduction <maximumf>, %94, %cst_36 [1] : vector<2x2xf32> to vector<2xf32>
    %96 = vector.shape_cast %95 : vector<2xf32> to vector<2x1xf32>
    %97 = vector.broadcast %96 : vector<2x1xf32> to vector<2x2xf32>
    %98 = arith.subf %94, %97 : vector<2x2xf32>
    %99 = math.exp %98 : vector<2x2xf32>
    %cst_37 = arith.constant dense<0.000000e+00> : vector<2xf32>
    %100 = vector.multi_reduction <add>, %99, %cst_37 [1] : vector<2x2xf32> to vector<2xf32>
    %101 = vector.shape_cast %100 : vector<2xf32> to vector<2x1xf32>
    %102 = tpu.reciprocal %101 {approx = true} : vector<2x1xf32> -> vector<2x1xf32>
    %103 = vector.broadcast %102 : vector<2x1xf32> to vector<2x2xf32>
    %104 = arith.mulf %99, %103 : vector<2x2xf32>
    %105 = vector.extract_strided_slice %24 {offsets = [0, 12], sizes = [2, 4], strides = [1, 1]} : vector<2x16xf32> to vector<2x4xf32>
    %106 = arith.truncf %104 : vector<2x2xf32> to vector<2x2xbf16>
    %107 = arith.truncf %105 : vector<2x4xf32> to vector<2x4xbf16>
    %cst_38 = arith.constant dense<0.000000e+00> : vector<2x4xf32>
    %108 = tpu.matmul %106, %107, %cst_38 {dimension_numbers = #tpu.dot_dimension_numbers<[1], [0], [0], [1], [0, 0, 1, 1], [], []>} : vector<2x2xbf16>, vector<2x4xbf16>, vector<2x4xf32> -> vector<2x4xf32>
    %109 = tpu.concatenate %45, %66, %87, %108 in 1 : vector<2x4xf32>, vector<2x4xf32>, vector<2x4xf32>, vector<2x4xf32> -> vector<2x16xf32>
    %110 = vector.extract_strided_slice %21 {offsets = [0, 0], sizes = [2, 16], strides = [1, 1]} : vector<2x48xf32> to vector<2x16xf32>
    %111 = vector.extract_strided_slice %12 {offsets = [0, 16], sizes = [2, 16], strides = [1, 1]} : vector<2x48xf32> to vector<2x16xf32>
    %112 = vector.extract_strided_slice %12 {offsets = [0, 32], sizes = [2, 16], strides = [1, 1]} : vector<2x48xf32> to vector<2x16xf32>
    %113 = vector.extract_strided_slice %110 {offsets = [0, 0], sizes = [2, 4], strides = [1, 1]} : vector<2x16xf32> to vector<2x4xf32>
    %114 = arith.truncf %113 : vector<2x4xf32> to vector<2x4xbf16>
    %115 = vector.extract_strided_slice %111 {offsets = [0, 0], sizes = [2, 4], strides = [1, 1]} : vector<2x16xf32> to vector<2x4xf32>
    %116 = arith.truncf %115 : vector<2x4xf32> to vector<2x4xbf16>
    %cst_39 = arith.constant dense<0.000000e+00> : vector<2x2xf32>
    %117 = tpu.matmul %114, %116, %cst_39 {dimension_numbers = #tpu.dot_dimension_numbers<[1], [1], [0], [0], [0, 0, 1, 0], [], []>} : vector<2x4xbf16>, vector<2x4xbf16>, vector<2x2xf32> -> vector<2x2xf32>
    %cst_40 = arith.constant 5.000000e-01 : f32
    %118 = vector.broadcast %cst_40 : f32 to vector<2x2xf32>
    %119 = arith.mulf %117, %118 : vector<2x2xf32>
    %cst_41 = arith.constant dense<0xFF800000> : vector<2xf32>
    %120 = vector.multi_reduction <maximumf>, %119, %cst_41 [1] : vector<2x2xf32> to vector<2xf32>
    %121 = vector.shape_cast %120 : vector<2xf32> to vector<2x1xf32>
    %122 = vector.broadcast %121 : vector<2x1xf32> to vector<2x2xf32>
    %123 = arith.subf %119, %122 : vector<2x2xf32>
    %124 = math.exp %123 : vector<2x2xf32>
    %cst_42 = arith.constant dense<0.000000e+00> : vector<2xf32>
    %125 = vector.multi_reduction <add>, %124, %cst_42 [1] : vector<2x2xf32> to vector<2xf32>
    %126 = vector.shape_cast %125 : vector<2xf32> to vector<2x1xf32>
    %127 = tpu.reciprocal %126 {approx = true} : vector<2x1xf32> -> vector<2x1xf32>
    %128 = vector.broadcast %127 : vector<2x1xf32> to vector<2x2xf32>
    %129 = arith.mulf %124, %128 : vector<2x2xf32>
    %130 = vector.extract_strided_slice %112 {offsets = [0, 0], sizes = [2, 4], strides = [1, 1]} : vector<2x16xf32> to vector<2x4xf32>
    %131 = arith.truncf %129 : vector<2x2xf32> to vector<2x2xbf16>
    %132 = arith.truncf %130 : vector<2x4xf32> to vector<2x4xbf16>
    %cst_43 = arith.constant dense<0.000000e+00> : vector<2x4xf32>
    %133 = tpu.matmul %131, %132, %cst_43 {dimension_numbers = #tpu.dot_dimension_numbers<[1], [0], [0], [1], [0, 0, 1, 1], [], []>} : vector<2x2xbf16>, vector<2x4xbf16>, vector<2x4xf32> -> vector<2x4xf32>
    %134 = vector.extract_strided_slice %110 {offsets = [0, 4], sizes = [2, 4], strides = [1, 1]} : vector<2x16xf32> to vector<2x4xf32>
    %135 = arith.truncf %134 : vector<2x4xf32> to vector<2x4xbf16>
    %136 = vector.extract_strided_slice %111 {offsets = [0, 4], sizes = [2, 4], strides = [1, 1]} : vector<2x16xf32> to vector<2x4xf32>
    %137 = arith.truncf %136 : vector<2x4xf32> to vector<2x4xbf16>
    %cst_44 = arith.constant dense<0.000000e+00> : vector<2x2xf32>
    %138 = tpu.matmul %135, %137, %cst_44 {dimension_numbers = #tpu.dot_dimension_numbers<[1], [1], [0], [0], [0, 0, 1, 0], [], []>} : vector<2x4xbf16>, vector<2x4xbf16>, vector<2x2xf32> -> vector<2x2xf32>
    %cst_45 = arith.constant 5.000000e-01 : f32
    %139 = vector.broadcast %cst_45 : f32 to vector<2x2xf32>
    %140 = arith.mulf %138, %139 : vector<2x2xf32>
    %cst_46 = arith.constant dense<0xFF800000> : vector<2xf32>
    %141 = vector.multi_reduction <maximumf>, %140, %cst_46 [1] : vector<2x2xf32> to vector<2xf32>
    %142 = vector.shape_cast %141 : vector<2xf32> to vector<2x1xf32>
    %143 = vector.broadcast %142 : vector<2x1xf32> to vector<2x2xf32>
    %144 = arith.subf %140, %143 : vector<2x2xf32>
    %145 = math.exp %144 : vector<2x2xf32>
    %cst_47 = arith.constant dense<0.000000e+00> : vector<2xf32>
    %146 = vector.multi_reduction <add>, %145, %cst_47 [1] : vector<2x2xf32> to vector<2xf32>
    %147 = vector.shape_cast %146 : vector<2xf32> to vector<2x1xf32>
    %148 = tpu.reciprocal %147 {approx = true} : vector<2x1xf32> -> vector<2x1xf32>
    %149 = vector.broadcast %148 : vector<2x1xf32> to vector<2x2xf32>
    %150 = arith.mulf %145, %149 : vector<2x2xf32>
    %151 = vector.extract_strided_slice %112 {offsets = [0, 4], sizes = [2, 4], strides = [1, 1]} : vector<2x16xf32> to vector<2x4xf32>
    %152 = arith.truncf %150 : vector<2x2xf32> to vector<2x2xbf16>
    %153 = arith.truncf %151 : vector<2x4xf32> to vector<2x4xbf16>
    %cst_48 = arith.constant dense<0.000000e+00> : vector<2x4xf32>
    %154 = tpu.matmul %152, %153, %cst_48 {dimension_numbers = #tpu.dot_dimension_numbers<[1], [0], [0], [1], [0, 0, 1, 1], [], []>} : vector<2x2xbf16>, vector<2x4xbf16>, vector<2x4xf32> -> vector<2x4xf32>
    %155 = vector.extract_strided_slice %110 {offsets = [0, 8], sizes = [2, 4], strides = [1, 1]} : vector<2x16xf32> to vector<2x4xf32>
    %156 = arith.truncf %155 : vector<2x4xf32> to vector<2x4xbf16>
    %157 = vector.extract_strided_slice %111 {offsets = [0, 8], sizes = [2, 4], strides = [1, 1]} : vector<2x16xf32> to vector<2x4xf32>
    %158 = arith.truncf %157 : vector<2x4xf32> to vector<2x4xbf16>
    %cst_49 = arith.constant dense<0.000000e+00> : vector<2x2xf32>
    %159 = tpu.matmul %156, %158, %cst_49 {dimension_numbers = #tpu.dot_dimension_numbers<[1], [1], [0], [0], [0, 0, 1, 0], [], []>} : vector<2x4xbf16>, vector<2x4xbf16>, vector<2x2xf32> -> vector<2x2xf32>
    %cst_50 = arith.constant 5.000000e-01 : f32
    %160 = vector.broadcast %cst_50 : f32 to vector<2x2xf32>
    %161 = arith.mulf %159, %160 : vector<2x2xf32>
    %cst_51 = arith.constant dense<0xFF800000> : vector<2xf32>
    %162 = vector.multi_reduction <maximumf>, %161, %cst_51 [1] : vector<2x2xf32> to vector<2xf32>
    %163 = vector.shape_cast %162 : vector<2xf32> to vector<2x1xf32>
    %164 = vector.broadcast %163 : vector<2x1xf32> to vector<2x2xf32>
    %165 = arith.subf %161, %164 : vector<2x2xf32>
    %166 = math.exp %165 : vector<2x2xf32>
    %cst_52 = arith.constant dense<0.000000e+00> : vector<2xf32>
    %167 = vector.multi_reduction <add>, %166, %cst_52 [1] : vector<2x2xf32> to vector<2xf32>
    %168 = vector.shape_cast %167 : vector<2xf32> to vector<2x1xf32>
    %169 = tpu.reciprocal %168 {approx = true} : vector<2x1xf32> -> vector<2x1xf32>
    %170 = vector.broadcast %169 : vector<2x1xf32> to vector<2x2xf32>
    %171 = arith.mulf %166, %170 : vector<2x2xf32>
    %172 = vector.extract_strided_slice %112 {offsets = [0, 8], sizes = [2, 4], strides = [1, 1]} : vector<2x16xf32> to vector<2x4xf32>
    %173 = arith.truncf %171 : vector<2x2xf32> to vector<2x2xbf16>
    %174 = arith.truncf %172 : vector<2x4xf32> to vector<2x4xbf16>
    %cst_53 = arith.constant dense<0.000000e+00> : vector<2x4xf32>
    %175 = tpu.matmul %173, %174, %cst_53 {dimension_numbers = #tpu.dot_dimension_numbers<[1], [0], [0], [1], [0, 0, 1, 1], [], []>} : vector<2x2xbf16>, vector<2x4xbf16>, vector<2x4xf32> -> vector<2x4xf32>
    %176 = vector.extract_strided_slice %110 {offsets = [0, 12], sizes = [2, 4], strides = [1, 1]} : vector<2x16xf32> to vector<2x4xf32>
    %177 = arith.truncf %176 : vector<2x4xf32> to vector<2x4xbf16>
    %178 = vector.extract_strided_slice %111 {offsets = [0, 12], sizes = [2, 4], strides = [1, 1]} : vector<2x16xf32> to vector<2x4xf32>
    %179 = arith.truncf %178 : vector<2x4xf32> to vector<2x4xbf16>
    %cst_54 = arith.constant dense<0.000000e+00> : vector<2x2xf32>
    %180 = tpu.matmul %177, %179, %cst_54 {dimension_numbers = #tpu.dot_dimension_numbers<[1], [1], [0], [0], [0, 0, 1, 0], [], []>} : vector<2x4xbf16>, vector<2x4xbf16>, vector<2x2xf32> -> vector<2x2xf32>
    %cst_55 = arith.constant 5.000000e-01 : f32
    %181 = vector.broadcast %cst_55 : f32 to vector<2x2xf32>
    %182 = arith.mulf %180, %181 : vector<2x2xf32>
    %cst_56 = arith.constant dense<0xFF800000> : vector<2xf32>
    %183 = vector.multi_reduction <maximumf>, %182, %cst_56 [1] : vector<2x2xf32> to vector<2xf32>
    %184 = vector.shape_cast %183 : vector<2xf32> to vector<2x1xf32>
    %185 = vector.broadcast %184 : vector<2x1xf32> to vector<2x2xf32>
    %186 = arith.subf %182, %185 : vector<2x2xf32>
    %187 = math.exp %186 : vector<2x2xf32>
    %cst_57 = arith.constant dense<0.000000e+00> : vector<2xf32>
    %188 = vector.multi_reduction <add>, %187, %cst_57 [1] : vector<2x2xf32> to vector<2xf32>
    %189 = vector.shape_cast %188 : vector<2xf32> to vector<2x1xf32>
    %190 = tpu.reciprocal %189 {approx = true} : vector<2x1xf32> -> vector<2x1xf32>
    %191 = vector.broadcast %190 : vector<2x1xf32> to vector<2x2xf32>
    %192 = arith.mulf %187, %191 : vector<2x2xf32>
    %193 = vector.extract_strided_slice %112 {offsets = [0, 12], sizes = [2, 4], strides = [1, 1]} : vector<2x16xf32> to vector<2x4xf32>
    %194 = arith.truncf %192 : vector<2x2xf32> to vector<2x2xbf16>
    %195 = arith.truncf %193 : vector<2x4xf32> to vector<2x4xbf16>
    %cst_58 = arith.constant dense<0.000000e+00> : vector<2x4xf32>
    %196 = tpu.matmul %194, %195, %cst_58 {dimension_numbers = #tpu.dot_dimension_numbers<[1], [0], [0], [1], [0, 0, 1, 1], [], []>} : vector<2x2xbf16>, vector<2x4xbf16>, vector<2x4xf32> -> vector<2x4xf32>
    %197 = tpu.concatenate %133, %154, %175, %196 in 1 : vector<2x4xf32>, vector<2x4xf32>, vector<2x4xf32>, vector<2x4xf32> -> vector<2x16xf32>
    %c0_59 = arith.constant 0 : index
    %c0_60 = arith.constant 0 : index
    %c0_61 = arith.constant 0 : index
    %198 = vector.load %arg6[%c0_59, %c0_60, %c0_61] : memref<2x16x16xf32, #tpu.memory_space<vmem>>, vector<1x16x16xf32>
    %199 = vector.shape_cast %198 : vector<1x16x16xf32> to vector<16x16xf32>
    %200 = arith.truncf %109 : vector<2x16xf32> to vector<2x16xbf16>
    %201 = arith.truncf %199 : vector<16x16xf32> to vector<16x16xbf16>
    %cst_62 = arith.constant dense<0.000000e+00> : vector<2x16xf32>
    %202 = tpu.matmul %200, %201, %cst_62 {dimension_numbers = #tpu.dot_dimension_numbers<[1], [0], [0], [1], [0, 0, 1, 1], [], []>} : vector<2x16xbf16>, vector<16x16xbf16>, vector<2x16xf32> -> vector<2x16xf32>
    %c0_63 = arith.constant 0 : index
    %c0_64 = arith.constant 0 : index
    %c0_65 = arith.constant 0 : index
    %203 = vector.load %arg7[%c0_63, %c0_64, %c0_65] : memref<2x1x16xf32, #tpu.memory_space<vmem>>, vector<1x1x16xf32>
    %204 = vector.shape_cast %203 : vector<1x1x16xf32> to vector<1x16xf32>
    %205 = vector.broadcast %204 : vector<1x16xf32> to vector<2x16xf32>
    %206 = arith.addf %202, %205 : vector<2x16xf32>
    %207 = arith.addf %206, %1 : vector<2x16xf32>
    %c1_66 = arith.constant 1 : index
    %c0_67 = arith.constant 0 : index
    %c0_68 = arith.constant 0 : index
    %208 = vector.load %arg6[%c1_66, %c0_67, %c0_68] : memref<2x16x16xf32, #tpu.memory_space<vmem>>, vector<1x16x16xf32>
    %209 = vector.shape_cast %208 : vector<1x16x16xf32> to vector<16x16xf32>
    %210 = arith.truncf %197 : vector<2x16xf32> to vector<2x16xbf16>
    %211 = arith.truncf %209 : vector<16x16xf32> to vector<16x16xbf16>
    %cst_69 = arith.constant dense<0.000000e+00> : vector<2x16xf32>
    %212 = tpu.matmul %210, %211, %cst_69 {dimension_numbers = #tpu.dot_dimension_numbers<[1], [0], [0], [1], [0, 0, 1, 1], [], []>} : vector<2x16xbf16>, vector<16x16xbf16>, vector<2x16xf32> -> vector<2x16xf32>
    %c1_70 = arith.constant 1 : index
    %c0_71 = arith.constant 0 : index
    %c0_72 = arith.constant 0 : index
    %213 = vector.load %arg7[%c1_70, %c0_71, %c0_72] : memref<2x1x16xf32, #tpu.memory_space<vmem>>, vector<1x1x16xf32>
    %214 = vector.shape_cast %213 : vector<1x1x16xf32> to vector<1x16xf32>
    %215 = vector.broadcast %214 : vector<1x16xf32> to vector<2x16xf32>
    %216 = arith.addf %212, %215 : vector<2x16xf32>
    %217 = arith.addf %216, %3 : vector<2x16xf32>
    %c0_73 = arith.constant 0 : index
    %c0_74 = arith.constant 0 : index
    %c0_75 = arith.constant 0 : index
    %218 = vector.load %arg8[%c0_73, %c0_74, %c0_75] : memref<2x1x16xf32, #tpu.memory_space<vmem>>, vector<1x1x16xf32>
    %219 = vector.shape_cast %218 : vector<1x1x16xf32> to vector<1x16xf32>
    %c0_76 = arith.constant 0 : index
    %c0_77 = arith.constant 0 : index
    %c0_78 = arith.constant 0 : index
    %220 = vector.load %arg9[%c0_76, %c0_77, %c0_78] : memref<2x1x16xf32, #tpu.memory_space<vmem>>, vector<1x1x16xf32>
    %221 = vector.shape_cast %220 : vector<1x1x16xf32> to vector<1x16xf32>
    %cst_79 = arith.constant dense<0.000000e+00> : vector<2xf32>
    %222 = vector.multi_reduction <add>, %207, %cst_79 [1] : vector<2x16xf32> to vector<2xf32>
    %223 = vector.shape_cast %222 : vector<2xf32> to vector<2x1xf32>
    %cst_80 = arith.constant 1.600000e+01 : f32
    %224 = vector.broadcast %cst_80 : f32 to vector<2x1xf32>
    %225 = arith.divf %223, %224 : vector<2x1xf32>
    %226 = vector.broadcast %225 : vector<2x1xf32> to vector<2x16xf32>
    %227 = arith.subf %207, %226 : vector<2x16xf32>
    %228 = arith.mulf %227, %227 : vector<2x16xf32>
    %cst_81 = arith.constant dense<0.000000e+00> : vector<2xf32>
    %229 = vector.multi_reduction <add>, %228, %cst_81 [1] : vector<2x16xf32> to vector<2xf32>
    %230 = vector.shape_cast %229 : vector<2xf32> to vector<2x1xf32>
    %cst_82 = arith.constant 1.600000e+01 : f32
    %231 = vector.broadcast %cst_82 : f32 to vector<2x1xf32>
    %232 = arith.divf %230, %231 : vector<2x1xf32>
    %233 = vector.broadcast %225 : vector<2x1xf32> to vector<2x16xf32>
    %234 = arith.subf %207, %233 : vector<2x16xf32>
    %cst_83 = arith.constant 9.99999974E-6 : f32
    %235 = vector.broadcast %cst_83 : f32 to vector<2x1xf32>
    %236 = arith.addf %232, %235 : vector<2x1xf32>
    %237 = math.rsqrt %236 : vector<2x1xf32>
    %238 = vector.broadcast %237 : vector<2x1xf32> to vector<2x16xf32>
    %239 = arith.mulf %234, %238 : vector<2x16xf32>
    %240 = vector.broadcast %219 : vector<1x16xf32> to vector<2x16xf32>
    %241 = arith.mulf %239, %240 : vector<2x16xf32>
    %242 = vector.broadcast %221 : vector<1x16xf32> to vector<2x16xf32>
    %243 = arith.addf %241, %242 : vector<2x16xf32>
    %c0_84 = arith.constant 0 : index
    %c0_85 = arith.constant 0 : index
    %c0_86 = arith.constant 0 : index
    %c0_87 = arith.constant 0 : index
    %244 = vector.load %arg10[%c0_84, %c0_85, %c0_86, %c0_87] : memref<1x1x2x16xf32, #tpu.memory_space<vmem>>, vector<1x1x2x16xf32>
    %245 = vector.shape_cast %244 : vector<1x1x2x16xf32> to vector<2x16xf32>
    %246 = vector.shape_cast %243 : vector<2x16xf32> to vector<1x1x2x16xf32>
    tpu.vector_store %arg10[%c0_84, %c0_85, %c0_86, %c0_87], %246 {strides = array<i32>} : memref<1x1x2x16xf32, #tpu.memory_space<vmem>>, vector<1x1x2x16xf32>,
    %c1_88 = arith.constant 1 : index
    %c0_89 = arith.constant 0 : index
    %c0_90 = arith.constant 0 : index
    %247 = vector.load %arg8[%c1_88, %c0_89, %c0_90] : memref<2x1x16xf32, #tpu.memory_space<vmem>>, vector<1x1x16xf32>
    %248 = vector.shape_cast %247 : vector<1x1x16xf32> to vector<1x16xf32>
    %c1_91 = arith.constant 1 : index
    %c0_92 = arith.constant 0 : index
    %c0_93 = arith.constant 0 : index
    %249 = vector.load %arg9[%c1_91, %c0_92, %c0_93] : memref<2x1x16xf32, #tpu.memory_space<vmem>>, vector<1x1x16xf32>
    %250 = vector.shape_cast %249 : vector<1x1x16xf32> to vector<1x16xf32>
    %cst_94 = arith.constant dense<0.000000e+00> : vector<2xf32>
    %251 = vector.multi_reduction <add>, %217, %cst_94 [1] : vector<2x16xf32> to vector<2xf32>
    %252 = vector.shape_cast %251 : vector<2xf32> to vector<2x1xf32>
    %cst_95 = arith.constant 1.600000e+01 : f32
    %253 = vector.broadcast %cst_95 : f32 to vector<2x1xf32>
    %254 = arith.divf %252, %253 : vector<2x1xf32>
    %255 = vector.broadcast %254 : vector<2x1xf32> to vector<2x16xf32>
    %256 = arith.subf %217, %255 : vector<2x16xf32>
    %257 = arith.mulf %256, %256 : vector<2x16xf32>
    %cst_96 = arith.constant dense<0.000000e+00> : vector<2xf32>
    %258 = vector.multi_reduction <add>, %257, %cst_96 [1] : vector<2x16xf32> to vector<2xf32>
    %259 = vector.shape_cast %258 : vector<2xf32> to vector<2x1xf32>
    %cst_97 = arith.constant 1.600000e+01 : f32
    %260 = vector.broadcast %cst_97 : f32 to vector<2x1xf32>
    %261 = arith.divf %259, %260 : vector<2x1xf32>
    %262 = vector.broadcast %254 : vector<2x1xf32> to vector<2x16xf32>
    %263 = arith.subf %217, %262 : vector<2x16xf32>
    %cst_98 = arith.constant 9.99999974E-6 : f32
    %264 = vector.broadcast %cst_98 : f32 to vector<2x1xf32>
    %265 = arith.addf %261, %264 : vector<2x1xf32>
    %266 = math.rsqrt %265 : vector<2x1xf32>
    %267 = vector.broadcast %266 : vector<2x1xf32> to vector<2x16xf32>
    %268 = arith.mulf %263, %267 : vector<2x16xf32>
    %269 = vector.broadcast %248 : vector<1x16xf32> to vector<2x16xf32>
    %270 = arith.mulf %268, %269 : vector<2x16xf32>
    %271 = vector.broadcast %250 : vector<1x16xf32> to vector<2x16xf32>
    %272 = arith.addf %270, %271 : vector<2x16xf32>
    %c0_99 = arith.constant 0 : index
    %c0_100 = arith.constant 0 : index
    %c0_101 = arith.constant 0 : index
    %c0_102 = arith.constant 0 : index
    %273 = vector.load %arg11[%c0_99, %c0_100, %c0_101, %c0_102] : memref<1x1x2x16xf32, #tpu.memory_space<vmem>>, vector<1x1x2x16xf32>
    %274 = vector.shape_cast %273 : vector<1x1x2x16xf32> to vector<2x16xf32>
    %275 = vector.shape_cast %272 : vector<2x16xf32> to vector<1x1x2x16xf32>
    tpu.vector_store %arg11[%c0_99, %c0_100, %c0_101, %c0_102], %275 {strides = array<i32>} : memref<1x1x2x16xf32, #tpu.memory_space<vmem>>, vector<1x1x2x16xf32>,
    return
  }
  func.func @transform_0(%arg0: i32, %arg1: i32) -> (i32, i32, i32, i32) {
    %c0_i32 = arith.constant 0 : i32
    %c0_i32_0 = arith.constant 0 : i32
    %c0_i32_1 = arith.constant 0 : i32
    return %arg0, %arg1, %c0_i32, %c0_i32_0 : i32, i32, i32, i32
  }
  func.func @transform_1(%arg0: i32, %arg1: i32) -> (i32, i32, i32, i32) {
    %c0_i32 = arith.constant 0 : i32
    %c0_i32_0 = arith.constant 0 : i32
    %c0_i32_1 = arith.constant 0 : i32
    return %arg0, %arg1, %c0_i32, %c0_i32_0 : i32, i32, i32, i32
  }
  func.func @transform_2(%arg0: i32, %arg1: i32) -> (i32, i32, i32) {
    %c0_i32 = arith.constant 0 : i32
    %c0_i32_0 = arith.constant 0 : i32
    %c0_i32_1 = arith.constant 0 : i32
    %c0_i32_2 = arith.constant 0 : i32
    return %c0_i32, %c0_i32_0, %c0_i32_1 : i32, i32, i32
  }
  func.func @transform_3(%arg0: i32, %arg1: i32) -> (i32, i32, i32) {
    %c0_i32 = arith.constant 0 : i32
    %c0_i32_0 = arith.constant 0 : i32
    %c0_i32_1 = arith.constant 0 : i32
    %c0_i32_2 = arith.constant 0 : i32
    return %c0_i32, %c0_i32_0, %c0_i32_1 : i32, i32, i32
  }
  func.func @transform_4(%arg0: i32, %arg1: i32) -> (i32, i32, i32) {
    %c0_i32 = arith.constant 0 : i32
    %c0_i32_0 = arith.constant 0 : i32
    %c0_i32_1 = arith.constant 0 : i32
    %c0_i32_2 = arith.constant 0 : i32
    return %c0_i32, %c0_i32_0, %c0_i32_1 : i32, i32, i32
  }
  func.func @transform_5(%arg0: i32, %arg1: i32) -> (i32, i32, i32) {
    %c0_i32 = arith.constant 0 : i32
    %c0_i32_0 = arith.constant 0 : i32
    %c0_i32_1 = arith.constant 0 : i32
    %c0_i32_2 = arith.constant 0 : i32
    return %c0_i32, %c0_i32_0, %c0_i32_1 : i32, i32, i32
  }
  func.func @transform_6(%arg0: i32, %arg1: i32) -> (i32, i32, i32) {
    %c0_i32 = arith.constant 0 : i32
    %c0_i32_0 = arith.constant 0 : i32
    %c0_i32_1 = arith.constant 0 : i32
    %c0_i32_2 = arith.constant 0 : i32
    return %c0_i32, %c0_i32_0, %c0_i32_1 : i32, i32, i32
  }
  func.func @transform_7(%arg0: i32, %arg1: i32) -> (i32, i32, i32) {
    %c0_i32 = arith.constant 0 : i32
    %c0_i32_0 = arith.constant 0 : i32
    %c0_i32_1 = arith.constant 0 : i32
    %c0_i32_2 = arith.constant 0 : i32
    return %c0_i32, %c0_i32_0, %c0_i32_1 : i32, i32, i32
  }
  func.func @transform_8(%arg0: i32, %arg1: i32) -> (i32, i32, i32, i32) {
    %c0_i32 = arith.constant 0 : i32
    %c0_i32_0 = arith.constant 0 : i32
    %c0_i32_1 = arith.constant 0 : i32
    return %arg0, %arg1, %c0_i32, %c0_i32_0 : i32, i32, i32, i32
  }
  func.func @transform_9(%arg0: i32, %arg1: i32) -> (i32, i32, i32, i32) {
    %c0_i32 = arith.constant 0 : i32
    %c0_i32_0 = arith.constant 0 : i32
    %c0_i32_1 = arith.constant 0 : i32
    return %arg0, %arg1, %c0_i32, %c0_i32_0 : i32, i32, i32, i32
  }
}

module attributes {stable_mosaic.version = 11 : i64} {
  func.func @_prelu_linear_kernel(%arg0: i32, %arg1: memref<128x16xf32, #tpu.memory_space<vmem>>, %arg2: memref<1x1xf32, #tpu.memory_space<vmem>>, %arg3: memref<16x32xf32, #tpu.memory_space<vmem>>, %arg4: memref<1x32xf32, #tpu.memory_space<vmem>>, %arg5: memref<128x32xf32, #tpu.memory_space<vmem>>) attributes {dimension_semantics = [#tpu.dimension_semantics<parallel>], iteration_bounds = array<i64: 1>, scalar_prefetch = 0 : i64, scratch_operands = 0 : i64, tpu.core_type = #tpu.core_type<tc>, window_params = [{transform_indices = @transform_0, window_bounds = array<i64: 128, 16>}, {pipeline_mode = #tpu.pipeline_mode<synchronous>, transform_indices = @transform_1, window_bounds = array<i64: 1, 1>}, {pipeline_mode = #tpu.pipeline_mode<synchronous>, transform_indices = @transform_2, window_bounds = array<i64: 16, 32>}, {pipeline_mode = #tpu.pipeline_mode<synchronous>, transform_indices = @transform_3, window_bounds = array<i64: 1, 32>}, {transform_indices = @transform_4, window_bounds = array<i64: 128, 32>}]} {
    %c0 = arith.constant 0 : index
    %c0_0 = arith.constant 0 : index
    %0 = vector.load %arg1[%c0, %c0_0] : memref<128x16xf32, #tpu.memory_space<vmem>>, vector<128x16xf32>
    %cst = arith.constant 0.000000e+00 : f32
    %1 = vector.broadcast %cst : f32 to vector<128x16xf32>
    %2 = arith.cmpf ogt, %0, %1 : vector<128x16xf32>
    %c0_1 = arith.constant 0 : index
    %c0_2 = arith.constant 0 : index
    %3 = vector.load %arg2[%c0_1, %c0_2] : memref<1x1xf32, #tpu.memory_space<vmem>>, vector<1x1xf32>
    %4 = vector.broadcast %3 : vector<1x1xf32> to vector<128x16xf32>
    %5 = arith.mulf %4, %0 : vector<128x16xf32>
    %6 = arith.select %2, %0, %5 : vector<128x16xi1>, vector<128x16xf32>
    %c0_3 = arith.constant 0 : index
    %c0_4 = arith.constant 0 : index
    %7 = vector.load %arg3[%c0_3, %c0_4] : memref<16x32xf32, #tpu.memory_space<vmem>>, vector<16x32xf32>
    %8 = arith.truncf %6 : vector<128x16xf32> to vector<128x16xbf16>
    %9 = arith.truncf %7 : vector<16x32xf32> to vector<16x32xbf16>
    %cst_5 = arith.constant dense<0.000000e+00> : vector<128x32xf32>
    %10 = tpu.matmul %8, %9, %cst_5 {dimension_numbers = #tpu.dot_dimension_numbers<[1], [0], [0], [1], [0, 0, 1, 1], [], []>} : vector<128x16xbf16>, vector<16x32xbf16>, vector<128x32xf32> -> vector<128x32xf32>
    %c0_6 = arith.constant 0 : index
    %c0_7 = arith.constant 0 : index
    %11 = vector.load %arg4[%c0_6, %c0_7] : memref<1x32xf32, #tpu.memory_space<vmem>>, vector<1x32xf32>
    %12 = vector.broadcast %11 : vector<1x32xf32> to vector<128x32xf32>
    %13 = arith.addf %10, %12 : vector<128x32xf32>
    %c0_8 = arith.constant 0 : index
    %c0_9 = arith.constant 0 : index
    %14 = vector.load %arg5[%c0_8, %c0_9] : memref<128x32xf32, #tpu.memory_space<vmem>>, vector<128x32xf32>
    tpu.vector_store %arg5[%c0_8, %c0_9], %13 {strides = array<i32>} : memref<128x32xf32, #tpu.memory_space<vmem>>, vector<128x32xf32>,
    return
  }
  func.func @transform_0(%arg0: i32) -> (i32, i32) {
    %c0_i32 = arith.constant 0 : i32
    %c0_i32_0 = arith.constant 0 : i32
    return %arg0, %c0_i32 : i32, i32
  }
  func.func @transform_1(%arg0: i32) -> (i32, i32) {
    %c0_i32 = arith.constant 0 : i32
    %c0_i32_0 = arith.constant 0 : i32
    %c0_i32_1 = arith.constant 0 : i32
    return %c0_i32, %c0_i32_0 : i32, i32
  }
  func.func @transform_2(%arg0: i32) -> (i32, i32) {
    %c0_i32 = arith.constant 0 : i32
    %c0_i32_0 = arith.constant 0 : i32
    %c0_i32_1 = arith.constant 0 : i32
    return %c0_i32, %c0_i32_0 : i32, i32
  }
  func.func @transform_3(%arg0: i32) -> (i32, i32) {
    %c0_i32 = arith.constant 0 : i32
    %c0_i32_0 = arith.constant 0 : i32
    %c0_i32_1 = arith.constant 0 : i32
    return %c0_i32, %c0_i32_0 : i32, i32
  }
  func.func @transform_4(%arg0: i32) -> (i32, i32) {
    %c0_i32 = arith.constant 0 : i32
    %c0_i32_0 = arith.constant 0 : i32
    return %arg0, %c0_i32 : i32, i32
  }
}

module attributes {stable_mosaic.version = 11 : i64} {
  func.func @_output_kernel(%arg0: i32, %arg1: memref<80x16xf32, #tpu.memory_space<vmem>>, %arg2: memref<16x16xf32, #tpu.memory_space<vmem>>, %arg3: memref<1x16xf32, #tpu.memory_space<vmem>>, %arg4: memref<1x16xf32, #tpu.memory_space<vmem>>, %arg5: memref<1x16xf32, #tpu.memory_space<vmem>>, %arg6: memref<16x16xf32, #tpu.memory_space<vmem>>, %arg7: memref<80x16xf32, #tpu.memory_space<vmem>>) attributes {dimension_semantics = [#tpu.dimension_semantics<parallel>], iteration_bounds = array<i64: 1>, scalar_prefetch = 0 : i64, scratch_operands = 0 : i64, tpu.core_type = #tpu.core_type<tc>, window_params = [{transform_indices = @transform_0, window_bounds = array<i64: 80, 16>}, {pipeline_mode = #tpu.pipeline_mode<synchronous>, transform_indices = @transform_1, window_bounds = array<i64: 16, 16>}, {pipeline_mode = #tpu.pipeline_mode<synchronous>, transform_indices = @transform_2, window_bounds = array<i64: 1, 16>}, {pipeline_mode = #tpu.pipeline_mode<synchronous>, transform_indices = @transform_3, window_bounds = array<i64: 1, 16>}, {pipeline_mode = #tpu.pipeline_mode<synchronous>, transform_indices = @transform_4, window_bounds = array<i64: 1, 16>}, {pipeline_mode = #tpu.pipeline_mode<synchronous>, transform_indices = @transform_5, window_bounds = array<i64: 16, 16>}, {transform_indices = @transform_6, window_bounds = array<i64: 80, 16>}]} {
    %c0 = arith.constant 0 : index
    %c0_0 = arith.constant 0 : index
    %0 = vector.load %arg1[%c0, %c0_0] : memref<80x16xf32, #tpu.memory_space<vmem>>, vector<80x16xf32>
    %c0_1 = arith.constant 0 : index
    %c0_2 = arith.constant 0 : index
    %1 = vector.load %arg2[%c0_1, %c0_2] : memref<16x16xf32, #tpu.memory_space<vmem>>, vector<16x16xf32>
    %2 = arith.truncf %0 : vector<80x16xf32> to vector<80x16xbf16>
    %3 = arith.truncf %1 : vector<16x16xf32> to vector<16x16xbf16>
    %cst = arith.constant dense<0.000000e+00> : vector<80x16xf32>
    %4 = tpu.matmul %2, %3, %cst {dimension_numbers = #tpu.dot_dimension_numbers<[1], [0], [0], [1], [0, 0, 1, 1], [], []>} : vector<80x16xbf16>, vector<16x16xbf16>, vector<80x16xf32> -> vector<80x16xf32>
    %c0_3 = arith.constant 0 : index
    %c0_4 = arith.constant 0 : index
    %5 = vector.load %arg3[%c0_3, %c0_4] : memref<1x16xf32, #tpu.memory_space<vmem>>, vector<1x16xf32>
    %6 = vector.broadcast %5 : vector<1x16xf32> to vector<80x16xf32>
    %7 = arith.addf %4, %6 : vector<80x16xf32>
    %8 = math.tanh %7 : vector<80x16xf32>
    %c0_5 = arith.constant 0 : index
    %c0_6 = arith.constant 0 : index
    %9 = vector.load %arg4[%c0_5, %c0_6] : memref<1x16xf32, #tpu.memory_space<vmem>>, vector<1x16xf32>
    %10 = vector.broadcast %9 : vector<1x16xf32> to vector<80x16xf32>
    %11 = arith.mulf %0, %10 : vector<80x16xf32>
    %c0_7 = arith.constant 0 : index
    %c0_8 = arith.constant 0 : index
    %12 = vector.load %arg5[%c0_7, %c0_8] : memref<1x16xf32, #tpu.memory_space<vmem>>, vector<1x16xf32>
    %13 = vector.broadcast %12 : vector<1x16xf32> to vector<80x16xf32>
    %14 = arith.addf %11, %13 : vector<80x16xf32>
    %15 = arith.negf %14 : vector<80x16xf32>
    %16 = math.exp %15 : vector<80x16xf32>
    %cst_9 = arith.constant 1.000000e+00 : f32
    %17 = vector.broadcast %cst_9 : f32 to vector<80x16xf32>
    %18 = arith.addf %17, %16 : vector<80x16xf32>
    %19 = arith.divf %17, %18 : vector<80x16xf32>
    %20 = arith.mulf %8, %19 : vector<80x16xf32>
    %c0_10 = arith.constant 0 : index
    %c0_11 = arith.constant 0 : index
    %21 = vector.load %arg6[%c0_10, %c0_11] : memref<16x16xf32, #tpu.memory_space<vmem>>, vector<16x16xf32>
    %22 = arith.truncf %20 : vector<80x16xf32> to vector<80x16xbf16>
    %23 = arith.truncf %21 : vector<16x16xf32> to vector<16x16xbf16>
    %cst_12 = arith.constant dense<0.000000e+00> : vector<80x16xf32>
    %24 = tpu.matmul %22, %23, %cst_12 {dimension_numbers = #tpu.dot_dimension_numbers<[1], [0], [0], [1], [0, 0, 1, 1], [], []>} : vector<80x16xbf16>, vector<16x16xbf16>, vector<80x16xf32> -> vector<80x16xf32>
    %cst_13 = arith.constant 0.000000e+00 : f32
    %25 = vector.broadcast %cst_13 : f32 to vector<80x16xf32>
    %26 = arith.maximumf %24, %25 : vector<80x16xf32>
    %c0_14 = arith.constant 0 : index
    %c0_15 = arith.constant 0 : index
    %27 = vector.load %arg7[%c0_14, %c0_15] : memref<80x16xf32, #tpu.memory_space<vmem>>, vector<80x16xf32>
    tpu.vector_store %arg7[%c0_14, %c0_15], %26 {strides = array<i32>} : memref<80x16xf32, #tpu.memory_space<vmem>>, vector<80x16xf32>,
    return
  }
  func.func @transform_0(%arg0: i32) -> (i32, i32) {
    %c0_i32 = arith.constant 0 : i32
    %c0_i32_0 = arith.constant 0 : i32
    return %arg0, %c0_i32 : i32, i32
  }
  func.func @transform_1(%arg0: i32) -> (i32, i32) {
    %c0_i32 = arith.constant 0 : i32
    %c0_i32_0 = arith.constant 0 : i32
    %c0_i32_1 = arith.constant 0 : i32
    return %c0_i32, %c0_i32_0 : i32, i32
  }
  func.func @transform_2(%arg0: i32) -> (i32, i32) {
    %c0_i32 = arith.constant 0 : i32
    %c0_i32_0 = arith.constant 0 : i32
    %c0_i32_1 = arith.constant 0 : i32
    return %c0_i32, %c0_i32_0 : i32, i32
  }
  func.func @transform_3(%arg0: i32) -> (i32, i32) {
    %c0_i32 = arith.constant 0 : i32
    %c0_i32_0 = arith.constant 0 : i32
    %c0_i32_1 = arith.constant 0 : i32
    return %c0_i32, %c0_i32_0 : i32, i32
  }
  func.func @transform_4(%arg0: i32) -> (i32, i32) {
    %c0_i32 = arith.constant 0 : i32
    %c0_i32_0 = arith.constant 0 : i32
    %c0_i32_1 = arith.constant 0 : i32
    return %c0_i32, %c0_i32_0 : i32, i32
  }
  func.func @transform_5(%arg0: i32) -> (i32, i32) {
    %c0_i32 = arith.constant 0 : i32
    %c0_i32_0 = arith.constant 0 : i32
    %c0_i32_1 = arith.constant 0 : i32
    return %c0_i32, %c0_i32_0 : i32, i32
  }
  func.func @transform_6(%arg0: i32) -> (i32, i32) {
    %c0_i32 = arith.constant 0 : i32
    %c0_i32_0 = arith.constant 0 : i32
    return %arg0, %c0_i32 : i32, i32
  }
}

</mosaic_0001>

<llo_original>
// kernel: _lambda_.50
$region0: #{_lambda_.50}
  #allocation0 [shape = 'u32[]', space=smem, size = 0x4, offset = 0x4, fixed_abs, tag = 'smem constant byte address 0x4 - core index']
  #allocation1 [shape = 'u32[144,128]{1,0:T(1,128)}', space=vmem, size = 0x12000, scoped, tag = 'internal scratch']
  %s0 = inlined_call_operand.vmem [shape: f32[40,16], index: 0, kind: input, shape index: {}]
  %s1 = inlined_call_operand.vmem [shape: f32[1,16], index: 1, kind: input, shape index: {}]
  %s2 = inlined_call_operand.vmem [shape: f32[1,16], index: 2, kind: input, shape index: {}]
  %s3 = inlined_call_operand.vmem [shape: f32[16,16], index: 3, kind: input, shape index: {}]
  %s4 = inlined_call_operand.vmem [shape: f32[1,16], index: 4, kind: input, shape index: {}]
  %s5 = inlined_call_operand.vmem [shape: f32[40,16], index: 5, kind: output, shape index: {}]
  %s6 = sld [smem:[#allocation0]]
  $region30: #{_lambda_.50} parent=0
    _
  %s8 = ssub.s32 1, %s6
  %s9 = scalar_select 0, %s8, %s6
  // Predicated region
  $region2: #{_lambda_.50} parent=0 // pred_check
    _
  $region3: #{_lambda_.50} parent=0 // pred_check_branch
    %11 = sbr.rel (0) target = $region5
  $region4: #{_lambda_.50} parent=0 // pred_region
    _
  $region5: #{_lambda_.50} parent=0 // pred_fallthru
    _
  // Predicated region
  $region6: #{_lambda_.50} parent=0 // pred_check
    _
  $region7: #{_lambda_.50} parent=0 // pred_check_branch
    %13 = sbr.rel (0) target = $region9
  $region8: #{_lambda_.50} parent=0 // pred_region
    _
  $region9: #{_lambda_.50} parent=0 // pred_fallthru
    _
  // Predicated region
  $region10: #{_lambda_.50} parent=0 // pred_check
    _
  $region11: #{_lambda_.50} parent=0 // pred_check_branch
    %15 = sbr.rel (0) target = $region13
  $region12: #{_lambda_.50} parent=0 // pred_region
    _
  $region13: #{_lambda_.50} parent=0 // pred_fallthru
    _
  // Predicated region
  $region14: #{_lambda_.50} parent=0 // pred_check
    _
  $region15: #{_lambda_.50} parent=0 // pred_check_branch
    %17 = sbr.rel (0) target = $region17
  $region16: #{_lambda_.50} parent=0 // pred_region
    _
  $region17: #{_lambda_.50} parent=0 // pred_fallthru
    _
  // Predicated region
  $region18: #{_lambda_.50} parent=0 // pred_check
    _
  $region19: #{_lambda_.50} parent=0 // pred_check_branch
    %19 = sbr.rel (0) target = $region21
  $region20: #{_lambda_.50} parent=0 // pred_region
    _
  $region21: #{_lambda_.50} parent=0 // pred_fallthru
    _
  %v21 = vld [vmem:[%s0] sm:$0xff]
  %v22 = vld [vmem:[%s0 + $0x8] sm:$0xff]
  %v23 = vld [vmem:[%s0 + $0x10] sm:$0xff]
  %v24 = vld [vmem:[%s0 + $0x18] sm:$0xff]
  %v25 = vld [vmem:[%s0 + $0x20] sm:$0xff]
  %vm26 = vcmask 130048
  %v27 = vsel %vm26, %v21, 0.0
  %28 = vadd.xlane.f32.xlu0 %v27
  %v29 = vpop.xlane.xlu0 %28
  %v30 = vsel %vm26, %v22, 0.0
  %31 = vadd.xlane.f32.xlu0 %v30
  %v32 = vpop.xlane.xlu0 %31
  %v33 = vsel %vm26, %v23, 0.0
  %34 = vadd.xlane.f32.xlu0 %v33
  %v35 = vpop.xlane.xlu0 %34
  %v36 = vsel %vm26, %v24, 0.0
  %37 = vadd.xlane.f32.xlu0 %v36
  %v38 = vpop.xlane.xlu0 %37
  %v39 = vsel %vm26, %v25, 0.0
  %40 = vadd.xlane.f32.xlu0 %v39
  %v41 = vpop.xlane.xlu0 %40
  %v42 = vrcp.pop 16.0
  %v43 = vmul.f32 %v29, %v42
  %v44 = vmul.f32 %v32, %v42
  %v45 = vmul.f32 %v35, %v42
  %v46 = vmul.f32 %v38, %v42
  %v47 = vmul.f32 %v41, %v42
  %v48 = vsub.f32 %v21, %v43
  %v49 = vsub.f32 %v22, %v44
  %v50 = vsub.f32 %v23, %v45
  %v51 = vsub.f32 %v24, %v46
  %v52 = vsub.f32 %v25, %v47
  %v53 = vmul.f32 %v48, %v48
  %v54 = vmul.f32 %v49, %v49
  %v55 = vmul.f32 %v50, %v50
  %v56 = vmul.f32 %v51, %v51
  %v57 = vmul.f32 %v52, %v52
  %v58 = vsel %vm26, %v53, 0.0
  %59 = vadd.xlane.f32.xlu0 %v58
  %v60 = vpop.xlane.xlu0 %59
  %v61 = vsel %vm26, %v54, 0.0
  %62 = vadd.xlane.f32.xlu0 %v61
  %v63 = vpop.xlane.xlu0 %62
  %v64 = vsel %vm26, %v55, 0.0
  %65 = vadd.xlane.f32.xlu0 %v64
  %v66 = vpop.xlane.xlu0 %65
  %v67 = vsel %vm26, %v56, 0.0
  %68 = vadd.xlane.f32.xlu0 %v67
  %v69 = vpop.xlane.xlu0 %68
  %v70 = vsel %vm26, %v57, 0.0
  %71 = vadd.xlane.f32.xlu0 %v70
  %v72 = vpop.xlane.xlu0 %71
  %v73 = vmul.f32 %v60, %v42
  %v74 = vmul.f32 %v63, %v42
  %v75 = vmul.f32 %v66, %v42
  %v76 = vmul.f32 %v69, %v42
  %v77 = vmul.f32 %v72, %v42
  %v78 = vadd.f32 %v73, 1e-05
  %v79 = vadd.f32 %v74, 1e-05
  %v80 = vadd.f32 %v75, 1e-05
  %v81 = vadd.f32 %v76, 1e-05
  %v82 = vadd.f32 %v77, 1e-05
  %v83 = vrsqrt.pop %v78
  %v84 = vrsqrt.pop %v79
  %v85 = vrsqrt.pop %v80
  %v86 = vrsqrt.pop %v81
  %v87 = vrsqrt.pop %v82
  %v88 = vmul.f32 %v48, %v83
  %v89 = vmul.f32 %v49, %v84
  %v90 = vmul.f32 %v50, %v85
  %v91 = vmul.f32 %v51, %v86
  %v92 = vmul.f32 %v52, %v87
  %v93 = vld [vmem:[%s1] sm:$0x1]
  %v95 = vlaneseq
  %v96 = vshrl.u32 %v95, 7
  %v97 = vsub.s32 0, %v96
  %v98 = vrot.slane %v93, %v97
  %v100 = vmul.f32 %v88, %v98
  %v101 = vmul.f32 %v89, %v98
  %v102 = vmul.f32 %v90, %v98
  %v103 = vmul.f32 %v91, %v98
  %v104 = vmul.f32 %v92, %v98
  %v105 = vld [vmem:[%s2] sm:$0x1]
  %v107 = vlaneseq
  %v108 = vshrl.u32 %v107, 7
  %v109 = vsub.s32 0, %v108
  %v110 = vrot.slane %v105, %v109
  %v112 = vadd.f32 %v100, %v110
  %v113 = vadd.f32 %v101, %v110
  %v114 = vadd.f32 %v102, %v110
  %v115 = vadd.f32 %v103, %v110
  %v116 = vadd.f32 %v104, %v110
  %v117 = vld [vmem:[%s3] sm:$0xff]
  %v118 = vld [vmem:[%s3 + $0x8] sm:$0xff]
  %v119 = vpack.c.bf16 %v113, %v112
  %v120 = vpack.c.bf16 %v115, %v114
  %v121 = vpack.c.bf16 %v116, %v116
  %v122 = vpack.c.bf16 %v118, %v117
  %v123 = vld [vmem:[%s4] sm:$0x1]
  %v125 = vlaneseq
  %v126 = vshrl.u32 %v125, 7
  %v127 = vsub.s32 0, %v126
  %v128 = vrot.slane %v123, %v127
  %v131 = vsel %vm26, %v119, 0
  %v134 = vsel %vm26, %v120, 0
  %v137 = vsel %vm26, %v121, 0
  %139 = vmatprep.subr.bf16.mxu0 0
  %140 = vmatpush1.bf16.msra.mxu0 0
  %141 = vmatprep.subr.bf16.mxu0 0
  %142 = vmatpush1.bf16.msra.mxu0 0
  %143 = vmatprep.subr.bf16.mxu0 0
  %144 = vmatpush1.bf16.msra.mxu0 0
  %145 = vmatprep.subr.bf16.mxu0 0
  %146 = vmatpush1.bf16.msra.mxu0 0
  %147 = vmatprep.subr.bf16.mxu0 0
  %148 = vmatpush1.bf16.msra.mxu0 0
  %149 = vmatprep.subr.bf16.mxu0 0
  %150 = vmatpush1.bf16.msra.mxu0 0
  %151 = vmatprep.subr.bf16.mxu0 0
  %152 = vmatpush1.bf16.msra.mxu0 0
  %153 = vmatprep.subr.bf16.mxu0 0
  %154 = vmatpush1.bf16.msra.mxu0 %v122
  %155 = vmatprep.subr.bf16.mxu0 0
  %156 = vmatpush2.bf16.msra.mxu0 0
  %157 = vmatprep.subr.bf16.mxu0 0
  %158 = vmatpush2.bf16.msra.mxu0 0
  %159 = vmatprep.subr.bf16.mxu0 0
  %160 = vmatpush2.bf16.msra.mxu0 0
  %161 = vmatprep.subr.bf16.mxu0 0
  %162 = vmatpush2.bf16.msra.mxu0 0
  %163 = vmatprep.subr.bf16.mxu0 0
  %164 = vmatpush2.bf16.msra.mxu0 0
  %165 = vmatprep.subr.bf16.mxu0 0
  %166 = vmatpush2.bf16.msra.mxu0 0
  %167 = vmatprep.subr.bf16.mxu0 0
  %168 = vmatpush2.bf16.msra.mxu0 0
  %169 = vmatprep.subr.bf16.mxu0 0
  %170 = vmatpush2.bf16.msra.mxu0 0
  %171 = vmatprep.mubr.bf16.mxu0 0
  %172 = vmatmul.mubr.bf16.gmra.mxu0 %v131
  %v173 = vpop.f32.mrf.mxu0
  %v174 = vadd.f32 %v128, %v173
  %v175 = vpop.f32.mrf.mxu0
  %v176 = vpop.f32.mrf.mxu0
  %v177 = vadd.f32 %v128, %v176
  %v178 = vpop.f32.mrf.mxu0
  %179 = vmatprep.mubr.bf16.mxu0 0
  %180 = vmatmul.mubr.bf16.gmra.mxu0 %v134
  %v181 = vpop.f32.mrf.mxu0
  %v182 = vadd.f32 %v128, %v181
  %v183 = vpop.f32.mrf.mxu0
  %v184 = vpop.f32.mrf.mxu0
  %v185 = vadd.f32 %v128, %v184
  %v186 = vpop.f32.mrf.mxu0
  %187 = vmatprep.mubr.bf16.mxu0 0
  %188 = vmatmul.mubr.bf16.gmra.mxu0 %v137
  %v189 = vpop.f32.mrf.mxu0
  %v190 = vadd.f32 %v128, %v189
  %v191 = vpop.f32.mrf.mxu0
  %v192 = vpop.f32.mrf.mxu0
  %v193 = vpop.f32.mrf.mxu0
  %194 = vdwg.mxu0
  %195 = vst.msk [vmem:[%s5] sm:$0xff] %vm26, %v174
  %196 = vst.msk [vmem:[%s5 + $0x8] sm:$0xff] %vm26, %v177
  %197 = vst.msk [vmem:[%s5 + $0x10] sm:$0xff] %vm26, %v182
  %198 = vst.msk [vmem:[%s5 + $0x18] sm:$0xff] %vm26, %v185
  %199 = vst.msk [vmem:[%s5 + $0x20] sm:$0xff] %vm26, %v190
  // Predicated region
  $region22: #{_lambda_.50} parent=0 // pred_check
    _
  $region23: #{_lambda_.50} parent=0 // pred_check_branch
    %201 = sbr.rel (0) target = $region25
  $region24: #{_lambda_.50} parent=0 // pred_region
    _
  $region25: #{_lambda_.50} parent=0 // pred_fallthru
    _
  // Predicated region
  $region26: #{_lambda_.50} parent=0 // pred_check
    _
  $region27: #{_lambda_.50} parent=0 // pred_check_branch
    %203 = sbr.rel (0) target = $region29
  $region28: #{_lambda_.50} parent=0 // pred_region
    _
  $region29: #{_lambda_.50} parent=0 // pred_fallthru
    _

// kernel: _lambda_.52
$region0: #{_lambda_.52}
  #allocation0 [shape = 'u32[]', space=smem, size = 0x4, offset = 0x4, fixed_abs, tag = 'smem constant byte address 0x4 - core index']
  #allocation1 [shape = 'u32[144,128]{1,0:T(1,128)}', space=vmem, size = 0x12000, scoped, tag = 'internal scratch']
  #allocation2 [shape = 'f32[8,16,64]{2,1,0:T(8,128)}', space=vmem, size = 0x10000, scoped, tag = 'scratch operand']
  #allocation3 [shape = 'f32[16,16]{1,0:T(8,128)}', space=vmem, size = 0x2000, scoped, tag = 'scratch operand']
  #allocation4 [shape = 'f32[16,16]{1,0:T(8,128)}', space=vmem, size = 0x2000, scoped, tag = 'scratch operand']
  %s0 = inlined_call_operand.vmem [shape: f32[8,16,16], index: 0, kind: input, shape index: {}]
  %s1 = inlined_call_operand.vmem [shape: f32[2,16,64], index: 1, kind: input, shape index: {}]
  %s2 = inlined_call_operand.vmem [shape: f32[2,16,64], index: 2, kind: input, shape index: {}]
  %s3 = inlined_call_operand.vmem [shape: f32[2,1,64], index: 3, kind: input, shape index: {}]
  %s4 = inlined_call_operand.vmem [shape: f32[2,8,16,16], index: 4, kind: output, shape index: {}]
  %s5 = sld [smem:[#allocation0]]
  $region56: #{_lambda_.52} parent=0
    _
  %s7 = ssub.s32 1, %s5
  %s8 = scalar_select 0, %s7, %s5
  loop: start=0, step=1, limit=4
  $region2: #{_lambda_.52} parent=0 // loop_pre_header
    _
  $region3: #{_lambda_.52} parent=0 // loop_header
    %s10 = sphi 0, %s14
    %p11 = scmp.ge.s32.totalorder %s10, 4
    %s18 = sphi 0, %s18
    %s20 = sphi 0, %s18
    %s21 = sphi 0, %s20
    %s35 = sphi 0, %s21
    %s41 = sphi 0, %s43
    %s44 = sphi 0, %s41
    %s45 = sphi 0, %s44
    %s61 = sphi 0, %s45
    %s67 = sphi 0, %s69
    %s70 = sphi 0, %s67
    %s71 = sphi 0, %s70
    %s87 = sphi 0, %s71
    %s93 = sphi 0, %s95
    %s96 = sphi 0, %s93
    %s97 = sphi 0, %s96
    %s113 = sphi 0, %s97
    %s119 = sphi 0, %s121
    %s122 = sphi 0, %s119
    %s123 = sphi 0, %s122
    %s139 = sphi 0, %s123
  $region4: #{_lambda_.52} parent=0 // loop_header_branch
    %13 = sbr.rel (%p11) target = $region8
  $region5: #{_lambda_.52} parent=0 // loop_body
    %s15 = ssub.s32 %s10, 1
    %s16 = ssub.s32 %s10, 2
    %s17 = sadd.s32 %s10, 1
    %s19 = sadd.s32 %s18, 1
    %p22 = scmp.eq.s32.totalorder %s10, 1
    %p23 = scmp.ne.s32.totalorder %s18, %s20
    %p24 = scmp.eq.s32.totalorder %s10, 0
    %p25 = por %p23, %p24
    %p26 = scmp.ne.s32.totalorder %s18, %s20
    %p27 = scmp.eq.s32.totalorder %s15, 1
    %p28 = por %p26, %p27
    %p29 = scmp.ne.s32.totalorder %s20, %s21
    %p30 = scmp.eq.s32.totalorder %s15, 0
    %p31 = por %p29, %p30
    %p32 = scmp.ne.s32.totalorder %s20, %s21
    %p33 = scmp.eq.s32.totalorder %s16, 1
    %p34 = por %p32, %p33
    %p36 = scmp.ne.s32.totalorder %s21, %s35
    %p37 = scmp.eq.s32.totalorder %s16, 0
    %p38 = por %p36, %p37
    %s39 = ssub.s32 %s10, %s17
    %p40 = scmp.eq.s32.totalorder %s39, 0
    %s42 = sadd.s32 %s41, 1
    %s43 = scalar_select %p40, %s41, %s42
    %p46 = pneg %p40
    %p47 = scmp.eq.s32.totalorder %s10, 1
    %p48 = por %p46, %p47
    %p49 = scmp.ne.s32.totalorder %s41, %s44
    %p50 = scmp.eq.s32.totalorder %s10, 0
    %p51 = por %p49, %p50
    %p52 = scmp.ne.s32.totalorder %s41, %s44
    %p53 = scmp.eq.s32.totalorder %s15, 1
    %p54 = por %p52, %p53
    %p55 = scmp.ne.s32.totalorder %s44, %s45
    %p56 = scmp.eq.s32.totalorder %s15, 0
    %p57 = por %p55, %p56
    %p58 = scmp.ne.s32.totalorder %s44, %s45
    %p59 = scmp.eq.s32.totalorder %s16, 1
    %p60 = por %p58, %p59
    %p62 = scmp.ne.s32.totalorder %s45, %s61
    %p63 = scmp.eq.s32.totalorder %s16, 0
    %p64 = por %p62, %p63
    %s65 = ssub.s32 %s10, %s17
    %p66 = scmp.eq.s32.totalorder %s65, 0
    %s68 = sadd.s32 %s67, 1
    %s69 = scalar_select %p66, %s67, %s68
    %p72 = pneg %p66
    %p73 = scmp.eq.s32.totalorder %s10, 1
    %p74 = por %p72, %p73
    %p75 = scmp.ne.s32.totalorder %s67, %s70
    %p76 = scmp.eq.s32.totalorder %s10, 0
    %p77 = por %p75, %p76
    %p78 = scmp.ne.s32.totalorder %s67, %s70
    %p79 = scmp.eq.s32.totalorder %s15, 1
    %p80 = por %p78, %p79
    %p81 = scmp.ne.s32.totalorder %s70, %s71
    %p82 = scmp.eq.s32.totalorder %s15, 0
    %p83 = por %p81, %p82
    %p84 = scmp.ne.s32.totalorder %s70, %s71
    %p85 = scmp.eq.s32.totalorder %s16, 1
    %p86 = por %p84, %p85
    %p88 = scmp.ne.s32.totalorder %s71, %s87
    %p89 = scmp.eq.s32.totalorder %s16, 0
    %p90 = por %p88, %p89
    %s91 = ssub.s32 %s10, %s17
    %p92 = scmp.eq.s32.totalorder %s91, 0
    %s94 = sadd.s32 %s93, 1
    %s95 = scalar_select %p92, %s93, %s94
    %p98 = pneg %p92
    %p99 = scmp.eq.s32.totalorder %s10, 1
    %p100 = por %p98, %p99
    %p101 = scmp.ne.s32.totalorder %s93, %s96
    %p102 = scmp.eq.s32.totalorder %s10, 0
    %p103 = por %p101, %p102
    %p104 = scmp.ne.s32.totalorder %s93, %s96
    %p105 = scmp.eq.s32.totalorder %s15, 1
    %p106 = por %p104, %p105
    %p107 = scmp.ne.s32.totalorder %s96, %s97
    %p108 = scmp.eq.s32.totalorder %s15, 0
    %p109 = por %p107, %p108
    %p110 = scmp.ne.s32.totalorder %s96, %s97
    %p111 = scmp.eq.s32.totalorder %s16, 1
    %p112 = por %p110, %p111
    %p114 = scmp.ne.s32.totalorder %s97, %s113
    %p115 = scmp.eq.s32.totalorder %s16, 0
    %p116 = por %p114, %p115
    %s117 = ssub.s32 %s10, %s17
    %p118 = scmp.eq.s32.totalorder %s117, 0
    %s120 = sadd.s32 %s119, 1
    %s121 = scalar_select %p118, %s119, %s120
    %p124 = pneg %p118
    %p125 = scmp.eq.s32.totalorder %s10, 1
    %p126 = por %p124, %p125
    %p127 = scmp.ne.s32.totalorder %s119, %s122
    %p128 = scmp.eq.s32.totalorder %s10, 0
    %p129 = por %p127, %p128
    %p130 = scmp.ne.s32.totalorder %s119, %s122
    %p131 = scmp.eq.s32.totalorder %s15, 1
    %p132 = por %p130, %p131
    %p133 = scmp.ne.s32.totalorder %s122, %s123
    %p134 = scmp.eq.s32.totalorder %s15, 0
    %p135 = por %p133, %p134
    %p136 = scmp.ne.s32.totalorder %s122, %s123
    %p137 = scmp.eq.s32.totalorder %s16, 1
    %p138 = por %p136, %p137
    %p140 = scmp.ne.s32.totalorder %s123, %s139
    %p141 = scmp.eq.s32.totalorder %s16, 0
    %p142 = por %p140, %p141
    %p143 = scmp.le.s32.totalorder 1, %s10
    %p144 = scmp.lt.s32.totalorder %s10, 3
    %p145 = pnand %p143, %p144
    %p146 = pneg %p145
    // Predicated region
    $region9: #{_lambda_.52} parent=5 // pred_check
      _
    $region10: #{_lambda_.52} parent=5 // pred_check_branch
      %148 = sbr.rel (%p145) target = $region12
    $region11: #{_lambda_.52} parent=5 // pred_region
      %s149 = ssub.s32 %s10, 1
      // Predicated region
      $region13: #{_lambda_.52} parent=11 // pred_check
        %p150 = pneg %p31
      $region14: #{_lambda_.52} parent=11 // pred_check_branch
        %152 = sbr.rel (%p150) target = $region16
      $region15: #{_lambda_.52} parent=11 // pred_region
        _
      $region16: #{_lambda_.52} parent=11 // pred_fallthru
        _
    $region12: #{_lambda_.52} parent=5 // pred_fallthru
      _
    %p153 = scmp.lt.s32.totalorder %s10, 2
    // Predicated region
    $region17: #{_lambda_.52} parent=5 // pred_check
      %p154 = pneg %p153
    $region18: #{_lambda_.52} parent=5 // pred_check_branch
      %156 = sbr.rel (%p154) target = $region20
    $region19: #{_lambda_.52} parent=5 // pred_region
      // Predicated region
      $region21: #{_lambda_.52} parent=19 // pred_check
        %p157 = pneg %p51
      $region22: #{_lambda_.52} parent=19 // pred_check_branch
        %159 = sbr.rel (%p157) target = $region24
      $region23: #{_lambda_.52} parent=19 // pred_region
        %p160 = scmp.lt.s32.totalorder %s10, 1
        %s161 = scalar_select %p160, %s10, 1
        %s162 = smul.addr %s161, 2
        %s163 = smul.addr %s162, 8
        %s164 = scalar_lea.vmem %s1, %s163
      $region24: #{_lambda_.52} parent=19 // pred_fallthru
        _
      // Predicated region
      $region25: #{_lambda_.52} parent=19 // pred_check
        %p165 = pneg %p77
      $region26: #{_lambda_.52} parent=19 // pred_check_branch
        %167 = sbr.rel (%p165) target = $region28
      $region27: #{_lambda_.52} parent=19 // pred_region
        %p168 = scmp.lt.s32.totalorder %s10, 1
        %s169 = scalar_select %p168, %s10, 1
        %s170 = smul.addr %s169, 2
        %s171 = smul.addr %s170, 8
        %s172 = scalar_lea.vmem %s2, %s171
      $region28: #{_lambda_.52} parent=19 // pred_fallthru
        _
      // Predicated region
      $region29: #{_lambda_.52} parent=19 // pred_check
        %p173 = pneg %p103
      $region30: #{_lambda_.52} parent=19 // pred_check_branch
        %175 = sbr.rel (%p173) target = $region32
      $region31: #{_lambda_.52} parent=19 // pred_region
        %p176 = scmp.lt.s32.totalorder %s10, 1
        %s177 = scalar_select %p176, %s10, 1
        %s178 = scalar_lea.vmem %s3, %s177
      $region32: #{_lambda_.52} parent=19 // pred_fallthru
        _
    $region20: #{_lambda_.52} parent=5 // pred_fallthru
      _
    %p179 = scmp.le.s32.totalorder 1, %s10
    %p180 = scmp.lt.s32.totalorder %s10, 3
    %p181 = pnand %p179, %p180
    %p182 = pneg %p181
    // Predicated region
    $region33: #{_lambda_.52} parent=5 // pred_check
      _
    $region34: #{_lambda_.52} parent=5 // pred_check_branch
      %184 = sbr.rel (%p181) target = $region36
    $region35: #{_lambda_.52} parent=5 // pred_region
      %s185 = ssub.s32 %s10, 1
      %p186 = pneg %p31
      %p187 = pneg %p28
      %p188 = scmp.lt.s32.totalorder %s15, 1
      %s189 = scalar_select %p188, %s15, 1
      %s190 = smul.addr %s189, 2
      %s191 = smul.addr %s190, 8
      %s192 = scalar_lea.vmem %s1, %s191
      %p193 = pneg %p57
      %p194 = pneg %p54
      %p195 = scmp.lt.s32.totalorder %s15, 1
      %s196 = scalar_select %p195, %s15, 1
      %s197 = smul.addr %s196, 2
      %s198 = smul.addr %s197, 8
      %s199 = scalar_lea.vmem %s2, %s198
      %p200 = pneg %p83
      %p201 = pneg %p80
      %p202 = scmp.lt.s32.totalorder %s15, 1
      %s203 = scalar_select %p202, %s15, 1
      %s204 = scalar_lea.vmem %s3, %s203
      %p205 = pneg %p109
      %p206 = pneg %p106
      %p207 = pneg %p135
      %p208 = pneg %p132
      %p209 = scmp.lt.s32.totalorder %s15, 1
      %s210 = scalar_select %p209, %s15, 1
      %s211 = smul.addr %s210, 16
      %s212 = smul.addr %s211, 8
      %s213 = scalar_lea.vmem %s4, %s212
      %p214 = scmp.lt.s32.totalorder %s15, 1
      %s215 = scalar_select %p214, %s15, 1
      %s216 = smul.addr %s215, 2
      %s217 = smul.addr %s216, 8
      %s218 = scalar_lea.vmem %s1, %s217
      %p219 = scmp.lt.s32.totalorder %s15, 1
      %s220 = scalar_select %p219, %s15, 1
      %s221 = smul.addr %s220, 2
      %s222 = smul.addr %s221, 8
      %s223 = scalar_lea.vmem %s2, %s222
      %p224 = scmp.lt.s32.totalorder %s15, 1
      %s225 = scalar_select %p224, %s15, 1
      %s226 = scalar_lea.vmem %s3, %s225
      %p227 = scmp.lt.s32.totalorder %s15, 1
      %s228 = scalar_select %p227, %s15, 1
      %s229 = smul.addr %s228, 16
      %s230 = smul.addr %s229, 8
      %s231 = scalar_lea.vmem %s4, %s230
      %v233 = vld [vmem:[%s0] sm:$0xff]
      %v234 = vld [vmem:[%s0 + $0x8] sm:$0xff]
      %v235 = vld [vmem:[%s0 + $0x10] sm:$0xff]
      %v236 = vld [vmem:[%s0 + $0x18] sm:$0xff]
      %v237 = vld [vmem:[%s0 + $0x20] sm:$0xff]
      %v238 = vld [vmem:[%s0 + $0x28] sm:$0xff]
      %v239 = vld [vmem:[%s0 + $0x30] sm:$0xff]
      %v240 = vld [vmem:[%s0 + $0x38] sm:$0xff]
      %v241 = vld [vmem:[%s0 + $0x40] sm:$0xff]
      %v242 = vld [vmem:[%s0 + $0x48] sm:$0xff]
      %v243 = vld [vmem:[%s0 + $0x50] sm:$0xff]
      %v244 = vld [vmem:[%s0 + $0x58] sm:$0xff]
      %v245 = vld [vmem:[%s0 + $0x60] sm:$0xff]
      %v246 = vld [vmem:[%s0 + $0x68] sm:$0xff]
      %v247 = vld [vmem:[%s0 + $0x70] sm:$0xff]
      %v248 = vld [vmem:[%s0 + $0x78] sm:$0xff]
      %v249 = vld [vmem:[%s218] sm:$0xff]
      %v250 = vld [vmem:[%s218 + $0x8] sm:$0xff]
      %v251 = vpack.c.bf16 %v234, %v233
      %v252 = vpack.c.bf16 %v236, %v235
      %v253 = vpack.c.bf16 %v238, %v237
      %v254 = vpack.c.bf16 %v240, %v239
      %v255 = vpack.c.bf16 %v242, %v241
      %v256 = vpack.c.bf16 %v244, %v243
      %v257 = vpack.c.bf16 %v246, %v245
      %v258 = vpack.c.bf16 %v248, %v247
      %v259 = vpack.c.bf16 %v250, %v249
      %v260 = vld [vmem:[%s226] sm:$0x1]
      %v262 = vlaneseq
      %v263 = vshrl.u32 %v262, 7
      %v264 = vsub.s32 0, %v263
      %v265 = vrot.slane %v260, %v264
      %vm267 = vcmask 130048
      %v269 = vsel %vm267, %v251, 0
      %v272 = vsel %vm267, %v252, 0
      %v275 = vsel %vm267, %v253, 0
      %v278 = vsel %vm267, %v254, 0
      %v281 = vsel %vm267, %v255, 0
      %v284 = vsel %vm267, %v256, 0
      %v287 = vsel %vm267, %v257, 0
      %v290 = vsel %vm267, %v258, 0
      %292 = vmatprep.subr.bf16.mxu0 0
      %293 = vmatpush1.bf16.msra.mxu0 0
      %294 = vmatprep.subr.bf16.mxu0 0
      %295 = vmatpush1.bf16.msra.mxu0 0
      %296 = vmatprep.subr.bf16.mxu0 0
      %297 = vmatpush1.bf16.msra.mxu0 0
      %298 = vmatprep.subr.bf16.mxu0 0
      %299 = vmatpush1.bf16.msra.mxu0 0
      %300 = vmatprep.subr.bf16.mxu0 0
      %301 = vmatpush1.bf16.msra.mxu0 0
      %302 = vmatprep.subr.bf16.mxu0 0
      %303 = vmatpush1.bf16.msra.mxu0 0
      %304 = vmatprep.subr.bf16.mxu0 0
      %305 = vmatpush1.bf16.msra.mxu0 0
      %306 = vmatprep.subr.bf16.mxu0 0
      %307 = vmatpush1.bf16.msra.mxu0 %v259
      %308 = vmatprep.subr.bf16.mxu0 0
      %309 = vmatpush2.bf16.msra.mxu0 0
      %310 = vmatprep.subr.bf16.mxu0 0
      %311 = vmatpush2.bf16.msra.mxu0 0
      %312 = vmatprep.subr.bf16.mxu0 0
      %313 = vmatpush2.bf16.msra.mxu0 0
      %314 = vmatprep.subr.bf16.mxu0 0
      %315 = vmatpush2.bf16.msra.mxu0 0
      %316 = vmatprep.subr.bf16.mxu0 0
      %317 = vmatpush2.bf16.msra.mxu0 0
      %318 = vmatprep.subr.bf16.mxu0 0
      %319 = vmatpush2.bf16.msra.mxu0 0
      %320 = vmatprep.subr.bf16.mxu0 0
      %321 = vmatpush2.bf16.msra.mxu0 0
      %322 = vmatprep.subr.bf16.mxu0 0
      %323 = vmatpush2.bf16.msra.mxu0 0
      %324 = vmatprep.mubr.bf16.mxu0 0
      %325 = vmatmul.mubr.bf16.gmra.mxu0 %v269
      %v326 = vpop.f32.mrf.mxu0
      %v327 = vadd.f32 %v265, %v326
      %v328 = vpop.f32.mrf.mxu0
      %v329 = vpop.f32.mrf.mxu0
      %v330 = vadd.f32 %v265, %v329
      %v331 = vpop.f32.mrf.mxu0
      %332 = vmatprep.mubr.bf16.mxu0 0
      %333 = vmatmul.mubr.bf16.gmra.mxu0 %v272
      %v334 = vpop.f32.mrf.mxu0
      %v335 = vadd.f32 %v265, %v334
      %v336 = vpop.f32.mrf.mxu0
      %v337 = vpop.f32.mrf.mxu0
      %v338 = vadd.f32 %v265, %v337
      %v339 = vpop.f32.mrf.mxu0
      %340 = vmatprep.mubr.bf16.mxu0 0
      %341 = vmatmul.mubr.bf16.gmra.mxu0 %v275
      %v342 = vpop.f32.mrf.mxu0
      %v343 = vadd.f32 %v265, %v342
      %v344 = vpop.f32.mrf.mxu0
      %v345 = vpop.f32.mrf.mxu0
      %v346 = vadd.f32 %v265, %v345
      %v347 = vpop.f32.mrf.mxu0
      %348 = vmatprep.mubr.bf16.mxu0 0
      %349 = vmatmul.mubr.bf16.gmra.mxu0 %v278
      %v350 = vpop.f32.mrf.mxu0
      %v351 = vadd.f32 %v265, %v350
      %v352 = vpop.f32.mrf.mxu0
      %v353 = vpop.f32.mrf.mxu0
      %v354 = vadd.f32 %v265, %v353
      %v355 = vpop.f32.mrf.mxu0
      %356 = vmatprep.mubr.bf16.mxu0 0
      %357 = vmatmul.mubr.bf16.gmra.mxu0 %v281
      %v358 = vpop.f32.mrf.mxu0
      %v359 = vadd.f32 %v265, %v358
      %v360 = vpop.f32.mrf.mxu0
      %v361 = vpop.f32.mrf.mxu0
      %v362 = vadd.f32 %v265, %v361
      %v363 = vpop.f32.mrf.mxu0
      %364 = vmatprep.mubr.bf16.mxu0 0
      %365 = vmatmul.mubr.bf16.gmra.mxu0 %v284
      %v366 = vpop.f32.mrf.mxu0
      %v367 = vadd.f32 %v265, %v366
      %v368 = vpop.f32.mrf.mxu0
      %v369 = vpop.f32.mrf.mxu0
      %v370 = vadd.f32 %v265, %v369
      %v371 = vpop.f32.mrf.mxu0
      %372 = vmatprep.mubr.bf16.mxu0 0
      %373 = vmatmul.mubr.bf16.gmra.mxu0 %v287
      %v374 = vpop.f32.mrf.mxu0
      %v375 = vadd.f32 %v265, %v374
      %v376 = vpop.f32.mrf.mxu0
      %v377 = vpop.f32.mrf.mxu0
      %v378 = vadd.f32 %v265, %v377
      %v379 = vpop.f32.mrf.mxu0
      %380 = vmatprep.mubr.bf16.mxu0 0
      %381 = vmatmul.mubr.bf16.gmra.mxu0 %v290
      %v382 = vpop.f32.mrf.mxu0
      %v383 = vadd.f32 %v265, %v382
      %v384 = vpop.f32.mrf.mxu0
      %v385 = vpop.f32.mrf.mxu0
      %v386 = vadd.f32 %v265, %v385
      %v387 = vpop.f32.mrf.mxu0
      %388 = vdwg.mxu0
      %vm389 = vcmask 523264
      %390 = vst.msk [vmem:[#allocation2] sm:$0xff] %vm389, %v327
      %391 = vst.msk [vmem:[#allocation2 + $0x8] sm:$0xff] %vm389, %v330
      %392 = vst.msk [vmem:[#allocation2 + $0x10] sm:$0xff] %vm389, %v335
      %393 = vst.msk [vmem:[#allocation2 + $0x18] sm:$0xff] %vm389, %v338
      %394 = vst.msk [vmem:[#allocation2 + $0x20] sm:$0xff] %vm389, %v343
      %395 = vst.msk [vmem:[#allocation2 + $0x28] sm:$0xff] %vm389, %v346
      %396 = vst.msk [vmem:[#allocation2 + $0x30] sm:$0xff] %vm389, %v351
      %397 = vst.msk [vmem:[#allocation2 + $0x38] sm:$0xff] %vm389, %v354
      %398 = vst.msk [vmem:[#allocation2 + $0x40] sm:$0xff] %vm389, %v359
      %399 = vst.msk [vmem:[#allocation2 + $0x48] sm:$0xff] %vm389, %v362
      %400 = vst.msk [vmem:[#allocation2 + $0x50] sm:$0xff] %vm389, %v367
      %401 = vst.msk [vmem:[#allocation2 + $0x58] sm:$0xff] %vm389, %v370
      %402 = vst.msk [vmem:[#allocation2 + $0x60] sm:$0xff] %vm389, %v375
      %403 = vst.msk [vmem:[#allocation2 + $0x68] sm:$0xff] %vm389, %v378
      %404 = vst.msk [vmem:[#allocation2 + $0x70] sm:$0xff] %vm389, %v383
      %405 = vst.msk [vmem:[#allocation2 + $0x78] sm:$0xff] %vm389, %v386
      %406 = vst.msk [vmem:[#allocation3] sm:$0xff] %vm267, 0.0
      %407 = vst.msk [vmem:[#allocation3 + $0x8] sm:$0xff] %vm267, 0.0
      %408 = vst.msk [vmem:[#allocation4] sm:$0xff] %vm267, 0.0
      %409 = vst.msk [vmem:[#allocation4 + $0x8] sm:$0xff] %vm267, 0.0
      %v410 = vld [vmem:[%s223] sm:$0xff]
      %v411 = vld [vmem:[%s223 + $0x8] sm:$0xff]
      %v412 = vpack.c.bf16 %v411, %v410
      loop: start=0, step=1, limit=8
      $region37: #{_lambda_.52} parent=35 // loop_pre_header
        _
      $region38: #{_lambda_.52} parent=35 // loop_header
        %s414 = sphi 0, %s418
        %p415 = scmp.ge.s32.totalorder %s414, 8
      $region39: #{_lambda_.52} parent=35 // loop_header_branch
        %417 = sbr.rel (%p415) target = $region43
      $region40: #{_lambda_.52} parent=35 // loop_body
        %p419 = scmp.eq.s32.totalorder %s15, 0
        %s420 = ssub.s32 7, %s414
        %s421 = scalar_select %p419, %s414, %s420
        %s422 = smul.u32 %s421, 16
        %s423 = scalar_lea.vmem [#allocation2], %s422
        %v424 = vld [vmem:[%s423] sm:$0xff]
        %v425 = vld [vmem:[%s423 + $0x8] sm:$0xff]
        %v426 = vld [vmem:[#allocation3] sm:$0xff]
        %v427 = vld [vmem:[#allocation3 + $0x8] sm:$0xff]
        %v428 = vpack.c.bf16 %v427, %v426
        %v430 = vsel %vm267, %v428, 0
        %432 = vmatprep.subr.bf16.mxu0 0
        %433 = vmatpush1.bf16.msra.mxu0 0
        %434 = vmatprep.subr.bf16.mxu0 0
        %435 = vmatpush1.bf16.msra.mxu0 0
        %436 = vmatprep.subr.bf16.mxu0 0
        %437 = vmatpush1.bf16.msra.mxu0 0
        %438 = vmatprep.subr.bf16.mxu0 0
        %439 = vmatpush1.bf16.msra.mxu0 0
        %440 = vmatprep.subr.bf16.mxu0 0
        %441 = vmatpush1.bf16.msra.mxu0 0
        %442 = vmatprep.subr.bf16.mxu0 0
        %443 = vmatpush1.bf16.msra.mxu0 0
        %444 = vmatprep.subr.bf16.mxu0 0
        %445 = vmatpush1.bf16.msra.mxu0 0
        %446 = vmatprep.subr.bf16.mxu0 0
        %447 = vmatpush1.bf16.msra.mxu0 %v412
        %448 = vmatprep.subr.bf16.mxu0 0
        %449 = vmatpush2.bf16.msra.mxu0 0
        %450 = vmatprep.subr.bf16.mxu0 0
        %451 = vmatpush2.bf16.msra.mxu0 0
        %452 = vmatprep.subr.bf16.mxu0 0
        %453 = vmatpush2.bf16.msra.mxu0 0
        %454 = vmatprep.subr.bf16.mxu0 0
        %455 = vmatpush2.bf16.msra.mxu0 0
        %456 = vmatprep.subr.bf16.mxu0 0
        %457 = vmatpush2.bf16.msra.mxu0 0
        %458 = vmatprep.subr.bf16.mxu0 0
        %459 = vmatpush2.bf16.msra.mxu0 0
        %460 = vmatprep.subr.bf16.mxu0 0
        %461 = vmatpush2.bf16.msra.mxu0 0
        %462 = vmatprep.subr.bf16.mxu0 0
        %463 = vmatpush2.bf16.msra.mxu0 0
        %464 = vmatprep.mubr.bf16.mxu0 0
        %465 = vmatmul.mubr.bf16.gmra.mxu0 %v430
        %v466 = vpop.f32.mrf.mxu0
        %v467 = vadd.f32 0.0, %v466
        %v468 = vpop.f32.mrf.mxu0
        %v469 = vpop.f32.mrf.mxu0
        %v470 = vadd.f32 0.0, %v469
        %v471 = vpop.f32.mrf.mxu0
        %472 = vdwg.mxu0
        %v473 = vadd.f32 %v424, %v467
        %v474 = vadd.f32 %v425, %v470
        %v475 = vxor.u32 %v473, 2147483648
        %v476 = vxor.u32 %v474, 2147483648
        %v477 = vmul.f32 %v475, 1.442695
        %v478 = vpow.pop %v477
        %v479 = vmul.f32 %v476, 1.442695
        %v480 = vpow.pop %v479
        %v481 = vadd.f32 %v478, 1.0
        %v482 = vadd.f32 %v480, 1.0
        %v483 = vrcp.pop %v481
        %v484 = vmul.f32 1.0, %v483
        %v485 = vrcp.pop %v482
        %v486 = vmul.f32 1.0, %v485
        %v487 = vtanh.pop %v473
        %v488 = vtanh.pop %v474
        %v489 = vld [vmem:[#allocation4] sm:$0xff]
        %v490 = vld [vmem:[#allocation4 + $0x8] sm:$0xff]
        %493 = vrot.lane.b32.xlu0 %v489, 16
        %v494 = vpop.permute.xlu0 %493
        %495 = vrot.lane.b32.xlu0 %v490, 16
        %v496 = vpop.permute.xlu0 %495
        %v499 = vmul.f32 %v484, %v494
        %v500 = vmul.f32 %v486, %v496
        %503 = vrot.lane.b32.xlu0 %v487, 96
        %v504 = vpop.permute.xlu0 %503
        %505 = vrot.lane.b32.xlu0 %v488, 96
        %v506 = vpop.permute.xlu0 %505
        %v509 = vmul.f32 %v484, %v504
        %v510 = vmul.f32 %v486, %v506
        %513 = vrot.lane.b32.xlu0 %v509, 16
        %v514 = vpop.permute.xlu0 %513
        %515 = vrot.lane.b32.xlu0 %v510, 16
        %v516 = vpop.permute.xlu0 %515
        %v519 = vadd.f32 %v499, %v514
        %v520 = vadd.f32 %v500, %v516
        %v521 = vtanh.pop %v519
        %v522 = vtanh.pop %v520
        %525 = vrot.lane.b32.xlu0 %v521, 32
        %v526 = vpop.permute.xlu0 %525
        %527 = vrot.lane.b32.xlu0 %v522, 32
        %v528 = vpop.permute.xlu0 %527
        %v531 = vmul.f32 %v484, %v526
        %v532 = vmul.f32 %v486, %v528
        %535 = vrot.lane.b32.xlu0 %v531, 80
        %v536 = vpop.permute.xlu0 %535
        %537 = vrot.lane.b32.xlu0 %v532, 80
        %v538 = vpop.permute.xlu0 %537
        %541 = vst.msk [vmem:[#allocation3] sm:$0xff] %vm267, %v536
        %542 = vst.msk [vmem:[#allocation3 + $0x8] sm:$0xff] %vm267, %v538
        %545 = vrot.lane.b32.xlu0 %v519, 112
        %v546 = vpop.permute.xlu0 %545
        %547 = vrot.lane.b32.xlu0 %v520, 112
        %v548 = vpop.permute.xlu0 %547
        %551 = vst.msk [vmem:[#allocation4] sm:$0xff] %vm267, %v546
        %552 = vst.msk [vmem:[#allocation4 + $0x8] sm:$0xff] %vm267, %v548
        %s553 = scalar_lea.vmem %s231, %s422
        %554 = vst.msk [vmem:[%s553] sm:$0xff] %vm267, %v536
        %555 = vst.msk [vmem:[%s553 + $0x8] sm:$0xff] %vm267, %v538
      $region41: #{_lambda_.52} parent=35 // loop_footer
        %s418 = sadd.s32 1, %s414
      $region42: #{_lambda_.52} parent=35 // loop_footer_branch
        %413 = sbr.rel target = $region38
      $region43: #{_lambda_.52} parent=35 // loop_exit
        _
      %p556 = scmp.lt.s32.totalorder %s15, 1
      %s557 = scalar_select %p556, %s15, 1
      %s558 = smul.addr %s557, 16
      %s559 = smul.addr %s558, 8
      %s560 = scalar_lea.vmem %s4, %s559
      // Predicated region
      $region44: #{_lambda_.52} parent=35 // pred_check
        %p561 = pneg %p132
      $region45: #{_lambda_.52} parent=35 // pred_check_branch
        %563 = sbr.rel (%p561) target = $region47
      $region46: #{_lambda_.52} parent=35 // pred_region
        _
      $region47: #{_lambda_.52} parent=35 // pred_fallthru
        _
    $region36: #{_lambda_.52} parent=5 // pred_fallthru
      _
    %p564 = scmp.le.s32.totalorder 2, %s10
    // Predicated region
    $region48: #{_lambda_.52} parent=5 // pred_check
      %p565 = pneg %p564
    $region49: #{_lambda_.52} parent=5 // pred_check_branch
      %567 = sbr.rel (%p565) target = $region51
    $region50: #{_lambda_.52} parent=5 // pred_region
      %s568 = ssub.s32 %s10, 2
      // Predicated region
      $region52: #{_lambda_.52} parent=50 // pred_check
        %p569 = pneg %p138
      $region53: #{_lambda_.52} parent=50 // pred_check_branch
        %571 = sbr.rel (%p569) target = $region55
      $region54: #{_lambda_.52} parent=50 // pred_region
        %p572 = scmp.lt.s32.totalorder %s16, 1
        %s573 = scalar_select %p572, %s16, 1
        %s574 = smul.addr %s573, 16
        %s575 = smul.addr %s574, 8
        %s576 = scalar_lea.vmem %s4, %s575
      $region55: #{_lambda_.52} parent=50 // pred_fallthru
        _
    $region51: #{_lambda_.52} parent=5 // pred_fallthru
      _
  $region6: #{_lambda_.52} parent=0 // loop_footer
    %s14 = sadd.s32 1, %s10
  $region7: #{_lambda_.52} parent=0 // loop_footer_branch
    %9 = sbr.rel target = $region3
  $region8: #{_lambda_.52} parent=0 // loop_exit
    _

// kernel: _lambda_.53
$region0: #{_lambda_.53}
  #allocation0 [shape = 'u32[]', space=smem, size = 0x4, offset = 0x4, fixed_abs, tag = 'smem constant byte address 0x4 - core index']
  #allocation1 [shape = 'u32[144,128]{1,0:T(1,128)}', space=vmem, size = 0x12000, scoped, tag = 'internal scratch']
  %s0 = inlined_call_operand.vmem [shape: f32[128,32], index: 0, kind: input, shape index: {}]
  %s1 = inlined_call_operand.vmem [shape: f32[32,16], index: 1, kind: input, shape index: {}]
  %s2 = inlined_call_operand.vmem [shape: f32[1,16], index: 2, kind: input, shape index: {}]
  %s3 = inlined_call_operand.vmem [shape: f32[128,16], index: 3, kind: input, shape index: {}, may-alias: {3,6}]
  %s4 = inlined_call_operand.vmem [shape: f32[1,16], index: 4, kind: input, shape index: {}]
  %s5 = inlined_call_operand.vmem [shape: f32[1,16], index: 5, kind: input, shape index: {}]
  %s6 = inlined_call_operand.vmem [shape: f32[128,16], index: 6, kind: output, shape index: {}, may-alias: {3,6}]
  %s7 = sld [smem:[#allocation0]]
  $region34: #{_lambda_.53} parent=0
    _
  %s9 = ssub.s32 1, %s7
  %s10 = scalar_select 0, %s9, %s7
  // Predicated region
  $region2: #{_lambda_.53} parent=0 // pred_check
    _
  $region3: #{_lambda_.53} parent=0 // pred_check_branch
    %12 = sbr.rel (0) target = $region5
  $region4: #{_lambda_.53} parent=0 // pred_region
    _
  $region5: #{_lambda_.53} parent=0 // pred_fallthru
    _
  // Predicated region
  $region6: #{_lambda_.53} parent=0 // pred_check
    _
  $region7: #{_lambda_.53} parent=0 // pred_check_branch
    %14 = sbr.rel (0) target = $region9
  $region8: #{_lambda_.53} parent=0 // pred_region
    _
  $region9: #{_lambda_.53} parent=0 // pred_fallthru
    _
  // Predicated region
  $region10: #{_lambda_.53} parent=0 // pred_check
    _
  $region11: #{_lambda_.53} parent=0 // pred_check_branch
    %16 = sbr.rel (0) target = $region13
  $region12: #{_lambda_.53} parent=0 // pred_region
    _
  $region13: #{_lambda_.53} parent=0 // pred_fallthru
    _
  // Predicated region
  $region14: #{_lambda_.53} parent=0 // pred_check
    _
  $region15: #{_lambda_.53} parent=0 // pred_check_branch
    %18 = sbr.rel (0) target = $region17
  $region16: #{_lambda_.53} parent=0 // pred_region
    _
  $region17: #{_lambda_.53} parent=0 // pred_fallthru
    _
  // Predicated region
  $region18: #{_lambda_.53} parent=0 // pred_check
    _
  $region19: #{_lambda_.53} parent=0 // pred_check_branch
    %20 = sbr.rel (0) target = $region21
  $region20: #{_lambda_.53} parent=0 // pred_region
    _
  $region21: #{_lambda_.53} parent=0 // pred_fallthru
    _
  // Predicated region
  $region22: #{_lambda_.53} parent=0 // pred_check
    _
  $region23: #{_lambda_.53} parent=0 // pred_check_branch
    %22 = sbr.rel (0) target = $region25
  $region24: #{_lambda_.53} parent=0 // pred_region
    _
  $region25: #{_lambda_.53} parent=0 // pred_fallthru
    _
  %v24 = vld [vmem:[%s0] sm:$0xff]
  %v25 = vld [vmem:[%s0 + $0x8] sm:$0xff]
  %v26 = vld [vmem:[%s0 + $0x10] sm:$0xff]
  %v27 = vld [vmem:[%s0 + $0x18] sm:$0xff]
  %v28 = vld [vmem:[%s0 + $0x20] sm:$0xff]
  %v29 = vld [vmem:[%s0 + $0x28] sm:$0xff]
  %v30 = vld [vmem:[%s0 + $0x30] sm:$0xff]
  %v31 = vld [vmem:[%s0 + $0x38] sm:$0xff]
  %v32 = vld [vmem:[%s0 + $0x40] sm:$0xff]
  %v33 = vld [vmem:[%s0 + $0x48] sm:$0xff]
  %v34 = vld [vmem:[%s0 + $0x50] sm:$0xff]
  %v35 = vld [vmem:[%s0 + $0x58] sm:$0xff]
  %v36 = vld [vmem:[%s0 + $0x60] sm:$0xff]
  %v37 = vld [vmem:[%s0 + $0x68] sm:$0xff]
  %v38 = vld [vmem:[%s0 + $0x70] sm:$0xff]
  %v39 = vld [vmem:[%s0 + $0x78] sm:$0xff]
  %v40 = vld [vmem:[%s1] sm:$0xff]
  %v41 = vld [vmem:[%s1 + $0x8] sm:$0xff]
  %v42 = vld [vmem:[%s1 + $0x10] sm:$0xff]
  %v43 = vld [vmem:[%s1 + $0x18] sm:$0xff]
  %v44 = vpack.c.bf16 %v25, %v24
  %v45 = vpack.c.bf16 %v27, %v26
  %v46 = vpack.c.bf16 %v29, %v28
  %v47 = vpack.c.bf16 %v31, %v30
  %v48 = vpack.c.bf16 %v33, %v32
  %v49 = vpack.c.bf16 %v35, %v34
  %v50 = vpack.c.bf16 %v37, %v36
  %v51 = vpack.c.bf16 %v39, %v38
  %v52 = vpack.c.bf16 %v41, %v40
  %v53 = vpack.c.bf16 %v43, %v42
  %v54 = vld [vmem:[%s2] sm:$0x1]
  %v56 = vlaneseq
  %v57 = vshrl.u32 %v56, 7
  %v58 = vsub.s32 0, %v57
  %v59 = vrot.slane %v54, %v58
  %vm61 = vcmask 261120
  %v63 = vsel %vm61, %v44, 0
  %v66 = vsel %vm61, %v45, 0
  %v69 = vsel %vm61, %v46, 0
  %v72 = vsel %vm61, %v47, 0
  %v75 = vsel %vm61, %v48, 0
  %v78 = vsel %vm61, %v49, 0
  %v81 = vsel %vm61, %v50, 0
  %v84 = vsel %vm61, %v51, 0
  %86 = vmatprep.subr.bf16.mxu0 0
  %87 = vmatpush1.bf16.msra.mxu0 0
  %88 = vmatprep.subr.bf16.mxu0 0
  %89 = vmatpush1.bf16.msra.mxu0 0
  %90 = vmatprep.subr.bf16.mxu0 0
  %91 = vmatpush1.bf16.msra.mxu0 0
  %92 = vmatprep.subr.bf16.mxu0 0
  %93 = vmatpush1.bf16.msra.mxu0 0
  %94 = vmatprep.subr.bf16.mxu0 0
  %95 = vmatpush1.bf16.msra.mxu0 0
  %96 = vmatprep.subr.bf16.mxu0 0
  %97 = vmatpush1.bf16.msra.mxu0 0
  %98 = vmatprep.subr.bf16.mxu0 0
  %99 = vmatpush1.bf16.msra.mxu0 %v53
  %100 = vmatprep.subr.bf16.mxu0 0
  %101 = vmatpush1.bf16.msra.mxu0 %v52
  %102 = vmatprep.subr.bf16.mxu0 0
  %103 = vmatpush2.bf16.msra.mxu0 0
  %104 = vmatprep.subr.bf16.mxu0 0
  %105 = vmatpush2.bf16.msra.mxu0 0
  %106 = vmatprep.subr.bf16.mxu0 0
  %107 = vmatpush2.bf16.msra.mxu0 0
  %108 = vmatprep.subr.bf16.mxu0 0
  %109 = vmatpush2.bf16.msra.mxu0 0
  %110 = vmatprep.subr.bf16.mxu0 0
  %111 = vmatpush2.bf16.msra.mxu0 0
  %112 = vmatprep.subr.bf16.mxu0 0
  %113 = vmatpush2.bf16.msra.mxu0 0
  %114 = vmatprep.subr.bf16.mxu0 0
  %115 = vmatpush2.bf16.msra.mxu0 0
  %116 = vmatprep.subr.bf16.mxu0 0
  %117 = vmatpush2.bf16.msra.mxu0 0
  %118 = vmatprep.mubr.bf16.mxu0 0
  %119 = vmatmul.mubr.bf16.gmra.mxu0 %v63
  %v120 = vpop.f32.mrf.mxu0
  %v121 = vadd.f32 %v59, %v120
  %v122 = vpop.f32.mrf.mxu0
  %v123 = vpop.f32.mrf.mxu0
  %v124 = vadd.f32 %v59, %v123
  %v125 = vpop.f32.mrf.mxu0
  %126 = vmatprep.mubr.bf16.mxu0 0
  %127 = vmatmul.mubr.bf16.gmra.mxu0 %v66
  %v128 = vpop.f32.mrf.mxu0
  %v129 = vadd.f32 %v59, %v128
  %v130 = vpop.f32.mrf.mxu0
  %v131 = vpop.f32.mrf.mxu0
  %v132 = vadd.f32 %v59, %v131
  %v133 = vpop.f32.mrf.mxu0
  %134 = vmatprep.mubr.bf16.mxu0 0
  %135 = vmatmul.mubr.bf16.gmra.mxu0 %v69
  %v136 = vpop.f32.mrf.mxu0
  %v137 = vadd.f32 %v59, %v136
  %v138 = vpop.f32.mrf.mxu0
  %v139 = vpop.f32.mrf.mxu0
  %v140 = vadd.f32 %v59, %v139
  %v141 = vpop.f32.mrf.mxu0
  %142 = vmatprep.mubr.bf16.mxu0 0
  %143 = vmatmul.mubr.bf16.gmra.mxu0 %v72
  %v144 = vpop.f32.mrf.mxu0
  %v145 = vadd.f32 %v59, %v144
  %v146 = vpop.f32.mrf.mxu0
  %v147 = vpop.f32.mrf.mxu0
  %v148 = vadd.f32 %v59, %v147
  %v149 = vpop.f32.mrf.mxu0
  %150 = vmatprep.mubr.bf16.mxu0 0
  %151 = vmatmul.mubr.bf16.gmra.mxu0 %v75
  %v152 = vpop.f32.mrf.mxu0
  %v153 = vadd.f32 %v59, %v152
  %v154 = vpop.f32.mrf.mxu0
  %v155 = vpop.f32.mrf.mxu0
  %v156 = vadd.f32 %v59, %v155
  %v157 = vpop.f32.mrf.mxu0
  %158 = vmatprep.mubr.bf16.mxu0 0
  %159 = vmatmul.mubr.bf16.gmra.mxu0 %v78
  %v160 = vpop.f32.mrf.mxu0
  %v161 = vadd.f32 %v59, %v160
  %v162 = vpop.f32.mrf.mxu0
  %v163 = vpop.f32.mrf.mxu0
  %v164 = vadd.f32 %v59, %v163
  %v165 = vpop.f32.mrf.mxu0
  %166 = vmatprep.mubr.bf16.mxu0 0
  %167 = vmatmul.mubr.bf16.gmra.mxu0 %v81
  %v168 = vpop.f32.mrf.mxu0
  %v169 = vadd.f32 %v59, %v168
  %v170 = vpop.f32.mrf.mxu0
  %v171 = vpop.f32.mrf.mxu0
  %v172 = vadd.f32 %v59, %v171
  %v173 = vpop.f32.mrf.mxu0
  %174 = vmatprep.mubr.bf16.mxu0 0
  %175 = vmatmul.mubr.bf16.gmra.mxu0 %v84
  %v176 = vpop.f32.mrf.mxu0
  %v177 = vadd.f32 %v59, %v176
  %v178 = vpop.f32.mrf.mxu0
  %v179 = vpop.f32.mrf.mxu0
  %v180 = vadd.f32 %v59, %v179
  %v181 = vpop.f32.mrf.mxu0
  %182 = vdwg.mxu0
  %v183 = vld [vmem:[%s3] sm:$0xff]
  %v184 = vld [vmem:[%s3 + $0x8] sm:$0xff]
  %v185 = vld [vmem:[%s3 + $0x10] sm:$0xff]
  %v186 = vld [vmem:[%s3 + $0x18] sm:$0xff]
  %v187 = vld [vmem:[%s3 + $0x20] sm:$0xff]
  %v188 = vld [vmem:[%s3 + $0x28] sm:$0xff]
  %v189 = vld [vmem:[%s3 + $0x30] sm:$0xff]
  %v190 = vld [vmem:[%s3 + $0x38] sm:$0xff]
  %v191 = vld [vmem:[%s3 + $0x40] sm:$0xff]
  %v192 = vld [vmem:[%s3 + $0x48] sm:$0xff]
  %v193 = vld [vmem:[%s3 + $0x50] sm:$0xff]
  %v194 = vld [vmem:[%s3 + $0x58] sm:$0xff]
  %v195 = vld [vmem:[%s3 + $0x60] sm:$0xff]
  %v196 = vld [vmem:[%s3 + $0x68] sm:$0xff]
  %v197 = vld [vmem:[%s3 + $0x70] sm:$0xff]
  %v198 = vld [vmem:[%s3 + $0x78] sm:$0xff]
  %v199 = vadd.f32 %v121, %v183
  %v200 = vadd.f32 %v124, %v184
  %v201 = vadd.f32 %v129, %v185
  %v202 = vadd.f32 %v132, %v186
  %v203 = vadd.f32 %v137, %v187
  %v204 = vadd.f32 %v140, %v188
  %v205 = vadd.f32 %v145, %v189
  %v206 = vadd.f32 %v148, %v190
  %v207 = vadd.f32 %v153, %v191
  %v208 = vadd.f32 %v156, %v192
  %v209 = vadd.f32 %v161, %v193
  %v210 = vadd.f32 %v164, %v194
  %v211 = vadd.f32 %v169, %v195
  %v212 = vadd.f32 %v172, %v196
  %v213 = vadd.f32 %v177, %v197
  %v214 = vadd.f32 %v180, %v198
  %vm215 = vcmask 130048
  %v216 = vsel %vm215, %v199, 0.0
  %217 = vadd.xlane.f32.xlu0 %v216
  %v218 = vpop.xlane.xlu0 %217
  %v219 = vsel %vm215, %v200, 0.0
  %220 = vadd.xlane.f32.xlu0 %v219
  %v221 = vpop.xlane.xlu0 %220
  %v222 = vsel %vm215, %v201, 0.0
  %223 = vadd.xlane.f32.xlu0 %v222
  %v224 = vpop.xlane.xlu0 %223
  %v225 = vsel %vm215, %v202, 0.0
  %226 = vadd.xlane.f32.xlu0 %v225
  %v227 = vpop.xlane.xlu0 %226
  %v228 = vsel %vm215, %v203, 0.0
  %229 = vadd.xlane.f32.xlu0 %v228
  %v230 = vpop.xlane.xlu0 %229
  %v231 = vsel %vm215, %v204, 0.0
  %232 = vadd.xlane.f32.xlu0 %v231
  %v233 = vpop.xlane.xlu0 %232
  %v234 = vsel %vm215, %v205, 0.0
  %235 = vadd.xlane.f32.xlu0 %v234
  %v236 = vpop.xlane.xlu0 %235
  %v237 = vsel %vm215, %v206, 0.0
  %238 = vadd.xlane.f32.xlu0 %v237
  %v239 = vpop.xlane.xlu0 %238
  %v240 = vsel %vm215, %v207, 0.0
  %241 = vadd.xlane.f32.xlu0 %v240
  %v242 = vpop.xlane.xlu0 %241
  %v243 = vsel %vm215, %v208, 0.0
  %244 = vadd.xlane.f32.xlu0 %v243
  %v245 = vpop.xlane.xlu0 %244
  %v246 = vsel %vm215, %v209, 0.0
  %247 = vadd.xlane.f32.xlu0 %v246
  %v248 = vpop.xlane.xlu0 %247
  %v249 = vsel %vm215, %v210, 0.0
  %250 = vadd.xlane.f32.xlu0 %v249
  %v251 = vpop.xlane.xlu0 %250
  %v252 = vsel %vm215, %v211, 0.0
  %253 = vadd.xlane.f32.xlu0 %v252
  %v254 = vpop.xlane.xlu0 %253
  %v255 = vsel %vm215, %v212, 0.0
  %256 = vadd.xlane.f32.xlu0 %v255
  %v257 = vpop.xlane.xlu0 %256
  %v258 = vsel %vm215, %v213, 0.0
  %259 = vadd.xlane.f32.xlu0 %v258
  %v260 = vpop.xlane.xlu0 %259
  %v261 = vsel %vm215, %v214, 0.0
  %262 = vadd.xlane.f32.xlu0 %v261
  %v263 = vpop.xlane.xlu0 %262
  %v264 = vrcp.pop 16.0
  %v265 = vmul.f32 %v218, %v264
  %v266 = vmul.f32 %v221, %v264
  %v267 = vmul.f32 %v224, %v264
  %v268 = vmul.f32 %v227, %v264
  %v269 = vmul.f32 %v230, %v264
  %v270 = vmul.f32 %v233, %v264
  %v271 = vmul.f32 %v236, %v264
  %v272 = vmul.f32 %v239, %v264
  %v273 = vmul.f32 %v242, %v264
  %v274 = vmul.f32 %v245, %v264
  %v275 = vmul.f32 %v248, %v264
  %v276 = vmul.f32 %v251, %v264
  %v277 = vmul.f32 %v254, %v264
  %v278 = vmul.f32 %v257, %v264
  %v279 = vmul.f32 %v260, %v264
  %v280 = vmul.f32 %v263, %v264
  %v281 = vsub.f32 %v199, %v265
  %v282 = vsub.f32 %v200, %v266
  %v283 = vsub.f32 %v201, %v267
  %v284 = vsub.f32 %v202, %v268
  %v285 = vsub.f32 %v203, %v269
  %v286 = vsub.f32 %v204, %v270
  %v287 = vsub.f32 %v205, %v271
  %v288 = vsub.f32 %v206, %v272
  %v289 = vsub.f32 %v207, %v273
  %v290 = vsub.f32 %v208, %v274
  %v291 = vsub.f32 %v209, %v275
  %v292 = vsub.f32 %v210, %v276
  %v293 = vsub.f32 %v211, %v277
  %v294 = vsub.f32 %v212, %v278
  %v295 = vsub.f32 %v213, %v279
  %v296 = vsub.f32 %v214, %v280
  %v297 = vmul.f32 %v281, %v281
  %v298 = vmul.f32 %v282, %v282
  %v299 = vmul.f32 %v283, %v283
  %v300 = vmul.f32 %v284, %v284
  %v301 = vmul.f32 %v285, %v285
  %v302 = vmul.f32 %v286, %v286
  %v303 = vmul.f32 %v287, %v287
  %v304 = vmul.f32 %v288, %v288
  %v305 = vmul.f32 %v289, %v289
  %v306 = vmul.f32 %v290, %v290
  %v307 = vmul.f32 %v291, %v291
  %v308 = vmul.f32 %v292, %v292
  %v309 = vmul.f32 %v293, %v293
  %v310 = vmul.f32 %v294, %v294
  %v311 = vmul.f32 %v295, %v295
  %v312 = vmul.f32 %v296, %v296
  %v313 = vsel %vm215, %v297, 0.0
  %314 = vadd.xlane.f32.xlu0 %v313
  %v315 = vpop.xlane.xlu0 %314
  %v316 = vsel %vm215, %v298, 0.0
  %317 = vadd.xlane.f32.xlu0 %v316
  %v318 = vpop.xlane.xlu0 %317
  %v319 = vsel %vm215, %v299, 0.0
  %320 = vadd.xlane.f32.xlu0 %v319
  %v321 = vpop.xlane.xlu0 %320
  %v322 = vsel %vm215, %v300, 0.0
  %323 = vadd.xlane.f32.xlu0 %v322
  %v324 = vpop.xlane.xlu0 %323
  %v325 = vsel %vm215, %v301, 0.0
  %326 = vadd.xlane.f32.xlu0 %v325
  %v327 = vpop.xlane.xlu0 %326
  %v328 = vsel %vm215, %v302, 0.0
  %329 = vadd.xlane.f32.xlu0 %v328
  %v330 = vpop.xlane.xlu0 %329
  %v331 = vsel %vm215, %v303, 0.0
  %332 = vadd.xlane.f32.xlu0 %v331
  %v333 = vpop.xlane.xlu0 %332
  %v334 = vsel %vm215, %v304, 0.0
  %335 = vadd.xlane.f32.xlu0 %v334
  %v336 = vpop.xlane.xlu0 %335
  %v337 = vsel %vm215, %v305, 0.0
  %338 = vadd.xlane.f32.xlu0 %v337
  %v339 = vpop.xlane.xlu0 %338
  %v340 = vsel %vm215, %v306, 0.0
  %341 = vadd.xlane.f32.xlu0 %v340
  %v342 = vpop.xlane.xlu0 %341
  %v343 = vsel %vm215, %v307, 0.0
  %344 = vadd.xlane.f32.xlu0 %v343
  %v345 = vpop.xlane.xlu0 %344
  %v346 = vsel %vm215, %v308, 0.0
  %347 = vadd.xlane.f32.xlu0 %v346
  %v348 = vpop.xlane.xlu0 %347
  %v349 = vsel %vm215, %v309, 0.0
  %350 = vadd.xlane.f32.xlu0 %v349
  %v351 = vpop.xlane.xlu0 %350
  %v352 = vsel %vm215, %v310, 0.0
  %353 = vadd.xlane.f32.xlu0 %v352
  %v354 = vpop.xlane.xlu0 %353
  %v355 = vsel %vm215, %v311, 0.0
  %356 = vadd.xlane.f32.xlu0 %v355
  %v357 = vpop.xlane.xlu0 %356
  %v358 = vsel %vm215, %v312, 0.0
  %359 = vadd.xlane.f32.xlu0 %v358
  %v360 = vpop.xlane.xlu0 %359
  %v361 = vmul.f32 %v315, %v264
  %v362 = vmul.f32 %v318, %v264
  %v363 = vmul.f32 %v321, %v264
  %v364 = vmul.f32 %v324, %v264
  %v365 = vmul.f32 %v327, %v264
  %v366 = vmul.f32 %v330, %v264
  %v367 = vmul.f32 %v333, %v264
  %v368 = vmul.f32 %v336, %v264
  %v369 = vmul.f32 %v339, %v264
  %v370 = vmul.f32 %v342, %v264
  %v371 = vmul.f32 %v345, %v264
  %v372 = vmul.f32 %v348, %v264
  %v373 = vmul.f32 %v351, %v264
  %v374 = vmul.f32 %v354, %v264
  %v375 = vmul.f32 %v357, %v264
  %v376 = vmul.f32 %v360, %v264
  %v377 = vadd.f32 %v361, 1e-05
  %v378 = vadd.f32 %v362, 1e-05
  %v379 = vadd.f32 %v363, 1e-05
  %v380 = vadd.f32 %v364, 1e-05
  %v381 = vadd.f32 %v365, 1e-05
  %v382 = vadd.f32 %v366, 1e-05
  %v383 = vadd.f32 %v367, 1e-05
  %v384 = vadd.f32 %v368, 1e-05
  %v385 = vadd.f32 %v369, 1e-05
  %v386 = vadd.f32 %v370, 1e-05
  %v387 = vadd.f32 %v371, 1e-05
  %v388 = vadd.f32 %v372, 1e-05
  %v389 = vadd.f32 %v373, 1e-05
  %v390 = vadd.f32 %v374, 1e-05
  %v391 = vadd.f32 %v375, 1e-05
  %v392 = vadd.f32 %v376, 1e-05
  %v393 = vrsqrt.pop %v377
  %v394 = vrsqrt.pop %v378
  %v395 = vrsqrt.pop %v379
  %v396 = vrsqrt.pop %v380
  %v397 = vrsqrt.pop %v381
  %v398 = vrsqrt.pop %v382
  %v399 = vrsqrt.pop %v383
  %v400 = vrsqrt.pop %v384
  %v401 = vrsqrt.pop %v385
  %v402 = vrsqrt.pop %v386
  %v403 = vrsqrt.pop %v387
  %v404 = vrsqrt.pop %v388
  %v405 = vrsqrt.pop %v389
  %v406 = vrsqrt.pop %v390
  %v407 = vrsqrt.pop %v391
  %v408 = vrsqrt.pop %v392
  %v409 = vmul.f32 %v281, %v393
  %v410 = vmul.f32 %v282, %v394
  %v411 = vmul.f32 %v283, %v395
  %v412 = vmul.f32 %v284, %v396
  %v413 = vmul.f32 %v285, %v397
  %v414 = vmul.f32 %v286, %v398
  %v415 = vmul.f32 %v287, %v399
  %v416 = vmul.f32 %v288, %v400
  %v417 = vmul.f32 %v289, %v401
  %v418 = vmul.f32 %v290, %v402
  %v419 = vmul.f32 %v291, %v403
  %v420 = vmul.f32 %v292, %v404
  %v421 = vmul.f32 %v293, %v405
  %v422 = vmul.f32 %v294, %v406
  %v423 = vmul.f32 %v295, %v407
  %v424 = vmul.f32 %v296, %v408
  %v425 = vld [vmem:[%s4] sm:$0x1]
  %v427 = vlaneseq
  %v428 = vshrl.u32 %v427, 7
  %v429 = vsub.s32 0, %v428
  %v430 = vrot.slane %v425, %v429
  %v432 = vmul.f32 %v409, %v430
  %v433 = vmul.f32 %v410, %v430
  %v434 = vmul.f32 %v411, %v430
  %v435 = vmul.f32 %v412, %v430
  %v436 = vmul.f32 %v413, %v430
  %v437 = vmul.f32 %v414, %v430
  %v438 = vmul.f32 %v415, %v430
  %v439 = vmul.f32 %v416, %v430
  %v440 = vmul.f32 %v417, %v430
  %v441 = vmul.f32 %v418, %v430
  %v442 = vmul.f32 %v419, %v430
  %v443 = vmul.f32 %v420, %v430
  %v444 = vmul.f32 %v421, %v430
  %v445 = vmul.f32 %v422, %v430
  %v446 = vmul.f32 %v423, %v430
  %v447 = vmul.f32 %v424, %v430
  %v448 = vld [vmem:[%s5] sm:$0x1]
  %v450 = vlaneseq
  %v451 = vshrl.u32 %v450, 7
  %v452 = vsub.s32 0, %v451
  %v453 = vrot.slane %v448, %v452
  %v455 = vadd.f32 %v432, %v453
  %v456 = vadd.f32 %v433, %v453
  %v457 = vadd.f32 %v434, %v453
  %v458 = vadd.f32 %v435, %v453
  %v459 = vadd.f32 %v436, %v453
  %v460 = vadd.f32 %v437, %v453
  %v461 = vadd.f32 %v438, %v453
  %v462 = vadd.f32 %v439, %v453
  %v463 = vadd.f32 %v440, %v453
  %v464 = vadd.f32 %v441, %v453
  %v465 = vadd.f32 %v442, %v453
  %v466 = vadd.f32 %v443, %v453
  %v467 = vadd.f32 %v444, %v453
  %v468 = vadd.f32 %v445, %v453
  %v469 = vadd.f32 %v446, %v453
  %v470 = vadd.f32 %v447, %v453
  %471 = vst.msk [vmem:[%s6] sm:$0xff] %vm215, %v455
  %472 = vst.msk [vmem:[%s6 + $0x8] sm:$0xff] %vm215, %v456
  %473 = vst.msk [vmem:[%s6 + $0x10] sm:$0xff] %vm215, %v457
  %474 = vst.msk [vmem:[%s6 + $0x18] sm:$0xff] %vm215, %v458
  %475 = vst.msk [vmem:[%s6 + $0x20] sm:$0xff] %vm215, %v459
  %476 = vst.msk [vmem:[%s6 + $0x28] sm:$0xff] %vm215, %v460
  %477 = vst.msk [vmem:[%s6 + $0x30] sm:$0xff] %vm215, %v461
  %478 = vst.msk [vmem:[%s6 + $0x38] sm:$0xff] %vm215, %v462
  %479 = vst.msk [vmem:[%s6 + $0x40] sm:$0xff] %vm215, %v463
  %480 = vst.msk [vmem:[%s6 + $0x48] sm:$0xff] %vm215, %v464
  %481 = vst.msk [vmem:[%s6 + $0x50] sm:$0xff] %vm215, %v465
  %482 = vst.msk [vmem:[%s6 + $0x58] sm:$0xff] %vm215, %v466
  %483 = vst.msk [vmem:[%s6 + $0x60] sm:$0xff] %vm215, %v467
  %484 = vst.msk [vmem:[%s6 + $0x68] sm:$0xff] %vm215, %v468
  %485 = vst.msk [vmem:[%s6 + $0x70] sm:$0xff] %vm215, %v469
  %486 = vst.msk [vmem:[%s6 + $0x78] sm:$0xff] %vm215, %v470
  // Predicated region
  $region26: #{_lambda_.53} parent=0 // pred_check
    _
  $region27: #{_lambda_.53} parent=0 // pred_check_branch
    %488 = sbr.rel (0) target = $region29
  $region28: #{_lambda_.53} parent=0 // pred_region
    _
  $region29: #{_lambda_.53} parent=0 // pred_fallthru
    _
  // Predicated region
  $region30: #{_lambda_.53} parent=0 // pred_check
    _
  $region31: #{_lambda_.53} parent=0 // pred_check_branch
    %490 = sbr.rel (0) target = $region33
  $region32: #{_lambda_.53} parent=0 // pred_region
    _
  $region33: #{_lambda_.53} parent=0 // pred_fallthru
    _

// kernel: _lambda_.56
$region0: #{_lambda_.56}
  #allocation0 [shape = 'u32[]', space=smem, size = 0x4, offset = 0x4, fixed_abs, tag = 'smem constant byte address 0x4 - core index']
  #allocation1 [shape = 'u32[144,128]{1,0:T(1,128)}', space=vmem, size = 0x12000, scoped, tag = 'internal scratch']
  %s0 = inlined_call_operand.vmem [shape: f32[128,16], index: 0, kind: input, shape index: {}]
  %s1 = inlined_call_operand.vmem [shape: f32[128,16], index: 1, kind: input, shape index: {}, may-alias: {1,4}]
  %s2 = inlined_call_operand.vmem [shape: f32[1,16], index: 2, kind: input, shape index: {}]
  %s3 = inlined_call_operand.vmem [shape: f32[1,16], index: 3, kind: input, shape index: {}]
  %s4 = inlined_call_operand.vmem [shape: f32[128,16], index: 4, kind: output, shape index: {}, may-alias: {1,4}]
  %s5 = sld [smem:[#allocation0]]
  $region26: #{_lambda_.56} parent=0
    _
  %s7 = ssub.s32 1, %s5
  %s8 = scalar_select 0, %s7, %s5
  // Predicated region
  $region2: #{_lambda_.56} parent=0 // pred_check
    _
  $region3: #{_lambda_.56} parent=0 // pred_check_branch
    %10 = sbr.rel (0) target = $region5
  $region4: #{_lambda_.56} parent=0 // pred_region
    _
  $region5: #{_lambda_.56} parent=0 // pred_fallthru
    _
  // Predicated region
  $region6: #{_lambda_.56} parent=0 // pred_check
    _
  $region7: #{_lambda_.56} parent=0 // pred_check_branch
    %12 = sbr.rel (0) target = $region9
  $region8: #{_lambda_.56} parent=0 // pred_region
    _
  $region9: #{_lambda_.56} parent=0 // pred_fallthru
    _
  // Predicated region
  $region10: #{_lambda_.56} parent=0 // pred_check
    _
  $region11: #{_lambda_.56} parent=0 // pred_check_branch
    %14 = sbr.rel (0) target = $region13
  $region12: #{_lambda_.56} parent=0 // pred_region
    _
  $region13: #{_lambda_.56} parent=0 // pred_fallthru
    _
  // Predicated region
  $region14: #{_lambda_.56} parent=0 // pred_check
    _
  $region15: #{_lambda_.56} parent=0 // pred_check_branch
    %16 = sbr.rel (0) target = $region17
  $region16: #{_lambda_.56} parent=0 // pred_region
    _
  $region17: #{_lambda_.56} parent=0 // pred_fallthru
    _
  %v17 = vld [vmem:[%s0] sm:$0xff]
  %v18 = vld [vmem:[%s0 + $0x8] sm:$0xff]
  %v19 = vld [vmem:[%s0 + $0x10] sm:$0xff]
  %v20 = vld [vmem:[%s0 + $0x18] sm:$0xff]
  %v21 = vld [vmem:[%s0 + $0x20] sm:$0xff]
  %v22 = vld [vmem:[%s0 + $0x28] sm:$0xff]
  %v23 = vld [vmem:[%s0 + $0x30] sm:$0xff]
  %v24 = vld [vmem:[%s0 + $0x38] sm:$0xff]
  %v25 = vld [vmem:[%s0 + $0x40] sm:$0xff]
  %v26 = vld [vmem:[%s0 + $0x48] sm:$0xff]
  %v27 = vld [vmem:[%s0 + $0x50] sm:$0xff]
  %v28 = vld [vmem:[%s0 + $0x58] sm:$0xff]
  %v29 = vld [vmem:[%s0 + $0x60] sm:$0xff]
  %v30 = vld [vmem:[%s0 + $0x68] sm:$0xff]
  %v31 = vld [vmem:[%s0 + $0x70] sm:$0xff]
  %v32 = vld [vmem:[%s0 + $0x78] sm:$0xff]
  %vm33 = vcmask 130048
  %v34 = vsel %vm33, %v17, 0.0
  %35 = vadd.xlane.f32.xlu0 %v34
  %v36 = vpop.xlane.xlu0 %35
  %v37 = vsel %vm33, %v18, 0.0
  %38 = vadd.xlane.f32.xlu0 %v37
  %v39 = vpop.xlane.xlu0 %38
  %v40 = vsel %vm33, %v19, 0.0
  %41 = vadd.xlane.f32.xlu0 %v40
  %v42 = vpop.xlane.xlu0 %41
  %v43 = vsel %vm33, %v20, 0.0
  %44 = vadd.xlane.f32.xlu0 %v43
  %v45 = vpop.xlane.xlu0 %44
  %v46 = vsel %vm33, %v21, 0.0
  %47 = vadd.xlane.f32.xlu0 %v46
  %v48 = vpop.xlane.xlu0 %47
  %v49 = vsel %vm33, %v22, 0.0
  %50 = vadd.xlane.f32.xlu0 %v49
  %v51 = vpop.xlane.xlu0 %50
  %v52 = vsel %vm33, %v23, 0.0
  %53 = vadd.xlane.f32.xlu0 %v52
  %v54 = vpop.xlane.xlu0 %53
  %v55 = vsel %vm33, %v24, 0.0
  %56 = vadd.xlane.f32.xlu0 %v55
  %v57 = vpop.xlane.xlu0 %56
  %v58 = vsel %vm33, %v25, 0.0
  %59 = vadd.xlane.f32.xlu0 %v58
  %v60 = vpop.xlane.xlu0 %59
  %v61 = vsel %vm33, %v26, 0.0
  %62 = vadd.xlane.f32.xlu0 %v61
  %v63 = vpop.xlane.xlu0 %62
  %v64 = vsel %vm33, %v27, 0.0
  %65 = vadd.xlane.f32.xlu0 %v64
  %v66 = vpop.xlane.xlu0 %65
  %v67 = vsel %vm33, %v28, 0.0
  %68 = vadd.xlane.f32.xlu0 %v67
  %v69 = vpop.xlane.xlu0 %68
  %v70 = vsel %vm33, %v29, 0.0
  %71 = vadd.xlane.f32.xlu0 %v70
  %v72 = vpop.xlane.xlu0 %71
  %v73 = vsel %vm33, %v30, 0.0
  %74 = vadd.xlane.f32.xlu0 %v73
  %v75 = vpop.xlane.xlu0 %74
  %v76 = vsel %vm33, %v31, 0.0
  %77 = vadd.xlane.f32.xlu0 %v76
  %v78 = vpop.xlane.xlu0 %77
  %v79 = vsel %vm33, %v32, 0.0
  %80 = vadd.xlane.f32.xlu0 %v79
  %v81 = vpop.xlane.xlu0 %80
  %v82 = vrcp.pop 16.0
  %v83 = vmul.f32 %v36, %v82
  %v84 = vmul.f32 %v39, %v82
  %v85 = vmul.f32 %v42, %v82
  %v86 = vmul.f32 %v45, %v82
  %v87 = vmul.f32 %v48, %v82
  %v88 = vmul.f32 %v51, %v82
  %v89 = vmul.f32 %v54, %v82
  %v90 = vmul.f32 %v57, %v82
  %v91 = vmul.f32 %v60, %v82
  %v92 = vmul.f32 %v63, %v82
  %v93 = vmul.f32 %v66, %v82
  %v94 = vmul.f32 %v69, %v82
  %v95 = vmul.f32 %v72, %v82
  %v96 = vmul.f32 %v75, %v82
  %v97 = vmul.f32 %v78, %v82
  %v98 = vmul.f32 %v81, %v82
  %v99 = vsub.f32 %v17, %v83
  %v100 = vsub.f32 %v18, %v84
  %v101 = vsub.f32 %v19, %v85
  %v102 = vsub.f32 %v20, %v86
  %v103 = vsub.f32 %v21, %v87
  %v104 = vsub.f32 %v22, %v88
  %v105 = vsub.f32 %v23, %v89
  %v106 = vsub.f32 %v24, %v90
  %v107 = vsub.f32 %v25, %v91
  %v108 = vsub.f32 %v26, %v92
  %v109 = vsub.f32 %v27, %v93
  %v110 = vsub.f32 %v28, %v94
  %v111 = vsub.f32 %v29, %v95
  %v112 = vsub.f32 %v30, %v96
  %v113 = vsub.f32 %v31, %v97
  %v114 = vsub.f32 %v32, %v98
  %v115 = vmul.f32 %v99, %v99
  %v116 = vmul.f32 %v100, %v100
  %v117 = vmul.f32 %v101, %v101
  %v118 = vmul.f32 %v102, %v102
  %v119 = vmul.f32 %v103, %v103
  %v120 = vmul.f32 %v104, %v104
  %v121 = vmul.f32 %v105, %v105
  %v122 = vmul.f32 %v106, %v106
  %v123 = vmul.f32 %v107, %v107
  %v124 = vmul.f32 %v108, %v108
  %v125 = vmul.f32 %v109, %v109
  %v126 = vmul.f32 %v110, %v110
  %v127 = vmul.f32 %v111, %v111
  %v128 = vmul.f32 %v112, %v112
  %v129 = vmul.f32 %v113, %v113
  %v130 = vmul.f32 %v114, %v114
  %v131 = vsel %vm33, %v115, 0.0
  %132 = vadd.xlane.f32.xlu0 %v131
  %v133 = vpop.xlane.xlu0 %132
  %v134 = vsel %vm33, %v116, 0.0
  %135 = vadd.xlane.f32.xlu0 %v134
  %v136 = vpop.xlane.xlu0 %135
  %v137 = vsel %vm33, %v117, 0.0
  %138 = vadd.xlane.f32.xlu0 %v137
  %v139 = vpop.xlane.xlu0 %138
  %v140 = vsel %vm33, %v118, 0.0
  %141 = vadd.xlane.f32.xlu0 %v140
  %v142 = vpop.xlane.xlu0 %141
  %v143 = vsel %vm33, %v119, 0.0
  %144 = vadd.xlane.f32.xlu0 %v143
  %v145 = vpop.xlane.xlu0 %144
  %v146 = vsel %vm33, %v120, 0.0
  %147 = vadd.xlane.f32.xlu0 %v146
  %v148 = vpop.xlane.xlu0 %147
  %v149 = vsel %vm33, %v121, 0.0
  %150 = vadd.xlane.f32.xlu0 %v149
  %v151 = vpop.xlane.xlu0 %150
  %v152 = vsel %vm33, %v122, 0.0
  %153 = vadd.xlane.f32.xlu0 %v152
  %v154 = vpop.xlane.xlu0 %153
  %v155 = vsel %vm33, %v123, 0.0
  %156 = vadd.xlane.f32.xlu0 %v155
  %v157 = vpop.xlane.xlu0 %156
  %v158 = vsel %vm33, %v124, 0.0
  %159 = vadd.xlane.f32.xlu0 %v158
  %v160 = vpop.xlane.xlu0 %159
  %v161 = vsel %vm33, %v125, 0.0
  %162 = vadd.xlane.f32.xlu0 %v161
  %v163 = vpop.xlane.xlu0 %162
  %v164 = vsel %vm33, %v126, 0.0
  %165 = vadd.xlane.f32.xlu0 %v164
  %v166 = vpop.xlane.xlu0 %165
  %v167 = vsel %vm33, %v127, 0.0
  %168 = vadd.xlane.f32.xlu0 %v167
  %v169 = vpop.xlane.xlu0 %168
  %v170 = vsel %vm33, %v128, 0.0
  %171 = vadd.xlane.f32.xlu0 %v170
  %v172 = vpop.xlane.xlu0 %171
  %v173 = vsel %vm33, %v129, 0.0
  %174 = vadd.xlane.f32.xlu0 %v173
  %v175 = vpop.xlane.xlu0 %174
  %v176 = vsel %vm33, %v130, 0.0
  %177 = vadd.xlane.f32.xlu0 %v176
  %v178 = vpop.xlane.xlu0 %177
  %v179 = vmul.f32 %v133, %v82
  %v180 = vmul.f32 %v136, %v82
  %v181 = vmul.f32 %v139, %v82
  %v182 = vmul.f32 %v142, %v82
  %v183 = vmul.f32 %v145, %v82
  %v184 = vmul.f32 %v148, %v82
  %v185 = vmul.f32 %v151, %v82
  %v186 = vmul.f32 %v154, %v82
  %v187 = vmul.f32 %v157, %v82
  %v188 = vmul.f32 %v160, %v82
  %v189 = vmul.f32 %v163, %v82
  %v190 = vmul.f32 %v166, %v82
  %v191 = vmul.f32 %v169, %v82
  %v192 = vmul.f32 %v172, %v82
  %v193 = vmul.f32 %v175, %v82
  %v194 = vmul.f32 %v178, %v82
  %v195 = vadd.f32 %v179, 1e-05
  %v196 = vadd.f32 %v180, 1e-05
  %v197 = vadd.f32 %v181, 1e-05
  %v198 = vadd.f32 %v182, 1e-05
  %v199 = vadd.f32 %v183, 1e-05
  %v200 = vadd.f32 %v184, 1e-05
  %v201 = vadd.f32 %v185, 1e-05
  %v202 = vadd.f32 %v186, 1e-05
  %v203 = vadd.f32 %v187, 1e-05
  %v204 = vadd.f32 %v188, 1e-05
  %v205 = vadd.f32 %v189, 1e-05
  %v206 = vadd.f32 %v190, 1e-05
  %v207 = vadd.f32 %v191, 1e-05
  %v208 = vadd.f32 %v192, 1e-05
  %v209 = vadd.f32 %v193, 1e-05
  %v210 = vadd.f32 %v194, 1e-05
  %v211 = vrsqrt.pop %v195
  %v212 = vrsqrt.pop %v196
  %v213 = vrsqrt.pop %v197
  %v214 = vrsqrt.pop %v198
  %v215 = vrsqrt.pop %v199
  %v216 = vrsqrt.pop %v200
  %v217 = vrsqrt.pop %v201
  %v218 = vrsqrt.pop %v202
  %v219 = vrsqrt.pop %v203
  %v220 = vrsqrt.pop %v204
  %v221 = vrsqrt.pop %v205
  %v222 = vrsqrt.pop %v206
  %v223 = vrsqrt.pop %v207
  %v224 = vrsqrt.pop %v208
  %v225 = vrsqrt.pop %v209
  %v226 = vrsqrt.pop %v210
  %v227 = vmul.f32 %v99, %v211
  %v228 = vmul.f32 %v100, %v212
  %v229 = vmul.f32 %v101, %v213
  %v230 = vmul.f32 %v102, %v214
  %v231 = vmul.f32 %v103, %v215
  %v232 = vmul.f32 %v104, %v216
  %v233 = vmul.f32 %v105, %v217
  %v234 = vmul.f32 %v106, %v218
  %v235 = vmul.f32 %v107, %v219
  %v236 = vmul.f32 %v108, %v220
  %v237 = vmul.f32 %v109, %v221
  %v238 = vmul.f32 %v110, %v222
  %v239 = vmul.f32 %v111, %v223
  %v240 = vmul.f32 %v112, %v224
  %v241 = vmul.f32 %v113, %v225
  %v242 = vmul.f32 %v114, %v226
  %v243 = vld [vmem:[%s2] sm:$0x1]
  %v245 = vlaneseq
  %v246 = vshrl.u32 %v245, 7
  %v247 = vsub.s32 0, %v246
  %v248 = vrot.slane %v243, %v247
  %v250 = vmul.f32 %v227, %v248
  %v251 = vmul.f32 %v228, %v248
  %v252 = vmul.f32 %v229, %v248
  %v253 = vmul.f32 %v230, %v248
  %v254 = vmul.f32 %v231, %v248
  %v255 = vmul.f32 %v232, %v248
  %v256 = vmul.f32 %v233, %v248
  %v257 = vmul.f32 %v234, %v248
  %v258 = vmul.f32 %v235, %v248
  %v259 = vmul.f32 %v236, %v248
  %v260 = vmul.f32 %v237, %v248
  %v261 = vmul.f32 %v238, %v248
  %v262 = vmul.f32 %v239, %v248
  %v263 = vmul.f32 %v240, %v248
  %v264 = vmul.f32 %v241, %v248
  %v265 = vmul.f32 %v242, %v248
  %v266 = vld [vmem:[%s3] sm:$0x1]
  %v268 = vlaneseq
  %v269 = vshrl.u32 %v268, 7
  %v270 = vsub.s32 0, %v269
  %v271 = vrot.slane %v266, %v270
  %v273 = vadd.f32 %v250, %v271
  %v274 = vadd.f32 %v251, %v271
  %v275 = vadd.f32 %v252, %v271
  %v276 = vadd.f32 %v253, %v271
  %v277 = vadd.f32 %v254, %v271
  %v278 = vadd.f32 %v255, %v271
  %v279 = vadd.f32 %v256, %v271
  %v280 = vadd.f32 %v257, %v271
  %v281 = vadd.f32 %v258, %v271
  %v282 = vadd.f32 %v259, %v271
  %v283 = vadd.f32 %v260, %v271
  %v284 = vadd.f32 %v261, %v271
  %v285 = vadd.f32 %v262, %v271
  %v286 = vadd.f32 %v263, %v271
  %v287 = vadd.f32 %v264, %v271
  %v288 = vadd.f32 %v265, %v271
  %v289 = vld [vmem:[%s1] sm:$0xff]
  %v290 = vld [vmem:[%s1 + $0x8] sm:$0xff]
  %v291 = vld [vmem:[%s1 + $0x10] sm:$0xff]
  %v292 = vld [vmem:[%s1 + $0x18] sm:$0xff]
  %v293 = vld [vmem:[%s1 + $0x20] sm:$0xff]
  %v294 = vld [vmem:[%s1 + $0x28] sm:$0xff]
  %v295 = vld [vmem:[%s1 + $0x30] sm:$0xff]
  %v296 = vld [vmem:[%s1 + $0x38] sm:$0xff]
  %v297 = vld [vmem:[%s1 + $0x40] sm:$0xff]
  %v298 = vld [vmem:[%s1 + $0x48] sm:$0xff]
  %v299 = vld [vmem:[%s1 + $0x50] sm:$0xff]
  %v300 = vld [vmem:[%s1 + $0x58] sm:$0xff]
  %v301 = vld [vmem:[%s1 + $0x60] sm:$0xff]
  %v302 = vld [vmem:[%s1 + $0x68] sm:$0xff]
  %v303 = vld [vmem:[%s1 + $0x70] sm:$0xff]
  %v304 = vld [vmem:[%s1 + $0x78] sm:$0xff]
  %v305 = vadd.f32 %v273, %v289
  %v306 = vadd.f32 %v274, %v290
  %v307 = vadd.f32 %v275, %v291
  %v308 = vadd.f32 %v276, %v292
  %v309 = vadd.f32 %v277, %v293
  %v310 = vadd.f32 %v278, %v294
  %v311 = vadd.f32 %v279, %v295
  %v312 = vadd.f32 %v280, %v296
  %v313 = vadd.f32 %v281, %v297
  %v314 = vadd.f32 %v282, %v298
  %v315 = vadd.f32 %v283, %v299
  %v316 = vadd.f32 %v284, %v300
  %v317 = vadd.f32 %v285, %v301
  %v318 = vadd.f32 %v286, %v302
  %v319 = vadd.f32 %v287, %v303
  %v320 = vadd.f32 %v288, %v304
  %321 = vst.msk [vmem:[%s4] sm:$0xff] %vm33, %v305
  %322 = vst.msk [vmem:[%s4 + $0x8] sm:$0xff] %vm33, %v306
  %323 = vst.msk [vmem:[%s4 + $0x10] sm:$0xff] %vm33, %v307
  %324 = vst.msk [vmem:[%s4 + $0x18] sm:$0xff] %vm33, %v308
  %325 = vst.msk [vmem:[%s4 + $0x20] sm:$0xff] %vm33, %v309
  %326 = vst.msk [vmem:[%s4 + $0x28] sm:$0xff] %vm33, %v310
  %327 = vst.msk [vmem:[%s4 + $0x30] sm:$0xff] %vm33, %v311
  %328 = vst.msk [vmem:[%s4 + $0x38] sm:$0xff] %vm33, %v312
  %329 = vst.msk [vmem:[%s4 + $0x40] sm:$0xff] %vm33, %v313
  %330 = vst.msk [vmem:[%s4 + $0x48] sm:$0xff] %vm33, %v314
  %331 = vst.msk [vmem:[%s4 + $0x50] sm:$0xff] %vm33, %v315
  %332 = vst.msk [vmem:[%s4 + $0x58] sm:$0xff] %vm33, %v316
  %333 = vst.msk [vmem:[%s4 + $0x60] sm:$0xff] %vm33, %v317
  %334 = vst.msk [vmem:[%s4 + $0x68] sm:$0xff] %vm33, %v318
  %335 = vst.msk [vmem:[%s4 + $0x70] sm:$0xff] %vm33, %v319
  %336 = vst.msk [vmem:[%s4 + $0x78] sm:$0xff] %vm33, %v320
  // Predicated region
  $region18: #{_lambda_.56} parent=0 // pred_check
    _
  $region19: #{_lambda_.56} parent=0 // pred_check_branch
    %338 = sbr.rel (0) target = $region21
  $region20: #{_lambda_.56} parent=0 // pred_region
    _
  $region21: #{_lambda_.56} parent=0 // pred_fallthru
    _
  // Predicated region
  $region22: #{_lambda_.56} parent=0 // pred_check
    _
  $region23: #{_lambda_.56} parent=0 // pred_check_branch
    %340 = sbr.rel (0) target = $region25
  $region24: #{_lambda_.56} parent=0 // pred_region
    _
  $region25: #{_lambda_.56} parent=0 // pred_fallthru
    _

// kernel: _lambda_.51
$region0: #{_lambda_.51}
  #allocation0 [shape = 'u32[]', space=smem, size = 0x4, offset = 0x4, fixed_abs, tag = 'smem constant byte address 0x4 - core index']
  #allocation1 [shape = 'u32[144,128]{1,0:T(1,128)}', space=vmem, size = 0x12000, scoped, tag = 'internal scratch']
  %s0 = inlined_call_operand.vmem [shape: f32[40,8], index: 0, kind: input, shape index: {}]
  %s1 = inlined_call_operand.vmem [shape: f32[8,16], index: 1, kind: input, shape index: {}]
  %s2 = inlined_call_operand.vmem [shape: f32[1,16], index: 2, kind: input, shape index: {}]
  %s3 = inlined_call_operand.vmem [shape: f32[40,16], index: 3, kind: output, shape index: {}]
  %s4 = sld [smem:[#allocation0]]
  $region22: #{_lambda_.51} parent=0
    _
  %s6 = ssub.s32 1, %s4
  %s7 = scalar_select 0, %s6, %s4
  // Predicated region
  $region2: #{_lambda_.51} parent=0 // pred_check
    _
  $region3: #{_lambda_.51} parent=0 // pred_check_branch
    %9 = sbr.rel (0) target = $region5
  $region4: #{_lambda_.51} parent=0 // pred_region
    _
  $region5: #{_lambda_.51} parent=0 // pred_fallthru
    _
  // Predicated region
  $region6: #{_lambda_.51} parent=0 // pred_check
    _
  $region7: #{_lambda_.51} parent=0 // pred_check_branch
    %11 = sbr.rel (0) target = $region9
  $region8: #{_lambda_.51} parent=0 // pred_region
    _
  $region9: #{_lambda_.51} parent=0 // pred_fallthru
    _
  // Predicated region
  $region10: #{_lambda_.51} parent=0 // pred_check
    _
  $region11: #{_lambda_.51} parent=0 // pred_check_branch
    %13 = sbr.rel (0) target = $region13
  $region12: #{_lambda_.51} parent=0 // pred_region
    _
  $region13: #{_lambda_.51} parent=0 // pred_fallthru
    _
  %v15 = vld [vmem:[%s0] sm:$0xff]
  %v16 = vld [vmem:[%s0 + $0x8] sm:$0xff]
  %v17 = vld [vmem:[%s0 + $0x10] sm:$0xff]
  %v18 = vld [vmem:[%s0 + $0x18] sm:$0xff]
  %v19 = vld [vmem:[%s0 + $0x20] sm:$0xff]
  %v20 = vld [vmem:[%s1] sm:$0xff]
  %v21 = vpack.c.bf16 %v16, %v15
  %v22 = vpack.c.bf16 %v18, %v17
  %v23 = vpack.c.bf16 %v19, %v19
  %v24 = vpack.c.bf16 %v20, %v20
  %v25 = vld [vmem:[%s2] sm:$0x1]
  %v27 = vlaneseq
  %v28 = vshrl.u32 %v27, 7
  %v29 = vsub.s32 0, %v28
  %v30 = vrot.slane %v25, %v29
  %vm32 = vcmask 64512
  %v34 = vsel %vm32, %v21, 0
  %v37 = vsel %vm32, %v22, 0
  %v40 = vsel %vm32, %v23, 0
  %vm42 = vcmask 1043456
  %v44 = vsel %vm42, %v24, 0
  %46 = vmatprep.subr.bf16.mxu0 0
  %47 = vmatpush1.bf16.msra.mxu0 0
  %48 = vmatprep.subr.bf16.mxu0 0
  %49 = vmatpush1.bf16.msra.mxu0 0
  %50 = vmatprep.subr.bf16.mxu0 0
  %51 = vmatpush1.bf16.msra.mxu0 0
  %52 = vmatprep.subr.bf16.mxu0 0
  %53 = vmatpush1.bf16.msra.mxu0 0
  %54 = vmatprep.subr.bf16.mxu0 0
  %55 = vmatpush1.bf16.msra.mxu0 0
  %56 = vmatprep.subr.bf16.mxu0 0
  %57 = vmatpush1.bf16.msra.mxu0 0
  %58 = vmatprep.subr.bf16.mxu0 0
  %59 = vmatpush1.bf16.msra.mxu0 0
  %60 = vmatprep.subr.bf16.mxu0 0
  %61 = vmatpush1.bf16.msra.mxu0 %v44
  %62 = vmatprep.subr.bf16.mxu0 0
  %63 = vmatpush2.bf16.msra.mxu0 0
  %64 = vmatprep.subr.bf16.mxu0 0
  %65 = vmatpush2.bf16.msra.mxu0 0
  %66 = vmatprep.subr.bf16.mxu0 0
  %67 = vmatpush2.bf16.msra.mxu0 0
  %68 = vmatprep.subr.bf16.mxu0 0
  %69 = vmatpush2.bf16.msra.mxu0 0
  %70 = vmatprep.subr.bf16.mxu0 0
  %71 = vmatpush2.bf16.msra.mxu0 0
  %72 = vmatprep.subr.bf16.mxu0 0
  %73 = vmatpush2.bf16.msra.mxu0 0
  %74 = vmatprep.subr.bf16.mxu0 0
  %75 = vmatpush2.bf16.msra.mxu0 0
  %76 = vmatprep.subr.bf16.mxu0 0
  %77 = vmatpush2.bf16.msra.mxu0 0
  %78 = vmatprep.mubr.bf16.mxu0 0
  %79 = vmatmul.mubr.bf16.gmra.mxu0 %v34
  %v80 = vpop.f32.mrf.mxu0
  %v81 = vadd.f32 %v30, %v80
  %v82 = vpop.f32.mrf.mxu0
  %v83 = vpop.f32.mrf.mxu0
  %v84 = vadd.f32 %v30, %v83
  %v85 = vpop.f32.mrf.mxu0
  %86 = vmatprep.mubr.bf16.mxu0 0
  %87 = vmatmul.mubr.bf16.gmra.mxu0 %v37
  %v88 = vpop.f32.mrf.mxu0
  %v89 = vadd.f32 %v30, %v88
  %v90 = vpop.f32.mrf.mxu0
  %v91 = vpop.f32.mrf.mxu0
  %v92 = vadd.f32 %v30, %v91
  %v93 = vpop.f32.mrf.mxu0
  %94 = vmatprep.mubr.bf16.mxu0 0
  %95 = vmatmul.mubr.bf16.gmra.mxu0 %v40
  %v96 = vpop.f32.mrf.mxu0
  %v97 = vadd.f32 %v30, %v96
  %v98 = vpop.f32.mrf.mxu0
  %v99 = vpop.f32.mrf.mxu0
  %v100 = vpop.f32.mrf.mxu0
  %101 = vdwg.mxu0
  %v102 = vmax.f32 %v81, 0.0
  %v103 = vmax.f32 %v84, 0.0
  %v104 = vmax.f32 %v89, 0.0
  %v105 = vmax.f32 %v92, 0.0
  %v106 = vmax.f32 %v97, 0.0
  %vm107 = vcmask 130048
  %108 = vst.msk [vmem:[%s3] sm:$0xff] %vm107, %v102
  %109 = vst.msk [vmem:[%s3 + $0x8] sm:$0xff] %vm107, %v103
  %110 = vst.msk [vmem:[%s3 + $0x10] sm:$0xff] %vm107, %v104
  %111 = vst.msk [vmem:[%s3 + $0x18] sm:$0xff] %vm107, %v105
  %112 = vst.msk [vmem:[%s3 + $0x20] sm:$0xff] %vm107, %v106
  // Predicated region
  $region14: #{_lambda_.51} parent=0 // pred_check
    _
  $region15: #{_lambda_.51} parent=0 // pred_check_branch
    %114 = sbr.rel (0) target = $region17
  $region16: #{_lambda_.51} parent=0 // pred_region
    _
  $region17: #{_lambda_.51} parent=0 // pred_fallthru
    _
  // Predicated region
  $region18: #{_lambda_.51} parent=0 // pred_check
    _
  $region19: #{_lambda_.51} parent=0 // pred_check_branch
    %116 = sbr.rel (0) target = $region21
  $region20: #{_lambda_.51} parent=0 // pred_region
    _
  $region21: #{_lambda_.51} parent=0 // pred_fallthru
    _

// kernel: _lambda_.58
$region0: #{_lambda_.58}
  #allocation0 [shape = 'u32[]', space=smem, size = 0x4, offset = 0x4, fixed_abs, tag = 'smem constant byte address 0x4 - core index']
  #allocation1 [shape = 'u32[144,128]{1,0:T(1,128)}', space=vmem, size = 0x12000, scoped, tag = 'internal scratch']
  %s0 = inlined_call_operand.vmem [shape: f32[128,1,16], index: 0, kind: input, shape index: {}]
  %s1 = inlined_call_operand.vmem [shape: f32[1,16], index: 1, kind: input, shape index: {}]
  %s2 = inlined_call_operand.vmem [shape: f32[1,16], index: 2, kind: input, shape index: {}]
  %s3 = inlined_call_operand.vmem [shape: f32[128,16], index: 3, kind: output, shape index: {}]
  %s4 = sld [smem:[#allocation0]]
  $region22: #{_lambda_.58} parent=0
    _
  %s6 = ssub.s32 1, %s4
  %s7 = scalar_select 0, %s6, %s4
  // Predicated region
  $region2: #{_lambda_.58} parent=0 // pred_check
    _
  $region3: #{_lambda_.58} parent=0 // pred_check_branch
    %9 = sbr.rel (0) target = $region5
  $region4: #{_lambda_.58} parent=0 // pred_region
    _
  $region5: #{_lambda_.58} parent=0 // pred_fallthru
    _
  // Predicated region
  $region6: #{_lambda_.58} parent=0 // pred_check
    _
  $region7: #{_lambda_.58} parent=0 // pred_check_branch
    %11 = sbr.rel (0) target = $region9
  $region8: #{_lambda_.58} parent=0 // pred_region
    _
  $region9: #{_lambda_.58} parent=0 // pred_fallthru
    _
  // Predicated region
  $region10: #{_lambda_.58} parent=0 // pred_check
    _
  $region11: #{_lambda_.58} parent=0 // pred_check_branch
    %13 = sbr.rel (0) target = $region13
  $region12: #{_lambda_.58} parent=0 // pred_region
    _
  $region13: #{_lambda_.58} parent=0 // pred_fallthru
    _
  %v14 = vld [vmem:[%s0] sm:$0x1]
  %v15 = vld [vmem:[%s0 + $0x1] sm:$0x1]
  %v16 = vld [vmem:[%s0 + $0x2] sm:$0x1]
  %v17 = vld [vmem:[%s0 + $0x3] sm:$0x1]
  %v18 = vld [vmem:[%s0 + $0x4] sm:$0x1]
  %v19 = vld [vmem:[%s0 + $0x5] sm:$0x1]
  %v20 = vld [vmem:[%s0 + $0x6] sm:$0x1]
  %v21 = vld [vmem:[%s0 + $0x7] sm:$0x1]
  %v22 = vld [vmem:[%s0 + $0x8] sm:$0x1]
  %v23 = vld [vmem:[%s0 + $0x9] sm:$0x1]
  %v24 = vld [vmem:[%s0 + $0xa] sm:$0x1]
  %v25 = vld [vmem:[%s0 + $0xb] sm:$0x1]
  %v26 = vld [vmem:[%s0 + $0xc] sm:$0x1]
  %v27 = vld [vmem:[%s0 + $0xd] sm:$0x1]
  %v28 = vld [vmem:[%s0 + $0xe] sm:$0x1]
  %v29 = vld [vmem:[%s0 + $0xf] sm:$0x1]
  %v30 = vld [vmem:[%s0 + $0x10] sm:$0x1]
  %v31 = vld [vmem:[%s0 + $0x11] sm:$0x1]
  %v32 = vld [vmem:[%s0 + $0x12] sm:$0x1]
  %v33 = vld [vmem:[%s0 + $0x13] sm:$0x1]
  %v34 = vld [vmem:[%s0 + $0x14] sm:$0x1]
  %v35 = vld [vmem:[%s0 + $0x15] sm:$0x1]
  %v36 = vld [vmem:[%s0 + $0x16] sm:$0x1]
  %v37 = vld [vmem:[%s0 + $0x17] sm:$0x1]
  %v38 = vld [vmem:[%s0 + $0x18] sm:$0x1]
  %v39 = vld [vmem:[%s0 + $0x19] sm:$0x1]
  %v40 = vld [vmem:[%s0 + $0x1a] sm:$0x1]
  %v41 = vld [vmem:[%s0 + $0x1b] sm:$0x1]
  %v42 = vld [vmem:[%s0 + $0x1c] sm:$0x1]
  %v43 = vld [vmem:[%s0 + $0x1d] sm:$0x1]
  %v44 = vld [vmem:[%s0 + $0x1e] sm:$0x1]
  %v45 = vld [vmem:[%s0 + $0x1f] sm:$0x1]
  %v46 = vld [vmem:[%s0 + $0x20] sm:$0x1]
  %v47 = vld [vmem:[%s0 + $0x21] sm:$0x1]
  %v48 = vld [vmem:[%s0 + $0x22] sm:$0x1]
  %v49 = vld [vmem:[%s0 + $0x23] sm:$0x1]
  %v50 = vld [vmem:[%s0 + $0x24] sm:$0x1]
  %v51 = vld [vmem:[%s0 + $0x25] sm:$0x1]
  %v52 = vld [vmem:[%s0 + $0x26] sm:$0x1]
  %v53 = vld [vmem:[%s0 + $0x27] sm:$0x1]
  %v54 = vld [vmem:[%s0 + $0x28] sm:$0x1]
  %v55 = vld [vmem:[%s0 + $0x29] sm:$0x1]
  %v56 = vld [vmem:[%s0 + $0x2a] sm:$0x1]
  %v57 = vld [vmem:[%s0 + $0x2b] sm:$0x1]
  %v58 = vld [vmem:[%s0 + $0x2c] sm:$0x1]
  %v59 = vld [vmem:[%s0 + $0x2d] sm:$0x1]
  %v60 = vld [vmem:[%s0 + $0x2e] sm:$0x1]
  %v61 = vld [vmem:[%s0 + $0x2f] sm:$0x1]
  %v62 = vld [vmem:[%s0 + $0x30] sm:$0x1]
  %v63 = vld [vmem:[%s0 + $0x31] sm:$0x1]
  %v64 = vld [vmem:[%s0 + $0x32] sm:$0x1]
  %v65 = vld [vmem:[%s0 + $0x33] sm:$0x1]
  %v66 = vld [vmem:[%s0 + $0x34] sm:$0x1]
  %v67 = vld [vmem:[%s0 + $0x35] sm:$0x1]
  %v68 = vld [vmem:[%s0 + $0x36] sm:$0x1]
  %v69 = vld [vmem:[%s0 + $0x37] sm:$0x1]
  %v70 = vld [vmem:[%s0 + $0x38] sm:$0x1]
  %v71 = vld [vmem:[%s0 + $0x39] sm:$0x1]
  %v72 = vld [vmem:[%s0 + $0x3a] sm:$0x1]
  %v73 = vld [vmem:[%s0 + $0x3b] sm:$0x1]
  %v74 = vld [vmem:[%s0 + $0x3c] sm:$0x1]
  %v75 = vld [vmem:[%s0 + $0x3d] sm:$0x1]
  %v76 = vld [vmem:[%s0 + $0x3e] sm:$0x1]
  %v77 = vld [vmem:[%s0 + $0x3f] sm:$0x1]
  %v78 = vld [vmem:[%s0 + $0x40] sm:$0x1]
  %v79 = vld [vmem:[%s0 + $0x41] sm:$0x1]
  %v80 = vld [vmem:[%s0 + $0x42] sm:$0x1]
  %v81 = vld [vmem:[%s0 + $0x43] sm:$0x1]
  %v82 = vld [vmem:[%s0 + $0x44] sm:$0x1]
  %v83 = vld [vmem:[%s0 + $0x45] sm:$0x1]
  %v84 = vld [vmem:[%s0 + $0x46] sm:$0x1]
  %v85 = vld [vmem:[%s0 + $0x47] sm:$0x1]
  %v86 = vld [vmem:[%s0 + $0x48] sm:$0x1]
  %v87 = vld [vmem:[%s0 + $0x49] sm:$0x1]
  %v88 = vld [vmem:[%s0 + $0x4a] sm:$0x1]
  %v89 = vld [vmem:[%s0 + $0x4b] sm:$0x1]
  %v90 = vld [vmem:[%s0 + $0x4c] sm:$0x1]
  %v91 = vld [vmem:[%s0 + $0x4d] sm:$0x1]
  %v92 = vld [vmem:[%s0 + $0x4e] sm:$0x1]
  %v93 = vld [vmem:[%s0 + $0x4f] sm:$0x1]
  %v94 = vld [vmem:[%s0 + $0x50] sm:$0x1]
  %v95 = vld [vmem:[%s0 + $0x51] sm:$0x1]
  %v96 = vld [vmem:[%s0 + $0x52] sm:$0x1]
  %v97 = vld [vmem:[%s0 + $0x53] sm:$0x1]
  %v98 = vld [vmem:[%s0 + $0x54] sm:$0x1]
  %v99 = vld [vmem:[%s0 + $0x55] sm:$0x1]
  %v100 = vld [vmem:[%s0 + $0x56] sm:$0x1]
  %v101 = vld [vmem:[%s0 + $0x57] sm:$0x1]
  %v102 = vld [vmem:[%s0 + $0x58] sm:$0x1]
  %v103 = vld [vmem:[%s0 + $0x59] sm:$0x1]
  %v104 = vld [vmem:[%s0 + $0x5a] sm:$0x1]
  %v105 = vld [vmem:[%s0 + $0x5b] sm:$0x1]
  %v106 = vld [vmem:[%s0 + $0x5c] sm:$0x1]
  %v107 = vld [vmem:[%s0 + $0x5d] sm:$0x1]
  %v108 = vld [vmem:[%s0 + $0x5e] sm:$0x1]
  %v109 = vld [vmem:[%s0 + $0x5f] sm:$0x1]
  %v110 = vld [vmem:[%s0 + $0x60] sm:$0x1]
  %v111 = vld [vmem:[%s0 + $0x61] sm:$0x1]
  %v112 = vld [vmem:[%s0 + $0x62] sm:$0x1]
  %v113 = vld [vmem:[%s0 + $0x63] sm:$0x1]
  %v114 = vld [vmem:[%s0 + $0x64] sm:$0x1]
  %v115 = vld [vmem:[%s0 + $0x65] sm:$0x1]
  %v116 = vld [vmem:[%s0 + $0x66] sm:$0x1]
  %v117 = vld [vmem:[%s0 + $0x67] sm:$0x1]
  %v118 = vld [vmem:[%s0 + $0x68] sm:$0x1]
  %v119 = vld [vmem:[%s0 + $0x69] sm:$0x1]
  %v120 = vld [vmem:[%s0 + $0x6a] sm:$0x1]
  %v121 = vld [vmem:[%s0 + $0x6b] sm:$0x1]
  %v122 = vld [vmem:[%s0 + $0x6c] sm:$0x1]
  %v123 = vld [vmem:[%s0 + $0x6d] sm:$0x1]
  %v124 = vld [vmem:[%s0 + $0x6e] sm:$0x1]
  %v125 = vld [vmem:[%s0 + $0x6f] sm:$0x1]
  %v126 = vld [vmem:[%s0 + $0x70] sm:$0x1]
  %v127 = vld [vmem:[%s0 + $0x71] sm:$0x1]
  %v128 = vld [vmem:[%s0 + $0x72] sm:$0x1]
  %v129 = vld [vmem:[%s0 + $0x73] sm:$0x1]
  %v130 = vld [vmem:[%s0 + $0x74] sm:$0x1]
  %v131 = vld [vmem:[%s0 + $0x75] sm:$0x1]
  %v132 = vld [vmem:[%s0 + $0x76] sm:$0x1]
  %v133 = vld [vmem:[%s0 + $0x77] sm:$0x1]
  %v134 = vld [vmem:[%s0 + $0x78] sm:$0x1]
  %v135 = vld [vmem:[%s0 + $0x79] sm:$0x1]
  %v136 = vld [vmem:[%s0 + $0x7a] sm:$0x1]
  %v137 = vld [vmem:[%s0 + $0x7b] sm:$0x1]
  %v138 = vld [vmem:[%s0 + $0x7c] sm:$0x1]
  %v139 = vld [vmem:[%s0 + $0x7d] sm:$0x1]
  %v140 = vld [vmem:[%s0 + $0x7e] sm:$0x1]
  %v141 = vld [vmem:[%s0 + $0x7f] sm:$0x1]
  %v142 = vld [vmem:[%s1] sm:$0x1]
  %v144 = vlaneseq
  %v145 = vshrl.u32 %v144, 7
  %v146 = vsub.s32 0, %v145
  %v147 = vrot.slane %v142, %v146
  %v148 = vcombine.high %v147, %v147
  %v150 = vunpack.c.l.s4 1966171168
  %v151 = vunpack.c.0.s8 %v150
  %v152 = vlaneseq
  %v153 = vshrl.u32 %v152, 7
  %v154 = vsub.s32 %v151, %v153
  %v155 = vrot.slane %v147, %v154
  %v157 = vunpack.c.l.s4 1966171168
  %v158 = vunpack.c.0.s8 %v157
  %v159 = vlaneseq
  %v160 = vshrl.u32 %v159, 7
  %v161 = vsub.s32 %v158, %v160
  %v162 = vrot.slane %v148, %v161
  %v163 = vcombine.high %v155, %v155
  %v164 = vcombine.high %v162, %v162
  %v166 = vunpack.c.l.s4 1966171168
  %v167 = vunpack.c.0.s8 %v166
  %v168 = vlaneseq
  %v169 = vshrl.u32 %v168, 7
  %v170 = vsub.s32 %v167, %v169
  %v171 = vrot.slane %v155, %v170
  %v173 = vunpack.c.l.s4 1966171168
  %v174 = vunpack.c.0.s8 %v173
  %v175 = vlaneseq
  %v176 = vshrl.u32 %v175, 7
  %v177 = vsub.s32 %v174, %v176
  %v178 = vrot.slane %v162, %v177
  %v180 = vunpack.c.l.s4 1966171168
  %v181 = vunpack.c.0.s8 %v180
  %v182 = vlaneseq
  %v183 = vshrl.u32 %v182, 7
  %v184 = vsub.s32 %v181, %v183
  %v185 = vrot.slane %v163, %v184
  %v187 = vunpack.c.l.s4 1966171168
  %v188 = vunpack.c.0.s8 %v187
  %v189 = vlaneseq
  %v190 = vshrl.u32 %v189, 7
  %v191 = vsub.s32 %v188, %v190
  %v192 = vrot.slane %v164, %v191
  %v193 = vcombine.high %v171, %v171
  %v194 = vcombine.high %v178, %v178
  %v195 = vcombine.high %v185, %v185
  %v196 = vcombine.high %v192, %v192
  %v205 = vmul.f32 %v14, %v171
  %v206 = vmul.f32 %v15, %v185
  %v207 = vmul.f32 %v16, %v193
  %v208 = vmul.f32 %v17, %v195
  %v209 = vmul.f32 %v18, %v178
  %v210 = vmul.f32 %v19, %v192
  %v211 = vmul.f32 %v20, %v194
  %v212 = vmul.f32 %v21, %v196
  %v213 = vmul.f32 %v22, %v171
  %v214 = vmul.f32 %v23, %v185
  %v215 = vmul.f32 %v24, %v193
  %v216 = vmul.f32 %v25, %v195
  %v217 = vmul.f32 %v26, %v178
  %v218 = vmul.f32 %v27, %v192
  %v219 = vmul.f32 %v28, %v194
  %v220 = vmul.f32 %v29, %v196
  %v221 = vmul.f32 %v30, %v171
  %v222 = vmul.f32 %v31, %v185
  %v223 = vmul.f32 %v32, %v193
  %v224 = vmul.f32 %v33, %v195
  %v225 = vmul.f32 %v34, %v178
  %v226 = vmul.f32 %v35, %v192
  %v227 = vmul.f32 %v36, %v194
  %v228 = vmul.f32 %v37, %v196
  %v229 = vmul.f32 %v38, %v171
  %v230 = vmul.f32 %v39, %v185
  %v231 = vmul.f32 %v40, %v193
  %v232 = vmul.f32 %v41, %v195
  %v233 = vmul.f32 %v42, %v178
  %v234 = vmul.f32 %v43, %v192
  %v235 = vmul.f32 %v44, %v194
  %v236 = vmul.f32 %v45, %v196
  %v237 = vmul.f32 %v46, %v171
  %v238 = vmul.f32 %v47, %v185
  %v239 = vmul.f32 %v48, %v193
  %v240 = vmul.f32 %v49, %v195
  %v241 = vmul.f32 %v50, %v178
  %v242 = vmul.f32 %v51, %v192
  %v243 = vmul.f32 %v52, %v194
  %v244 = vmul.f32 %v53, %v196
  %v245 = vmul.f32 %v54, %v171
  %v246 = vmul.f32 %v55, %v185
  %v247 = vmul.f32 %v56, %v193
  %v248 = vmul.f32 %v57, %v195
  %v249 = vmul.f32 %v58, %v178
  %v250 = vmul.f32 %v59, %v192
  %v251 = vmul.f32 %v60, %v194
  %v252 = vmul.f32 %v61, %v196
  %v253 = vmul.f32 %v62, %v171
  %v254 = vmul.f32 %v63, %v185
  %v255 = vmul.f32 %v64, %v193
  %v256 = vmul.f32 %v65, %v195
  %v257 = vmul.f32 %v66, %v178
  %v258 = vmul.f32 %v67, %v192
  %v259 = vmul.f32 %v68, %v194
  %v260 = vmul.f32 %v69, %v196
  %v261 = vmul.f32 %v70, %v171
  %v262 = vmul.f32 %v71, %v185
  %v263 = vmul.f32 %v72, %v193
  %v264 = vmul.f32 %v73, %v195
  %v265 = vmul.f32 %v74, %v178
  %v266 = vmul.f32 %v75, %v192
  %v267 = vmul.f32 %v76, %v194
  %v268 = vmul.f32 %v77, %v196
  %v269 = vmul.f32 %v78, %v171
  %v270 = vmul.f32 %v79, %v185
  %v271 = vmul.f32 %v80, %v193
  %v272 = vmul.f32 %v81, %v195
  %v273 = vmul.f32 %v82, %v178
  %v274 = vmul.f32 %v83, %v192
  %v275 = vmul.f32 %v84, %v194
  %v276 = vmul.f32 %v85, %v196
  %v277 = vmul.f32 %v86, %v171
  %v278 = vmul.f32 %v87, %v185
  %v279 = vmul.f32 %v88, %v193
  %v280 = vmul.f32 %v89, %v195
  %v281 = vmul.f32 %v90, %v178
  %v282 = vmul.f32 %v91, %v192
  %v283 = vmul.f32 %v92, %v194
  %v284 = vmul.f32 %v93, %v196
  %v285 = vmul.f32 %v94, %v171
  %v286 = vmul.f32 %v95, %v185
  %v287 = vmul.f32 %v96, %v193
  %v288 = vmul.f32 %v97, %v195
  %v289 = vmul.f32 %v98, %v178
  %v290 = vmul.f32 %v99, %v192
  %v291 = vmul.f32 %v100, %v194
  %v292 = vmul.f32 %v101, %v196
  %v293 = vmul.f32 %v102, %v171
  %v294 = vmul.f32 %v103, %v185
  %v295 = vmul.f32 %v104, %v193
  %v296 = vmul.f32 %v105, %v195
  %v297 = vmul.f32 %v106, %v178
  %v298 = vmul.f32 %v107, %v192
  %v299 = vmul.f32 %v108, %v194
  %v300 = vmul.f32 %v109, %v196
  %v301 = vmul.f32 %v110, %v171
  %v302 = vmul.f32 %v111, %v185
  %v303 = vmul.f32 %v112, %v193
  %v304 = vmul.f32 %v113, %v195
  %v305 = vmul.f32 %v114, %v178
  %v306 = vmul.f32 %v115, %v192
  %v307 = vmul.f32 %v116, %v194
  %v308 = vmul.f32 %v117, %v196
  %v309 = vmul.f32 %v118, %v171
  %v310 = vmul.f32 %v119, %v185
  %v311 = vmul.f32 %v120, %v193
  %v312 = vmul.f32 %v121, %v195
  %v313 = vmul.f32 %v122, %v178
  %v314 = vmul.f32 %v123, %v192
  %v315 = vmul.f32 %v124, %v194
  %v316 = vmul.f32 %v125, %v196
  %v317 = vmul.f32 %v126, %v171
  %v318 = vmul.f32 %v127, %v185
  %v319 = vmul.f32 %v128, %v193
  %v320 = vmul.f32 %v129, %v195
  %v321 = vmul.f32 %v130, %v178
  %v322 = vmul.f32 %v131, %v192
  %v323 = vmul.f32 %v132, %v194
  %v324 = vmul.f32 %v133, %v196
  %v325 = vmul.f32 %v134, %v171
  %v326 = vmul.f32 %v135, %v185
  %v327 = vmul.f32 %v136, %v193
  %v328 = vmul.f32 %v137, %v195
  %v329 = vmul.f32 %v138, %v178
  %v330 = vmul.f32 %v139, %v192
  %v331 = vmul.f32 %v140, %v194
  %v332 = vmul.f32 %v141, %v196
  %v333 = vld [vmem:[%s2] sm:$0x1]
  %v335 = vlaneseq
  %v336 = vshrl.u32 %v335, 7
  %v337 = vsub.s32 0, %v336
  %v338 = vrot.slane %v333, %v337
  %v339 = vcombine.high %v338, %v338
  %v341 = vunpack.c.l.s4 1966171168
  %v342 = vunpack.c.0.s8 %v341
  %v343 = vlaneseq
  %v344 = vshrl.u32 %v343, 7
  %v345 = vsub.s32 %v342, %v344
  %v346 = vrot.slane %v338, %v345
  %v348 = vunpack.c.l.s4 1966171168
  %v349 = vunpack.c.0.s8 %v348
  %v350 = vlaneseq
  %v351 = vshrl.u32 %v350, 7
  %v352 = vsub.s32 %v349, %v351
  %v353 = vrot.slane %v339, %v352
  %v354 = vcombine.high %v346, %v346
  %v355 = vcombine.high %v353, %v353
  %v357 = vunpack.c.l.s4 1966171168
  %v358 = vunpack.c.0.s8 %v357
  %v359 = vlaneseq
  %v360 = vshrl.u32 %v359, 7
  %v361 = vsub.s32 %v358, %v360
  %v362 = vrot.slane %v346, %v361
  %v364 = vunpack.c.l.s4 1966171168
  %v365 = vunpack.c.0.s8 %v364
  %v366 = vlaneseq
  %v367 = vshrl.u32 %v366, 7
  %v368 = vsub.s32 %v365, %v367
  %v369 = vrot.slane %v353, %v368
  %v371 = vunpack.c.l.s4 1966171168
  %v372 = vunpack.c.0.s8 %v371
  %v373 = vlaneseq
  %v374 = vshrl.u32 %v373, 7
  %v375 = vsub.s32 %v372, %v374
  %v376 = vrot.slane %v354, %v375
  %v378 = vunpack.c.l.s4 1966171168
  %v379 = vunpack.c.0.s8 %v378
  %v380 = vlaneseq
  %v381 = vshrl.u32 %v380, 7
  %v382 = vsub.s32 %v379, %v381
  %v383 = vrot.slane %v355, %v382
  %v384 = vcombine.high %v362, %v362
  %v385 = vcombine.high %v369, %v369
  %v386 = vcombine.high %v376, %v376
  %v387 = vcombine.high %v383, %v383
  %v396 = vadd.f32 %v205, %v362
  %v397 = vadd.f32 %v206, %v376
  %v398 = vadd.f32 %v207, %v384
  %v399 = vadd.f32 %v208, %v386
  %v400 = vadd.f32 %v209, %v369
  %v401 = vadd.f32 %v210, %v383
  %v402 = vadd.f32 %v211, %v385
  %v403 = vadd.f32 %v212, %v387
  %v404 = vadd.f32 %v213, %v362
  %v405 = vadd.f32 %v214, %v376
  %v406 = vadd.f32 %v215, %v384
  %v407 = vadd.f32 %v216, %v386
  %v408 = vadd.f32 %v217, %v369
  %v409 = vadd.f32 %v218, %v383
  %v410 = vadd.f32 %v219, %v385
  %v411 = vadd.f32 %v220, %v387
  %v412 = vadd.f32 %v221, %v362
  %v413 = vadd.f32 %v222, %v376
  %v414 = vadd.f32 %v223, %v384
  %v415 = vadd.f32 %v224, %v386
  %v416 = vadd.f32 %v225, %v369
  %v417 = vadd.f32 %v226, %v383
  %v418 = vadd.f32 %v227, %v385
  %v419 = vadd.f32 %v228, %v387
  %v420 = vadd.f32 %v229, %v362
  %v421 = vadd.f32 %v230, %v376
  %v422 = vadd.f32 %v231, %v384
  %v423 = vadd.f32 %v232, %v386
  %v424 = vadd.f32 %v233, %v369
  %v425 = vadd.f32 %v234, %v383
  %v426 = vadd.f32 %v235, %v385
  %v427 = vadd.f32 %v236, %v387
  %v428 = vadd.f32 %v237, %v362
  %v429 = vadd.f32 %v238, %v376
  %v430 = vadd.f32 %v239, %v384
  %v431 = vadd.f32 %v240, %v386
  %v432 = vadd.f32 %v241, %v369
  %v433 = vadd.f32 %v242, %v383
  %v434 = vadd.f32 %v243, %v385
  %v435 = vadd.f32 %v244, %v387
  %v436 = vadd.f32 %v245, %v362
  %v437 = vadd.f32 %v246, %v376
  %v438 = vadd.f32 %v247, %v384
  %v439 = vadd.f32 %v248, %v386
  %v440 = vadd.f32 %v249, %v369
  %v441 = vadd.f32 %v250, %v383
  %v442 = vadd.f32 %v251, %v385
  %v443 = vadd.f32 %v252, %v387
  %v444 = vadd.f32 %v253, %v362
  %v445 = vadd.f32 %v254, %v376
  %v446 = vadd.f32 %v255, %v384
  %v447 = vadd.f32 %v256, %v386
  %v448 = vadd.f32 %v257, %v369
  %v449 = vadd.f32 %v258, %v383
  %v450 = vadd.f32 %v259, %v385
  %v451 = vadd.f32 %v260, %v387
  %v452 = vadd.f32 %v261, %v362
  %v453 = vadd.f32 %v262, %v376
  %v454 = vadd.f32 %v263, %v384
  %v455 = vadd.f32 %v264, %v386
  %v456 = vadd.f32 %v265, %v369
  %v457 = vadd.f32 %v266, %v383
  %v458 = vadd.f32 %v267, %v385
  %v459 = vadd.f32 %v268, %v387
  %v460 = vadd.f32 %v269, %v362
  %v461 = vadd.f32 %v270, %v376
  %v462 = vadd.f32 %v271, %v384
  %v463 = vadd.f32 %v272, %v386
  %v464 = vadd.f32 %v273, %v369
  %v465 = vadd.f32 %v274, %v383
  %v466 = vadd.f32 %v275, %v385
  %v467 = vadd.f32 %v276, %v387
  %v468 = vadd.f32 %v277, %v362
  %v469 = vadd.f32 %v278, %v376
  %v470 = vadd.f32 %v279, %v384
  %v471 = vadd.f32 %v280, %v386
  %v472 = vadd.f32 %v281, %v369
  %v473 = vadd.f32 %v282, %v383
  %v474 = vadd.f32 %v283, %v385
  %v475 = vadd.f32 %v284, %v387
  %v476 = vadd.f32 %v285, %v362
  %v477 = vadd.f32 %v286, %v376
  %v478 = vadd.f32 %v287, %v384
  %v479 = vadd.f32 %v288, %v386
  %v480 = vadd.f32 %v289, %v369
  %v481 = vadd.f32 %v290, %v383
  %v482 = vadd.f32 %v291, %v385
  %v483 = vadd.f32 %v292, %v387
  %v484 = vadd.f32 %v293, %v362
  %v485 = vadd.f32 %v294, %v376
  %v486 = vadd.f32 %v295, %v384
  %v487 = vadd.f32 %v296, %v386
  %v488 = vadd.f32 %v297, %v369
  %v489 = vadd.f32 %v298, %v383
  %v490 = vadd.f32 %v299, %v385
  %v491 = vadd.f32 %v300, %v387
  %v492 = vadd.f32 %v301, %v362
  %v493 = vadd.f32 %v302, %v376
  %v494 = vadd.f32 %v303, %v384
  %v495 = vadd.f32 %v304, %v386
  %v496 = vadd.f32 %v305, %v369
  %v497 = vadd.f32 %v306, %v383
  %v498 = vadd.f32 %v307, %v385
  %v499 = vadd.f32 %v308, %v387
  %v500 = vadd.f32 %v309, %v362
  %v501 = vadd.f32 %v310, %v376
  %v502 = vadd.f32 %v311, %v384
  %v503 = vadd.f32 %v312, %v386
  %v504 = vadd.f32 %v313, %v369
  %v505 = vadd.f32 %v314, %v383
  %v506 = vadd.f32 %v315, %v385
  %v507 = vadd.f32 %v316, %v387
  %v508 = vadd.f32 %v317, %v362
  %v509 = vadd.f32 %v318, %v376
  %v510 = vadd.f32 %v319, %v384
  %v511 = vadd.f32 %v320, %v386
  %v512 = vadd.f32 %v321, %v369
  %v513 = vadd.f32 %v322, %v383
  %v514 = vadd.f32 %v323, %v385
  %v515 = vadd.f32 %v324, %v387
  %v516 = vadd.f32 %v325, %v362
  %v517 = vadd.f32 %v326, %v376
  %v518 = vadd.f32 %v327, %v384
  %v519 = vadd.f32 %v328, %v386
  %v520 = vadd.f32 %v329, %v369
  %v521 = vadd.f32 %v330, %v383
  %v522 = vadd.f32 %v331, %v385
  %v523 = vadd.f32 %v332, %v387
  %v652 = vcombine.low %v396, %v397
  %v653 = vcombine.low %v398, %v399
  %v654 = vcombine.low %v400, %v401
  %v655 = vcombine.low %v402, %v403
  %v657 = vunpack.c.l.s4 1966171168
  %v658 = vunpack.c.0.s8 %v657
  %v659 = vlaneseq
  %v660 = vshrl.u32 %v659, 7
  %v661 = vsub.s32 %v658, %v660
  %v662 = vrot.slane %v652, %v661
  %v664 = vunpack.c.l.s4 1966171168
  %v665 = vunpack.c.0.s8 %v664
  %v666 = vlaneseq
  %v667 = vshrl.u32 %v666, 7
  %v668 = vsub.s32 %v665, %v667
  %v669 = vrot.slane %v653, %v668
  %v671 = vunpack.c.l.s4 1966171168
  %v672 = vunpack.c.0.s8 %v671
  %v673 = vlaneseq
  %v674 = vshrl.u32 %v673, 7
  %v675 = vsub.s32 %v672, %v674
  %v676 = vrot.slane %v654, %v675
  %v678 = vunpack.c.l.s4 1966171168
  %v679 = vunpack.c.0.s8 %v678
  %v680 = vlaneseq
  %v681 = vshrl.u32 %v680, 7
  %v682 = vsub.s32 %v679, %v681
  %v683 = vrot.slane %v655, %v682
  %v684 = vcombine.low %v662, %v669
  %v685 = vcombine.low %v676, %v683
  %v687 = vunpack.c.l.s4 1966171168
  %v688 = vunpack.c.0.s8 %v687
  %v689 = vlaneseq
  %v690 = vshrl.u32 %v689, 7
  %v691 = vsub.s32 %v688, %v690
  %v692 = vrot.slane %v684, %v691
  %v694 = vunpack.c.l.s4 1966171168
  %v695 = vunpack.c.0.s8 %v694
  %v696 = vlaneseq
  %v697 = vshrl.u32 %v696, 7
  %v698 = vsub.s32 %v695, %v697
  %v699 = vrot.slane %v685, %v698
  %v700 = vcombine.low %v692, %v699
  %v701 = vcombine.low %v404, %v405
  %v702 = vcombine.low %v406, %v407
  %v703 = vcombine.low %v408, %v409
  %v704 = vcombine.low %v410, %v411
  %v706 = vunpack.c.l.s4 1966171168
  %v707 = vunpack.c.0.s8 %v706
  %v708 = vlaneseq
  %v709 = vshrl.u32 %v708, 7
  %v710 = vsub.s32 %v707, %v709
  %v711 = vrot.slane %v701, %v710
  %v713 = vunpack.c.l.s4 1966171168
  %v714 = vunpack.c.0.s8 %v713
  %v715 = vlaneseq
  %v716 = vshrl.u32 %v715, 7
  %v717 = vsub.s32 %v714, %v716
  %v718 = vrot.slane %v702, %v717
  %v720 = vunpack.c.l.s4 1966171168
  %v721 = vunpack.c.0.s8 %v720
  %v722 = vlaneseq
  %v723 = vshrl.u32 %v722, 7
  %v724 = vsub.s32 %v721, %v723
  %v725 = vrot.slane %v703, %v724
  %v727 = vunpack.c.l.s4 1966171168
  %v728 = vunpack.c.0.s8 %v727
  %v729 = vlaneseq
  %v730 = vshrl.u32 %v729, 7
  %v731 = vsub.s32 %v728, %v730
  %v732 = vrot.slane %v704, %v731
  %v733 = vcombine.low %v711, %v718
  %v734 = vcombine.low %v725, %v732
  %v736 = vunpack.c.l.s4 1966171168
  %v737 = vunpack.c.0.s8 %v736
  %v738 = vlaneseq
  %v739 = vshrl.u32 %v738, 7
  %v740 = vsub.s32 %v737, %v739
  %v741 = vrot.slane %v733, %v740
  %v743 = vunpack.c.l.s4 1966171168
  %v744 = vunpack.c.0.s8 %v743
  %v745 = vlaneseq
  %v746 = vshrl.u32 %v745, 7
  %v747 = vsub.s32 %v744, %v746
  %v748 = vrot.slane %v734, %v747
  %v749 = vcombine.low %v741, %v748
  %v750 = vcombine.low %v412, %v413
  %v751 = vcombine.low %v414, %v415
  %v752 = vcombine.low %v416, %v417
  %v753 = vcombine.low %v418, %v419
  %v755 = vunpack.c.l.s4 1966171168
  %v756 = vunpack.c.0.s8 %v755
  %v757 = vlaneseq
  %v758 = vshrl.u32 %v757, 7
  %v759 = vsub.s32 %v756, %v758
  %v760 = vrot.slane %v750, %v759
  %v762 = vunpack.c.l.s4 1966171168
  %v763 = vunpack.c.0.s8 %v762
  %v764 = vlaneseq
  %v765 = vshrl.u32 %v764, 7
  %v766 = vsub.s32 %v763, %v765
  %v767 = vrot.slane %v751, %v766
  %v769 = vunpack.c.l.s4 1966171168
  %v770 = vunpack.c.0.s8 %v769
  %v771 = vlaneseq
  %v772 = vshrl.u32 %v771, 7
  %v773 = vsub.s32 %v770, %v772
  %v774 = vrot.slane %v752, %v773
  %v776 = vunpack.c.l.s4 1966171168
  %v777 = vunpack.c.0.s8 %v776
  %v778 = vlaneseq
  %v779 = vshrl.u32 %v778, 7
  %v780 = vsub.s32 %v777, %v779
  %v781 = vrot.slane %v753, %v780
  %v782 = vcombine.low %v760, %v767
  %v783 = vcombine.low %v774, %v781
  %v785 = vunpack.c.l.s4 1966171168
  %v786 = vunpack.c.0.s8 %v785
  %v787 = vlaneseq
  %v788 = vshrl.u32 %v787, 7
  %v789 = vsub.s32 %v786, %v788
  %v790 = vrot.slane %v782, %v789
  %v792 = vunpack.c.l.s4 1966171168
  %v793 = vunpack.c.0.s8 %v792
  %v794 = vlaneseq
  %v795 = vshrl.u32 %v794, 7
  %v796 = vsub.s32 %v793, %v795
  %v797 = vrot.slane %v783, %v796
  %v798 = vcombine.low %v790, %v797
  %v799 = vcombine.low %v420, %v421
  %v800 = vcombine.low %v422, %v423
  %v801 = vcombine.low %v424, %v425
  %v802 = vcombine.low %v426, %v427
  %v804 = vunpack.c.l.s4 1966171168
  %v805 = vunpack.c.0.s8 %v804
  %v806 = vlaneseq
  %v807 = vshrl.u32 %v806, 7
  %v808 = vsub.s32 %v805, %v807
  %v809 = vrot.slane %v799, %v808
  %v811 = vunpack.c.l.s4 1966171168
  %v812 = vunpack.c.0.s8 %v811
  %v813 = vlaneseq
  %v814 = vshrl.u32 %v813, 7
  %v815 = vsub.s32 %v812, %v814
  %v816 = vrot.slane %v800, %v815
  %v818 = vunpack.c.l.s4 1966171168
  %v819 = vunpack.c.0.s8 %v818
  %v820 = vlaneseq
  %v821 = vshrl.u32 %v820, 7
  %v822 = vsub.s32 %v819, %v821
  %v823 = vrot.slane %v801, %v822
  %v825 = vunpack.c.l.s4 1966171168
  %v826 = vunpack.c.0.s8 %v825
  %v827 = vlaneseq
  %v828 = vshrl.u32 %v827, 7
  %v829 = vsub.s32 %v826, %v828
  %v830 = vrot.slane %v802, %v829
  %v831 = vcombine.low %v809, %v816
  %v832 = vcombine.low %v823, %v830
  %v834 = vunpack.c.l.s4 1966171168
  %v835 = vunpack.c.0.s8 %v834
  %v836 = vlaneseq
  %v837 = vshrl.u32 %v836, 7
  %v838 = vsub.s32 %v835, %v837
  %v839 = vrot.slane %v831, %v838
  %v841 = vunpack.c.l.s4 1966171168
  %v842 = vunpack.c.0.s8 %v841
  %v843 = vlaneseq
  %v844 = vshrl.u32 %v843, 7
  %v845 = vsub.s32 %v842, %v844
  %v846 = vrot.slane %v832, %v845
  %v847 = vcombine.low %v839, %v846
  %v848 = vcombine.low %v428, %v429
  %v849 = vcombine.low %v430, %v431
  %v850 = vcombine.low %v432, %v433
  %v851 = vcombine.low %v434, %v435
  %v853 = vunpack.c.l.s4 1966171168
  %v854 = vunpack.c.0.s8 %v853
  %v855 = vlaneseq
  %v856 = vshrl.u32 %v855, 7
  %v857 = vsub.s32 %v854, %v856
  %v858 = vrot.slane %v848, %v857
  %v860 = vunpack.c.l.s4 1966171168
  %v861 = vunpack.c.0.s8 %v860
  %v862 = vlaneseq
  %v863 = vshrl.u32 %v862, 7
  %v864 = vsub.s32 %v861, %v863
  %v865 = vrot.slane %v849, %v864
  %v867 = vunpack.c.l.s4 1966171168
  %v868 = vunpack.c.0.s8 %v867
  %v869 = vlaneseq
  %v870 = vshrl.u32 %v869, 7
  %v871 = vsub.s32 %v868, %v870
  %v872 = vrot.slane %v850, %v871
  %v874 = vunpack.c.l.s4 1966171168
  %v875 = vunpack.c.0.s8 %v874
  %v876 = vlaneseq
  %v877 = vshrl.u32 %v876, 7
  %v878 = vsub.s32 %v875, %v877
  %v879 = vrot.slane %v851, %v878
  %v880 = vcombine.low %v858, %v865
  %v881 = vcombine.low %v872, %v879
  %v883 = vunpack.c.l.s4 1966171168
  %v884 = vunpack.c.0.s8 %v883
  %v885 = vlaneseq
  %v886 = vshrl.u32 %v885, 7
  %v887 = vsub.s32 %v884, %v886
  %v888 = vrot.slane %v880, %v887
  %v890 = vunpack.c.l.s4 1966171168
  %v891 = vunpack.c.0.s8 %v890
  %v892 = vlaneseq
  %v893 = vshrl.u32 %v892, 7
  %v894 = vsub.s32 %v891, %v893
  %v895 = vrot.slane %v881, %v894
  %v896 = vcombine.low %v888, %v895
  %v897 = vcombine.low %v436, %v437
  %v898 = vcombine.low %v438, %v439
  %v899 = vcombine.low %v440, %v441
  %v900 = vcombine.low %v442, %v443
  %v902 = vunpack.c.l.s4 1966171168
  %v903 = vunpack.c.0.s8 %v902
  %v904 = vlaneseq
  %v905 = vshrl.u32 %v904, 7
  %v906 = vsub.s32 %v903, %v905
  %v907 = vrot.slane %v897, %v906
  %v909 = vunpack.c.l.s4 1966171168
  %v910 = vunpack.c.0.s8 %v909
  %v911 = vlaneseq
  %v912 = vshrl.u32 %v911, 7
  %v913 = vsub.s32 %v910, %v912
  %v914 = vrot.slane %v898, %v913
  %v916 = vunpack.c.l.s4 1966171168
  %v917 = vunpack.c.0.s8 %v916
  %v918 = vlaneseq
  %v919 = vshrl.u32 %v918, 7
  %v920 = vsub.s32 %v917, %v919
  %v921 = vrot.slane %v899, %v920
  %v923 = vunpack.c.l.s4 1966171168
  %v924 = vunpack.c.0.s8 %v923
  %v925 = vlaneseq
  %v926 = vshrl.u32 %v925, 7
  %v927 = vsub.s32 %v924, %v926
  %v928 = vrot.slane %v900, %v927
  %v929 = vcombine.low %v907, %v914
  %v930 = vcombine.low %v921, %v928
  %v932 = vunpack.c.l.s4 1966171168
  %v933 = vunpack.c.0.s8 %v932
  %v934 = vlaneseq
  %v935 = vshrl.u32 %v934, 7
  %v936 = vsub.s32 %v933, %v935
  %v937 = vrot.slane %v929, %v936
  %v939 = vunpack.c.l.s4 1966171168
  %v940 = vunpack.c.0.s8 %v939
  %v941 = vlaneseq
  %v942 = vshrl.u32 %v941, 7
  %v943 = vsub.s32 %v940, %v942
  %v944 = vrot.slane %v930, %v943
  %v945 = vcombine.low %v937, %v944
  %v946 = vcombine.low %v444, %v445
  %v947 = vcombine.low %v446, %v447
  %v948 = vcombine.low %v448, %v449
  %v949 = vcombine.low %v450, %v451
  %v951 = vunpack.c.l.s4 1966171168
  %v952 = vunpack.c.0.s8 %v951
  %v953 = vlaneseq
  %v954 = vshrl.u32 %v953, 7
  %v955 = vsub.s32 %v952, %v954
  %v956 = vrot.slane %v946, %v955
  %v958 = vunpack.c.l.s4 1966171168
  %v959 = vunpack.c.0.s8 %v958
  %v960 = vlaneseq
  %v961 = vshrl.u32 %v960, 7
  %v962 = vsub.s32 %v959, %v961
  %v963 = vrot.slane %v947, %v962
  %v965 = vunpack.c.l.s4 1966171168
  %v966 = vunpack.c.0.s8 %v965
  %v967 = vlaneseq
  %v968 = vshrl.u32 %v967, 7
  %v969 = vsub.s32 %v966, %v968
  %v970 = vrot.slane %v948, %v969
  %v972 = vunpack.c.l.s4 1966171168
  %v973 = vunpack.c.0.s8 %v972
  %v974 = vlaneseq
  %v975 = vshrl.u32 %v974, 7
  %v976 = vsub.s32 %v973, %v975
  %v977 = vrot.slane %v949, %v976
  %v978 = vcombine.low %v956, %v963
  %v979 = vcombine.low %v970, %v977
  %v981 = vunpack.c.l.s4 1966171168
  %v982 = vunpack.c.0.s8 %v981
  %v983 = vlaneseq
  %v984 = vshrl.u32 %v983, 7
  %v985 = vsub.s32 %v982, %v984
  %v986 = vrot.slane %v978, %v985
  %v988 = vunpack.c.l.s4 1966171168
  %v989 = vunpack.c.0.s8 %v988
  %v990 = vlaneseq
  %v991 = vshrl.u32 %v990, 7
  %v992 = vsub.s32 %v989, %v991
  %v993 = vrot.slane %v979, %v992
  %v994 = vcombine.low %v986, %v993
  %v995 = vcombine.low %v452, %v453
  %v996 = vcombine.low %v454, %v455
  %v997 = vcombine.low %v456, %v457
  %v998 = vcombine.low %v458, %v459
  %v1000 = vunpack.c.l.s4 1966171168
  %v1001 = vunpack.c.0.s8 %v1000
  %v1002 = vlaneseq
  %v1003 = vshrl.u32 %v1002, 7
  %v1004 = vsub.s32 %v1001, %v1003
  %v1005 = vrot.slane %v995, %v1004
  %v1007 = vunpack.c.l.s4 1966171168
  %v1008 = vunpack.c.0.s8 %v1007
  %v1009 = vlaneseq
  %v1010 = vshrl.u32 %v1009, 7
  %v1011 = vsub.s32 %v1008, %v1010
  %v1012 = vrot.slane %v996, %v1011
  %v1014 = vunpack.c.l.s4 1966171168
  %v1015 = vunpack.c.0.s8 %v1014
  %v1016 = vlaneseq
  %v1017 = vshrl.u32 %v1016, 7
  %v1018 = vsub.s32 %v1015, %v1017
  %v1019 = vrot.slane %v997, %v1018
  %v1021 = vunpack.c.l.s4 1966171168
  %v1022 = vunpack.c.0.s8 %v1021
  %v1023 = vlaneseq
  %v1024 = vshrl.u32 %v1023, 7
  %v1025 = vsub.s32 %v1022, %v1024
  %v1026 = vrot.slane %v998, %v1025
  %v1027 = vcombine.low %v1005, %v1012
  %v1028 = vcombine.low %v1019, %v1026
  %v1030 = vunpack.c.l.s4 1966171168
  %v1031 = vunpack.c.0.s8 %v1030
  %v1032 = vlaneseq
  %v1033 = vshrl.u32 %v1032, 7
  %v1034 = vsub.s32 %v1031, %v1033
  %v1035 = vrot.slane %v1027, %v1034
  %v1037 = vunpack.c.l.s4 1966171168
  %v1038 = vunpack.c.0.s8 %v1037
  %v1039 = vlaneseq
  %v1040 = vshrl.u32 %v1039, 7
  %v1041 = vsub.s32 %v1038, %v1040
  %v1042 = vrot.slane %v1028, %v1041
  %v1043 = vcombine.low %v1035, %v1042
  %v1044 = vcombine.low %v460, %v461
  %v1045 = vcombine.low %v462, %v463
  %v1046 = vcombine.low %v464, %v465
  %v1047 = vcombine.low %v466, %v467
  %v1049 = vunpack.c.l.s4 1966171168
  %v1050 = vunpack.c.0.s8 %v1049
  %v1051 = vlaneseq
  %v1052 = vshrl.u32 %v1051, 7
  %v1053 = vsub.s32 %v1050, %v1052
  %v1054 = vrot.slane %v1044, %v1053
  %v1056 = vunpack.c.l.s4 1966171168
  %v1057 = vunpack.c.0.s8 %v1056
  %v1058 = vlaneseq
  %v1059 = vshrl.u32 %v1058, 7
  %v1060 = vsub.s32 %v1057, %v1059
  %v1061 = vrot.slane %v1045, %v1060
  %v1063 = vunpack.c.l.s4 1966171168
  %v1064 = vunpack.c.0.s8 %v1063
  %v1065 = vlaneseq
  %v1066 = vshrl.u32 %v1065, 7
  %v1067 = vsub.s32 %v1064, %v1066
  %v1068 = vrot.slane %v1046, %v1067
  %v1070 = vunpack.c.l.s4 1966171168
  %v1071 = vunpack.c.0.s8 %v1070
  %v1072 = vlaneseq
  %v1073 = vshrl.u32 %v1072, 7
  %v1074 = vsub.s32 %v1071, %v1073
  %v1075 = vrot.slane %v1047, %v1074
  %v1076 = vcombine.low %v1054, %v1061
  %v1077 = vcombine.low %v1068, %v1075
  %v1079 = vunpack.c.l.s4 1966171168
  %v1080 = vunpack.c.0.s8 %v1079
  %v1081 = vlaneseq
  %v1082 = vshrl.u32 %v1081, 7
  %v1083 = vsub.s32 %v1080, %v1082
  %v1084 = vrot.slane %v1076, %v1083
  %v1086 = vunpack.c.l.s4 1966171168
  %v1087 = vunpack.c.0.s8 %v1086
  %v1088 = vlaneseq
  %v1089 = vshrl.u32 %v1088, 7
  %v1090 = vsub.s32 %v1087, %v1089
  %v1091 = vrot.slane %v1077, %v1090
  %v1092 = vcombine.low %v1084, %v1091
  %v1093 = vcombine.low %v468, %v469
  %v1094 = vcombine.low %v470, %v471
  %v1095 = vcombine.low %v472, %v473
  %v1096 = vcombine.low %v474, %v475
  %v1098 = vunpack.c.l.s4 1966171168
  %v1099 = vunpack.c.0.s8 %v1098
  %v1100 = vlaneseq
  %v1101 = vshrl.u32 %v1100, 7
  %v1102 = vsub.s32 %v1099, %v1101
  %v1103 = vrot.slane %v1093, %v1102
  %v1105 = vunpack.c.l.s4 1966171168
  %v1106 = vunpack.c.0.s8 %v1105
  %v1107 = vlaneseq
  %v1108 = vshrl.u32 %v1107, 7
  %v1109 = vsub.s32 %v1106, %v1108
  %v1110 = vrot.slane %v1094, %v1109
  %v1112 = vunpack.c.l.s4 1966171168
  %v1113 = vunpack.c.0.s8 %v1112
  %v1114 = vlaneseq
  %v1115 = vshrl.u32 %v1114, 7
  %v1116 = vsub.s32 %v1113, %v1115
  %v1117 = vrot.slane %v1095, %v1116
  %v1119 = vunpack.c.l.s4 1966171168
  %v1120 = vunpack.c.0.s8 %v1119
  %v1121 = vlaneseq
  %v1122 = vshrl.u32 %v1121, 7
  %v1123 = vsub.s32 %v1120, %v1122
  %v1124 = vrot.slane %v1096, %v1123
  %v1125 = vcombine.low %v1103, %v1110
  %v1126 = vcombine.low %v1117, %v1124
  %v1128 = vunpack.c.l.s4 1966171168
  %v1129 = vunpack.c.0.s8 %v1128
  %v1130 = vlaneseq
  %v1131 = vshrl.u32 %v1130, 7
  %v1132 = vsub.s32 %v1129, %v1131
  %v1133 = vrot.slane %v1125, %v1132
  %v1135 = vunpack.c.l.s4 1966171168
  %v1136 = vunpack.c.0.s8 %v1135
  %v1137 = vlaneseq
  %v1138 = vshrl.u32 %v1137, 7
  %v1139 = vsub.s32 %v1136, %v1138
  %v1140 = vrot.slane %v1126, %v1139
  %v1141 = vcombine.low %v1133, %v1140
  %v1142 = vcombine.low %v476, %v477
  %v1143 = vcombine.low %v478, %v479
  %v1144 = vcombine.low %v480, %v481
  %v1145 = vcombine.low %v482, %v483
  %v1147 = vunpack.c.l.s4 1966171168
  %v1148 = vunpack.c.0.s8 %v1147
  %v1149 = vlaneseq
  %v1150 = vshrl.u32 %v1149, 7
  %v1151 = vsub.s32 %v1148, %v1150
  %v1152 = vrot.slane %v1142, %v1151
  %v1154 = vunpack.c.l.s4 1966171168
  %v1155 = vunpack.c.0.s8 %v1154
  %v1156 = vlaneseq
  %v1157 = vshrl.u32 %v1156, 7
  %v1158 = vsub.s32 %v1155, %v1157
  %v1159 = vrot.slane %v1143, %v1158
  %v1161 = vunpack.c.l.s4 1966171168
  %v1162 = vunpack.c.0.s8 %v1161
  %v1163 = vlaneseq
  %v1164 = vshrl.u32 %v1163, 7
  %v1165 = vsub.s32 %v1162, %v1164
  %v1166 = vrot.slane %v1144, %v1165
  %v1168 = vunpack.c.l.s4 1966171168
  %v1169 = vunpack.c.0.s8 %v1168
  %v1170 = vlaneseq
  %v1171 = vshrl.u32 %v1170, 7
  %v1172 = vsub.s32 %v1169, %v1171
  %v1173 = vrot.slane %v1145, %v1172
  %v1174 = vcombine.low %v1152, %v1159
  %v1175 = vcombine.low %v1166, %v1173
  %v1177 = vunpack.c.l.s4 1966171168
  %v1178 = vunpack.c.0.s8 %v1177
  %v1179 = vlaneseq
  %v1180 = vshrl.u32 %v1179, 7
  %v1181 = vsub.s32 %v1178, %v1180
  %v1182 = vrot.slane %v1174, %v1181
  %v1184 = vunpack.c.l.s4 1966171168
  %v1185 = vunpack.c.0.s8 %v1184
  %v1186 = vlaneseq
  %v1187 = vshrl.u32 %v1186, 7
  %v1188 = vsub.s32 %v1185, %v1187
  %v1189 = vrot.slane %v1175, %v1188
  %v1190 = vcombine.low %v1182, %v1189
  %v1191 = vcombine.low %v484, %v485
  %v1192 = vcombine.low %v486, %v487
  %v1193 = vcombine.low %v488, %v489
  %v1194 = vcombine.low %v490, %v491
  %v1196 = vunpack.c.l.s4 1966171168
  %v1197 = vunpack.c.0.s8 %v1196
  %v1198 = vlaneseq
  %v1199 = vshrl.u32 %v1198, 7
  %v1200 = vsub.s32 %v1197, %v1199
  %v1201 = vrot.slane %v1191, %v1200
  %v1203 = vunpack.c.l.s4 1966171168
  %v1204 = vunpack.c.0.s8 %v1203
  %v1205 = vlaneseq
  %v1206 = vshrl.u32 %v1205, 7
  %v1207 = vsub.s32 %v1204, %v1206
  %v1208 = vrot.slane %v1192, %v1207
  %v1210 = vunpack.c.l.s4 1966171168
  %v1211 = vunpack.c.0.s8 %v1210
  %v1212 = vlaneseq
  %v1213 = vshrl.u32 %v1212, 7
  %v1214 = vsub.s32 %v1211, %v1213
  %v1215 = vrot.slane %v1193, %v1214
  %v1217 = vunpack.c.l.s4 1966171168
  %v1218 = vunpack.c.0.s8 %v1217
  %v1219 = vlaneseq
  %v1220 = vshrl.u32 %v1219, 7
  %v1221 = vsub.s32 %v1218, %v1220
  %v1222 = vrot.slane %v1194, %v1221
  %v1223 = vcombine.low %v1201, %v1208
  %v1224 = vcombine.low %v1215, %v1222
  %v1226 = vunpack.c.l.s4 1966171168
  %v1227 = vunpack.c.0.s8 %v1226
  %v1228 = vlaneseq
  %v1229 = vshrl.u32 %v1228, 7
  %v1230 = vsub.s32 %v1227, %v1229
  %v1231 = vrot.slane %v1223, %v1230
  %v1233 = vunpack.c.l.s4 1966171168
  %v1234 = vunpack.c.0.s8 %v1233
  %v1235 = vlaneseq
  %v1236 = vshrl.u32 %v1235, 7
  %v1237 = vsub.s32 %v1234, %v1236
  %v1238 = vrot.slane %v1224, %v1237
  %v1239 = vcombine.low %v1231, %v1238
  %v1240 = vcombine.low %v492, %v493
  %v1241 = vcombine.low %v494, %v495
  %v1242 = vcombine.low %v496, %v497
  %v1243 = vcombine.low %v498, %v499
  %v1245 = vunpack.c.l.s4 1966171168
  %v1246 = vunpack.c.0.s8 %v1245
  %v1247 = vlaneseq
  %v1248 = vshrl.u32 %v1247, 7
  %v1249 = vsub.s32 %v1246, %v1248
  %v1250 = vrot.slane %v1240, %v1249
  %v1252 = vunpack.c.l.s4 1966171168
  %v1253 = vunpack.c.0.s8 %v1252
  %v1254 = vlaneseq
  %v1255 = vshrl.u32 %v1254, 7
  %v1256 = vsub.s32 %v1253, %v1255
  %v1257 = vrot.slane %v1241, %v1256
  %v1259 = vunpack.c.l.s4 1966171168
  %v1260 = vunpack.c.0.s8 %v1259
  %v1261 = vlaneseq
  %v1262 = vshrl.u32 %v1261, 7
  %v1263 = vsub.s32 %v1260, %v1262
  %v1264 = vrot.slane %v1242, %v1263
  %v1266 = vunpack.c.l.s4 1966171168
  %v1267 = vunpack.c.0.s8 %v1266
  %v1268 = vlaneseq
  %v1269 = vshrl.u32 %v1268, 7
  %v1270 = vsub.s32 %v1267, %v1269
  %v1271 = vrot.slane %v1243, %v1270
  %v1272 = vcombine.low %v1250, %v1257
  %v1273 = vcombine.low %v1264, %v1271
  %v1275 = vunpack.c.l.s4 1966171168
  %v1276 = vunpack.c.0.s8 %v1275
  %v1277 = vlaneseq
  %v1278 = vshrl.u32 %v1277, 7
  %v1279 = vsub.s32 %v1276, %v1278
  %v1280 = vrot.slane %v1272, %v1279
  %v1282 = vunpack.c.l.s4 1966171168
  %v1283 = vunpack.c.0.s8 %v1282
  %v1284 = vlaneseq
  %v1285 = vshrl.u32 %v1284, 7
  %v1286 = vsub.s32 %v1283, %v1285
  %v1287 = vrot.slane %v1273, %v1286
  %v1288 = vcombine.low %v1280, %v1287
  %v1289 = vcombine.low %v500, %v501
  %v1290 = vcombine.low %v502, %v503
  %v1291 = vcombine.low %v504, %v505
  %v1292 = vcombine.low %v506, %v507
  %v1294 = vunpack.c.l.s4 1966171168
  %v1295 = vunpack.c.0.s8 %v1294
  %v1296 = vlaneseq
  %v1297 = vshrl.u32 %v1296, 7
  %v1298 = vsub.s32 %v1295, %v1297
  %v1299 = vrot.slane %v1289, %v1298
  %v1301 = vunpack.c.l.s4 1966171168
  %v1302 = vunpack.c.0.s8 %v1301
  %v1303 = vlaneseq
  %v1304 = vshrl.u32 %v1303, 7
  %v1305 = vsub.s32 %v1302, %v1304
  %v1306 = vrot.slane %v1290, %v1305
  %v1308 = vunpack.c.l.s4 1966171168
  %v1309 = vunpack.c.0.s8 %v1308
  %v1310 = vlaneseq
  %v1311 = vshrl.u32 %v1310, 7
  %v1312 = vsub.s32 %v1309, %v1311
  %v1313 = vrot.slane %v1291, %v1312
  %v1315 = vunpack.c.l.s4 1966171168
  %v1316 = vunpack.c.0.s8 %v1315
  %v1317 = vlaneseq
  %v1318 = vshrl.u32 %v1317, 7
  %v1319 = vsub.s32 %v1316, %v1318
  %v1320 = vrot.slane %v1292, %v1319
  %v1321 = vcombine.low %v1299, %v1306
  %v1322 = vcombine.low %v1313, %v1320
  %v1324 = vunpack.c.l.s4 1966171168
  %v1325 = vunpack.c.0.s8 %v1324
  %v1326 = vlaneseq
  %v1327 = vshrl.u32 %v1326, 7
  %v1328 = vsub.s32 %v1325, %v1327
  %v1329 = vrot.slane %v1321, %v1328
  %v1331 = vunpack.c.l.s4 1966171168
  %v1332 = vunpack.c.0.s8 %v1331
  %v1333 = vlaneseq
  %v1334 = vshrl.u32 %v1333, 7
  %v1335 = vsub.s32 %v1332, %v1334
  %v1336 = vrot.slane %v1322, %v1335
  %v1337 = vcombine.low %v1329, %v1336
  %v1338 = vcombine.low %v508, %v509
  %v1339 = vcombine.low %v510, %v511
  %v1340 = vcombine.low %v512, %v513
  %v1341 = vcombine.low %v514, %v515
  %v1343 = vunpack.c.l.s4 1966171168
  %v1344 = vunpack.c.0.s8 %v1343
  %v1345 = vlaneseq
  %v1346 = vshrl.u32 %v1345, 7
  %v1347 = vsub.s32 %v1344, %v1346
  %v1348 = vrot.slane %v1338, %v1347
  %v1350 = vunpack.c.l.s4 1966171168
  %v1351 = vunpack.c.0.s8 %v1350
  %v1352 = vlaneseq
  %v1353 = vshrl.u32 %v1352, 7
  %v1354 = vsub.s32 %v1351, %v1353
  %v1355 = vrot.slane %v1339, %v1354
  %v1357 = vunpack.c.l.s4 1966171168
  %v1358 = vunpack.c.0.s8 %v1357
  %v1359 = vlaneseq
  %v1360 = vshrl.u32 %v1359, 7
  %v1361 = vsub.s32 %v1358, %v1360
  %v1362 = vrot.slane %v1340, %v1361
  %v1364 = vunpack.c.l.s4 1966171168
  %v1365 = vunpack.c.0.s8 %v1364
  %v1366 = vlaneseq
  %v1367 = vshrl.u32 %v1366, 7
  %v1368 = vsub.s32 %v1365, %v1367
  %v1369 = vrot.slane %v1341, %v1368
  %v1370 = vcombine.low %v1348, %v1355
  %v1371 = vcombine.low %v1362, %v1369
  %v1373 = vunpack.c.l.s4 1966171168
  %v1374 = vunpack.c.0.s8 %v1373
  %v1375 = vlaneseq
  %v1376 = vshrl.u32 %v1375, 7
  %v1377 = vsub.s32 %v1374, %v1376
  %v1378 = vrot.slane %v1370, %v1377
  %v1380 = vunpack.c.l.s4 1966171168
  %v1381 = vunpack.c.0.s8 %v1380
  %v1382 = vlaneseq
  %v1383 = vshrl.u32 %v1382, 7
  %v1384 = vsub.s32 %v1381, %v1383
  %v1385 = vrot.slane %v1371, %v1384
  %v1386 = vcombine.low %v1378, %v1385
  %v1387 = vcombine.low %v516, %v517
  %v1388 = vcombine.low %v518, %v519
  %v1389 = vcombine.low %v520, %v521
  %v1390 = vcombine.low %v522, %v523
  %v1392 = vunpack.c.l.s4 1966171168
  %v1393 = vunpack.c.0.s8 %v1392
  %v1394 = vlaneseq
  %v1395 = vshrl.u32 %v1394, 7
  %v1396 = vsub.s32 %v1393, %v1395
  %v1397 = vrot.slane %v1387, %v1396
  %v1399 = vunpack.c.l.s4 1966171168
  %v1400 = vunpack.c.0.s8 %v1399
  %v1401 = vlaneseq
  %v1402 = vshrl.u32 %v1401, 7
  %v1403 = vsub.s32 %v1400, %v1402
  %v1404 = vrot.slane %v1388, %v1403
  %v1406 = vunpack.c.l.s4 1966171168
  %v1407 = vunpack.c.0.s8 %v1406
  %v1408 = vlaneseq
  %v1409 = vshrl.u32 %v1408, 7
  %v1410 = vsub.s32 %v1407, %v1409
  %v1411 = vrot.slane %v1389, %v1410
  %v1413 = vunpack.c.l.s4 1966171168
  %v1414 = vunpack.c.0.s8 %v1413
  %v1415 = vlaneseq
  %v1416 = vshrl.u32 %v1415, 7
  %v1417 = vsub.s32 %v1414, %v1416
  %v1418 = vrot.slane %v1390, %v1417
  %v1419 = vcombine.low %v1397, %v1404
  %v1420 = vcombine.low %v1411, %v1418
  %v1422 = vunpack.c.l.s4 1966171168
  %v1423 = vunpack.c.0.s8 %v1422
  %v1424 = vlaneseq
  %v1425 = vshrl.u32 %v1424, 7
  %v1426 = vsub.s32 %v1423, %v1425
  %v1427 = vrot.slane %v1419, %v1426
  %v1429 = vunpack.c.l.s4 1966171168
  %v1430 = vunpack.c.0.s8 %v1429
  %v1431 = vlaneseq
  %v1432 = vshrl.u32 %v1431, 7
  %v1433 = vsub.s32 %v1430, %v1432
  %v1434 = vrot.slane %v1420, %v1433
  %v1435 = vcombine.low %v1427, %v1434
  %vm1452 = vcmask 130048
  %1453 = vst.msk [vmem:[%s3] sm:$0xff] %vm1452, %v700
  %1454 = vst.msk [vmem:[%s3 + $0x8] sm:$0xff] %vm1452, %v749
  %1455 = vst.msk [vmem:[%s3 + $0x10] sm:$0xff] %vm1452, %v798
  %1456 = vst.msk [vmem:[%s3 + $0x18] sm:$0xff] %vm1452, %v847
  %1457 = vst.msk [vmem:[%s3 + $0x20] sm:$0xff] %vm1452, %v896
  %1458 = vst.msk [vmem:[%s3 + $0x28] sm:$0xff] %vm1452, %v945
  %1459 = vst.msk [vmem:[%s3 + $0x30] sm:$0xff] %vm1452, %v994
  %1460 = vst.msk [vmem:[%s3 + $0x38] sm:$0xff] %vm1452, %v1043
  %1461 = vst.msk [vmem:[%s3 + $0x40] sm:$0xff] %vm1452, %v1092
  %1462 = vst.msk [vmem:[%s3 + $0x48] sm:$0xff] %vm1452, %v1141
  %1463 = vst.msk [vmem:[%s3 + $0x50] sm:$0xff] %vm1452, %v1190
  %1464 = vst.msk [vmem:[%s3 + $0x58] sm:$0xff] %vm1452, %v1239
  %1465 = vst.msk [vmem:[%s3 + $0x60] sm:$0xff] %vm1452, %v1288
  %1466 = vst.msk [vmem:[%s3 + $0x68] sm:$0xff] %vm1452, %v1337
  %1467 = vst.msk [vmem:[%s3 + $0x70] sm:$0xff] %vm1452, %v1386
  %1468 = vst.msk [vmem:[%s3 + $0x78] sm:$0xff] %vm1452, %v1435
  // Predicated region
  $region14: #{_lambda_.58} parent=0 // pred_check
    _
  $region15: #{_lambda_.58} parent=0 // pred_check_branch
    %1470 = sbr.rel (0) target = $region17
  $region16: #{_lambda_.58} parent=0 // pred_region
    _
  $region17: #{_lambda_.58} parent=0 // pred_fallthru
    _
  // Predicated region
  $region18: #{_lambda_.58} parent=0 // pred_check
    _
  $region19: #{_lambda_.58} parent=0 // pred_check_branch
    %1472 = sbr.rel (0) target = $region21
  $region20: #{_lambda_.58} parent=0 // pred_region
    _
  $region21: #{_lambda_.58} parent=0 // pred_fallthru
    _

// kernel: _lambda_.62
$region0: #{_lambda_.62}
  #allocation0 [shape = 'u32[]', space=smem, size = 0x4, offset = 0x4, fixed_abs, tag = 'smem constant byte address 0x4 - core index']
  #allocation1 [shape = 'u32[144,128]{1,0:T(1,128)}', space=vmem, size = 0x12000, scoped, tag = 'internal scratch']
  %s0 = inlined_call_operand.vmem [shape: f32[128,16], index: 0, kind: input, shape index: {}]
  %s1 = inlined_call_operand.vmem [shape: f32[16,16], index: 1, kind: input, shape index: {}]
  %s2 = inlined_call_operand.vmem [shape: f32[1,16], index: 2, kind: input, shape index: {}]
  %s3 = inlined_call_operand.vmem [shape: f32[128,16], index: 3, kind: output, shape index: {}]
  %s4 = sld [smem:[#allocation0]]
  $region22: #{_lambda_.62} parent=0
    _
  %s6 = ssub.s32 1, %s4
  %s7 = scalar_select 0, %s6, %s4
  // Predicated region
  $region2: #{_lambda_.62} parent=0 // pred_check
    _
  $region3: #{_lambda_.62} parent=0 // pred_check_branch
    %9 = sbr.rel (0) target = $region5
  $region4: #{_lambda_.62} parent=0 // pred_region
    _
  $region5: #{_lambda_.62} parent=0 // pred_fallthru
    _
  // Predicated region
  $region6: #{_lambda_.62} parent=0 // pred_check
    _
  $region7: #{_lambda_.62} parent=0 // pred_check_branch
    %11 = sbr.rel (0) target = $region9
  $region8: #{_lambda_.62} parent=0 // pred_region
    _
  $region9: #{_lambda_.62} parent=0 // pred_fallthru
    _
  // Predicated region
  $region10: #{_lambda_.62} parent=0 // pred_check
    _
  $region11: #{_lambda_.62} parent=0 // pred_check_branch
    %13 = sbr.rel (0) target = $region13
  $region12: #{_lambda_.62} parent=0 // pred_region
    _
  $region13: #{_lambda_.62} parent=0 // pred_fallthru
    _
  %v15 = vld [vmem:[%s0] sm:$0xff]
  %v16 = vld [vmem:[%s0 + $0x8] sm:$0xff]
  %v17 = vld [vmem:[%s0 + $0x10] sm:$0xff]
  %v18 = vld [vmem:[%s0 + $0x18] sm:$0xff]
  %v19 = vld [vmem:[%s0 + $0x20] sm:$0xff]
  %v20 = vld [vmem:[%s0 + $0x28] sm:$0xff]
  %v21 = vld [vmem:[%s0 + $0x30] sm:$0xff]
  %v22 = vld [vmem:[%s0 + $0x38] sm:$0xff]
  %v23 = vld [vmem:[%s0 + $0x40] sm:$0xff]
  %v24 = vld [vmem:[%s0 + $0x48] sm:$0xff]
  %v25 = vld [vmem:[%s0 + $0x50] sm:$0xff]
  %v26 = vld [vmem:[%s0 + $0x58] sm:$0xff]
  %v27 = vld [vmem:[%s0 + $0x60] sm:$0xff]
  %v28 = vld [vmem:[%s0 + $0x68] sm:$0xff]
  %v29 = vld [vmem:[%s0 + $0x70] sm:$0xff]
  %v30 = vld [vmem:[%s0 + $0x78] sm:$0xff]
  %v31 = vld [vmem:[%s1] sm:$0xff]
  %v32 = vld [vmem:[%s1 + $0x8] sm:$0xff]
  %v33 = vpack.c.bf16 %v16, %v15
  %v34 = vpack.c.bf16 %v18, %v17
  %v35 = vpack.c.bf16 %v20, %v19
  %v36 = vpack.c.bf16 %v22, %v21
  %v37 = vpack.c.bf16 %v24, %v23
  %v38 = vpack.c.bf16 %v26, %v25
  %v39 = vpack.c.bf16 %v28, %v27
  %v40 = vpack.c.bf16 %v30, %v29
  %v41 = vpack.c.bf16 %v32, %v31
  %v42 = vld [vmem:[%s2] sm:$0x1]
  %v44 = vlaneseq
  %v45 = vshrl.u32 %v44, 7
  %v46 = vsub.s32 0, %v45
  %v47 = vrot.slane %v42, %v46
  %vm49 = vcmask 130048
  %v51 = vsel %vm49, %v33, 0
  %v54 = vsel %vm49, %v34, 0
  %v57 = vsel %vm49, %v35, 0
  %v60 = vsel %vm49, %v36, 0
  %v63 = vsel %vm49, %v37, 0
  %v66 = vsel %vm49, %v38, 0
  %v69 = vsel %vm49, %v39, 0
  %v72 = vsel %vm49, %v40, 0
  %74 = vmatprep.subr.bf16.mxu0 0
  %75 = vmatpush1.bf16.msra.mxu0 0
  %76 = vmatprep.subr.bf16.mxu0 0
  %77 = vmatpush1.bf16.msra.mxu0 0
  %78 = vmatprep.subr.bf16.mxu0 0
  %79 = vmatpush1.bf16.msra.mxu0 0
  %80 = vmatprep.subr.bf16.mxu0 0
  %81 = vmatpush1.bf16.msra.mxu0 0
  %82 = vmatprep.subr.bf16.mxu0 0
  %83 = vmatpush1.bf16.msra.mxu0 0
  %84 = vmatprep.subr.bf16.mxu0 0
  %85 = vmatpush1.bf16.msra.mxu0 0
  %86 = vmatprep.subr.bf16.mxu0 0
  %87 = vmatpush1.bf16.msra.mxu0 0
  %88 = vmatprep.subr.bf16.mxu0 0
  %89 = vmatpush1.bf16.msra.mxu0 %v41
  %90 = vmatprep.subr.bf16.mxu0 0
  %91 = vmatpush2.bf16.msra.mxu0 0
  %92 = vmatprep.subr.bf16.mxu0 0
  %93 = vmatpush2.bf16.msra.mxu0 0
  %94 = vmatprep.subr.bf16.mxu0 0
  %95 = vmatpush2.bf16.msra.mxu0 0
  %96 = vmatprep.subr.bf16.mxu0 0
  %97 = vmatpush2.bf16.msra.mxu0 0
  %98 = vmatprep.subr.bf16.mxu0 0
  %99 = vmatpush2.bf16.msra.mxu0 0
  %100 = vmatprep.subr.bf16.mxu0 0
  %101 = vmatpush2.bf16.msra.mxu0 0
  %102 = vmatprep.subr.bf16.mxu0 0
  %103 = vmatpush2.bf16.msra.mxu0 0
  %104 = vmatprep.subr.bf16.mxu0 0
  %105 = vmatpush2.bf16.msra.mxu0 0
  %106 = vmatprep.mubr.bf16.mxu0 0
  %107 = vmatmul.mubr.bf16.gmra.mxu0 %v51
  %v108 = vpop.f32.mrf.mxu0
  %v109 = vadd.f32 %v47, %v108
  %v110 = vpop.f32.mrf.mxu0
  %v111 = vpop.f32.mrf.mxu0
  %v112 = vadd.f32 %v47, %v111
  %v113 = vpop.f32.mrf.mxu0
  %114 = vmatprep.mubr.bf16.mxu0 0
  %115 = vmatmul.mubr.bf16.gmra.mxu0 %v54
  %v116 = vpop.f32.mrf.mxu0
  %v117 = vadd.f32 %v47, %v116
  %v118 = vpop.f32.mrf.mxu0
  %v119 = vpop.f32.mrf.mxu0
  %v120 = vadd.f32 %v47, %v119
  %v121 = vpop.f32.mrf.mxu0
  %122 = vmatprep.mubr.bf16.mxu0 0
  %123 = vmatmul.mubr.bf16.gmra.mxu0 %v57
  %v124 = vpop.f32.mrf.mxu0
  %v125 = vadd.f32 %v47, %v124
  %v126 = vpop.f32.mrf.mxu0
  %v127 = vpop.f32.mrf.mxu0
  %v128 = vadd.f32 %v47, %v127
  %v129 = vpop.f32.mrf.mxu0
  %130 = vmatprep.mubr.bf16.mxu0 0
  %131 = vmatmul.mubr.bf16.gmra.mxu0 %v60
  %v132 = vpop.f32.mrf.mxu0
  %v133 = vadd.f32 %v47, %v132
  %v134 = vpop.f32.mrf.mxu0
  %v135 = vpop.f32.mrf.mxu0
  %v136 = vadd.f32 %v47, %v135
  %v137 = vpop.f32.mrf.mxu0
  %138 = vmatprep.mubr.bf16.mxu0 0
  %139 = vmatmul.mubr.bf16.gmra.mxu0 %v63
  %v140 = vpop.f32.mrf.mxu0
  %v141 = vadd.f32 %v47, %v140
  %v142 = vpop.f32.mrf.mxu0
  %v143 = vpop.f32.mrf.mxu0
  %v144 = vadd.f32 %v47, %v143
  %v145 = vpop.f32.mrf.mxu0
  %146 = vmatprep.mubr.bf16.mxu0 0
  %147 = vmatmul.mubr.bf16.gmra.mxu0 %v66
  %v148 = vpop.f32.mrf.mxu0
  %v149 = vadd.f32 %v47, %v148
  %v150 = vpop.f32.mrf.mxu0
  %v151 = vpop.f32.mrf.mxu0
  %v152 = vadd.f32 %v47, %v151
  %v153 = vpop.f32.mrf.mxu0
  %154 = vmatprep.mubr.bf16.mxu0 0
  %155 = vmatmul.mubr.bf16.gmra.mxu0 %v69
  %v156 = vpop.f32.mrf.mxu0
  %v157 = vadd.f32 %v47, %v156
  %v158 = vpop.f32.mrf.mxu0
  %v159 = vpop.f32.mrf.mxu0
  %v160 = vadd.f32 %v47, %v159
  %v161 = vpop.f32.mrf.mxu0
  %162 = vmatprep.mubr.bf16.mxu0 0
  %163 = vmatmul.mubr.bf16.gmra.mxu0 %v72
  %v164 = vpop.f32.mrf.mxu0
  %v165 = vadd.f32 %v47, %v164
  %v166 = vpop.f32.mrf.mxu0
  %v167 = vpop.f32.mrf.mxu0
  %v168 = vadd.f32 %v47, %v167
  %v169 = vpop.f32.mrf.mxu0
  %170 = vdwg.mxu0
  %171 = vst.msk [vmem:[%s3] sm:$0xff] %vm49, %v109
  %172 = vst.msk [vmem:[%s3 + $0x8] sm:$0xff] %vm49, %v112
  %173 = vst.msk [vmem:[%s3 + $0x10] sm:$0xff] %vm49, %v117
  %174 = vst.msk [vmem:[%s3 + $0x18] sm:$0xff] %vm49, %v120
  %175 = vst.msk [vmem:[%s3 + $0x20] sm:$0xff] %vm49, %v125
  %176 = vst.msk [vmem:[%s3 + $0x28] sm:$0xff] %vm49, %v128
  %177 = vst.msk [vmem:[%s3 + $0x30] sm:$0xff] %vm49, %v133
  %178 = vst.msk [vmem:[%s3 + $0x38] sm:$0xff] %vm49, %v136
  %179 = vst.msk [vmem:[%s3 + $0x40] sm:$0xff] %vm49, %v141
  %180 = vst.msk [vmem:[%s3 + $0x48] sm:$0xff] %vm49, %v144
  %181 = vst.msk [vmem:[%s3 + $0x50] sm:$0xff] %vm49, %v149
  %182 = vst.msk [vmem:[%s3 + $0x58] sm:$0xff] %vm49, %v152
  %183 = vst.msk [vmem:[%s3 + $0x60] sm:$0xff] %vm49, %v157
  %184 = vst.msk [vmem:[%s3 + $0x68] sm:$0xff] %vm49, %v160
  %185 = vst.msk [vmem:[%s3 + $0x70] sm:$0xff] %vm49, %v165
  %186 = vst.msk [vmem:[%s3 + $0x78] sm:$0xff] %vm49, %v168
  // Predicated region
  $region14: #{_lambda_.62} parent=0 // pred_check
    _
  $region15: #{_lambda_.62} parent=0 // pred_check_branch
    %188 = sbr.rel (0) target = $region17
  $region16: #{_lambda_.62} parent=0 // pred_region
    _
  $region17: #{_lambda_.62} parent=0 // pred_fallthru
    _
  // Predicated region
  $region18: #{_lambda_.62} parent=0 // pred_check
    _
  $region19: #{_lambda_.62} parent=0 // pred_check_branch
    %190 = sbr.rel (0) target = $region21
  $region20: #{_lambda_.62} parent=0 // pred_region
    _
  $region21: #{_lambda_.62} parent=0 // pred_fallthru
    _

// kernel: _lambda_.60
$region0: #{_lambda_.60}
  #allocation0 [shape = 'u32[]', space=smem, size = 0x4, offset = 0x4, fixed_abs, tag = 'smem constant byte address 0x4 - core index']
  #allocation1 [shape = 'u32[144,128]{1,0:T(1,128)}', space=vmem, size = 0x12000, scoped, tag = 'internal scratch']
  %s0 = inlined_call_operand.vmem [shape: f32[2,8,8,16], index: 0, kind: input, shape index: {}]
  %s1 = inlined_call_operand.vmem [shape: f32[2,8,8,16], index: 1, kind: input, shape index: {}]
  %s2 = inlined_call_operand.vmem [shape: f32[2,16,48], index: 2, kind: input, shape index: {}]
  %s3 = inlined_call_operand.vmem [shape: f32[2,1,48], index: 3, kind: input, shape index: {}]
  %s4 = inlined_call_operand.vmem [shape: f32[2,16,16], index: 4, kind: input, shape index: {}]
  %s5 = inlined_call_operand.vmem [shape: f32[2,1,16], index: 5, kind: input, shape index: {}]
  %s6 = inlined_call_operand.vmem [shape: f32[2,1,16], index: 6, kind: input, shape index: {}]
  %s7 = inlined_call_operand.vmem [shape: f32[2,1,16], index: 7, kind: input, shape index: {}]
  %s8 = inlined_call_operand.vmem [shape: f32[2,8,8,16], index: 8, kind: output, shape index: {0}]
  %s9 = inlined_call_operand.vmem [shape: f32[2,8,8,16], index: 9, kind: output, shape index: {1}]
  %10 = xla_tuple %s8, %s9
  %s11 = sld [smem:[#allocation0]]
  $region73: #{_lambda_.60} parent=0
    _
  %s13 = ssub.s32 1, %s11
  %s14 = scalar_select 0, %s13, %s11
  loop: start=0, step=1, limit=18
  $region2: #{_lambda_.60} parent=0 // loop_pre_header
    _
  $region3: #{_lambda_.60} parent=0 // loop_header
    %s16 = sphi 0, %s20
    %p17 = scmp.ge.s32.totalorder %s16, 18
    %s23 = sphi 0, %s35
    %s24 = sphi 0, %s31
    %s25 = sphi 0, %s23
    %s26 = sphi 0, %s24
    %s27 = sphi 0, %s25
    %s28 = sphi 0, %s26
    %s40 = sphi 0, %s42
    %s43 = sphi 0, %s40
    %s44 = sphi 0, %s43
    %s60 = sphi 0, %s44
    %s68 = sphi 0, %s70
    %s71 = sphi 0, %s68
    %s72 = sphi 0, %s71
    %s88 = sphi 0, %s72
    %s92 = sphi 0, %s92
    %s94 = sphi 0, %s92
    %s95 = sphi 0, %s94
    %s109 = sphi 0, %s95
    %s113 = sphi 0, %s113
    %s115 = sphi 0, %s113
    %s116 = sphi 0, %s115
    %s130 = sphi 0, %s116
    %s134 = sphi 0, %s134
    %s136 = sphi 0, %s134
    %s137 = sphi 0, %s136
    %s151 = sphi 0, %s137
    %s155 = sphi 0, %s155
    %s157 = sphi 0, %s155
    %s158 = sphi 0, %s157
    %s172 = sphi 0, %s158
    %s176 = sphi 0, %s176
    %s178 = sphi 0, %s176
    %s179 = sphi 0, %s178
    %s193 = sphi 0, %s179
    %s197 = sphi 0, %s197
    %s199 = sphi 0, %s197
    %s200 = sphi 0, %s199
    %s214 = sphi 0, %s200
    %s222 = sphi 0, %s224
    %s225 = sphi 0, %s222
    %s226 = sphi 0, %s225
    %s242 = sphi 0, %s226
    %s250 = sphi 0, %s252
    %s253 = sphi 0, %s250
    %s254 = sphi 0, %s253
    %s270 = sphi 0, %s254
  $region4: #{_lambda_.60} parent=0 // loop_header_branch
    %19 = sbr.rel (%p17) target = $region8
  $region5: #{_lambda_.60} parent=0 // loop_body
    %s21 = ssub.s32 %s16, 1
    %s22 = ssub.s32 %s16, 2
    %s29 = sadd.s32 1, %s24
    %p30 = scmp.ge.s32.totalorder %s29, 8
    %s31 = scalar_select %p30, 0, %s29
    %s32 = sadd.s32 1, %s23
    %s33 = scalar_select %p30, %s32, %s23
    %p34 = scmp.ge.s32.totalorder %s33, 2
    %s35 = scalar_select %p34, 0, %s33
    %s36 = ssub.s32 %s23, %s35
    %s37 = ssub.s32 %s24, %s31
    %s38 = sor.u32 %s36, %s37
    %p39 = scmp.eq.s32.totalorder %s38, 0
    %s41 = sadd.s32 %s40, 1
    %s42 = scalar_select %p39, %s40, %s41
    %p45 = pneg %p39
    %p46 = scmp.eq.s32.totalorder %s16, 15
    %p47 = por %p45, %p46
    %p48 = scmp.ne.s32.totalorder %s40, %s43
    %p49 = scmp.eq.s32.totalorder %s16, 0
    %p50 = por %p48, %p49
    %p51 = scmp.ne.s32.totalorder %s40, %s43
    %p52 = scmp.eq.s32.totalorder %s21, 15
    %p53 = por %p51, %p52
    %p54 = scmp.ne.s32.totalorder %s43, %s44
    %p55 = scmp.eq.s32.totalorder %s21, 0
    %p56 = por %p54, %p55
    %p57 = scmp.ne.s32.totalorder %s43, %s44
    %p58 = scmp.eq.s32.totalorder %s22, 15
    %p59 = por %p57, %p58
    %p61 = scmp.ne.s32.totalorder %s44, %s60
    %p62 = scmp.eq.s32.totalorder %s22, 0
    %p63 = por %p61, %p62
    %s64 = ssub.s32 %s23, %s35
    %s65 = ssub.s32 %s24, %s31
    %s66 = sor.u32 %s64, %s65
    %p67 = scmp.eq.s32.totalorder %s66, 0
    %s69 = sadd.s32 %s68, 1
    %s70 = scalar_select %p67, %s68, %s69
    %p73 = pneg %p67
    %p74 = scmp.eq.s32.totalorder %s16, 15
    %p75 = por %p73, %p74
    %p76 = scmp.ne.s32.totalorder %s68, %s71
    %p77 = scmp.eq.s32.totalorder %s16, 0
    %p78 = por %p76, %p77
    %p79 = scmp.ne.s32.totalorder %s68, %s71
    %p80 = scmp.eq.s32.totalorder %s21, 15
    %p81 = por %p79, %p80
    %p82 = scmp.ne.s32.totalorder %s71, %s72
    %p83 = scmp.eq.s32.totalorder %s21, 0
    %p84 = por %p82, %p83
    %p85 = scmp.ne.s32.totalorder %s71, %s72
    %p86 = scmp.eq.s32.totalorder %s22, 15
    %p87 = por %p85, %p86
    %p89 = scmp.ne.s32.totalorder %s72, %s88
    %p90 = scmp.eq.s32.totalorder %s22, 0
    %p91 = por %p89, %p90
    %s93 = sadd.s32 %s92, 1
    %p96 = scmp.eq.s32.totalorder %s16, 15
    %p97 = scmp.ne.s32.totalorder %s92, %s94
    %p98 = scmp.eq.s32.totalorder %s16, 0
    %p99 = por %p97, %p98
    %p100 = scmp.ne.s32.totalorder %s92, %s94
    %p101 = scmp.eq.s32.totalorder %s21, 15
    %p102 = por %p100, %p101
    %p103 = scmp.ne.s32.totalorder %s94, %s95
    %p104 = scmp.eq.s32.totalorder %s21, 0
    %p105 = por %p103, %p104
    %p106 = scmp.ne.s32.totalorder %s94, %s95
    %p107 = scmp.eq.s32.totalorder %s22, 15
    %p108 = por %p106, %p107
    %p110 = scmp.ne.s32.totalorder %s95, %s109
    %p111 = scmp.eq.s32.totalorder %s22, 0
    %p112 = por %p110, %p111
    %s114 = sadd.s32 %s113, 1
    %p117 = scmp.eq.s32.totalorder %s16, 15
    %p118 = scmp.ne.s32.totalorder %s113, %s115
    %p119 = scmp.eq.s32.totalorder %s16, 0
    %p120 = por %p118, %p119
    %p121 = scmp.ne.s32.totalorder %s113, %s115
    %p122 = scmp.eq.s32.totalorder %s21, 15
    %p123 = por %p121, %p122
    %p124 = scmp.ne.s32.totalorder %s115, %s116
    %p125 = scmp.eq.s32.totalorder %s21, 0
    %p126 = por %p124, %p125
    %p127 = scmp.ne.s32.totalorder %s115, %s116
    %p128 = scmp.eq.s32.totalorder %s22, 15
    %p129 = por %p127, %p128
    %p131 = scmp.ne.s32.totalorder %s116, %s130
    %p132 = scmp.eq.s32.totalorder %s22, 0
    %p133 = por %p131, %p132
    %s135 = sadd.s32 %s134, 1
    %p138 = scmp.eq.s32.totalorder %s16, 15
    %p139 = scmp.ne.s32.totalorder %s134, %s136
    %p140 = scmp.eq.s32.totalorder %s16, 0
    %p141 = por %p139, %p140
    %p142 = scmp.ne.s32.totalorder %s134, %s136
    %p143 = scmp.eq.s32.totalorder %s21, 15
    %p144 = por %p142, %p143
    %p145 = scmp.ne.s32.totalorder %s136, %s137
    %p146 = scmp.eq.s32.totalorder %s21, 0
    %p147 = por %p145, %p146
    %p148 = scmp.ne.s32.totalorder %s136, %s137
    %p149 = scmp.eq.s32.totalorder %s22, 15
    %p150 = por %p148, %p149
    %p152 = scmp.ne.s32.totalorder %s137, %s151
    %p153 = scmp.eq.s32.totalorder %s22, 0
    %p154 = por %p152, %p153
    %s156 = sadd.s32 %s155, 1
    %p159 = scmp.eq.s32.totalorder %s16, 15
    %p160 = scmp.ne.s32.totalorder %s155, %s157
    %p161 = scmp.eq.s32.totalorder %s16, 0
    %p162 = por %p160, %p161
    %p163 = scmp.ne.s32.totalorder %s155, %s157
    %p164 = scmp.eq.s32.totalorder %s21, 15
    %p165 = por %p163, %p164
    %p166 = scmp.ne.s32.totalorder %s157, %s158
    %p167 = scmp.eq.s32.totalorder %s21, 0
    %p168 = por %p166, %p167
    %p169 = scmp.ne.s32.totalorder %s157, %s158
    %p170 = scmp.eq.s32.totalorder %s22, 15
    %p171 = por %p169, %p170
    %p173 = scmp.ne.s32.totalorder %s158, %s172
    %p174 = scmp.eq.s32.totalorder %s22, 0
    %p175 = por %p173, %p174
    %s177 = sadd.s32 %s176, 1
    %p180 = scmp.eq.s32.totalorder %s16, 15
    %p181 = scmp.ne.s32.totalorder %s176, %s178
    %p182 = scmp.eq.s32.totalorder %s16, 0
    %p183 = por %p181, %p182
    %p184 = scmp.ne.s32.totalorder %s176, %s178
    %p185 = scmp.eq.s32.totalorder %s21, 15
    %p186 = por %p184, %p185
    %p187 = scmp.ne.s32.totalorder %s178, %s179
    %p188 = scmp.eq.s32.totalorder %s21, 0
    %p189 = por %p187, %p188
    %p190 = scmp.ne.s32.totalorder %s178, %s179
    %p191 = scmp.eq.s32.totalorder %s22, 15
    %p192 = por %p190, %p191
    %p194 = scmp.ne.s32.totalorder %s179, %s193
    %p195 = scmp.eq.s32.totalorder %s22, 0
    %p196 = por %p194, %p195
    %s198 = sadd.s32 %s197, 1
    %p201 = scmp.eq.s32.totalorder %s16, 15
    %p202 = scmp.ne.s32.totalorder %s197, %s199
    %p203 = scmp.eq.s32.totalorder %s16, 0
    %p204 = por %p202, %p203
    %p205 = scmp.ne.s32.totalorder %s197, %s199
    %p206 = scmp.eq.s32.totalorder %s21, 15
    %p207 = por %p205, %p206
    %p208 = scmp.ne.s32.totalorder %s199, %s200
    %p209 = scmp.eq.s32.totalorder %s21, 0
    %p210 = por %p208, %p209
    %p211 = scmp.ne.s32.totalorder %s199, %s200
    %p212 = scmp.eq.s32.totalorder %s22, 15
    %p213 = por %p211, %p212
    %p215 = scmp.ne.s32.totalorder %s200, %s214
    %p216 = scmp.eq.s32.totalorder %s22, 0
    %p217 = por %p215, %p216
    %s218 = ssub.s32 %s23, %s35
    %s219 = ssub.s32 %s24, %s31
    %s220 = sor.u32 %s218, %s219
    %p221 = scmp.eq.s32.totalorder %s220, 0
    %s223 = sadd.s32 %s222, 1
    %s224 = scalar_select %p221, %s222, %s223
    %p227 = pneg %p221
    %p228 = scmp.eq.s32.totalorder %s16, 15
    %p229 = por %p227, %p228
    %p230 = scmp.ne.s32.totalorder %s222, %s225
    %p231 = scmp.eq.s32.totalorder %s16, 0
    %p232 = por %p230, %p231
    %p233 = scmp.ne.s32.totalorder %s222, %s225
    %p234 = scmp.eq.s32.totalorder %s21, 15
    %p235 = por %p233, %p234
    %p236 = scmp.ne.s32.totalorder %s225, %s226
    %p237 = scmp.eq.s32.totalorder %s21, 0
    %p238 = por %p236, %p237
    %p239 = scmp.ne.s32.totalorder %s225, %s226
    %p240 = scmp.eq.s32.totalorder %s22, 15
    %p241 = por %p239, %p240
    %p243 = scmp.ne.s32.totalorder %s226, %s242
    %p244 = scmp.eq.s32.totalorder %s22, 0
    %p245 = por %p243, %p244
    %s246 = ssub.s32 %s23, %s35
    %s247 = ssub.s32 %s24, %s31
    %s248 = sor.u32 %s246, %s247
    %p249 = scmp.eq.s32.totalorder %s248, 0
    %s251 = sadd.s32 %s250, 1
    %s252 = scalar_select %p249, %s250, %s251
    %p255 = pneg %p249
    %p256 = scmp.eq.s32.totalorder %s16, 15
    %p257 = por %p255, %p256
    %p258 = scmp.ne.s32.totalorder %s250, %s253
    %p259 = scmp.eq.s32.totalorder %s16, 0
    %p260 = por %p258, %p259
    %p261 = scmp.ne.s32.totalorder %s250, %s253
    %p262 = scmp.eq.s32.totalorder %s21, 15
    %p263 = por %p261, %p262
    %p264 = scmp.ne.s32.totalorder %s253, %s254
    %p265 = scmp.eq.s32.totalorder %s21, 0
    %p266 = por %p264, %p265
    %p267 = scmp.ne.s32.totalorder %s253, %s254
    %p268 = scmp.eq.s32.totalorder %s22, 15
    %p269 = por %p267, %p268
    %p271 = scmp.ne.s32.totalorder %s254, %s270
    %p272 = scmp.eq.s32.totalorder %s22, 0
    %p273 = por %p271, %p272
    %p274 = scmp.le.s32.totalorder 1, %s16
    %p275 = scmp.lt.s32.totalorder %s16, 17
    %p276 = pnand %p274, %p275
    %p277 = pneg %p276
    // Predicated region
    $region9: #{_lambda_.60} parent=5 // pred_check
      _
    $region10: #{_lambda_.60} parent=5 // pred_check_branch
      %279 = sbr.rel (%p276) target = $region12
    $region11: #{_lambda_.60} parent=5 // pred_region
      %s280 = ssub.s32 %s16, 1
      // Predicated region
      $region13: #{_lambda_.60} parent=11 // pred_check
        %p281 = pneg %p105
      $region14: #{_lambda_.60} parent=11 // pred_check_branch
        %283 = sbr.rel (%p281) target = $region16
      $region15: #{_lambda_.60} parent=11 // pred_region
        _
      $region16: #{_lambda_.60} parent=11 // pred_fallthru
        _
      // Predicated region
      $region17: #{_lambda_.60} parent=11 // pred_check
        %p284 = pneg %p126
      $region18: #{_lambda_.60} parent=11 // pred_check_branch
        %286 = sbr.rel (%p284) target = $region20
      $region19: #{_lambda_.60} parent=11 // pred_region
        _
      $region20: #{_lambda_.60} parent=11 // pred_fallthru
        _
      // Predicated region
      $region21: #{_lambda_.60} parent=11 // pred_check
        %p287 = pneg %p147
      $region22: #{_lambda_.60} parent=11 // pred_check_branch
        %289 = sbr.rel (%p287) target = $region24
      $region23: #{_lambda_.60} parent=11 // pred_region
        _
      $region24: #{_lambda_.60} parent=11 // pred_fallthru
        _
      // Predicated region
      $region25: #{_lambda_.60} parent=11 // pred_check
        %p290 = pneg %p168
      $region26: #{_lambda_.60} parent=11 // pred_check_branch
        %292 = sbr.rel (%p290) target = $region28
      $region27: #{_lambda_.60} parent=11 // pred_region
        _
      $region28: #{_lambda_.60} parent=11 // pred_fallthru
        _
      // Predicated region
      $region29: #{_lambda_.60} parent=11 // pred_check
        %p293 = pneg %p189
      $region30: #{_lambda_.60} parent=11 // pred_check_branch
        %295 = sbr.rel (%p293) target = $region32
      $region31: #{_lambda_.60} parent=11 // pred_region
        _
      $region32: #{_lambda_.60} parent=11 // pred_fallthru
        _
      // Predicated region
      $region33: #{_lambda_.60} parent=11 // pred_check
        %p296 = pneg %p210
      $region34: #{_lambda_.60} parent=11 // pred_check_branch
        %298 = sbr.rel (%p296) target = $region36
      $region35: #{_lambda_.60} parent=11 // pred_region
        _
      $region36: #{_lambda_.60} parent=11 // pred_fallthru
        _
    $region12: #{_lambda_.60} parent=5 // pred_fallthru
      _
    %p299 = scmp.lt.s32.totalorder %s16, 16
    // Predicated region
    $region37: #{_lambda_.60} parent=5 // pred_check
      %p300 = pneg %p299
    $region38: #{_lambda_.60} parent=5 // pred_check_branch
      %302 = sbr.rel (%p300) target = $region40
    $region39: #{_lambda_.60} parent=5 // pred_region
      // Predicated region
      $region41: #{_lambda_.60} parent=39 // pred_check
        %p303 = pneg %p50
      $region42: #{_lambda_.60} parent=39 // pred_check_branch
        %305 = sbr.rel (%p303) target = $region44
      $region43: #{_lambda_.60} parent=39 // pred_region
        %p306 = scmp.lt.s32.totalorder %s23, 1
        %s307 = scalar_select %p306, %s23, 1
        %p308 = scmp.lt.s32.totalorder %s24, 7
        %s309 = scalar_select %p308, %s24, 7
        %s310 = smul.addr %s307, 8
        %s311 = sadd.s32 %s309, %s310
        %s312 = smul.addr %s311, 8
        %s313 = scalar_lea.vmem %s0, %s312
      $region44: #{_lambda_.60} parent=39 // pred_fallthru
        _
      // Predicated region
      $region45: #{_lambda_.60} parent=39 // pred_check
        %p314 = pneg %p78
      $region46: #{_lambda_.60} parent=39 // pred_check_branch
        %316 = sbr.rel (%p314) target = $region48
      $region47: #{_lambda_.60} parent=39 // pred_region
        %p317 = scmp.lt.s32.totalorder %s23, 1
        %s318 = scalar_select %p317, %s23, 1
        %p319 = scmp.lt.s32.totalorder %s24, 7
        %s320 = scalar_select %p319, %s24, 7
        %s321 = smul.addr %s318, 8
        %s322 = sadd.s32 %s320, %s321
        %s323 = smul.addr %s322, 8
        %s324 = scalar_lea.vmem %s1, %s323
      $region48: #{_lambda_.60} parent=39 // pred_fallthru
        _
    $region40: #{_lambda_.60} parent=5 // pred_fallthru
      _
    %p325 = scmp.le.s32.totalorder 1, %s16
    %p326 = scmp.lt.s32.totalorder %s16, 17
    %p327 = pnand %p325, %p326
    %p328 = pneg %p327
    // Predicated region
    $region49: #{_lambda_.60} parent=5 // pred_check
      _
    $region50: #{_lambda_.60} parent=5 // pred_check_branch
      %330 = sbr.rel (%p327) target = $region52
    $region51: #{_lambda_.60} parent=5 // pred_region
      %s331 = ssub.s32 %s16, 1
      %p332 = scmp.lt.s32.totalorder %s25, 1
      %s333 = scalar_select %p332, %s25, 1
      %p334 = scmp.lt.s32.totalorder %s26, 7
      %s335 = scalar_select %p334, %s26, 7
      %s336 = smul.addr %s333, 8
      %s337 = sadd.s32 %s335, %s336
      %s338 = smul.addr %s337, 8
      %s339 = scalar_lea.vmem %s0, %s338
      %p340 = pneg %p56
      %p341 = pneg %p53
      %p342 = scmp.lt.s32.totalorder %s25, 1
      %s343 = scalar_select %p342, %s25, 1
      %p344 = scmp.lt.s32.totalorder %s26, 7
      %s345 = scalar_select %p344, %s26, 7
      %s346 = smul.addr %s343, 8
      %s347 = sadd.s32 %s345, %s346
      %s348 = smul.addr %s347, 8
      %s349 = scalar_lea.vmem %s1, %s348
      %p350 = pneg %p84
      %p351 = pneg %p81
      %p352 = pneg %p105
      %p353 = pneg %p102
      %p354 = pneg %p126
      %p355 = pneg %p123
      %p356 = pneg %p147
      %p357 = pneg %p144
      %p358 = pneg %p168
      %p359 = pneg %p165
      %p360 = pneg %p189
      %p361 = pneg %p186
      %p362 = pneg %p210
      %p363 = pneg %p207
      %p364 = pneg %p238
      %p365 = pneg %p235
      %p366 = scmp.lt.s32.totalorder %s25, 1
      %s367 = scalar_select %p366, %s25, 1
      %p368 = scmp.lt.s32.totalorder %s26, 7
      %s369 = scalar_select %p368, %s26, 7
      %s370 = smul.addr %s367, 8
      %s371 = sadd.s32 %s369, %s370
      %s372 = smul.addr %s371, 8
      %s373 = scalar_lea.vmem %s8, %s372
      %p374 = pneg %p266
      %p375 = pneg %p263
      %p376 = scmp.lt.s32.totalorder %s25, 1
      %s377 = scalar_select %p376, %s25, 1
      %p378 = scmp.lt.s32.totalorder %s26, 7
      %s379 = scalar_select %p378, %s26, 7
      %s380 = smul.addr %s377, 8
      %s381 = sadd.s32 %s379, %s380
      %s382 = smul.addr %s381, 8
      %s383 = scalar_lea.vmem %s9, %s382
      %p384 = scmp.lt.s32.totalorder %s25, 1
      %s385 = scalar_select %p384, %s25, 1
      %p386 = scmp.lt.s32.totalorder %s26, 7
      %s387 = scalar_select %p386, %s26, 7
      %s388 = smul.addr %s385, 8
      %s389 = sadd.s32 %s387, %s388
      %s390 = smul.addr %s389, 8
      %s391 = scalar_lea.vmem %s0, %s390
      %p392 = scmp.lt.s32.totalorder %s25, 1
      %s393 = scalar_select %p392, %s25, 1
      %p394 = scmp.lt.s32.totalorder %s26, 7
      %s395 = scalar_select %p394, %s26, 7
      %s396 = smul.addr %s393, 8
      %s397 = sadd.s32 %s395, %s396
      %s398 = smul.addr %s397, 8
      %s399 = scalar_lea.vmem %s1, %s398
      %p400 = scmp.lt.s32.totalorder %s25, 1
      %s401 = scalar_select %p400, %s25, 1
      %p402 = scmp.lt.s32.totalorder %s26, 7
      %s403 = scalar_select %p402, %s26, 7
      %s404 = smul.addr %s401, 8
      %s405 = sadd.s32 %s403, %s404
      %s406 = smul.addr %s405, 8
      %s407 = scalar_lea.vmem %s8, %s406
      %p408 = scmp.lt.s32.totalorder %s25, 1
      %s409 = scalar_select %p408, %s25, 1
      %p410 = scmp.lt.s32.totalorder %s26, 7
      %s411 = scalar_select %p410, %s26, 7
      %s412 = smul.addr %s409, 8
      %s413 = sadd.s32 %s411, %s412
      %s414 = smul.addr %s413, 8
      %s415 = scalar_lea.vmem %s9, %s414
      %v417 = vld [vmem:[%s391] sm:$0xff]
      %v418 = vld [vmem:[%s399] sm:$0xff]
      %v419 = vld [vmem:[%s2] sm:$0xff]
      %v420 = vld [vmem:[%s2 + $0x8] sm:$0xff]
      %v421 = vpack.c.bf16 %v417, %v417
      %v422 = vpack.c.bf16 %v420, %v419
      %v423 = vld [vmem:[%s3] sm:$0x1]
      %v425 = vlaneseq
      %v426 = vshrl.u32 %v425, 7
      %v427 = vsub.s32 0, %v426
      %v428 = vrot.slane %v423, %v427
      %vm430 = vcmask 130048
      %v432 = vsel %vm430, %v421, 0
      %434 = vmatprep.subr.bf16.mxu0 0
      %435 = vmatpush1.bf16.msra.mxu0 0
      %436 = vmatprep.subr.bf16.mxu0 0
      %437 = vmatpush1.bf16.msra.mxu0 0
      %438 = vmatprep.subr.bf16.mxu0 0
      %439 = vmatpush1.bf16.msra.mxu0 0
      %440 = vmatprep.subr.bf16.mxu0 0
      %441 = vmatpush1.bf16.msra.mxu0 0
      %442 = vmatprep.subr.bf16.mxu0 0
      %443 = vmatpush1.bf16.msra.mxu0 0
      %444 = vmatprep.subr.bf16.mxu0 0
      %445 = vmatpush1.bf16.msra.mxu0 0
      %446 = vmatprep.subr.bf16.mxu0 0
      %447 = vmatpush1.bf16.msra.mxu0 0
      %448 = vmatprep.subr.bf16.mxu0 0
      %449 = vmatpush1.bf16.msra.mxu0 %v422
      %450 = vmatprep.subr.bf16.mxu0 0
      %451 = vmatpush2.bf16.msra.mxu0 0
      %452 = vmatprep.subr.bf16.mxu0 0
      %453 = vmatpush2.bf16.msra.mxu0 0
      %454 = vmatprep.subr.bf16.mxu0 0
      %455 = vmatpush2.bf16.msra.mxu0 0
      %456 = vmatprep.subr.bf16.mxu0 0
      %457 = vmatpush2.bf16.msra.mxu0 0
      %458 = vmatprep.subr.bf16.mxu0 0
      %459 = vmatpush2.bf16.msra.mxu0 0
      %460 = vmatprep.subr.bf16.mxu0 0
      %461 = vmatpush2.bf16.msra.mxu0 0
      %462 = vmatprep.subr.bf16.mxu0 0
      %463 = vmatpush2.bf16.msra.mxu0 0
      %464 = vmatprep.subr.bf16.mxu0 0
      %465 = vmatpush2.bf16.msra.mxu0 0
      %466 = vmatprep.mubr.bf16.mxu0 0
      %467 = vmatmul.mubr.bf16.gmra.mxu0 %v432
      %v468 = vpop.f32.mrf.mxu0
      %v469 = vadd.f32 %v428, %v468
      %v470 = vpop.f32.mrf.mxu0
      %v471 = vpop.f32.mrf.mxu0
      %v472 = vpop.f32.mrf.mxu0
      %473 = vdwg.mxu0
      %s474 = scalar_lea.vmem %s2, 16
      %v475 = vld [vmem:[%s474] sm:$0xff]
      %v476 = vld [vmem:[%s474 + $0x8] sm:$0xff]
      %v477 = vpack.c.bf16 %v418, %v418
      %v478 = vpack.c.bf16 %v476, %v475
      %s479 = scalar_lea.vmem %s3, 1
      %v480 = vld [vmem:[%s479] sm:$0x1]
      %v482 = vlaneseq
      %v483 = vshrl.u32 %v482, 7
      %v484 = vsub.s32 0, %v483
      %v485 = vrot.slane %v480, %v484
      %v488 = vsel %vm430, %v477, 0
      %490 = vmatprep.subr.bf16.mxu0 0
      %491 = vmatpush1.bf16.msra.mxu0 0
      %492 = vmatprep.subr.bf16.mxu0 0
      %493 = vmatpush1.bf16.msra.mxu0 0
      %494 = vmatprep.subr.bf16.mxu0 0
      %495 = vmatpush1.bf16.msra.mxu0 0
      %496 = vmatprep.subr.bf16.mxu0 0
      %497 = vmatpush1.bf16.msra.mxu0 0
      %498 = vmatprep.subr.bf16.mxu0 0
      %499 = vmatpush1.bf16.msra.mxu0 0
      %500 = vmatprep.subr.bf16.mxu0 0
      %501 = vmatpush1.bf16.msra.mxu0 0
      %502 = vmatprep.subr.bf16.mxu0 0
      %503 = vmatpush1.bf16.msra.mxu0 0
      %504 = vmatprep.subr.bf16.mxu0 0
      %505 = vmatpush1.bf16.msra.mxu0 %v478
      %506 = vmatprep.subr.bf16.mxu0 0
      %507 = vmatpush2.bf16.msra.mxu0 0
      %508 = vmatprep.subr.bf16.mxu0 0
      %509 = vmatpush2.bf16.msra.mxu0 0
      %510 = vmatprep.subr.bf16.mxu0 0
      %511 = vmatpush2.bf16.msra.mxu0 0
      %512 = vmatprep.subr.bf16.mxu0 0
      %513 = vmatpush2.bf16.msra.mxu0 0
      %514 = vmatprep.subr.bf16.mxu0 0
      %515 = vmatpush2.bf16.msra.mxu0 0
      %516 = vmatprep.subr.bf16.mxu0 0
      %517 = vmatpush2.bf16.msra.mxu0 0
      %518 = vmatprep.subr.bf16.mxu0 0
      %519 = vmatpush2.bf16.msra.mxu0 0
      %520 = vmatprep.subr.bf16.mxu0 0
      %521 = vmatpush2.bf16.msra.mxu0 0
      %522 = vmatprep.mubr.bf16.mxu0 0
      %523 = vmatmul.mubr.bf16.gmra.mxu0 %v488
      %v524 = vpop.f32.mrf.mxu0
      %v525 = vadd.f32 %v485, %v524
      %v526 = vpop.f32.mrf.mxu0
      %v527 = vpop.f32.mrf.mxu0
      %v528 = vpop.f32.mrf.mxu0
      %529 = vdwg.mxu0
      %v530 = vpack.c.bf16 %v469, %v469
      %v531 = vpack.c.bf16 %v525, %v525
      %533 = vrot.lane.b32.xlu0 %v531, 112
      %v534 = vpop.permute.xlu0 %533
      %vm535 = vcmask 31744
      %v537 = vsel %vm535, %v530, 0
      %v540 = vsel %vm535, %v534, 0
      %542 = vmatprep.subr.bf16.mxu0 0
      %543 = vmatpush1.bf16.xpose.msra.mxu0 0
      %544 = vmatprep.subr.bf16.mxu0 0
      %545 = vmatpush1.bf16.xpose.msra.mxu0 0
      %546 = vmatprep.subr.bf16.mxu0 0
      %547 = vmatpush1.bf16.xpose.msra.mxu0 0
      %548 = vmatprep.subr.bf16.mxu0 0
      %549 = vmatpush1.bf16.xpose.msra.mxu0 0
      %550 = vmatprep.subr.bf16.mxu0 0
      %551 = vmatpush1.bf16.xpose.msra.mxu0 0
      %552 = vmatprep.subr.bf16.mxu0 0
      %553 = vmatpush1.bf16.xpose.msra.mxu0 0
      %554 = vmatprep.subr.bf16.mxu0 0
      %555 = vmatpush1.bf16.xpose.msra.mxu0 0
      %556 = vmatprep.subr.bf16.mxu0 0
      %557 = vmatpush1.bf16.xpose.msra.mxu0 %v540
      %558 = vmatprep.subr.bf16.mxu0 0
      %559 = vmatpush2.bf16.xpose.msra.mxu0 0
      %560 = vmatprep.subr.bf16.mxu0 0
      %561 = vmatpush2.bf16.xpose.msra.mxu0 0
      %562 = vmatprep.subr.bf16.mxu0 0
      %563 = vmatpush2.bf16.xpose.msra.mxu0 0
      %564 = vmatprep.subr.bf16.mxu0 0
      %565 = vmatpush2.bf16.xpose.msra.mxu0 0
      %566 = vmatprep.subr.bf16.mxu0 0
      %567 = vmatpush2.bf16.xpose.msra.mxu0 0
      %568 = vmatprep.subr.bf16.mxu0 0
      %569 = vmatpush2.bf16.xpose.msra.mxu0 0
      %570 = vmatprep.subr.bf16.mxu0 0
      %571 = vmatpush2.bf16.xpose.msra.mxu0 0
      %572 = vmatprep.subr.bf16.mxu0 0
      %573 = vmatpush2.bf16.xpose.msra.mxu0 0
      %574 = vmatprep.mubr.bf16.mxu0 0
      %575 = vmatmul.mubr.bf16.gmra.mxu0 %v537
      %v576 = vpop.f32.mrf.mxu0
      %v577 = vadd.f32 0.0, %v576
      %v578 = vpop.f32.mrf.mxu0
      %v579 = vpop.f32.mrf.mxu0
      %v580 = vpop.f32.mrf.mxu0
      %581 = vdwg.mxu0
      %v582 = vmul.f32 %v577, 0.5
      %vm583 = vcmask 64512
      %v584 = vsel %vm583, %v582, -inf
      %585 = vmax.xlane.f32.xlu0 %v584
      %v586 = vpop.xlane.xlu0 %585
      %v587 = vsub.f32 %v582, %v586
      %v588 = vmul.f32 %v587, 1.442695
      %v589 = vpow.pop %v588
      %v590 = vsel %vm583, %v589, 0.0
      %591 = vadd.xlane.f32.xlu0 %v590
      %v592 = vpop.xlane.xlu0 %591
      %v593 = vrcp.pop %v592
      %v594 = vmul.f32 %v589, %v593
      %v595 = vpack.c.bf16 %v594, %v594
      %596 = vrot.lane.b32.xlu0 %v531, 96
      %v597 = vpop.permute.xlu0 %596
      %v599 = vsel %vm583, %v595, 0
      %vm601 = vcmask 1043456
      %v603 = vsel %vm601, %v597, 0
      %605 = vmatprep.subr.bf16.mxu0 0
      %606 = vmatpush1.bf16.msra.mxu0 0
      %607 = vmatprep.subr.bf16.mxu0 0
      %608 = vmatpush1.bf16.msra.mxu0 0
      %609 = vmatprep.subr.bf16.mxu0 0
      %610 = vmatpush1.bf16.msra.mxu0 0
      %611 = vmatprep.subr.bf16.mxu0 0
      %612 = vmatpush1.bf16.msra.mxu0 0
      %613 = vmatprep.subr.bf16.mxu0 0
      %614 = vmatpush1.bf16.msra.mxu0 0
      %615 = vmatprep.subr.bf16.mxu0 0
      %616 = vmatpush1.bf16.msra.mxu0 0
      %617 = vmatprep.subr.bf16.mxu0 0
      %618 = vmatpush1.bf16.msra.mxu0 0
      %619 = vmatprep.subr.bf16.mxu0 0
      %620 = vmatpush1.bf16.msra.mxu0 %v603
      %621 = vmatprep.subr.bf16.mxu0 0
      %622 = vmatpush2.bf16.msra.mxu0 0
      %623 = vmatprep.subr.bf16.mxu0 0
      %624 = vmatpush2.bf16.msra.mxu0 0
      %625 = vmatprep.subr.bf16.mxu0 0
      %626 = vmatpush2.bf16.msra.mxu0 0
      %627 = vmatprep.subr.bf16.mxu0 0
      %628 = vmatpush2.bf16.msra.mxu0 0
      %629 = vmatprep.subr.bf16.mxu0 0
      %630 = vmatpush2.bf16.msra.mxu0 0
      %631 = vmatprep.subr.bf16.mxu0 0
      %632 = vmatpush2.bf16.msra.mxu0 0
      %633 = vmatprep.subr.bf16.mxu0 0
      %634 = vmatpush2.bf16.msra.mxu0 0
      %635 = vmatprep.subr.bf16.mxu0 0
      %636 = vmatpush2.bf16.msra.mxu0 0
      %637 = vmatprep.mubr.bf16.mxu0 0
      %638 = vmatmul.mubr.bf16.gmra.mxu0 %v599
      %v639 = vpop.f32.mrf.mxu0
      %v640 = vadd.f32 0.0, %v639
      %v641 = vpop.f32.mrf.mxu0
      %v642 = vpop.f32.mrf.mxu0
      %v643 = vpop.f32.mrf.mxu0
      %644 = vdwg.mxu0
      %646 = vrot.lane.b32.xlu0 %v530, 124
      %v647 = vpop.permute.xlu0 %646
      %648 = vrot.lane.b32.xlu0 %v531, 108
      %v649 = vpop.permute.xlu0 %648
      %v651 = vsel %vm535, %v647, 0
      %v654 = vsel %vm535, %v649, 0
      %656 = vmatprep.subr.bf16.mxu0 0
      %657 = vmatpush1.bf16.xpose.msra.mxu0 0
      %658 = vmatprep.subr.bf16.mxu0 0
      %659 = vmatpush1.bf16.xpose.msra.mxu0 0
      %660 = vmatprep.subr.bf16.mxu0 0
      %661 = vmatpush1.bf16.xpose.msra.mxu0 0
      %662 = vmatprep.subr.bf16.mxu0 0
      %663 = vmatpush1.bf16.xpose.msra.mxu0 0
      %664 = vmatprep.subr.bf16.mxu0 0
      %665 = vmatpush1.bf16.xpose.msra.mxu0 0
      %666 = vmatprep.subr.bf16.mxu0 0
      %667 = vmatpush1.bf16.xpose.msra.mxu0 0
      %668 = vmatprep.subr.bf16.mxu0 0
      %669 = vmatpush1.bf16.xpose.msra.mxu0 0
      %670 = vmatprep.subr.bf16.mxu0 0
      %671 = vmatpush1.bf16.xpose.msra.mxu0 %v654
      %672 = vmatprep.subr.bf16.mxu0 0
      %673 = vmatpush2.bf16.xpose.msra.mxu0 0
      %674 = vmatprep.subr.bf16.mxu0 0
      %675 = vmatpush2.bf16.xpose.msra.mxu0 0
      %676 = vmatprep.subr.bf16.mxu0 0
      %677 = vmatpush2.bf16.xpose.msra.mxu0 0
      %678 = vmatprep.subr.bf16.mxu0 0
      %679 = vmatpush2.bf16.xpose.msra.mxu0 0
      %680 = vmatprep.subr.bf16.mxu0 0
      %681 = vmatpush2.bf16.xpose.msra.mxu0 0
      %682 = vmatprep.subr.bf16.mxu0 0
      %683 = vmatpush2.bf16.xpose.msra.mxu0 0
      %684 = vmatprep.subr.bf16.mxu0 0
      %685 = vmatpush2.bf16.xpose.msra.mxu0 0
      %686 = vmatprep.subr.bf16.mxu0 0
      %687 = vmatpush2.bf16.xpose.msra.mxu0 0
      %688 = vmatprep.mubr.bf16.mxu0 0
      %689 = vmatmul.mubr.bf16.gmra.mxu0 %v651
      %v690 = vpop.f32.mrf.mxu0
      %v691 = vadd.f32 0.0, %v690
      %v692 = vpop.f32.mrf.mxu0
      %v693 = vpop.f32.mrf.mxu0
      %v694 = vpop.f32.mrf.mxu0
      %695 = vdwg.mxu0
      %v696 = vmul.f32 %v691, 0.5
      %v697 = vsel %vm583, %v696, -inf
      %698 = vmax.xlane.f32.xlu0 %v697
      %v699 = vpop.xlane.xlu0 %698
      %v700 = vsub.f32 %v696, %v699
      %v701 = vmul.f32 %v700, 1.442695
      %v702 = vpow.pop %v701
      %v703 = vsel %vm583, %v702, 0.0
      %704 = vadd.xlane.f32.xlu0 %v703
      %v705 = vpop.xlane.xlu0 %704
      %v706 = vrcp.pop %v705
      %v707 = vmul.f32 %v702, %v706
      %v708 = vpack.c.bf16 %v707, %v707
      %709 = vrot.lane.b32.xlu0 %v531, 92
      %v710 = vpop.permute.xlu0 %709
      %v712 = vsel %vm583, %v708, 0
      %v715 = vsel %vm601, %v710, 0
      %717 = vmatprep.subr.bf16.mxu0 0
      %718 = vmatpush1.bf16.msra.mxu0 0
      %719 = vmatprep.subr.bf16.mxu0 0
      %720 = vmatpush1.bf16.msra.mxu0 0
      %721 = vmatprep.subr.bf16.mxu0 0
      %722 = vmatpush1.bf16.msra.mxu0 0
      %723 = vmatprep.subr.bf16.mxu0 0
      %724 = vmatpush1.bf16.msra.mxu0 0
      %725 = vmatprep.subr.bf16.mxu0 0
      %726 = vmatpush1.bf16.msra.mxu0 0
      %727 = vmatprep.subr.bf16.mxu0 0
      %728 = vmatpush1.bf16.msra.mxu0 0
      %729 = vmatprep.subr.bf16.mxu0 0
      %730 = vmatpush1.bf16.msra.mxu0 0
      %731 = vmatprep.subr.bf16.mxu0 0
      %732 = vmatpush1.bf16.msra.mxu0 %v715
      %733 = vmatprep.subr.bf16.mxu0 0
      %734 = vmatpush2.bf16.msra.mxu0 0
      %735 = vmatprep.subr.bf16.mxu0 0
      %736 = vmatpush2.bf16.msra.mxu0 0
      %737 = vmatprep.subr.bf16.mxu0 0
      %738 = vmatpush2.bf16.msra.mxu0 0
      %739 = vmatprep.subr.bf16.mxu0 0
      %740 = vmatpush2.bf16.msra.mxu0 0
      %741 = vmatprep.subr.bf16.mxu0 0
      %742 = vmatpush2.bf16.msra.mxu0 0
      %743 = vmatprep.subr.bf16.mxu0 0
      %744 = vmatpush2.bf16.msra.mxu0 0
      %745 = vmatprep.subr.bf16.mxu0 0
      %746 = vmatpush2.bf16.msra.mxu0 0
      %747 = vmatprep.subr.bf16.mxu0 0
      %748 = vmatpush2.bf16.msra.mxu0 0
      %749 = vmatprep.mubr.bf16.mxu0 0
      %750 = vmatmul.mubr.bf16.gmra.mxu0 %v712
      %v751 = vpop.f32.mrf.mxu0
      %v752 = vadd.f32 0.0, %v751
      %v753 = vpop.f32.mrf.mxu0
      %v754 = vpop.f32.mrf.mxu0
      %v755 = vpop.f32.mrf.mxu0
      %756 = vdwg.mxu0
      %757 = vrot.lane.b32.xlu0 %v530, 120
      %v758 = vpop.permute.xlu0 %757
      %759 = vrot.lane.b32.xlu0 %v531, 104
      %v760 = vpop.permute.xlu0 %759
      %v762 = vsel %vm535, %v758, 0
      %v765 = vsel %vm535, %v760, 0
      %767 = vmatprep.subr.bf16.mxu0 0
      %768 = vmatpush1.bf16.xpose.msra.mxu0 0
      %769 = vmatprep.subr.bf16.mxu0 0
      %770 = vmatpush1.bf16.xpose.msra.mxu0 0
      %771 = vmatprep.subr.bf16.mxu0 0
      %772 = vmatpush1.bf16.xpose.msra.mxu0 0
      %773 = vmatprep.subr.bf16.mxu0 0
      %774 = vmatpush1.bf16.xpose.msra.mxu0 0
      %775 = vmatprep.subr.bf16.mxu0 0
      %776 = vmatpush1.bf16.xpose.msra.mxu0 0
      %777 = vmatprep.subr.bf16.mxu0 0
      %778 = vmatpush1.bf16.xpose.msra.mxu0 0
      %779 = vmatprep.subr.bf16.mxu0 0
      %780 = vmatpush1.bf16.xpose.msra.mxu0 0
      %781 = vmatprep.subr.bf16.mxu0 0
      %782 = vmatpush1.bf16.xpose.msra.mxu0 %v765
      %783 = vmatprep.subr.bf16.mxu0 0
      %784 = vmatpush2.bf16.xpose.msra.mxu0 0
      %785 = vmatprep.subr.bf16.mxu0 0
      %786 = vmatpush2.bf16.xpose.msra.mxu0 0
      %787 = vmatprep.subr.bf16.mxu0 0
      %788 = vmatpush2.bf16.xpose.msra.mxu0 0
      %789 = vmatprep.subr.bf16.mxu0 0
      %790 = vmatpush2.bf16.xpose.msra.mxu0 0
      %791 = vmatprep.subr.bf16.mxu0 0
      %792 = vmatpush2.bf16.xpose.msra.mxu0 0
      %793 = vmatprep.subr.bf16.mxu0 0
      %794 = vmatpush2.bf16.xpose.msra.mxu0 0
      %795 = vmatprep.subr.bf16.mxu0 0
      %796 = vmatpush2.bf16.xpose.msra.mxu0 0
      %797 = vmatprep.subr.bf16.mxu0 0
      %798 = vmatpush2.bf16.xpose.msra.mxu0 0
      %799 = vmatprep.mubr.bf16.mxu0 0
      %800 = vmatmul.mubr.bf16.gmra.mxu0 %v762
      %v801 = vpop.f32.mrf.mxu0
      %v802 = vadd.f32 0.0, %v801
      %v803 = vpop.f32.mrf.mxu0
      %v804 = vpop.f32.mrf.mxu0
      %v805 = vpop.f32.mrf.mxu0
      %806 = vdwg.mxu0
      %v807 = vmul.f32 %v802, 0.5
      %v808 = vsel %vm583, %v807, -inf
      %809 = vmax.xlane.f32.xlu0 %v808
      %v810 = vpop.xlane.xlu0 %809
      %v811 = vsub.f32 %v807, %v810
      %v812 = vmul.f32 %v811, 1.442695
      %v813 = vpow.pop %v812
      %v814 = vsel %vm583, %v813, 0.0
      %815 = vadd.xlane.f32.xlu0 %v814
      %v816 = vpop.xlane.xlu0 %815
      %v817 = vrcp.pop %v816
      %v818 = vmul.f32 %v813, %v817
      %v819 = vpack.c.bf16 %v818, %v818
      %820 = vrot.lane.b32.xlu0 %v531, 88
      %v821 = vpop.permute.xlu0 %820
      %v823 = vsel %vm583, %v819, 0
      %v826 = vsel %vm601, %v821, 0
      %828 = vmatprep.subr.bf16.mxu0 0
      %829 = vmatpush1.bf16.msra.mxu0 0
      %830 = vmatprep.subr.bf16.mxu0 0
      %831 = vmatpush1.bf16.msra.mxu0 0
      %832 = vmatprep.subr.bf16.mxu0 0
      %833 = vmatpush1.bf16.msra.mxu0 0
      %834 = vmatprep.subr.bf16.mxu0 0
      %835 = vmatpush1.bf16.msra.mxu0 0
      %836 = vmatprep.subr.bf16.mxu0 0
      %837 = vmatpush1.bf16.msra.mxu0 0
      %838 = vmatprep.subr.bf16.mxu0 0
      %839 = vmatpush1.bf16.msra.mxu0 0
      %840 = vmatprep.subr.bf16.mxu0 0
      %841 = vmatpush1.bf16.msra.mxu0 0
      %842 = vmatprep.subr.bf16.mxu0 0
      %843 = vmatpush1.bf16.msra.mxu0 %v826
      %844 = vmatprep.subr.bf16.mxu0 0
      %845 = vmatpush2.bf16.msra.mxu0 0
      %846 = vmatprep.subr.bf16.mxu0 0
      %847 = vmatpush2.bf16.msra.mxu0 0
      %848 = vmatprep.subr.bf16.mxu0 0
      %849 = vmatpush2.bf16.msra.mxu0 0
      %850 = vmatprep.subr.bf16.mxu0 0
      %851 = vmatpush2.bf16.msra.mxu0 0
      %852 = vmatprep.subr.bf16.mxu0 0
      %853 = vmatpush2.bf16.msra.mxu0 0
      %854 = vmatprep.subr.bf16.mxu0 0
      %855 = vmatpush2.bf16.msra.mxu0 0
      %856 = vmatprep.subr.bf16.mxu0 0
      %857 = vmatpush2.bf16.msra.mxu0 0
      %858 = vmatprep.subr.bf16.mxu0 0
      %859 = vmatpush2.bf16.msra.mxu0 0
      %860 = vmatprep.mubr.bf16.mxu0 0
      %861 = vmatmul.mubr.bf16.gmra.mxu0 %v823
      %v862 = vpop.f32.mrf.mxu0
      %v863 = vadd.f32 0.0, %v862
      %v864 = vpop.f32.mrf.mxu0
      %v865 = vpop.f32.mrf.mxu0
      %v866 = vpop.f32.mrf.mxu0
      %867 = vdwg.mxu0
      %868 = vrot.lane.b32.xlu0 %v530, 116
      %v869 = vpop.permute.xlu0 %868
      %870 = vrot.lane.b32.xlu0 %v531, 100
      %v871 = vpop.permute.xlu0 %870
      %v873 = vsel %vm535, %v869, 0
      %v876 = vsel %vm535, %v871, 0
      %878 = vmatprep.subr.bf16.mxu0 0
      %879 = vmatpush1.bf16.xpose.msra.mxu0 0
      %880 = vmatprep.subr.bf16.mxu0 0
      %881 = vmatpush1.bf16.xpose.msra.mxu0 0
      %882 = vmatprep.subr.bf16.mxu0 0
      %883 = vmatpush1.bf16.xpose.msra.mxu0 0
      %884 = vmatprep.subr.bf16.mxu0 0
      %885 = vmatpush1.bf16.xpose.msra.mxu0 0
      %886 = vmatprep.subr.bf16.mxu0 0
      %887 = vmatpush1.bf16.xpose.msra.mxu0 0
      %888 = vmatprep.subr.bf16.mxu0 0
      %889 = vmatpush1.bf16.xpose.msra.mxu0 0
      %890 = vmatprep.subr.bf16.mxu0 0
      %891 = vmatpush1.bf16.xpose.msra.mxu0 0
      %892 = vmatprep.subr.bf16.mxu0 0
      %893 = vmatpush1.bf16.xpose.msra.mxu0 %v876
      %894 = vmatprep.subr.bf16.mxu0 0
      %895 = vmatpush2.bf16.xpose.msra.mxu0 0
      %896 = vmatprep.subr.bf16.mxu0 0
      %897 = vmatpush2.bf16.xpose.msra.mxu0 0
      %898 = vmatprep.subr.bf16.mxu0 0
      %899 = vmatpush2.bf16.xpose.msra.mxu0 0
      %900 = vmatprep.subr.bf16.mxu0 0
      %901 = vmatpush2.bf16.xpose.msra.mxu0 0
      %902 = vmatprep.subr.bf16.mxu0 0
      %903 = vmatpush2.bf16.xpose.msra.mxu0 0
      %904 = vmatprep.subr.bf16.mxu0 0
      %905 = vmatpush2.bf16.xpose.msra.mxu0 0
      %906 = vmatprep.subr.bf16.mxu0 0
      %907 = vmatpush2.bf16.xpose.msra.mxu0 0
      %908 = vmatprep.subr.bf16.mxu0 0
      %909 = vmatpush2.bf16.xpose.msra.mxu0 0
      %910 = vmatprep.mubr.bf16.mxu0 0
      %911 = vmatmul.mubr.bf16.gmra.mxu0 %v873
      %v912 = vpop.f32.mrf.mxu0
      %v913 = vadd.f32 0.0, %v912
      %v914 = vpop.f32.mrf.mxu0
      %v915 = vpop.f32.mrf.mxu0
      %v916 = vpop.f32.mrf.mxu0
      %917 = vdwg.mxu0
      %v918 = vmul.f32 %v913, 0.5
      %v919 = vsel %vm583, %v918, -inf
      %920 = vmax.xlane.f32.xlu0 %v919
      %v921 = vpop.xlane.xlu0 %920
      %v922 = vsub.f32 %v918, %v921
      %v923 = vmul.f32 %v922, 1.442695
      %v924 = vpow.pop %v923
      %v925 = vsel %vm583, %v924, 0.0
      %926 = vadd.xlane.f32.xlu0 %v925
      %v927 = vpop.xlane.xlu0 %926
      %v928 = vrcp.pop %v927
      %v929 = vmul.f32 %v924, %v928
      %v930 = vpack.c.bf16 %v929, %v929
      %931 = vrot.lane.b32.xlu0 %v531, 84
      %v932 = vpop.permute.xlu0 %931
      %v934 = vsel %vm583, %v930, 0
      %v937 = vsel %vm601, %v932, 0
      %939 = vmatprep.subr.bf16.mxu0 0
      %940 = vmatpush1.bf16.msra.mxu0 0
      %941 = vmatprep.subr.bf16.mxu0 0
      %942 = vmatpush1.bf16.msra.mxu0 0
      %943 = vmatprep.subr.bf16.mxu0 0
      %944 = vmatpush1.bf16.msra.mxu0 0
      %945 = vmatprep.subr.bf16.mxu0 0
      %946 = vmatpush1.bf16.msra.mxu0 0
      %947 = vmatprep.subr.bf16.mxu0 0
      %948 = vmatpush1.bf16.msra.mxu0 0
      %949 = vmatprep.subr.bf16.mxu0 0
      %950 = vmatpush1.bf16.msra.mxu0 0
      %951 = vmatprep.subr.bf16.mxu0 0
      %952 = vmatpush1.bf16.msra.mxu0 0
      %953 = vmatprep.subr.bf16.mxu0 0
      %954 = vmatpush1.bf16.msra.mxu0 %v937
      %955 = vmatprep.subr.bf16.mxu0 0
      %956 = vmatpush2.bf16.msra.mxu0 0
      %957 = vmatprep.subr.bf16.mxu0 0
      %958 = vmatpush2.bf16.msra.mxu0 0
      %959 = vmatprep.subr.bf16.mxu0 0
      %960 = vmatpush2.bf16.msra.mxu0 0
      %961 = vmatprep.subr.bf16.mxu0 0
      %962 = vmatpush2.bf16.msra.mxu0 0
      %963 = vmatprep.subr.bf16.mxu0 0
      %964 = vmatpush2.bf16.msra.mxu0 0
      %965 = vmatprep.subr.bf16.mxu0 0
      %966 = vmatpush2.bf16.msra.mxu0 0
      %967 = vmatprep.subr.bf16.mxu0 0
      %968 = vmatpush2.bf16.msra.mxu0 0
      %969 = vmatprep.subr.bf16.mxu0 0
      %970 = vmatpush2.bf16.msra.mxu0 0
      %971 = vmatprep.mubr.bf16.mxu0 0
      %972 = vmatmul.mubr.bf16.gmra.mxu0 %v934
      %v973 = vpop.f32.mrf.mxu0
      %v974 = vadd.f32 0.0, %v973
      %v975 = vpop.f32.mrf.mxu0
      %v976 = vpop.f32.mrf.mxu0
      %v977 = vpop.f32.mrf.mxu0
      %978 = vdwg.mxu0
      %980 = vrot.lane.b32.xlu0 %v752, 4
      %v981 = vpop.permute.xlu0 %980
      %984 = vrot.lane.b32.xlu0 %v863, 8
      %v985 = vpop.permute.xlu0 %984
      %988 = vrot.lane.b32.xlu0 %v974, 12
      %v989 = vpop.permute.xlu0 %988
      %v991 = vsel %vm535, %v640, %v981
      %v992 = vsel %vm583, %v991, %v985
      %vm993 = vcmask 97280
      %v994 = vsel %vm993, %v992, %v989
      %995 = vrot.lane.b32.xlu0 %v530, 112
      %v996 = vpop.permute.xlu0 %995
      %v998 = vsel %vm535, %v531, 0
      %v1001 = vsel %vm535, %v996, 0
      %1003 = vmatprep.subr.bf16.mxu0 0
      %1004 = vmatpush1.bf16.xpose.msra.mxu0 0
      %1005 = vmatprep.subr.bf16.mxu0 0
      %1006 = vmatpush1.bf16.xpose.msra.mxu0 0
      %1007 = vmatprep.subr.bf16.mxu0 0
      %1008 = vmatpush1.bf16.xpose.msra.mxu0 0
      %1009 = vmatprep.subr.bf16.mxu0 0
      %1010 = vmatpush1.bf16.xpose.msra.mxu0 0
      %1011 = vmatprep.subr.bf16.mxu0 0
      %1012 = vmatpush1.bf16.xpose.msra.mxu0 0
      %1013 = vmatprep.subr.bf16.mxu0 0
      %1014 = vmatpush1.bf16.xpose.msra.mxu0 0
      %1015 = vmatprep.subr.bf16.mxu0 0
      %1016 = vmatpush1.bf16.xpose.msra.mxu0 0
      %1017 = vmatprep.subr.bf16.mxu0 0
      %1018 = vmatpush1.bf16.xpose.msra.mxu0 %v1001
      %1019 = vmatprep.subr.bf16.mxu0 0
      %1020 = vmatpush2.bf16.xpose.msra.mxu0 0
      %1021 = vmatprep.subr.bf16.mxu0 0
      %1022 = vmatpush2.bf16.xpose.msra.mxu0 0
      %1023 = vmatprep.subr.bf16.mxu0 0
      %1024 = vmatpush2.bf16.xpose.msra.mxu0 0
      %1025 = vmatprep.subr.bf16.mxu0 0
      %1026 = vmatpush2.bf16.xpose.msra.mxu0 0
      %1027 = vmatprep.subr.bf16.mxu0 0
      %1028 = vmatpush2.bf16.xpose.msra.mxu0 0
      %1029 = vmatprep.subr.bf16.mxu0 0
      %1030 = vmatpush2.bf16.xpose.msra.mxu0 0
      %1031 = vmatprep.subr.bf16.mxu0 0
      %1032 = vmatpush2.bf16.xpose.msra.mxu0 0
      %1033 = vmatprep.subr.bf16.mxu0 0
      %1034 = vmatpush2.bf16.xpose.msra.mxu0 0
      %1035 = vmatprep.mubr.bf16.mxu0 0
      %1036 = vmatmul.mubr.bf16.gmra.mxu0 %v998
      %v1037 = vpop.f32.mrf.mxu0
      %v1038 = vadd.f32 0.0, %v1037
      %v1039 = vpop.f32.mrf.mxu0
      %v1040 = vpop.f32.mrf.mxu0
      %v1041 = vpop.f32.mrf.mxu0
      %1042 = vdwg.mxu0
      %v1043 = vmul.f32 %v1038, 0.5
      %v1044 = vsel %vm583, %v1043, -inf
      %1045 = vmax.xlane.f32.xlu0 %v1044
      %v1046 = vpop.xlane.xlu0 %1045
      %v1047 = vsub.f32 %v1043, %v1046
      %v1048 = vmul.f32 %v1047, 1.442695
      %v1049 = vpow.pop %v1048
      %v1050 = vsel %vm583, %v1049, 0.0
      %1051 = vadd.xlane.f32.xlu0 %v1050
      %v1052 = vpop.xlane.xlu0 %1051
      %v1053 = vrcp.pop %v1052
      %v1054 = vmul.f32 %v1049, %v1053
      %v1055 = vpack.c.bf16 %v1054, %v1054
      %1056 = vrot.lane.b32.xlu0 %v530, 96
      %v1057 = vpop.permute.xlu0 %1056
      %v1059 = vsel %vm583, %v1055, 0
      %v1062 = vsel %vm601, %v1057, 0
      %1064 = vmatprep.subr.bf16.mxu0 0
      %1065 = vmatpush1.bf16.msra.mxu0 0
      %1066 = vmatprep.subr.bf16.mxu0 0
      %1067 = vmatpush1.bf16.msra.mxu0 0
      %1068 = vmatprep.subr.bf16.mxu0 0
      %1069 = vmatpush1.bf16.msra.mxu0 0
      %1070 = vmatprep.subr.bf16.mxu0 0
      %1071 = vmatpush1.bf16.msra.mxu0 0
      %1072 = vmatprep.subr.bf16.mxu0 0
      %1073 = vmatpush1.bf16.msra.mxu0 0
      %1074 = vmatprep.subr.bf16.mxu0 0
      %1075 = vmatpush1.bf16.msra.mxu0 0
      %1076 = vmatprep.subr.bf16.mxu0 0
      %1077 = vmatpush1.bf16.msra.mxu0 0
      %1078 = vmatprep.subr.bf16.mxu0 0
      %1079 = vmatpush1.bf16.msra.mxu0 %v1062
      %1080 = vmatprep.subr.bf16.mxu0 0
      %1081 = vmatpush2.bf16.msra.mxu0 0
      %1082 = vmatprep.subr.bf16.mxu0 0
      %1083 = vmatpush2.bf16.msra.mxu0 0
      %1084 = vmatprep.subr.bf16.mxu0 0
      %1085 = vmatpush2.bf16.msra.mxu0 0
      %1086 = vmatprep.subr.bf16.mxu0 0
      %1087 = vmatpush2.bf16.msra.mxu0 0
      %1088 = vmatprep.subr.bf16.mxu0 0
      %1089 = vmatpush2.bf16.msra.mxu0 0
      %1090 = vmatprep.subr.bf16.mxu0 0
      %1091 = vmatpush2.bf16.msra.mxu0 0
      %1092 = vmatprep.subr.bf16.mxu0 0
      %1093 = vmatpush2.bf16.msra.mxu0 0
      %1094 = vmatprep.subr.bf16.mxu0 0
      %1095 = vmatpush2.bf16.msra.mxu0 0
      %1096 = vmatprep.mubr.bf16.mxu0 0
      %1097 = vmatmul.mubr.bf16.gmra.mxu0 %v1059
      %v1098 = vpop.f32.mrf.mxu0
      %v1099 = vadd.f32 0.0, %v1098
      %v1100 = vpop.f32.mrf.mxu0
      %v1101 = vpop.f32.mrf.mxu0
      %v1102 = vpop.f32.mrf.mxu0
      %1103 = vdwg.mxu0
      %1104 = vrot.lane.b32.xlu0 %v531, 124
      %v1105 = vpop.permute.xlu0 %1104
      %1106 = vrot.lane.b32.xlu0 %v530, 108
      %v1107 = vpop.permute.xlu0 %1106
      %v1109 = vsel %vm535, %v1105, 0
      %v1112 = vsel %vm535, %v1107, 0
      %1114 = vmatprep.subr.bf16.mxu0 0
      %1115 = vmatpush1.bf16.xpose.msra.mxu0 0
      %1116 = vmatprep.subr.bf16.mxu0 0
      %1117 = vmatpush1.bf16.xpose.msra.mxu0 0
      %1118 = vmatprep.subr.bf16.mxu0 0
      %1119 = vmatpush1.bf16.xpose.msra.mxu0 0
      %1120 = vmatprep.subr.bf16.mxu0 0
      %1121 = vmatpush1.bf16.xpose.msra.mxu0 0
      %1122 = vmatprep.subr.bf16.mxu0 0
      %1123 = vmatpush1.bf16.xpose.msra.mxu0 0
      %1124 = vmatprep.subr.bf16.mxu0 0
      %1125 = vmatpush1.bf16.xpose.msra.mxu0 0
      %1126 = vmatprep.subr.bf16.mxu0 0
      %1127 = vmatpush1.bf16.xpose.msra.mxu0 0
      %1128 = vmatprep.subr.bf16.mxu0 0
      %1129 = vmatpush1.bf16.xpose.msra.mxu0 %v1112
      %1130 = vmatprep.subr.bf16.mxu0 0
      %1131 = vmatpush2.bf16.xpose.msra.mxu0 0
      %1132 = vmatprep.subr.bf16.mxu0 0
      %1133 = vmatpush2.bf16.xpose.msra.mxu0 0
      %1134 = vmatprep.subr.bf16.mxu0 0
      %1135 = vmatpush2.bf16.xpose.msra.mxu0 0
      %1136 = vmatprep.subr.bf16.mxu0 0
      %1137 = vmatpush2.bf16.xpose.msra.mxu0 0
      %1138 = vmatprep.subr.bf16.mxu0 0
      %1139 = vmatpush2.bf16.xpose.msra.mxu0 0
      %1140 = vmatprep.subr.bf16.mxu0 0
      %1141 = vmatpush2.bf16.xpose.msra.mxu0 0
      %1142 = vmatprep.subr.bf16.mxu0 0
      %1143 = vmatpush2.bf16.xpose.msra.mxu0 0
      %1144 = vmatprep.subr.bf16.mxu0 0
      %1145 = vmatpush2.bf16.xpose.msra.mxu0 0
      %1146 = vmatprep.mubr.bf16.mxu0 0
      %1147 = vmatmul.mubr.bf16.gmra.mxu0 %v1109
      %v1148 = vpop.f32.mrf.mxu0
      %v1149 = vadd.f32 0.0, %v1148
      %v1150 = vpop.f32.mrf.mxu0
      %v1151 = vpop.f32.mrf.mxu0
      %v1152 = vpop.f32.mrf.mxu0
      %1153 = vdwg.mxu0
      %v1154 = vmul.f32 %v1149, 0.5
      %v1155 = vsel %vm583, %v1154, -inf
      %1156 = vmax.xlane.f32.xlu0 %v1155
      %v1157 = vpop.xlane.xlu0 %1156
      %v1158 = vsub.f32 %v1154, %v1157
      %v1159 = vmul.f32 %v1158, 1.442695
      %v1160 = vpow.pop %v1159
      %v1161 = vsel %vm583, %v1160, 0.0
      %1162 = vadd.xlane.f32.xlu0 %v1161
      %v1163 = vpop.xlane.xlu0 %1162
      %v1164 = vrcp.pop %v1163
      %v1165 = vmul.f32 %v1160, %v1164
      %v1166 = vpack.c.bf16 %v1165, %v1165
      %1167 = vrot.lane.b32.xlu0 %v530, 92
      %v1168 = vpop.permute.xlu0 %1167
      %v1170 = vsel %vm583, %v1166, 0
      %v1173 = vsel %vm601, %v1168, 0
      %1175 = vmatprep.subr.bf16.mxu0 0
      %1176 = vmatpush1.bf16.msra.mxu0 0
      %1177 = vmatprep.subr.bf16.mxu0 0
      %1178 = vmatpush1.bf16.msra.mxu0 0
      %1179 = vmatprep.subr.bf16.mxu0 0
      %1180 = vmatpush1.bf16.msra.mxu0 0
      %1181 = vmatprep.subr.bf16.mxu0 0
      %1182 = vmatpush1.bf16.msra.mxu0 0
      %1183 = vmatprep.subr.bf16.mxu0 0
      %1184 = vmatpush1.bf16.msra.mxu0 0
      %1185 = vmatprep.subr.bf16.mxu0 0
      %1186 = vmatpush1.bf16.msra.mxu0 0
      %1187 = vmatprep.subr.bf16.mxu0 0
      %1188 = vmatpush1.bf16.msra.mxu0 0
      %1189 = vmatprep.subr.bf16.mxu0 0
      %1190 = vmatpush1.bf16.msra.mxu0 %v1173
      %1191 = vmatprep.subr.bf16.mxu0 0
      %1192 = vmatpush2.bf16.msra.mxu0 0
      %1193 = vmatprep.subr.bf16.mxu0 0
      %1194 = vmatpush2.bf16.msra.mxu0 0
      %1195 = vmatprep.subr.bf16.mxu0 0
      %1196 = vmatpush2.bf16.msra.mxu0 0
      %1197 = vmatprep.subr.bf16.mxu0 0
      %1198 = vmatpush2.bf16.msra.mxu0 0
      %1199 = vmatprep.subr.bf16.mxu0 0
      %1200 = vmatpush2.bf16.msra.mxu0 0
      %1201 = vmatprep.subr.bf16.mxu0 0
      %1202 = vmatpush2.bf16.msra.mxu0 0
      %1203 = vmatprep.subr.bf16.mxu0 0
      %1204 = vmatpush2.bf16.msra.mxu0 0
      %1205 = vmatprep.subr.bf16.mxu0 0
      %1206 = vmatpush2.bf16.msra.mxu0 0
      %1207 = vmatprep.mubr.bf16.mxu0 0
      %1208 = vmatmul.mubr.bf16.gmra.mxu0 %v1170
      %v1209 = vpop.f32.mrf.mxu0
      %v1210 = vadd.f32 0.0, %v1209
      %v1211 = vpop.f32.mrf.mxu0
      %v1212 = vpop.f32.mrf.mxu0
      %v1213 = vpop.f32.mrf.mxu0
      %1214 = vdwg.mxu0
      %1215 = vrot.lane.b32.xlu0 %v531, 120
      %v1216 = vpop.permute.xlu0 %1215
      %1217 = vrot.lane.b32.xlu0 %v530, 104
      %v1218 = vpop.permute.xlu0 %1217
      %v1220 = vsel %vm535, %v1216, 0
      %v1223 = vsel %vm535, %v1218, 0
      %1225 = vmatprep.subr.bf16.mxu0 0
      %1226 = vmatpush1.bf16.xpose.msra.mxu0 0
      %1227 = vmatprep.subr.bf16.mxu0 0
      %1228 = vmatpush1.bf16.xpose.msra.mxu0 0
      %1229 = vmatprep.subr.bf16.mxu0 0
      %1230 = vmatpush1.bf16.xpose.msra.mxu0 0
      %1231 = vmatprep.subr.bf16.mxu0 0
      %1232 = vmatpush1.bf16.xpose.msra.mxu0 0
      %1233 = vmatprep.subr.bf16.mxu0 0
      %1234 = vmatpush1.bf16.xpose.msra.mxu0 0
      %1235 = vmatprep.subr.bf16.mxu0 0
      %1236 = vmatpush1.bf16.xpose.msra.mxu0 0
      %1237 = vmatprep.subr.bf16.mxu0 0
      %1238 = vmatpush1.bf16.xpose.msra.mxu0 0
      %1239 = vmatprep.subr.bf16.mxu0 0
      %1240 = vmatpush1.bf16.xpose.msra.mxu0 %v1223
      %1241 = vmatprep.subr.bf16.mxu0 0
      %1242 = vmatpush2.bf16.xpose.msra.mxu0 0
      %1243 = vmatprep.subr.bf16.mxu0 0
      %1244 = vmatpush2.bf16.xpose.msra.mxu0 0
      %1245 = vmatprep.subr.bf16.mxu0 0
      %1246 = vmatpush2.bf16.xpose.msra.mxu0 0
      %1247 = vmatprep.subr.bf16.mxu0 0
      %1248 = vmatpush2.bf16.xpose.msra.mxu0 0
      %1249 = vmatprep.subr.bf16.mxu0 0
      %1250 = vmatpush2.bf16.xpose.msra.mxu0 0
      %1251 = vmatprep.subr.bf16.mxu0 0
      %1252 = vmatpush2.bf16.xpose.msra.mxu0 0
      %1253 = vmatprep.subr.bf16.mxu0 0
      %1254 = vmatpush2.bf16.xpose.msra.mxu0 0
      %1255 = vmatprep.subr.bf16.mxu0 0
      %1256 = vmatpush2.bf16.xpose.msra.mxu0 0
      %1257 = vmatprep.mubr.bf16.mxu0 0
      %1258 = vmatmul.mubr.bf16.gmra.mxu0 %v1220
      %v1259 = vpop.f32.mrf.mxu0
      %v1260 = vadd.f32 0.0, %v1259
      %v1261 = vpop.f32.mrf.mxu0
      %v1262 = vpop.f32.mrf.mxu0
      %v1263 = vpop.f32.mrf.mxu0
      %1264 = vdwg.mxu0
      %v1265 = vmul.f32 %v1260, 0.5
      %v1266 = vsel %vm583, %v1265, -inf
      %1267 = vmax.xlane.f32.xlu0 %v1266
      %v1268 = vpop.xlane.xlu0 %1267
      %v1269 = vsub.f32 %v1265, %v1268
      %v1270 = vmul.f32 %v1269, 1.442695
      %v1271 = vpow.pop %v1270
      %v1272 = vsel %vm583, %v1271, 0.0
      %1273 = vadd.xlane.f32.xlu0 %v1272
      %v1274 = vpop.xlane.xlu0 %1273
      %v1275 = vrcp.pop %v1274
      %v1276 = vmul.f32 %v1271, %v1275
      %v1277 = vpack.c.bf16 %v1276, %v1276
      %1278 = vrot.lane.b32.xlu0 %v530, 88
      %v1279 = vpop.permute.xlu0 %1278
      %v1281 = vsel %vm583, %v1277, 0
      %v1284 = vsel %vm601, %v1279, 0
      %1286 = vmatprep.subr.bf16.mxu0 0
      %1287 = vmatpush1.bf16.msra.mxu0 0
      %1288 = vmatprep.subr.bf16.mxu0 0
      %1289 = vmatpush1.bf16.msra.mxu0 0
      %1290 = vmatprep.subr.bf16.mxu0 0
      %1291 = vmatpush1.bf16.msra.mxu0 0
      %1292 = vmatprep.subr.bf16.mxu0 0
      %1293 = vmatpush1.bf16.msra.mxu0 0
      %1294 = vmatprep.subr.bf16.mxu0 0
      %1295 = vmatpush1.bf16.msra.mxu0 0
      %1296 = vmatprep.subr.bf16.mxu0 0
      %1297 = vmatpush1.bf16.msra.mxu0 0
      %1298 = vmatprep.subr.bf16.mxu0 0
      %1299 = vmatpush1.bf16.msra.mxu0 0
      %1300 = vmatprep.subr.bf16.mxu0 0
      %1301 = vmatpush1.bf16.msra.mxu0 %v1284
      %1302 = vmatprep.subr.bf16.mxu0 0
      %1303 = vmatpush2.bf16.msra.mxu0 0
      %1304 = vmatprep.subr.bf16.mxu0 0
      %1305 = vmatpush2.bf16.msra.mxu0 0
      %1306 = vmatprep.subr.bf16.mxu0 0
      %1307 = vmatpush2.bf16.msra.mxu0 0
      %1308 = vmatprep.subr.bf16.mxu0 0
      %1309 = vmatpush2.bf16.msra.mxu0 0
      %1310 = vmatprep.subr.bf16.mxu0 0
      %1311 = vmatpush2.bf16.msra.mxu0 0
      %1312 = vmatprep.subr.bf16.mxu0 0
      %1313 = vmatpush2.bf16.msra.mxu0 0
      %1314 = vmatprep.subr.bf16.mxu0 0
      %1315 = vmatpush2.bf16.msra.mxu0 0
      %1316 = vmatprep.subr.bf16.mxu0 0
      %1317 = vmatpush2.bf16.msra.mxu0 0
      %1318 = vmatprep.mubr.bf16.mxu0 0
      %1319 = vmatmul.mubr.bf16.gmra.mxu0 %v1281
      %v1320 = vpop.f32.mrf.mxu0
      %v1321 = vadd.f32 0.0, %v1320
      %v1322 = vpop.f32.mrf.mxu0
      %v1323 = vpop.f32.mrf.mxu0
      %v1324 = vpop.f32.mrf.mxu0
      %1325 = vdwg.mxu0
      %1326 = vrot.lane.b32.xlu0 %v531, 116
      %v1327 = vpop.permute.xlu0 %1326
      %1328 = vrot.lane.b32.xlu0 %v530, 100
      %v1329 = vpop.permute.xlu0 %1328
      %v1331 = vsel %vm535, %v1327, 0
      %v1334 = vsel %vm535, %v1329, 0
      %1336 = vmatprep.subr.bf16.mxu0 0
      %1337 = vmatpush1.bf16.xpose.msra.mxu0 0
      %1338 = vmatprep.subr.bf16.mxu0 0
      %1339 = vmatpush1.bf16.xpose.msra.mxu0 0
      %1340 = vmatprep.subr.bf16.mxu0 0
      %1341 = vmatpush1.bf16.xpose.msra.mxu0 0
      %1342 = vmatprep.subr.bf16.mxu0 0
      %1343 = vmatpush1.bf16.xpose.msra.mxu0 0
      %1344 = vmatprep.subr.bf16.mxu0 0
      %1345 = vmatpush1.bf16.xpose.msra.mxu0 0
      %1346 = vmatprep.subr.bf16.mxu0 0
      %1347 = vmatpush1.bf16.xpose.msra.mxu0 0
      %1348 = vmatprep.subr.bf16.mxu0 0
      %1349 = vmatpush1.bf16.xpose.msra.mxu0 0
      %1350 = vmatprep.subr.bf16.mxu0 0
      %1351 = vmatpush1.bf16.xpose.msra.mxu0 %v1334
      %1352 = vmatprep.subr.bf16.mxu0 0
      %1353 = vmatpush2.bf16.xpose.msra.mxu0 0
      %1354 = vmatprep.subr.bf16.mxu0 0
      %1355 = vmatpush2.bf16.xpose.msra.mxu0 0
      %1356 = vmatprep.subr.bf16.mxu0 0
      %1357 = vmatpush2.bf16.xpose.msra.mxu0 0
      %1358 = vmatprep.subr.bf16.mxu0 0
      %1359 = vmatpush2.bf16.xpose.msra.mxu0 0
      %1360 = vmatprep.subr.bf16.mxu0 0
      %1361 = vmatpush2.bf16.xpose.msra.mxu0 0
      %1362 = vmatprep.subr.bf16.mxu0 0
      %1363 = vmatpush2.bf16.xpose.msra.mxu0 0
      %1364 = vmatprep.subr.bf16.mxu0 0
      %1365 = vmatpush2.bf16.xpose.msra.mxu0 0
      %1366 = vmatprep.subr.bf16.mxu0 0
      %1367 = vmatpush2.bf16.xpose.msra.mxu0 0
      %1368 = vmatprep.mubr.bf16.mxu0 0
      %1369 = vmatmul.mubr.bf16.gmra.mxu0 %v1331
      %v1370 = vpop.f32.mrf.mxu0
      %v1371 = vadd.f32 0.0, %v1370
      %v1372 = vpop.f32.mrf.mxu0
      %v1373 = vpop.f32.mrf.mxu0
      %v1374 = vpop.f32.mrf.mxu0
      %1375 = vdwg.mxu0
      %v1376 = vmul.f32 %v1371, 0.5
      %v1377 = vsel %vm583, %v1376, -inf
      %1378 = vmax.xlane.f32.xlu0 %v1377
      %v1379 = vpop.xlane.xlu0 %1378
      %v1380 = vsub.f32 %v1376, %v1379
      %v1381 = vmul.f32 %v1380, 1.442695
      %v1382 = vpow.pop %v1381
      %v1383 = vsel %vm583, %v1382, 0.0
      %1384 = vadd.xlane.f32.xlu0 %v1383
      %v1385 = vpop.xlane.xlu0 %1384
      %v1386 = vrcp.pop %v1385
      %v1387 = vmul.f32 %v1382, %v1386
      %v1388 = vpack.c.bf16 %v1387, %v1387
      %1389 = vrot.lane.b32.xlu0 %v530, 84
      %v1390 = vpop.permute.xlu0 %1389
      %v1392 = vsel %vm583, %v1388, 0
      %v1395 = vsel %vm601, %v1390, 0
      %1397 = vmatprep.subr.bf16.mxu0 0
      %1398 = vmatpush1.bf16.msra.mxu0 0
      %1399 = vmatprep.subr.bf16.mxu0 0
      %1400 = vmatpush1.bf16.msra.mxu0 0
      %1401 = vmatprep.subr.bf16.mxu0 0
      %1402 = vmatpush1.bf16.msra.mxu0 0
      %1403 = vmatprep.subr.bf16.mxu0 0
      %1404 = vmatpush1.bf16.msra.mxu0 0
      %1405 = vmatprep.subr.bf16.mxu0 0
      %1406 = vmatpush1.bf16.msra.mxu0 0
      %1407 = vmatprep.subr.bf16.mxu0 0
      %1408 = vmatpush1.bf16.msra.mxu0 0
      %1409 = vmatprep.subr.bf16.mxu0 0
      %1410 = vmatpush1.bf16.msra.mxu0 0
      %1411 = vmatprep.subr.bf16.mxu0 0
      %1412 = vmatpush1.bf16.msra.mxu0 %v1395
      %1413 = vmatprep.subr.bf16.mxu0 0
      %1414 = vmatpush2.bf16.msra.mxu0 0
      %1415 = vmatprep.subr.bf16.mxu0 0
      %1416 = vmatpush2.bf16.msra.mxu0 0
      %1417 = vmatprep.subr.bf16.mxu0 0
      %1418 = vmatpush2.bf16.msra.mxu0 0
      %1419 = vmatprep.subr.bf16.mxu0 0
      %1420 = vmatpush2.bf16.msra.mxu0 0
      %1421 = vmatprep.subr.bf16.mxu0 0
      %1422 = vmatpush2.bf16.msra.mxu0 0
      %1423 = vmatprep.subr.bf16.mxu0 0
      %1424 = vmatpush2.bf16.msra.mxu0 0
      %1425 = vmatprep.subr.bf16.mxu0 0
      %1426 = vmatpush2.bf16.msra.mxu0 0
      %1427 = vmatprep.subr.bf16.mxu0 0
      %1428 = vmatpush2.bf16.msra.mxu0 0
      %1429 = vmatprep.mubr.bf16.mxu0 0
      %1430 = vmatmul.mubr.bf16.gmra.mxu0 %v1392
      %v1431 = vpop.f32.mrf.mxu0
      %v1432 = vadd.f32 0.0, %v1431
      %v1433 = vpop.f32.mrf.mxu0
      %v1434 = vpop.f32.mrf.mxu0
      %v1435 = vpop.f32.mrf.mxu0
      %1436 = vdwg.mxu0
      %1438 = vrot.lane.b32.xlu0 %v1210, 4
      %v1439 = vpop.permute.xlu0 %1438
      %1442 = vrot.lane.b32.xlu0 %v1321, 8
      %v1443 = vpop.permute.xlu0 %1442
      %1446 = vrot.lane.b32.xlu0 %v1432, 12
      %v1447 = vpop.permute.xlu0 %1446
      %v1449 = vsel %vm535, %v1099, %v1439
      %v1450 = vsel %vm583, %v1449, %v1443
      %v1451 = vsel %vm993, %v1450, %v1447
      %v1452 = vld [vmem:[%s4] sm:$0xff]
      %v1453 = vld [vmem:[%s4 + $0x8] sm:$0xff]
      %v1454 = vpack.c.bf16 %v994, %v994
      %v1455 = vpack.c.bf16 %v1453, %v1452
      %v1456 = vld [vmem:[%s5] sm:$0x1]
      %v1458 = vlaneseq
      %v1459 = vshrl.u32 %v1458, 7
      %v1460 = vsub.s32 0, %v1459
      %v1461 = vrot.slane %v1456, %v1460
      %v1464 = vsel %vm430, %v1454, 0
      %1466 = vmatprep.subr.bf16.mxu0 0
      %1467 = vmatpush1.bf16.msra.mxu0 0
      %1468 = vmatprep.subr.bf16.mxu0 0
      %1469 = vmatpush1.bf16.msra.mxu0 0
      %1470 = vmatprep.subr.bf16.mxu0 0
      %1471 = vmatpush1.bf16.msra.mxu0 0
      %1472 = vmatprep.subr.bf16.mxu0 0
      %1473 = vmatpush1.bf16.msra.mxu0 0
      %1474 = vmatprep.subr.bf16.mxu0 0
      %1475 = vmatpush1.bf16.msra.mxu0 0
      %1476 = vmatprep.subr.bf16.mxu0 0
      %1477 = vmatpush1.bf16.msra.mxu0 0
      %1478 = vmatprep.subr.bf16.mxu0 0
      %1479 = vmatpush1.bf16.msra.mxu0 0
      %1480 = vmatprep.subr.bf16.mxu0 0
      %1481 = vmatpush1.bf16.msra.mxu0 %v1455
      %1482 = vmatprep.subr.bf16.mxu0 0
      %1483 = vmatpush2.bf16.msra.mxu0 0
      %1484 = vmatprep.subr.bf16.mxu0 0
      %1485 = vmatpush2.bf16.msra.mxu0 0
      %1486 = vmatprep.subr.bf16.mxu0 0
      %1487 = vmatpush2.bf16.msra.mxu0 0
      %1488 = vmatprep.subr.bf16.mxu0 0
      %1489 = vmatpush2.bf16.msra.mxu0 0
      %1490 = vmatprep.subr.bf16.mxu0 0
      %1491 = vmatpush2.bf16.msra.mxu0 0
      %1492 = vmatprep.subr.bf16.mxu0 0
      %1493 = vmatpush2.bf16.msra.mxu0 0
      %1494 = vmatprep.subr.bf16.mxu0 0
      %1495 = vmatpush2.bf16.msra.mxu0 0
      %1496 = vmatprep.subr.bf16.mxu0 0
      %1497 = vmatpush2.bf16.msra.mxu0 0
      %1498 = vmatprep.mubr.bf16.mxu0 0
      %1499 = vmatmul.mubr.bf16.gmra.mxu0 %v1464
      %v1500 = vpop.f32.mrf.mxu0
      %v1501 = vadd.f32 %v1461, %v1500
      %v1502 = vpop.f32.mrf.mxu0
      %v1503 = vpop.f32.mrf.mxu0
      %v1504 = vpop.f32.mrf.mxu0
      %1505 = vdwg.mxu0
      %v1506 = vadd.f32 %v1501, %v417
      %s1507 = scalar_lea.vmem %s4, 16
      %v1508 = vld [vmem:[%s1507] sm:$0xff]
      %v1509 = vld [vmem:[%s1507 + $0x8] sm:$0xff]
      %v1510 = vpack.c.bf16 %v1451, %v1451
      %v1511 = vpack.c.bf16 %v1509, %v1508
      %s1512 = scalar_lea.vmem %s5, 1
      %v1513 = vld [vmem:[%s1512] sm:$0x1]
      %v1515 = vlaneseq
      %v1516 = vshrl.u32 %v1515, 7
      %v1517 = vsub.s32 0, %v1516
      %v1518 = vrot.slane %v1513, %v1517
      %v1521 = vsel %vm430, %v1510, 0
      %1523 = vmatprep.subr.bf16.mxu0 0
      %1524 = vmatpush1.bf16.msra.mxu0 0
      %1525 = vmatprep.subr.bf16.mxu0 0
      %1526 = vmatpush1.bf16.msra.mxu0 0
      %1527 = vmatprep.subr.bf16.mxu0 0
      %1528 = vmatpush1.bf16.msra.mxu0 0
      %1529 = vmatprep.subr.bf16.mxu0 0
      %1530 = vmatpush1.bf16.msra.mxu0 0
      %1531 = vmatprep.subr.bf16.mxu0 0
      %1532 = vmatpush1.bf16.msra.mxu0 0
      %1533 = vmatprep.subr.bf16.mxu0 0
      %1534 = vmatpush1.bf16.msra.mxu0 0
      %1535 = vmatprep.subr.bf16.mxu0 0
      %1536 = vmatpush1.bf16.msra.mxu0 0
      %1537 = vmatprep.subr.bf16.mxu0 0
      %1538 = vmatpush1.bf16.msra.mxu0 %v1511
      %1539 = vmatprep.subr.bf16.mxu0 0
      %1540 = vmatpush2.bf16.msra.mxu0 0
      %1541 = vmatprep.subr.bf16.mxu0 0
      %1542 = vmatpush2.bf16.msra.mxu0 0
      %1543 = vmatprep.subr.bf16.mxu0 0
      %1544 = vmatpush2.bf16.msra.mxu0 0
      %1545 = vmatprep.subr.bf16.mxu0 0
      %1546 = vmatpush2.bf16.msra.mxu0 0
      %1547 = vmatprep.subr.bf16.mxu0 0
      %1548 = vmatpush2.bf16.msra.mxu0 0
      %1549 = vmatprep.subr.bf16.mxu0 0
      %1550 = vmatpush2.bf16.msra.mxu0 0
      %1551 = vmatprep.subr.bf16.mxu0 0
      %1552 = vmatpush2.bf16.msra.mxu0 0
      %1553 = vmatprep.subr.bf16.mxu0 0
      %1554 = vmatpush2.bf16.msra.mxu0 0
      %1555 = vmatprep.mubr.bf16.mxu0 0
      %1556 = vmatmul.mubr.bf16.gmra.mxu0 %v1521
      %v1557 = vpop.f32.mrf.mxu0
      %v1558 = vadd.f32 %v1518, %v1557
      %v1559 = vpop.f32.mrf.mxu0
      %v1560 = vpop.f32.mrf.mxu0
      %v1561 = vpop.f32.mrf.mxu0
      %1562 = vdwg.mxu0
      %v1563 = vadd.f32 %v1558, %v418
      %v1564 = vld [vmem:[%s6] sm:$0x1]
      %v1565 = vld [vmem:[%s7] sm:$0x1]
      %v1566 = vsel %vm430, %v1506, 0.0
      %1567 = vadd.xlane.f32.xlu0 %v1566
      %v1568 = vpop.xlane.xlu0 %1567
      %v1569 = vrcp.pop 16.0
      %v1570 = vmul.f32 %v1568, %v1569
      %v1571 = vsub.f32 %v1506, %v1570
      %v1572 = vmul.f32 %v1571, %v1571
      %v1573 = vsel %vm430, %v1572, 0.0
      %1574 = vadd.xlane.f32.xlu0 %v1573
      %v1575 = vpop.xlane.xlu0 %1574
      %v1576 = vmul.f32 %v1575, %v1569
      %v1577 = vadd.f32 %v1576, 1e-05
      %v1578 = vrsqrt.pop %v1577
      %v1579 = vmul.f32 %v1571, %v1578
      %v1581 = vlaneseq
      %v1582 = vshrl.u32 %v1581, 7
      %v1583 = vsub.s32 0, %v1582
      %v1584 = vrot.slane %v1564, %v1583
      %v1586 = vmul.f32 %v1579, %v1584
      %v1588 = vlaneseq
      %v1589 = vshrl.u32 %v1588, 7
      %v1590 = vsub.s32 0, %v1589
      %v1591 = vrot.slane %v1565, %v1590
      %v1593 = vadd.f32 %v1586, %v1591
      %1594 = vst.msk [vmem:[%s407] sm:$0xff] %vm430, %v1593
      %s1595 = scalar_lea.vmem %s6, 1
      %v1596 = vld [vmem:[%s1595] sm:$0x1]
      %s1597 = scalar_lea.vmem %s7, 1
      %v1598 = vld [vmem:[%s1597] sm:$0x1]
      %v1599 = vsel %vm430, %v1563, 0.0
      %1600 = vadd.xlane.f32.xlu0 %v1599
      %v1601 = vpop.xlane.xlu0 %1600
      %v1602 = vmul.f32 %v1601, %v1569
      %v1603 = vsub.f32 %v1563, %v1602
      %v1604 = vmul.f32 %v1603, %v1603
      %v1605 = vsel %vm430, %v1604, 0.0
      %1606 = vadd.xlane.f32.xlu0 %v1605
      %v1607 = vpop.xlane.xlu0 %1606
      %v1608 = vmul.f32 %v1607, %v1569
      %v1609 = vadd.f32 %v1608, 1e-05
      %v1610 = vrsqrt.pop %v1609
      %v1611 = vmul.f32 %v1603, %v1610
      %v1613 = vlaneseq
      %v1614 = vshrl.u32 %v1613, 7
      %v1615 = vsub.s32 0, %v1614
      %v1616 = vrot.slane %v1596, %v1615
      %v1618 = vmul.f32 %v1611, %v1616
      %v1620 = vlaneseq
      %v1621 = vshrl.u32 %v1620, 7
      %v1622 = vsub.s32 0, %v1621
      %v1623 = vrot.slane %v1598, %v1622
      %v1625 = vadd.f32 %v1618, %v1623
      %1626 = vst.msk [vmem:[%s415] sm:$0xff] %vm430, %v1625
      %p1627 = scmp.lt.s32.totalorder %s25, 1
      %s1628 = scalar_select %p1627, %s25, 1
      %p1629 = scmp.lt.s32.totalorder %s26, 7
      %s1630 = scalar_select %p1629, %s26, 7
      %s1631 = smul.addr %s1628, 8
      %s1632 = sadd.s32 %s1630, %s1631
      %s1633 = smul.addr %s1632, 8
      %s1634 = scalar_lea.vmem %s8, %s1633
      %p1635 = scmp.lt.s32.totalorder %s25, 1
      %s1636 = scalar_select %p1635, %s25, 1
      %p1637 = scmp.lt.s32.totalorder %s26, 7
      %s1638 = scalar_select %p1637, %s26, 7
      %s1639 = smul.addr %s1636, 8
      %s1640 = sadd.s32 %s1638, %s1639
      %s1641 = smul.addr %s1640, 8
      %s1642 = scalar_lea.vmem %s9, %s1641
      // Predicated region
      $region53: #{_lambda_.60} parent=51 // pred_check
        %p1643 = pneg %p235
      $region54: #{_lambda_.60} parent=51 // pred_check_branch
        %1645 = sbr.rel (%p1643) target = $region56
      $region55: #{_lambda_.60} parent=51 // pred_region
        _
      $region56: #{_lambda_.60} parent=51 // pred_fallthru
        _
      // Predicated region
      $region57: #{_lambda_.60} parent=51 // pred_check
        %p1646 = pneg %p263
      $region58: #{_lambda_.60} parent=51 // pred_check_branch
        %1648 = sbr.rel (%p1646) target = $region60
      $region59: #{_lambda_.60} parent=51 // pred_region
        _
      $region60: #{_lambda_.60} parent=51 // pred_fallthru
        _
    $region52: #{_lambda_.60} parent=5 // pred_fallthru
      _
    %p1649 = scmp.le.s32.totalorder 2, %s16
    // Predicated region
    $region61: #{_lambda_.60} parent=5 // pred_check
      %p1650 = pneg %p1649
    $region62: #{_lambda_.60} parent=5 // pred_check_branch
      %1652 = sbr.rel (%p1650) target = $region64
    $region63: #{_lambda_.60} parent=5 // pred_region
      %s1653 = ssub.s32 %s16, 2
      // Predicated region
      $region65: #{_lambda_.60} parent=63 // pred_check
        %p1654 = pneg %p241
      $region66: #{_lambda_.60} parent=63 // pred_check_branch
        %1656 = sbr.rel (%p1654) target = $region68
      $region67: #{_lambda_.60} parent=63 // pred_region
        %p1657 = scmp.lt.s32.totalorder %s27, 1
        %s1658 = scalar_select %p1657, %s27, 1
        %p1659 = scmp.lt.s32.totalorder %s28, 7
        %s1660 = scalar_select %p1659, %s28, 7
        %s1661 = smul.addr %s1658, 8
        %s1662 = sadd.s32 %s1660, %s1661
        %s1663 = smul.addr %s1662, 8
        %s1664 = scalar_lea.vmem %s8, %s1663
      $region68: #{_lambda_.60} parent=63 // pred_fallthru
        _
      // Predicated region
      $region69: #{_lambda_.60} parent=63 // pred_check
        %p1665 = pneg %p269
      $region70: #{_lambda_.60} parent=63 // pred_check_branch
        %1667 = sbr.rel (%p1665) target = $region72
      $region71: #{_lambda_.60} parent=63 // pred_region
        %p1668 = scmp.lt.s32.totalorder %s27, 1
        %s1669 = scalar_select %p1668, %s27, 1
        %p1670 = scmp.lt.s32.totalorder %s28, 7
        %s1671 = scalar_select %p1670, %s28, 7
        %s1672 = smul.addr %s1669, 8
        %s1673 = sadd.s32 %s1671, %s1672
        %s1674 = smul.addr %s1673, 8
        %s1675 = scalar_lea.vmem %s9, %s1674
      $region72: #{_lambda_.60} parent=63 // pred_fallthru
        _
    $region64: #{_lambda_.60} parent=5 // pred_fallthru
      _
  $region6: #{_lambda_.60} parent=0 // loop_footer
    %s20 = sadd.s32 1, %s16
  $region7: #{_lambda_.60} parent=0 // loop_footer_branch
    %15 = sbr.rel target = $region3
  $region8: #{_lambda_.60} parent=0 // loop_exit
    _

// kernel: _lambda_.70
$region0: #{_lambda_.70}
  #allocation0 [shape = 'u32[]', space=smem, size = 0x4, offset = 0x4, fixed_abs, tag = 'smem constant byte address 0x4 - core index']
  #allocation1 [shape = 'u32[144,128]{1,0:T(1,128)}', space=vmem, size = 0x12000, scoped, tag = 'internal scratch']
  %s0 = inlined_call_operand.vmem [shape: f32[32,4,16], index: 0, kind: input, shape index: {}]
  %s1 = inlined_call_operand.vmem [shape: f32[4,16], index: 1, kind: input, shape index: {}]
  %s2 = inlined_call_operand.vmem [shape: f32[1,16], index: 2, kind: input, shape index: {}]
  %s3 = inlined_call_operand.vmem [shape: f32[32,16], index: 3, kind: output, shape index: {}]
  %s4 = sld [smem:[#allocation0]]
  $region22: #{_lambda_.70} parent=0
    _
  %s6 = ssub.s32 1, %s4
  %s7 = scalar_select 0, %s6, %s4
  // Predicated region
  $region2: #{_lambda_.70} parent=0 // pred_check
    _
  $region3: #{_lambda_.70} parent=0 // pred_check_branch
    %9 = sbr.rel (0) target = $region5
  $region4: #{_lambda_.70} parent=0 // pred_region
    _
  $region5: #{_lambda_.70} parent=0 // pred_fallthru
    _
  // Predicated region
  $region6: #{_lambda_.70} parent=0 // pred_check
    _
  $region7: #{_lambda_.70} parent=0 // pred_check_branch
    %11 = sbr.rel (0) target = $region9
  $region8: #{_lambda_.70} parent=0 // pred_region
    _
  $region9: #{_lambda_.70} parent=0 // pred_fallthru
    _
  // Predicated region
  $region10: #{_lambda_.70} parent=0 // pred_check
    _
  $region11: #{_lambda_.70} parent=0 // pred_check_branch
    %13 = sbr.rel (0) target = $region13
  $region12: #{_lambda_.70} parent=0 // pred_region
    _
  $region13: #{_lambda_.70} parent=0 // pred_fallthru
    _
  %v14 = vld [vmem:[%s0] sm:$0xf]
  %v15 = vld [vmem:[%s0 + $0x4] sm:$0xf]
  %v16 = vld [vmem:[%s0 + $0x8] sm:$0xf]
  %v17 = vld [vmem:[%s0 + $0xc] sm:$0xf]
  %v18 = vld [vmem:[%s0 + $0x10] sm:$0xf]
  %v19 = vld [vmem:[%s0 + $0x14] sm:$0xf]
  %v20 = vld [vmem:[%s0 + $0x18] sm:$0xf]
  %v21 = vld [vmem:[%s0 + $0x1c] sm:$0xf]
  %v22 = vld [vmem:[%s0 + $0x20] sm:$0xf]
  %v23 = vld [vmem:[%s0 + $0x24] sm:$0xf]
  %v24 = vld [vmem:[%s0 + $0x28] sm:$0xf]
  %v25 = vld [vmem:[%s0 + $0x2c] sm:$0xf]
  %v26 = vld [vmem:[%s0 + $0x30] sm:$0xf]
  %v27 = vld [vmem:[%s0 + $0x34] sm:$0xf]
  %v28 = vld [vmem:[%s0 + $0x38] sm:$0xf]
  %v29 = vld [vmem:[%s0 + $0x3c] sm:$0xf]
  %v30 = vld [vmem:[%s0 + $0x40] sm:$0xf]
  %v31 = vld [vmem:[%s0 + $0x44] sm:$0xf]
  %v32 = vld [vmem:[%s0 + $0x48] sm:$0xf]
  %v33 = vld [vmem:[%s0 + $0x4c] sm:$0xf]
  %v34 = vld [vmem:[%s0 + $0x50] sm:$0xf]
  %v35 = vld [vmem:[%s0 + $0x54] sm:$0xf]
  %v36 = vld [vmem:[%s0 + $0x58] sm:$0xf]
  %v37 = vld [vmem:[%s0 + $0x5c] sm:$0xf]
  %v38 = vld [vmem:[%s0 + $0x60] sm:$0xf]
  %v39 = vld [vmem:[%s0 + $0x64] sm:$0xf]
  %v40 = vld [vmem:[%s0 + $0x68] sm:$0xf]
  %v41 = vld [vmem:[%s0 + $0x6c] sm:$0xf]
  %v42 = vld [vmem:[%s0 + $0x70] sm:$0xf]
  %v43 = vld [vmem:[%s0 + $0x74] sm:$0xf]
  %v44 = vld [vmem:[%s0 + $0x78] sm:$0xf]
  %v45 = vld [vmem:[%s0 + $0x7c] sm:$0xf]
  %v46 = vld [vmem:[%s1] sm:$0xf]
  %v47 = vlaneseq
  %v48 = vshrl.u32 %v47, 7
  %v49 = vsub.s32 0, %v48
  %v50 = vrot.slane %v46, %v49
  %v51 = vmul.f32 %v14, %v50
  %v52 = vmul.f32 %v15, %v50
  %v53 = vmul.f32 %v16, %v50
  %v54 = vmul.f32 %v17, %v50
  %v55 = vmul.f32 %v18, %v50
  %v56 = vmul.f32 %v19, %v50
  %v57 = vmul.f32 %v20, %v50
  %v58 = vmul.f32 %v21, %v50
  %v59 = vmul.f32 %v22, %v50
  %v60 = vmul.f32 %v23, %v50
  %v61 = vmul.f32 %v24, %v50
  %v62 = vmul.f32 %v25, %v50
  %v63 = vmul.f32 %v26, %v50
  %v64 = vmul.f32 %v27, %v50
  %v65 = vmul.f32 %v28, %v50
  %v66 = vmul.f32 %v29, %v50
  %v67 = vmul.f32 %v30, %v50
  %v68 = vmul.f32 %v31, %v50
  %v69 = vmul.f32 %v32, %v50
  %v70 = vmul.f32 %v33, %v50
  %v71 = vmul.f32 %v34, %v50
  %v72 = vmul.f32 %v35, %v50
  %v73 = vmul.f32 %v36, %v50
  %v74 = vmul.f32 %v37, %v50
  %v75 = vmul.f32 %v38, %v50
  %v76 = vmul.f32 %v39, %v50
  %v77 = vmul.f32 %v40, %v50
  %v78 = vmul.f32 %v41, %v50
  %v79 = vmul.f32 %v42, %v50
  %v80 = vmul.f32 %v43, %v50
  %v81 = vmul.f32 %v44, %v50
  %v82 = vmul.f32 %v45, %v50
  %v83 = vlaneseq
  %v84 = vshrl.u32 %v83, 7
  %v85 = vsub.s32 1, %v84
  %v86 = vrot.slane %v46, %v85
  %v87 = vmul.f32 %v14, %v86
  %v88 = vmul.f32 %v15, %v86
  %v89 = vmul.f32 %v16, %v86
  %v90 = vmul.f32 %v17, %v86
  %v91 = vmul.f32 %v18, %v86
  %v92 = vmul.f32 %v19, %v86
  %v93 = vmul.f32 %v20, %v86
  %v94 = vmul.f32 %v21, %v86
  %v95 = vmul.f32 %v22, %v86
  %v96 = vmul.f32 %v23, %v86
  %v97 = vmul.f32 %v24, %v86
  %v98 = vmul.f32 %v25, %v86
  %v99 = vmul.f32 %v26, %v86
  %v100 = vmul.f32 %v27, %v86
  %v101 = vmul.f32 %v28, %v86
  %v102 = vmul.f32 %v29, %v86
  %v103 = vmul.f32 %v30, %v86
  %v104 = vmul.f32 %v31, %v86
  %v105 = vmul.f32 %v32, %v86
  %v106 = vmul.f32 %v33, %v86
  %v107 = vmul.f32 %v34, %v86
  %v108 = vmul.f32 %v35, %v86
  %v109 = vmul.f32 %v36, %v86
  %v110 = vmul.f32 %v37, %v86
  %v111 = vmul.f32 %v38, %v86
  %v112 = vmul.f32 %v39, %v86
  %v113 = vmul.f32 %v40, %v86
  %v114 = vmul.f32 %v41, %v86
  %v115 = vmul.f32 %v42, %v86
  %v116 = vmul.f32 %v43, %v86
  %v117 = vmul.f32 %v44, %v86
  %v118 = vmul.f32 %v45, %v86
  %v151 = vrot.slane %v87, 1
  %v152 = vrot.slane %v88, 1
  %v153 = vrot.slane %v89, 1
  %v154 = vrot.slane %v90, 1
  %v155 = vrot.slane %v91, 1
  %v156 = vrot.slane %v92, 1
  %v157 = vrot.slane %v93, 1
  %v158 = vrot.slane %v94, 1
  %v159 = vrot.slane %v95, 1
  %v160 = vrot.slane %v96, 1
  %v161 = vrot.slane %v97, 1
  %v162 = vrot.slane %v98, 1
  %v163 = vrot.slane %v99, 1
  %v164 = vrot.slane %v100, 1
  %v165 = vrot.slane %v101, 1
  %v166 = vrot.slane %v102, 1
  %v167 = vrot.slane %v103, 1
  %v168 = vrot.slane %v104, 1
  %v169 = vrot.slane %v105, 1
  %v170 = vrot.slane %v106, 1
  %v171 = vrot.slane %v107, 1
  %v172 = vrot.slane %v108, 1
  %v173 = vrot.slane %v109, 1
  %v174 = vrot.slane %v110, 1
  %v175 = vrot.slane %v111, 1
  %v176 = vrot.slane %v112, 1
  %v177 = vrot.slane %v113, 1
  %v178 = vrot.slane %v114, 1
  %v179 = vrot.slane %v115, 1
  %v180 = vrot.slane %v116, 1
  %v181 = vrot.slane %v117, 1
  %v182 = vrot.slane %v118, 1
  %v215 = vadd.f32 %v51, %v151
  %v216 = vadd.f32 %v52, %v152
  %v217 = vadd.f32 %v53, %v153
  %v218 = vadd.f32 %v54, %v154
  %v219 = vadd.f32 %v55, %v155
  %v220 = vadd.f32 %v56, %v156
  %v221 = vadd.f32 %v57, %v157
  %v222 = vadd.f32 %v58, %v158
  %v223 = vadd.f32 %v59, %v159
  %v224 = vadd.f32 %v60, %v160
  %v225 = vadd.f32 %v61, %v161
  %v226 = vadd.f32 %v62, %v162
  %v227 = vadd.f32 %v63, %v163
  %v228 = vadd.f32 %v64, %v164
  %v229 = vadd.f32 %v65, %v165
  %v230 = vadd.f32 %v66, %v166
  %v231 = vadd.f32 %v67, %v167
  %v232 = vadd.f32 %v68, %v168
  %v233 = vadd.f32 %v69, %v169
  %v234 = vadd.f32 %v70, %v170
  %v235 = vadd.f32 %v71, %v171
  %v236 = vadd.f32 %v72, %v172
  %v237 = vadd.f32 %v73, %v173
  %v238 = vadd.f32 %v74, %v174
  %v239 = vadd.f32 %v75, %v175
  %v240 = vadd.f32 %v76, %v176
  %v241 = vadd.f32 %v77, %v177
  %v242 = vadd.f32 %v78, %v178
  %v243 = vadd.f32 %v79, %v179
  %v244 = vadd.f32 %v80, %v180
  %v245 = vadd.f32 %v81, %v181
  %v246 = vadd.f32 %v82, %v182
  %v247 = vlaneseq
  %v248 = vshrl.u32 %v247, 7
  %v249 = vsub.s32 2, %v248
  %v250 = vrot.slane %v46, %v249
  %v251 = vmul.f32 %v14, %v250
  %v252 = vmul.f32 %v15, %v250
  %v253 = vmul.f32 %v16, %v250
  %v254 = vmul.f32 %v17, %v250
  %v255 = vmul.f32 %v18, %v250
  %v256 = vmul.f32 %v19, %v250
  %v257 = vmul.f32 %v20, %v250
  %v258 = vmul.f32 %v21, %v250
  %v259 = vmul.f32 %v22, %v250
  %v260 = vmul.f32 %v23, %v250
  %v261 = vmul.f32 %v24, %v250
  %v262 = vmul.f32 %v25, %v250
  %v263 = vmul.f32 %v26, %v250
  %v264 = vmul.f32 %v27, %v250
  %v265 = vmul.f32 %v28, %v250
  %v266 = vmul.f32 %v29, %v250
  %v267 = vmul.f32 %v30, %v250
  %v268 = vmul.f32 %v31, %v250
  %v269 = vmul.f32 %v32, %v250
  %v270 = vmul.f32 %v33, %v250
  %v271 = vmul.f32 %v34, %v250
  %v272 = vmul.f32 %v35, %v250
  %v273 = vmul.f32 %v36, %v250
  %v274 = vmul.f32 %v37, %v250
  %v275 = vmul.f32 %v38, %v250
  %v276 = vmul.f32 %v39, %v250
  %v277 = vmul.f32 %v40, %v250
  %v278 = vmul.f32 %v41, %v250
  %v279 = vmul.f32 %v42, %v250
  %v280 = vmul.f32 %v43, %v250
  %v281 = vmul.f32 %v44, %v250
  %v282 = vmul.f32 %v45, %v250
  %v315 = vrot.slane %v251, 2
  %v316 = vrot.slane %v252, 2
  %v317 = vrot.slane %v253, 2
  %v318 = vrot.slane %v254, 2
  %v319 = vrot.slane %v255, 2
  %v320 = vrot.slane %v256, 2
  %v321 = vrot.slane %v257, 2
  %v322 = vrot.slane %v258, 2
  %v323 = vrot.slane %v259, 2
  %v324 = vrot.slane %v260, 2
  %v325 = vrot.slane %v261, 2
  %v326 = vrot.slane %v262, 2
  %v327 = vrot.slane %v263, 2
  %v328 = vrot.slane %v264, 2
  %v329 = vrot.slane %v265, 2
  %v330 = vrot.slane %v266, 2
  %v331 = vrot.slane %v267, 2
  %v332 = vrot.slane %v268, 2
  %v333 = vrot.slane %v269, 2
  %v334 = vrot.slane %v270, 2
  %v335 = vrot.slane %v271, 2
  %v336 = vrot.slane %v272, 2
  %v337 = vrot.slane %v273, 2
  %v338 = vrot.slane %v274, 2
  %v339 = vrot.slane %v275, 2
  %v340 = vrot.slane %v276, 2
  %v341 = vrot.slane %v277, 2
  %v342 = vrot.slane %v278, 2
  %v343 = vrot.slane %v279, 2
  %v344 = vrot.slane %v280, 2
  %v345 = vrot.slane %v281, 2
  %v346 = vrot.slane %v282, 2
  %v379 = vadd.f32 %v215, %v315
  %v380 = vadd.f32 %v216, %v316
  %v381 = vadd.f32 %v217, %v317
  %v382 = vadd.f32 %v218, %v318
  %v383 = vadd.f32 %v219, %v319
  %v384 = vadd.f32 %v220, %v320
  %v385 = vadd.f32 %v221, %v321
  %v386 = vadd.f32 %v222, %v322
  %v387 = vadd.f32 %v223, %v323
  %v388 = vadd.f32 %v224, %v324
  %v389 = vadd.f32 %v225, %v325
  %v390 = vadd.f32 %v226, %v326
  %v391 = vadd.f32 %v227, %v327
  %v392 = vadd.f32 %v228, %v328
  %v393 = vadd.f32 %v229, %v329
  %v394 = vadd.f32 %v230, %v330
  %v395 = vadd.f32 %v231, %v331
  %v396 = vadd.f32 %v232, %v332
  %v397 = vadd.f32 %v233, %v333
  %v398 = vadd.f32 %v234, %v334
  %v399 = vadd.f32 %v235, %v335
  %v400 = vadd.f32 %v236, %v336
  %v401 = vadd.f32 %v237, %v337
  %v402 = vadd.f32 %v238, %v338
  %v403 = vadd.f32 %v239, %v339
  %v404 = vadd.f32 %v240, %v340
  %v405 = vadd.f32 %v241, %v341
  %v406 = vadd.f32 %v242, %v342
  %v407 = vadd.f32 %v243, %v343
  %v408 = vadd.f32 %v244, %v344
  %v409 = vadd.f32 %v245, %v345
  %v410 = vadd.f32 %v246, %v346
  %v411 = vlaneseq
  %v412 = vshrl.u32 %v411, 7
  %v413 = vsub.s32 3, %v412
  %v414 = vrot.slane %v46, %v413
  %v415 = vmul.f32 %v14, %v414
  %v416 = vmul.f32 %v15, %v414
  %v417 = vmul.f32 %v16, %v414
  %v418 = vmul.f32 %v17, %v414
  %v419 = vmul.f32 %v18, %v414
  %v420 = vmul.f32 %v19, %v414
  %v421 = vmul.f32 %v20, %v414
  %v422 = vmul.f32 %v21, %v414
  %v423 = vmul.f32 %v22, %v414
  %v424 = vmul.f32 %v23, %v414
  %v425 = vmul.f32 %v24, %v414
  %v426 = vmul.f32 %v25, %v414
  %v427 = vmul.f32 %v26, %v414
  %v428 = vmul.f32 %v27, %v414
  %v429 = vmul.f32 %v28, %v414
  %v430 = vmul.f32 %v29, %v414
  %v431 = vmul.f32 %v30, %v414
  %v432 = vmul.f32 %v31, %v414
  %v433 = vmul.f32 %v32, %v414
  %v434 = vmul.f32 %v33, %v414
  %v435 = vmul.f32 %v34, %v414
  %v436 = vmul.f32 %v35, %v414
  %v437 = vmul.f32 %v36, %v414
  %v438 = vmul.f32 %v37, %v414
  %v439 = vmul.f32 %v38, %v414
  %v440 = vmul.f32 %v39, %v414
  %v441 = vmul.f32 %v40, %v414
  %v442 = vmul.f32 %v41, %v414
  %v443 = vmul.f32 %v42, %v414
  %v444 = vmul.f32 %v43, %v414
  %v445 = vmul.f32 %v44, %v414
  %v446 = vmul.f32 %v45, %v414
  %v479 = vrot.slane %v415, 3
  %v480 = vrot.slane %v416, 3
  %v481 = vrot.slane %v417, 3
  %v482 = vrot.slane %v418, 3
  %v483 = vrot.slane %v419, 3
  %v484 = vrot.slane %v420, 3
  %v485 = vrot.slane %v421, 3
  %v486 = vrot.slane %v422, 3
  %v487 = vrot.slane %v423, 3
  %v488 = vrot.slane %v424, 3
  %v489 = vrot.slane %v425, 3
  %v490 = vrot.slane %v426, 3
  %v491 = vrot.slane %v427, 3
  %v492 = vrot.slane %v428, 3
  %v493 = vrot.slane %v429, 3
  %v494 = vrot.slane %v430, 3
  %v495 = vrot.slane %v431, 3
  %v496 = vrot.slane %v432, 3
  %v497 = vrot.slane %v433, 3
  %v498 = vrot.slane %v434, 3
  %v499 = vrot.slane %v435, 3
  %v500 = vrot.slane %v436, 3
  %v501 = vrot.slane %v437, 3
  %v502 = vrot.slane %v438, 3
  %v503 = vrot.slane %v439, 3
  %v504 = vrot.slane %v440, 3
  %v505 = vrot.slane %v441, 3
  %v506 = vrot.slane %v442, 3
  %v507 = vrot.slane %v443, 3
  %v508 = vrot.slane %v444, 3
  %v509 = vrot.slane %v445, 3
  %v510 = vrot.slane %v446, 3
  %v543 = vadd.f32 %v379, %v479
  %v544 = vadd.f32 %v380, %v480
  %v545 = vadd.f32 %v381, %v481
  %v546 = vadd.f32 %v382, %v482
  %v547 = vadd.f32 %v383, %v483
  %v548 = vadd.f32 %v384, %v484
  %v549 = vadd.f32 %v385, %v485
  %v550 = vadd.f32 %v386, %v486
  %v551 = vadd.f32 %v387, %v487
  %v552 = vadd.f32 %v388, %v488
  %v553 = vadd.f32 %v389, %v489
  %v554 = vadd.f32 %v390, %v490
  %v555 = vadd.f32 %v391, %v491
  %v556 = vadd.f32 %v392, %v492
  %v557 = vadd.f32 %v393, %v493
  %v558 = vadd.f32 %v394, %v494
  %v559 = vadd.f32 %v395, %v495
  %v560 = vadd.f32 %v396, %v496
  %v561 = vadd.f32 %v397, %v497
  %v562 = vadd.f32 %v398, %v498
  %v563 = vadd.f32 %v399, %v499
  %v564 = vadd.f32 %v400, %v500
  %v565 = vadd.f32 %v401, %v501
  %v566 = vadd.f32 %v402, %v502
  %v567 = vadd.f32 %v403, %v503
  %v568 = vadd.f32 %v404, %v504
  %v569 = vadd.f32 %v405, %v505
  %v570 = vadd.f32 %v406, %v506
  %v571 = vadd.f32 %v407, %v507
  %v572 = vadd.f32 %v408, %v508
  %v573 = vadd.f32 %v409, %v509
  %v574 = vadd.f32 %v410, %v510
  %v575 = vld [vmem:[%s2] sm:$0x1]
  %v577 = vlaneseq
  %v578 = vshrl.u32 %v577, 7
  %v579 = vsub.s32 0, %v578
  %v580 = vrot.slane %v575, %v579
  %v582 = vadd.f32 %v543, %v580
  %v583 = vadd.f32 %v544, %v580
  %v584 = vadd.f32 %v545, %v580
  %v585 = vadd.f32 %v546, %v580
  %v586 = vadd.f32 %v547, %v580
  %v587 = vadd.f32 %v548, %v580
  %v588 = vadd.f32 %v549, %v580
  %v589 = vadd.f32 %v550, %v580
  %v590 = vadd.f32 %v551, %v580
  %v591 = vadd.f32 %v552, %v580
  %v592 = vadd.f32 %v553, %v580
  %v593 = vadd.f32 %v554, %v580
  %v594 = vadd.f32 %v555, %v580
  %v595 = vadd.f32 %v556, %v580
  %v596 = vadd.f32 %v557, %v580
  %v597 = vadd.f32 %v558, %v580
  %v598 = vadd.f32 %v559, %v580
  %v599 = vadd.f32 %v560, %v580
  %v600 = vadd.f32 %v561, %v580
  %v601 = vadd.f32 %v562, %v580
  %v602 = vadd.f32 %v563, %v580
  %v603 = vadd.f32 %v564, %v580
  %v604 = vadd.f32 %v565, %v580
  %v605 = vadd.f32 %v566, %v580
  %v606 = vadd.f32 %v567, %v580
  %v607 = vadd.f32 %v568, %v580
  %v608 = vadd.f32 %v569, %v580
  %v609 = vadd.f32 %v570, %v580
  %v610 = vadd.f32 %v571, %v580
  %v611 = vadd.f32 %v572, %v580
  %v612 = vadd.f32 %v573, %v580
  %v613 = vadd.f32 %v574, %v580
  %v646 = vrot.slane %v583, 7
  %vm647 = vcmask 1041409
  %v648 = vsel %vm647, %v646, %v582
  %v649 = vrot.slane %v584, 6
  %vm650 = vcmask 1042434
  %v651 = vsel %vm650, %v649, %v648
  %v652 = vrot.slane %v585, 5
  %vm653 = vcmask 1043459
  %v654 = vsel %vm653, %v652, %v651
  %v655 = vrot.slane %v586, 4
  %vm656 = vcmask 1044484
  %v657 = vsel %vm656, %v655, %v654
  %v658 = vrot.slane %v587, 3
  %vm659 = vcmask 1045509
  %v660 = vsel %vm659, %v658, %v657
  %v661 = vrot.slane %v588, 2
  %vm662 = vcmask 1046534
  %v663 = vsel %vm662, %v661, %v660
  %v664 = vrot.slane %v589, 1
  %vm665 = vcmask 1047559
  %v666 = vsel %vm665, %v664, %v663
  %v667 = vrot.slane %v591, 7
  %v668 = vsel %vm647, %v667, %v590
  %v669 = vrot.slane %v592, 6
  %v670 = vsel %vm650, %v669, %v668
  %v671 = vrot.slane %v593, 5
  %v672 = vsel %vm653, %v671, %v670
  %v673 = vrot.slane %v594, 4
  %v674 = vsel %vm656, %v673, %v672
  %v675 = vrot.slane %v595, 3
  %v676 = vsel %vm659, %v675, %v674
  %v677 = vrot.slane %v596, 2
  %v678 = vsel %vm662, %v677, %v676
  %v679 = vrot.slane %v597, 1
  %v680 = vsel %vm665, %v679, %v678
  %v681 = vrot.slane %v599, 7
  %v682 = vsel %vm647, %v681, %v598
  %v683 = vrot.slane %v600, 6
  %v684 = vsel %vm650, %v683, %v682
  %v685 = vrot.slane %v601, 5
  %v686 = vsel %vm653, %v685, %v684
  %v687 = vrot.slane %v602, 4
  %v688 = vsel %vm656, %v687, %v686
  %v689 = vrot.slane %v603, 3
  %v690 = vsel %vm659, %v689, %v688
  %v691 = vrot.slane %v604, 2
  %v692 = vsel %vm662, %v691, %v690
  %v693 = vrot.slane %v605, 1
  %v694 = vsel %vm665, %v693, %v692
  %v695 = vrot.slane %v607, 7
  %v696 = vsel %vm647, %v695, %v606
  %v697 = vrot.slane %v608, 6
  %v698 = vsel %vm650, %v697, %v696
  %v699 = vrot.slane %v609, 5
  %v700 = vsel %vm653, %v699, %v698
  %v701 = vrot.slane %v610, 4
  %v702 = vsel %vm656, %v701, %v700
  %v703 = vrot.slane %v611, 3
  %v704 = vsel %vm659, %v703, %v702
  %v705 = vrot.slane %v612, 2
  %v706 = vsel %vm662, %v705, %v704
  %v707 = vrot.slane %v613, 1
  %v708 = vsel %vm665, %v707, %v706
  %vm713 = vcmask 130048
  %714 = vst.msk [vmem:[%s3] sm:$0xff] %vm713, %v666
  %715 = vst.msk [vmem:[%s3 + $0x8] sm:$0xff] %vm713, %v680
  %716 = vst.msk [vmem:[%s3 + $0x10] sm:$0xff] %vm713, %v694
  %717 = vst.msk [vmem:[%s3 + $0x18] sm:$0xff] %vm713, %v708
  // Predicated region
  $region14: #{_lambda_.70} parent=0 // pred_check
    _
  $region15: #{_lambda_.70} parent=0 // pred_check_branch
    %719 = sbr.rel (0) target = $region17
  $region16: #{_lambda_.70} parent=0 // pred_region
    _
  $region17: #{_lambda_.70} parent=0 // pred_fallthru
    _
  // Predicated region
  $region18: #{_lambda_.70} parent=0 // pred_check
    _
  $region19: #{_lambda_.70} parent=0 // pred_check_branch
    %721 = sbr.rel (0) target = $region21
  $region20: #{_lambda_.70} parent=0 // pred_region
    _
  $region21: #{_lambda_.70} parent=0 // pred_fallthru
    _

// kernel: _lambda_.73
$region0: #{_lambda_.73}
  #allocation0 [shape = 'u32[]', space=smem, size = 0x4, offset = 0x4, fixed_abs, tag = 'smem constant byte address 0x4 - core index']
  #allocation1 [shape = 'u32[144,128]{1,0:T(1,128)}', space=vmem, size = 0x12000, scoped, tag = 'internal scratch']
  %s0 = inlined_call_operand.vmem [shape: f32[32,16], index: 0, kind: input, shape index: {}]
  %s1 = inlined_call_operand.vmem [shape: f32[16,64], index: 1, kind: input, shape index: {}]
  %s2 = inlined_call_operand.vmem [shape: f32[1,64], index: 2, kind: input, shape index: {}]
  %s3 = inlined_call_operand.vmem [shape: f32[32,64], index: 3, kind: output, shape index: {}]
  %s4 = sld [smem:[#allocation0]]
  $region22: #{_lambda_.73} parent=0
    _
  %s6 = ssub.s32 1, %s4
  %s7 = scalar_select 0, %s6, %s4
  // Predicated region
  $region2: #{_lambda_.73} parent=0 // pred_check
    _
  $region3: #{_lambda_.73} parent=0 // pred_check_branch
    %9 = sbr.rel (0) target = $region5
  $region4: #{_lambda_.73} parent=0 // pred_region
    _
  $region5: #{_lambda_.73} parent=0 // pred_fallthru
    _
  // Predicated region
  $region6: #{_lambda_.73} parent=0 // pred_check
    _
  $region7: #{_lambda_.73} parent=0 // pred_check_branch
    %11 = sbr.rel (0) target = $region9
  $region8: #{_lambda_.73} parent=0 // pred_region
    _
  $region9: #{_lambda_.73} parent=0 // pred_fallthru
    _
  // Predicated region
  $region10: #{_lambda_.73} parent=0 // pred_check
    _
  $region11: #{_lambda_.73} parent=0 // pred_check_branch
    %13 = sbr.rel (0) target = $region13
  $region12: #{_lambda_.73} parent=0 // pred_region
    _
  $region13: #{_lambda_.73} parent=0 // pred_fallthru
    _
  %v15 = vld [vmem:[%s0] sm:$0xff]
  %v16 = vld [vmem:[%s0 + $0x8] sm:$0xff]
  %v17 = vld [vmem:[%s0 + $0x10] sm:$0xff]
  %v18 = vld [vmem:[%s0 + $0x18] sm:$0xff]
  %v19 = vld [vmem:[%s1] sm:$0xff]
  %v20 = vld [vmem:[%s1 + $0x8] sm:$0xff]
  %v21 = vpack.c.bf16 %v16, %v15
  %v22 = vpack.c.bf16 %v18, %v17
  %v23 = vpack.c.bf16 %v20, %v19
  %v24 = vld [vmem:[%s2] sm:$0x1]
  %v26 = vlaneseq
  %v27 = vshrl.u32 %v26, 7
  %v28 = vsub.s32 0, %v27
  %v29 = vrot.slane %v24, %v28
  %vm31 = vcmask 130048
  %v33 = vsel %vm31, %v21, 0
  %v36 = vsel %vm31, %v22, 0
  %38 = vmatprep.subr.bf16.mxu0 0
  %39 = vmatpush1.bf16.msra.mxu0 0
  %40 = vmatprep.subr.bf16.mxu0 0
  %41 = vmatpush1.bf16.msra.mxu0 0
  %42 = vmatprep.subr.bf16.mxu0 0
  %43 = vmatpush1.bf16.msra.mxu0 0
  %44 = vmatprep.subr.bf16.mxu0 0
  %45 = vmatpush1.bf16.msra.mxu0 0
  %46 = vmatprep.subr.bf16.mxu0 0
  %47 = vmatpush1.bf16.msra.mxu0 0
  %48 = vmatprep.subr.bf16.mxu0 0
  %49 = vmatpush1.bf16.msra.mxu0 0
  %50 = vmatprep.subr.bf16.mxu0 0
  %51 = vmatpush1.bf16.msra.mxu0 0
  %52 = vmatprep.subr.bf16.mxu0 0
  %53 = vmatpush1.bf16.msra.mxu0 %v23
  %54 = vmatprep.subr.bf16.mxu0 0
  %55 = vmatpush2.bf16.msra.mxu0 0
  %56 = vmatprep.subr.bf16.mxu0 0
  %57 = vmatpush2.bf16.msra.mxu0 0
  %58 = vmatprep.subr.bf16.mxu0 0
  %59 = vmatpush2.bf16.msra.mxu0 0
  %60 = vmatprep.subr.bf16.mxu0 0
  %61 = vmatpush2.bf16.msra.mxu0 0
  %62 = vmatprep.subr.bf16.mxu0 0
  %63 = vmatpush2.bf16.msra.mxu0 0
  %64 = vmatprep.subr.bf16.mxu0 0
  %65 = vmatpush2.bf16.msra.mxu0 0
  %66 = vmatprep.subr.bf16.mxu0 0
  %67 = vmatpush2.bf16.msra.mxu0 0
  %68 = vmatprep.subr.bf16.mxu0 0
  %69 = vmatpush2.bf16.msra.mxu0 0
  %70 = vmatprep.mubr.bf16.mxu0 0
  %71 = vmatmul.mubr.bf16.gmra.mxu0 %v33
  %v72 = vpop.f32.mrf.mxu0
  %v73 = vadd.f32 %v29, %v72
  %v74 = vpop.f32.mrf.mxu0
  %v75 = vpop.f32.mrf.mxu0
  %v76 = vadd.f32 %v29, %v75
  %v77 = vpop.f32.mrf.mxu0
  %78 = vmatprep.mubr.bf16.mxu0 0
  %79 = vmatmul.mubr.bf16.gmra.mxu0 %v36
  %v80 = vpop.f32.mrf.mxu0
  %v81 = vadd.f32 %v29, %v80
  %v82 = vpop.f32.mrf.mxu0
  %v83 = vpop.f32.mrf.mxu0
  %v84 = vadd.f32 %v29, %v83
  %v85 = vpop.f32.mrf.mxu0
  %86 = vdwg.mxu0
  %vm87 = vcmask 523264
  %88 = vst.msk [vmem:[%s3] sm:$0xff] %vm87, %v73
  %89 = vst.msk [vmem:[%s3 + $0x8] sm:$0xff] %vm87, %v76
  %90 = vst.msk [vmem:[%s3 + $0x10] sm:$0xff] %vm87, %v81
  %91 = vst.msk [vmem:[%s3 + $0x18] sm:$0xff] %vm87, %v84
  // Predicated region
  $region14: #{_lambda_.73} parent=0 // pred_check
    _
  $region15: #{_lambda_.73} parent=0 // pred_check_branch
    %93 = sbr.rel (0) target = $region17
  $region16: #{_lambda_.73} parent=0 // pred_region
    _
  $region17: #{_lambda_.73} parent=0 // pred_fallthru
    _
  // Predicated region
  $region18: #{_lambda_.73} parent=0 // pred_check
    _
  $region19: #{_lambda_.73} parent=0 // pred_check_branch
    %95 = sbr.rel (0) target = $region21
  $region20: #{_lambda_.73} parent=0 // pred_region
    _
  $region21: #{_lambda_.73} parent=0 // pred_fallthru
    _

// kernel: _lambda_.97
$region0: #{_lambda_.97}
  #allocation0 [shape = 'u32[]', space=smem, size = 0x4, offset = 0x4, fixed_abs, tag = 'smem constant byte address 0x4 - core index']
  #allocation1 [shape = 'u32[144,128]{1,0:T(1,128)}', space=vmem, size = 0x12000, scoped, tag = 'internal scratch']
  #allocation2 [shape = 'f32[1,1]{1,0:T(1,128)S(1)}', space=vmem, size = 0x200, scoped, tag = 'scoped memory for _lambda_.97']
  %s0 = inlined_call_operand.vmem [shape: f32[128,16], index: 0, kind: input, shape index: {}]
  %s1 = inlined_call_operand.<no memory space> [shape: f32[1,1], index: 1, kind: input, shape index: {}]
  %s2 = inlined_call_operand.vmem [shape: f32[16,32], index: 2, kind: input, shape index: {}]
  %s3 = inlined_call_operand.vmem [shape: f32[1,32], index: 3, kind: input, shape index: {}]
  %s4 = inlined_call_operand.vmem [shape: f32[128,32], index: 4, kind: output, shape index: {}]
  %s5 = sld [smem:[#allocation0]]
  $region26: #{_lambda_.97} parent=0
    _
  %s7 = ssub.s32 1, %s5
  %s8 = scalar_select 0, %s7, %s5
  %v9 = vstv %s1
  %10 = vst [vmem:[#allocation2] sm:$0x1] %v9
  // Predicated region
  $region2: #{_lambda_.97} parent=0 // pred_check
    _
  $region3: #{_lambda_.97} parent=0 // pred_check_branch
    %12 = sbr.rel (0) target = $region5
  $region4: #{_lambda_.97} parent=0 // pred_region
    _
  $region5: #{_lambda_.97} parent=0 // pred_fallthru
    _
  // Predicated region
  $region6: #{_lambda_.97} parent=0 // pred_check
    _
  $region7: #{_lambda_.97} parent=0 // pred_check_branch
    %14 = sbr.rel (0) target = $region9
  $region8: #{_lambda_.97} parent=0 // pred_region
    _
  $region9: #{_lambda_.97} parent=0 // pred_fallthru
    _
  // Predicated region
  $region10: #{_lambda_.97} parent=0 // pred_check
    _
  $region11: #{_lambda_.97} parent=0 // pred_check_branch
    %16 = sbr.rel (0) target = $region13
  $region12: #{_lambda_.97} parent=0 // pred_region
    _
  $region13: #{_lambda_.97} parent=0 // pred_fallthru
    _
  // Predicated region
  $region14: #{_lambda_.97} parent=0 // pred_check
    _
  $region15: #{_lambda_.97} parent=0 // pred_check_branch
    %18 = sbr.rel (0) target = $region17
  $region16: #{_lambda_.97} parent=0 // pred_region
    _
  $region17: #{_lambda_.97} parent=0 // pred_fallthru
    _
  %v20 = vld [vmem:[%s0] sm:$0xff]
  %v21 = vld [vmem:[%s0 + $0x8] sm:$0xff]
  %v22 = vld [vmem:[%s0 + $0x10] sm:$0xff]
  %v23 = vld [vmem:[%s0 + $0x18] sm:$0xff]
  %v24 = vld [vmem:[%s0 + $0x20] sm:$0xff]
  %v25 = vld [vmem:[%s0 + $0x28] sm:$0xff]
  %v26 = vld [vmem:[%s0 + $0x30] sm:$0xff]
  %v27 = vld [vmem:[%s0 + $0x38] sm:$0xff]
  %v28 = vld [vmem:[%s0 + $0x40] sm:$0xff]
  %v29 = vld [vmem:[%s0 + $0x48] sm:$0xff]
  %v30 = vld [vmem:[%s0 + $0x50] sm:$0xff]
  %v31 = vld [vmem:[%s0 + $0x58] sm:$0xff]
  %v32 = vld [vmem:[%s0 + $0x60] sm:$0xff]
  %v33 = vld [vmem:[%s0 + $0x68] sm:$0xff]
  %v34 = vld [vmem:[%s0 + $0x70] sm:$0xff]
  %v35 = vld [vmem:[%s0 + $0x78] sm:$0xff]
  %vm36 = vcmp.gt.f32.partialorder %v20, 0.0
  %vm37 = vcmp.gt.f32.partialorder %v21, 0.0
  %vm38 = vcmp.gt.f32.partialorder %v22, 0.0
  %vm39 = vcmp.gt.f32.partialorder %v23, 0.0
  %vm40 = vcmp.gt.f32.partialorder %v24, 0.0
  %vm41 = vcmp.gt.f32.partialorder %v25, 0.0
  %vm42 = vcmp.gt.f32.partialorder %v26, 0.0
  %vm43 = vcmp.gt.f32.partialorder %v27, 0.0
  %vm44 = vcmp.gt.f32.partialorder %v28, 0.0
  %vm45 = vcmp.gt.f32.partialorder %v29, 0.0
  %vm46 = vcmp.gt.f32.partialorder %v30, 0.0
  %vm47 = vcmp.gt.f32.partialorder %v31, 0.0
  %vm48 = vcmp.gt.f32.partialorder %v32, 0.0
  %vm49 = vcmp.gt.f32.partialorder %v33, 0.0
  %vm50 = vcmp.gt.f32.partialorder %v34, 0.0
  %vm51 = vcmp.gt.f32.partialorder %v35, 0.0
  %v52 = vld [vmem:[#allocation2] sm:$0x1]
  %v54 = vlaneseq
  %v55 = vshrl.u32 %v54, 7
  %v56 = vsub.s32 0, %v55
  %v57 = vrot.slane %v52, %v56
  %58 = vset.pattern.permute.xlu0 0
  %59 = vperm.xlu0 %58, %v57
  %v60 = vpop.permute.xlu0 %59
  %v62 = vmul.f32 %v60, %v20
  %v63 = vmul.f32 %v60, %v21
  %v64 = vmul.f32 %v60, %v22
  %v65 = vmul.f32 %v60, %v23
  %v66 = vmul.f32 %v60, %v24
  %v67 = vmul.f32 %v60, %v25
  %v68 = vmul.f32 %v60, %v26
  %v69 = vmul.f32 %v60, %v27
  %v70 = vmul.f32 %v60, %v28
  %v71 = vmul.f32 %v60, %v29
  %v72 = vmul.f32 %v60, %v30
  %v73 = vmul.f32 %v60, %v31
  %v74 = vmul.f32 %v60, %v32
  %v75 = vmul.f32 %v60, %v33
  %v76 = vmul.f32 %v60, %v34
  %v77 = vmul.f32 %v60, %v35
  %v78 = vsel %vm36, %v20, %v62
  %v79 = vsel %vm37, %v21, %v63
  %v80 = vsel %vm38, %v22, %v64
  %v81 = vsel %vm39, %v23, %v65
  %v82 = vsel %vm40, %v24, %v66
  %v83 = vsel %vm41, %v25, %v67
  %v84 = vsel %vm42, %v26, %v68
  %v85 = vsel %vm43, %v27, %v69
  %v86 = vsel %vm44, %v28, %v70
  %v87 = vsel %vm45, %v29, %v71
  %v88 = vsel %vm46, %v30, %v72
  %v89 = vsel %vm47, %v31, %v73
  %v90 = vsel %vm48, %v32, %v74
  %v91 = vsel %vm49, %v33, %v75
  %v92 = vsel %vm50, %v34, %v76
  %v93 = vsel %vm51, %v35, %v77
  %v94 = vld [vmem:[%s2] sm:$0xff]
  %v95 = vld [vmem:[%s2 + $0x8] sm:$0xff]
  %v96 = vpack.c.bf16 %v79, %v78
  %v97 = vpack.c.bf16 %v81, %v80
  %v98 = vpack.c.bf16 %v83, %v82
  %v99 = vpack.c.bf16 %v85, %v84
  %v100 = vpack.c.bf16 %v87, %v86
  %v101 = vpack.c.bf16 %v89, %v88
  %v102 = vpack.c.bf16 %v91, %v90
  %v103 = vpack.c.bf16 %v93, %v92
  %v104 = vpack.c.bf16 %v95, %v94
  %v105 = vld [vmem:[%s3] sm:$0x1]
  %v107 = vlaneseq
  %v108 = vshrl.u32 %v107, 7
  %v109 = vsub.s32 0, %v108
  %v110 = vrot.slane %v105, %v109
  %vm112 = vcmask 130048
  %v114 = vsel %vm112, %v96, 0
  %v117 = vsel %vm112, %v97, 0
  %v120 = vsel %vm112, %v98, 0
  %v123 = vsel %vm112, %v99, 0
  %v126 = vsel %vm112, %v100, 0
  %v129 = vsel %vm112, %v101, 0
  %v132 = vsel %vm112, %v102, 0
  %v135 = vsel %vm112, %v103, 0
  %137 = vmatprep.subr.bf16.mxu0 0
  %138 = vmatpush1.bf16.msra.mxu0 0
  %139 = vmatprep.subr.bf16.mxu0 0
  %140 = vmatpush1.bf16.msra.mxu0 0
  %141 = vmatprep.subr.bf16.mxu0 0
  %142 = vmatpush1.bf16.msra.mxu0 0
  %143 = vmatprep.subr.bf16.mxu0 0
  %144 = vmatpush1.bf16.msra.mxu0 0
  %145 = vmatprep.subr.bf16.mxu0 0
  %146 = vmatpush1.bf16.msra.mxu0 0
  %147 = vmatprep.subr.bf16.mxu0 0
  %148 = vmatpush1.bf16.msra.mxu0 0
  %149 = vmatprep.subr.bf16.mxu0 0
  %150 = vmatpush1.bf16.msra.mxu0 0
  %151 = vmatprep.subr.bf16.mxu0 0
  %152 = vmatpush1.bf16.msra.mxu0 %v104
  %153 = vmatprep.subr.bf16.mxu0 0
  %154 = vmatpush2.bf16.msra.mxu0 0
  %155 = vmatprep.subr.bf16.mxu0 0
  %156 = vmatpush2.bf16.msra.mxu0 0
  %157 = vmatprep.subr.bf16.mxu0 0
  %158 = vmatpush2.bf16.msra.mxu0 0
  %159 = vmatprep.subr.bf16.mxu0 0
  %160 = vmatpush2.bf16.msra.mxu0 0
  %161 = vmatprep.subr.bf16.mxu0 0
  %162 = vmatpush2.bf16.msra.mxu0 0
  %163 = vmatprep.subr.bf16.mxu0 0
  %164 = vmatpush2.bf16.msra.mxu0 0
  %165 = vmatprep.subr.bf16.mxu0 0
  %166 = vmatpush2.bf16.msra.mxu0 0
  %167 = vmatprep.subr.bf16.mxu0 0
  %168 = vmatpush2.bf16.msra.mxu0 0
  %169 = vmatprep.mubr.bf16.mxu0 0
  %170 = vmatmul.mubr.bf16.gmra.mxu0 %v114
  %v171 = vpop.f32.mrf.mxu0
  %v172 = vadd.f32 %v110, %v171
  %v173 = vpop.f32.mrf.mxu0
  %v174 = vpop.f32.mrf.mxu0
  %v175 = vadd.f32 %v110, %v174
  %v176 = vpop.f32.mrf.mxu0
  %177 = vmatprep.mubr.bf16.mxu0 0
  %178 = vmatmul.mubr.bf16.gmra.mxu0 %v117
  %v179 = vpop.f32.mrf.mxu0
  %v180 = vadd.f32 %v110, %v179
  %v181 = vpop.f32.mrf.mxu0
  %v182 = vpop.f32.mrf.mxu0
  %v183 = vadd.f32 %v110, %v182
  %v184 = vpop.f32.mrf.mxu0
  %185 = vmatprep.mubr.bf16.mxu0 0
  %186 = vmatmul.mubr.bf16.gmra.mxu0 %v120
  %v187 = vpop.f32.mrf.mxu0
  %v188 = vadd.f32 %v110, %v187
  %v189 = vpop.f32.mrf.mxu0
  %v190 = vpop.f32.mrf.mxu0
  %v191 = vadd.f32 %v110, %v190
  %v192 = vpop.f32.mrf.mxu0
  %193 = vmatprep.mubr.bf16.mxu0 0
  %194 = vmatmul.mubr.bf16.gmra.mxu0 %v123
  %v195 = vpop.f32.mrf.mxu0
  %v196 = vadd.f32 %v110, %v195
  %v197 = vpop.f32.mrf.mxu0
  %v198 = vpop.f32.mrf.mxu0
  %v199 = vadd.f32 %v110, %v198
  %v200 = vpop.f32.mrf.mxu0
  %201 = vmatprep.mubr.bf16.mxu0 0
  %202 = vmatmul.mubr.bf16.gmra.mxu0 %v126
  %v203 = vpop.f32.mrf.mxu0
  %v204 = vadd.f32 %v110, %v203
  %v205 = vpop.f32.mrf.mxu0
  %v206 = vpop.f32.mrf.mxu0
  %v207 = vadd.f32 %v110, %v206
  %v208 = vpop.f32.mrf.mxu0
  %209 = vmatprep.mubr.bf16.mxu0 0
  %210 = vmatmul.mubr.bf16.gmra.mxu0 %v129
  %v211 = vpop.f32.mrf.mxu0
  %v212 = vadd.f32 %v110, %v211
  %v213 = vpop.f32.mrf.mxu0
  %v214 = vpop.f32.mrf.mxu0
  %v215 = vadd.f32 %v110, %v214
  %v216 = vpop.f32.mrf.mxu0
  %217 = vmatprep.mubr.bf16.mxu0 0
  %218 = vmatmul.mubr.bf16.gmra.mxu0 %v132
  %v219 = vpop.f32.mrf.mxu0
  %v220 = vadd.f32 %v110, %v219
  %v221 = vpop.f32.mrf.mxu0
  %v222 = vpop.f32.mrf.mxu0
  %v223 = vadd.f32 %v110, %v222
  %v224 = vpop.f32.mrf.mxu0
  %225 = vmatprep.mubr.bf16.mxu0 0
  %226 = vmatmul.mubr.bf16.gmra.mxu0 %v135
  %v227 = vpop.f32.mrf.mxu0
  %v228 = vadd.f32 %v110, %v227
  %v229 = vpop.f32.mrf.mxu0
  %v230 = vpop.f32.mrf.mxu0
  %v231 = vadd.f32 %v110, %v230
  %v232 = vpop.f32.mrf.mxu0
  %233 = vdwg.mxu0
  %vm234 = vcmask 261120
  %235 = vst.msk [vmem:[%s4] sm:$0xff] %vm234, %v172
  %236 = vst.msk [vmem:[%s4 + $0x8] sm:$0xff] %vm234, %v175
  %237 = vst.msk [vmem:[%s4 + $0x10] sm:$0xff] %vm234, %v180
  %238 = vst.msk [vmem:[%s4 + $0x18] sm:$0xff] %vm234, %v183
  %239 = vst.msk [vmem:[%s4 + $0x20] sm:$0xff] %vm234, %v188
  %240 = vst.msk [vmem:[%s4 + $0x28] sm:$0xff] %vm234, %v191
  %241 = vst.msk [vmem:[%s4 + $0x30] sm:$0xff] %vm234, %v196
  %242 = vst.msk [vmem:[%s4 + $0x38] sm:$0xff] %vm234, %v199
  %243 = vst.msk [vmem:[%s4 + $0x40] sm:$0xff] %vm234, %v204
  %244 = vst.msk [vmem:[%s4 + $0x48] sm:$0xff] %vm234, %v207
  %245 = vst.msk [vmem:[%s4 + $0x50] sm:$0xff] %vm234, %v212
  %246 = vst.msk [vmem:[%s4 + $0x58] sm:$0xff] %vm234, %v215
  %247 = vst.msk [vmem:[%s4 + $0x60] sm:$0xff] %vm234, %v220
  %248 = vst.msk [vmem:[%s4 + $0x68] sm:$0xff] %vm234, %v223
  %249 = vst.msk [vmem:[%s4 + $0x70] sm:$0xff] %vm234, %v228
  %250 = vst.msk [vmem:[%s4 + $0x78] sm:$0xff] %vm234, %v231
  // Predicated region
  $region18: #{_lambda_.97} parent=0 // pred_check
    _
  $region19: #{_lambda_.97} parent=0 // pred_check_branch
    %252 = sbr.rel (0) target = $region21
  $region20: #{_lambda_.97} parent=0 // pred_region
    _
  $region21: #{_lambda_.97} parent=0 // pred_fallthru
    _
  // Predicated region
  $region22: #{_lambda_.97} parent=0 // pred_check
    _
  $region23: #{_lambda_.97} parent=0 // pred_check_branch
    %254 = sbr.rel (0) target = $region25
  $region24: #{_lambda_.97} parent=0 // pred_region
    _
  $region25: #{_lambda_.97} parent=0 // pred_fallthru
    _

// kernel: _lambda_.71
$region0: #{_lambda_.71}
  #allocation0 [shape = 'u32[]', space=smem, size = 0x4, offset = 0x4, fixed_abs, tag = 'smem constant byte address 0x4 - core index']
  #allocation1 [shape = 'u32[144,128]{1,0:T(1,128)}', space=vmem, size = 0x12000, scoped, tag = 'internal scratch']
  %s0 = inlined_call_operand.vmem [shape: f32[2,8,2,16], index: 0, kind: input, shape index: {}]
  %s1 = inlined_call_operand.vmem [shape: f32[2,8,2,16], index: 1, kind: input, shape index: {}]
  %s2 = inlined_call_operand.vmem [shape: f32[2,16,48], index: 2, kind: input, shape index: {}]
  %s3 = inlined_call_operand.vmem [shape: f32[2,1,48], index: 3, kind: input, shape index: {}]
  %s4 = inlined_call_operand.vmem [shape: f32[2,16,16], index: 4, kind: input, shape index: {}]
  %s5 = inlined_call_operand.vmem [shape: f32[2,1,16], index: 5, kind: input, shape index: {}]
  %s6 = inlined_call_operand.vmem [shape: f32[2,1,16], index: 6, kind: input, shape index: {}]
  %s7 = inlined_call_operand.vmem [shape: f32[2,1,16], index: 7, kind: input, shape index: {}]
  %s8 = inlined_call_operand.vmem [shape: f32[2,8,2,16], index: 8, kind: output, shape index: {0}]
  %s9 = inlined_call_operand.vmem [shape: f32[2,8,2,16], index: 9, kind: output, shape index: {1}]
  %10 = xla_tuple %s8, %s9
  %s11 = sld [smem:[#allocation0]]
  $region73: #{_lambda_.71} parent=0
    _
  %s13 = ssub.s32 1, %s11
  %s14 = scalar_select 0, %s13, %s11
  loop: start=0, step=1, limit=18
  $region2: #{_lambda_.71} parent=0 // loop_pre_header
    _
  $region3: #{_lambda_.71} parent=0 // loop_header
    %s16 = sphi 0, %s20
    %p17 = scmp.ge.s32.totalorder %s16, 18
    %s23 = sphi 0, %s35
    %s24 = sphi 0, %s31
    %s25 = sphi 0, %s23
    %s26 = sphi 0, %s24
    %s27 = sphi 0, %s25
    %s28 = sphi 0, %s26
    %s40 = sphi 0, %s42
    %s43 = sphi 0, %s40
    %s44 = sphi 0, %s43
    %s60 = sphi 0, %s44
    %s68 = sphi 0, %s70
    %s71 = sphi 0, %s68
    %s72 = sphi 0, %s71
    %s88 = sphi 0, %s72
    %s92 = sphi 0, %s92
    %s94 = sphi 0, %s92
    %s95 = sphi 0, %s94
    %s109 = sphi 0, %s95
    %s113 = sphi 0, %s113
    %s115 = sphi 0, %s113
    %s116 = sphi 0, %s115
    %s130 = sphi 0, %s116
    %s134 = sphi 0, %s134
    %s136 = sphi 0, %s134
    %s137 = sphi 0, %s136
    %s151 = sphi 0, %s137
    %s155 = sphi 0, %s155
    %s157 = sphi 0, %s155
    %s158 = sphi 0, %s157
    %s172 = sphi 0, %s158
    %s176 = sphi 0, %s176
    %s178 = sphi 0, %s176
    %s179 = sphi 0, %s178
    %s193 = sphi 0, %s179
    %s197 = sphi 0, %s197
    %s199 = sphi 0, %s197
    %s200 = sphi 0, %s199
    %s214 = sphi 0, %s200
    %s222 = sphi 0, %s224
    %s225 = sphi 0, %s222
    %s226 = sphi 0, %s225
    %s242 = sphi 0, %s226
    %s250 = sphi 0, %s252
    %s253 = sphi 0, %s250
    %s254 = sphi 0, %s253
    %s270 = sphi 0, %s254
  $region4: #{_lambda_.71} parent=0 // loop_header_branch
    %19 = sbr.rel (%p17) target = $region8
  $region5: #{_lambda_.71} parent=0 // loop_body
    %s21 = ssub.s32 %s16, 1
    %s22 = ssub.s32 %s16, 2
    %s29 = sadd.s32 1, %s24
    %p30 = scmp.ge.s32.totalorder %s29, 8
    %s31 = scalar_select %p30, 0, %s29
    %s32 = sadd.s32 1, %s23
    %s33 = scalar_select %p30, %s32, %s23
    %p34 = scmp.ge.s32.totalorder %s33, 2
    %s35 = scalar_select %p34, 0, %s33
    %s36 = ssub.s32 %s23, %s35
    %s37 = ssub.s32 %s24, %s31
    %s38 = sor.u32 %s36, %s37
    %p39 = scmp.eq.s32.totalorder %s38, 0
    %s41 = sadd.s32 %s40, 1
    %s42 = scalar_select %p39, %s40, %s41
    %p45 = pneg %p39
    %p46 = scmp.eq.s32.totalorder %s16, 15
    %p47 = por %p45, %p46
    %p48 = scmp.ne.s32.totalorder %s40, %s43
    %p49 = scmp.eq.s32.totalorder %s16, 0
    %p50 = por %p48, %p49
    %p51 = scmp.ne.s32.totalorder %s40, %s43
    %p52 = scmp.eq.s32.totalorder %s21, 15
    %p53 = por %p51, %p52
    %p54 = scmp.ne.s32.totalorder %s43, %s44
    %p55 = scmp.eq.s32.totalorder %s21, 0
    %p56 = por %p54, %p55
    %p57 = scmp.ne.s32.totalorder %s43, %s44
    %p58 = scmp.eq.s32.totalorder %s22, 15
    %p59 = por %p57, %p58
    %p61 = scmp.ne.s32.totalorder %s44, %s60
    %p62 = scmp.eq.s32.totalorder %s22, 0
    %p63 = por %p61, %p62
    %s64 = ssub.s32 %s23, %s35
    %s65 = ssub.s32 %s24, %s31
    %s66 = sor.u32 %s64, %s65
    %p67 = scmp.eq.s32.totalorder %s66, 0
    %s69 = sadd.s32 %s68, 1
    %s70 = scalar_select %p67, %s68, %s69
    %p73 = pneg %p67
    %p74 = scmp.eq.s32.totalorder %s16, 15
    %p75 = por %p73, %p74
    %p76 = scmp.ne.s32.totalorder %s68, %s71
    %p77 = scmp.eq.s32.totalorder %s16, 0
    %p78 = por %p76, %p77
    %p79 = scmp.ne.s32.totalorder %s68, %s71
    %p80 = scmp.eq.s32.totalorder %s21, 15
    %p81 = por %p79, %p80
    %p82 = scmp.ne.s32.totalorder %s71, %s72
    %p83 = scmp.eq.s32.totalorder %s21, 0
    %p84 = por %p82, %p83
    %p85 = scmp.ne.s32.totalorder %s71, %s72
    %p86 = scmp.eq.s32.totalorder %s22, 15
    %p87 = por %p85, %p86
    %p89 = scmp.ne.s32.totalorder %s72, %s88
    %p90 = scmp.eq.s32.totalorder %s22, 0
    %p91 = por %p89, %p90
    %s93 = sadd.s32 %s92, 1
    %p96 = scmp.eq.s32.totalorder %s16, 15
    %p97 = scmp.ne.s32.totalorder %s92, %s94
    %p98 = scmp.eq.s32.totalorder %s16, 0
    %p99 = por %p97, %p98
    %p100 = scmp.ne.s32.totalorder %s92, %s94
    %p101 = scmp.eq.s32.totalorder %s21, 15
    %p102 = por %p100, %p101
    %p103 = scmp.ne.s32.totalorder %s94, %s95
    %p104 = scmp.eq.s32.totalorder %s21, 0
    %p105 = por %p103, %p104
    %p106 = scmp.ne.s32.totalorder %s94, %s95
    %p107 = scmp.eq.s32.totalorder %s22, 15
    %p108 = por %p106, %p107
    %p110 = scmp.ne.s32.totalorder %s95, %s109
    %p111 = scmp.eq.s32.totalorder %s22, 0
    %p112 = por %p110, %p111
    %s114 = sadd.s32 %s113, 1
    %p117 = scmp.eq.s32.totalorder %s16, 15
    %p118 = scmp.ne.s32.totalorder %s113, %s115
    %p119 = scmp.eq.s32.totalorder %s16, 0
    %p120 = por %p118, %p119
    %p121 = scmp.ne.s32.totalorder %s113, %s115
    %p122 = scmp.eq.s32.totalorder %s21, 15
    %p123 = por %p121, %p122
    %p124 = scmp.ne.s32.totalorder %s115, %s116
    %p125 = scmp.eq.s32.totalorder %s21, 0
    %p126 = por %p124, %p125
    %p127 = scmp.ne.s32.totalorder %s115, %s116
    %p128 = scmp.eq.s32.totalorder %s22, 15
    %p129 = por %p127, %p128
    %p131 = scmp.ne.s32.totalorder %s116, %s130
    %p132 = scmp.eq.s32.totalorder %s22, 0
    %p133 = por %p131, %p132
    %s135 = sadd.s32 %s134, 1
    %p138 = scmp.eq.s32.totalorder %s16, 15
    %p139 = scmp.ne.s32.totalorder %s134, %s136
    %p140 = scmp.eq.s32.totalorder %s16, 0
    %p141 = por %p139, %p140
    %p142 = scmp.ne.s32.totalorder %s134, %s136
    %p143 = scmp.eq.s32.totalorder %s21, 15
    %p144 = por %p142, %p143
    %p145 = scmp.ne.s32.totalorder %s136, %s137
    %p146 = scmp.eq.s32.totalorder %s21, 0
    %p147 = por %p145, %p146
    %p148 = scmp.ne.s32.totalorder %s136, %s137
    %p149 = scmp.eq.s32.totalorder %s22, 15
    %p150 = por %p148, %p149
    %p152 = scmp.ne.s32.totalorder %s137, %s151
    %p153 = scmp.eq.s32.totalorder %s22, 0
    %p154 = por %p152, %p153
    %s156 = sadd.s32 %s155, 1
    %p159 = scmp.eq.s32.totalorder %s16, 15
    %p160 = scmp.ne.s32.totalorder %s155, %s157
    %p161 = scmp.eq.s32.totalorder %s16, 0
    %p162 = por %p160, %p161
    %p163 = scmp.ne.s32.totalorder %s155, %s157
    %p164 = scmp.eq.s32.totalorder %s21, 15
    %p165 = por %p163, %p164
    %p166 = scmp.ne.s32.totalorder %s157, %s158
    %p167 = scmp.eq.s32.totalorder %s21, 0
    %p168 = por %p166, %p167
    %p169 = scmp.ne.s32.totalorder %s157, %s158
    %p170 = scmp.eq.s32.totalorder %s22, 15
    %p171 = por %p169, %p170
    %p173 = scmp.ne.s32.totalorder %s158, %s172
    %p174 = scmp.eq.s32.totalorder %s22, 0
    %p175 = por %p173, %p174
    %s177 = sadd.s32 %s176, 1
    %p180 = scmp.eq.s32.totalorder %s16, 15
    %p181 = scmp.ne.s32.totalorder %s176, %s178
    %p182 = scmp.eq.s32.totalorder %s16, 0
    %p183 = por %p181, %p182
    %p184 = scmp.ne.s32.totalorder %s176, %s178
    %p185 = scmp.eq.s32.totalorder %s21, 15
    %p186 = por %p184, %p185
    %p187 = scmp.ne.s32.totalorder %s178, %s179
    %p188 = scmp.eq.s32.totalorder %s21, 0
    %p189 = por %p187, %p188
    %p190 = scmp.ne.s32.totalorder %s178, %s179
    %p191 = scmp.eq.s32.totalorder %s22, 15
    %p192 = por %p190, %p191
    %p194 = scmp.ne.s32.totalorder %s179, %s193
    %p195 = scmp.eq.s32.totalorder %s22, 0
    %p196 = por %p194, %p195
    %s198 = sadd.s32 %s197, 1
    %p201 = scmp.eq.s32.totalorder %s16, 15
    %p202 = scmp.ne.s32.totalorder %s197, %s199
    %p203 = scmp.eq.s32.totalorder %s16, 0
    %p204 = por %p202, %p203
    %p205 = scmp.ne.s32.totalorder %s197, %s199
    %p206 = scmp.eq.s32.totalorder %s21, 15
    %p207 = por %p205, %p206
    %p208 = scmp.ne.s32.totalorder %s199, %s200
    %p209 = scmp.eq.s32.totalorder %s21, 0
    %p210 = por %p208, %p209
    %p211 = scmp.ne.s32.totalorder %s199, %s200
    %p212 = scmp.eq.s32.totalorder %s22, 15
    %p213 = por %p211, %p212
    %p215 = scmp.ne.s32.totalorder %s200, %s214
    %p216 = scmp.eq.s32.totalorder %s22, 0
    %p217 = por %p215, %p216
    %s218 = ssub.s32 %s23, %s35
    %s219 = ssub.s32 %s24, %s31
    %s220 = sor.u32 %s218, %s219
    %p221 = scmp.eq.s32.totalorder %s220, 0
    %s223 = sadd.s32 %s222, 1
    %s224 = scalar_select %p221, %s222, %s223
    %p227 = pneg %p221
    %p228 = scmp.eq.s32.totalorder %s16, 15
    %p229 = por %p227, %p228
    %p230 = scmp.ne.s32.totalorder %s222, %s225
    %p231 = scmp.eq.s32.totalorder %s16, 0
    %p232 = por %p230, %p231
    %p233 = scmp.ne.s32.totalorder %s222, %s225
    %p234 = scmp.eq.s32.totalorder %s21, 15
    %p235 = por %p233, %p234
    %p236 = scmp.ne.s32.totalorder %s225, %s226
    %p237 = scmp.eq.s32.totalorder %s21, 0
    %p238 = por %p236, %p237
    %p239 = scmp.ne.s32.totalorder %s225, %s226
    %p240 = scmp.eq.s32.totalorder %s22, 15
    %p241 = por %p239, %p240
    %p243 = scmp.ne.s32.totalorder %s226, %s242
    %p244 = scmp.eq.s32.totalorder %s22, 0
    %p245 = por %p243, %p244
    %s246 = ssub.s32 %s23, %s35
    %s247 = ssub.s32 %s24, %s31
    %s248 = sor.u32 %s246, %s247
    %p249 = scmp.eq.s32.totalorder %s248, 0
    %s251 = sadd.s32 %s250, 1
    %s252 = scalar_select %p249, %s250, %s251
    %p255 = pneg %p249
    %p256 = scmp.eq.s32.totalorder %s16, 15
    %p257 = por %p255, %p256
    %p258 = scmp.ne.s32.totalorder %s250, %s253
    %p259 = scmp.eq.s32.totalorder %s16, 0
    %p260 = por %p258, %p259
    %p261 = scmp.ne.s32.totalorder %s250, %s253
    %p262 = scmp.eq.s32.totalorder %s21, 15
    %p263 = por %p261, %p262
    %p264 = scmp.ne.s32.totalorder %s253, %s254
    %p265 = scmp.eq.s32.totalorder %s21, 0
    %p266 = por %p264, %p265
    %p267 = scmp.ne.s32.totalorder %s253, %s254
    %p268 = scmp.eq.s32.totalorder %s22, 15
    %p269 = por %p267, %p268
    %p271 = scmp.ne.s32.totalorder %s254, %s270
    %p272 = scmp.eq.s32.totalorder %s22, 0
    %p273 = por %p271, %p272
    %p274 = scmp.le.s32.totalorder 1, %s16
    %p275 = scmp.lt.s32.totalorder %s16, 17
    %p276 = pnand %p274, %p275
    %p277 = pneg %p276
    // Predicated region
    $region9: #{_lambda_.71} parent=5 // pred_check
      _
    $region10: #{_lambda_.71} parent=5 // pred_check_branch
      %279 = sbr.rel (%p276) target = $region12
    $region11: #{_lambda_.71} parent=5 // pred_region
      %s280 = ssub.s32 %s16, 1
      // Predicated region
      $region13: #{_lambda_.71} parent=11 // pred_check
        %p281 = pneg %p105
      $region14: #{_lambda_.71} parent=11 // pred_check_branch
        %283 = sbr.rel (%p281) target = $region16
      $region15: #{_lambda_.71} parent=11 // pred_region
        _
      $region16: #{_lambda_.71} parent=11 // pred_fallthru
        _
      // Predicated region
      $region17: #{_lambda_.71} parent=11 // pred_check
        %p284 = pneg %p126
      $region18: #{_lambda_.71} parent=11 // pred_check_branch
        %286 = sbr.rel (%p284) target = $region20
      $region19: #{_lambda_.71} parent=11 // pred_region
        _
      $region20: #{_lambda_.71} parent=11 // pred_fallthru
        _
      // Predicated region
      $region21: #{_lambda_.71} parent=11 // pred_check
        %p287 = pneg %p147
      $region22: #{_lambda_.71} parent=11 // pred_check_branch
        %289 = sbr.rel (%p287) target = $region24
      $region23: #{_lambda_.71} parent=11 // pred_region
        _
      $region24: #{_lambda_.71} parent=11 // pred_fallthru
        _
      // Predicated region
      $region25: #{_lambda_.71} parent=11 // pred_check
        %p290 = pneg %p168
      $region26: #{_lambda_.71} parent=11 // pred_check_branch
        %292 = sbr.rel (%p290) target = $region28
      $region27: #{_lambda_.71} parent=11 // pred_region
        _
      $region28: #{_lambda_.71} parent=11 // pred_fallthru
        _
      // Predicated region
      $region29: #{_lambda_.71} parent=11 // pred_check
        %p293 = pneg %p189
      $region30: #{_lambda_.71} parent=11 // pred_check_branch
        %295 = sbr.rel (%p293) target = $region32
      $region31: #{_lambda_.71} parent=11 // pred_region
        _
      $region32: #{_lambda_.71} parent=11 // pred_fallthru
        _
      // Predicated region
      $region33: #{_lambda_.71} parent=11 // pred_check
        %p296 = pneg %p210
      $region34: #{_lambda_.71} parent=11 // pred_check_branch
        %298 = sbr.rel (%p296) target = $region36
      $region35: #{_lambda_.71} parent=11 // pred_region
        _
      $region36: #{_lambda_.71} parent=11 // pred_fallthru
        _
    $region12: #{_lambda_.71} parent=5 // pred_fallthru
      _
    %p299 = scmp.lt.s32.totalorder %s16, 16
    // Predicated region
    $region37: #{_lambda_.71} parent=5 // pred_check
      %p300 = pneg %p299
    $region38: #{_lambda_.71} parent=5 // pred_check_branch
      %302 = sbr.rel (%p300) target = $region40
    $region39: #{_lambda_.71} parent=5 // pred_region
      // Predicated region
      $region41: #{_lambda_.71} parent=39 // pred_check
        %p303 = pneg %p50
      $region42: #{_lambda_.71} parent=39 // pred_check_branch
        %305 = sbr.rel (%p303) target = $region44
      $region43: #{_lambda_.71} parent=39 // pred_region
        %p306 = scmp.lt.s32.totalorder %s23, 1
        %s307 = scalar_select %p306, %s23, 1
        %p308 = scmp.lt.s32.totalorder %s24, 7
        %s309 = scalar_select %p308, %s24, 7
        %s310 = smul.addr %s307, 8
        %s311 = sadd.s32 %s309, %s310
        %s312 = smul.addr %s311, 2
        %s313 = scalar_lea.vmem %s0, %s312
      $region44: #{_lambda_.71} parent=39 // pred_fallthru
        _
      // Predicated region
      $region45: #{_lambda_.71} parent=39 // pred_check
        %p314 = pneg %p78
      $region46: #{_lambda_.71} parent=39 // pred_check_branch
        %316 = sbr.rel (%p314) target = $region48
      $region47: #{_lambda_.71} parent=39 // pred_region
        %p317 = scmp.lt.s32.totalorder %s23, 1
        %s318 = scalar_select %p317, %s23, 1
        %p319 = scmp.lt.s32.totalorder %s24, 7
        %s320 = scalar_select %p319, %s24, 7
        %s321 = smul.addr %s318, 8
        %s322 = sadd.s32 %s320, %s321
        %s323 = smul.addr %s322, 2
        %s324 = scalar_lea.vmem %s1, %s323
      $region48: #{_lambda_.71} parent=39 // pred_fallthru
        _
    $region40: #{_lambda_.71} parent=5 // pred_fallthru
      _
    %p325 = scmp.le.s32.totalorder 1, %s16
    %p326 = scmp.lt.s32.totalorder %s16, 17
    %p327 = pnand %p325, %p326
    %p328 = pneg %p327
    // Predicated region
    $region49: #{_lambda_.71} parent=5 // pred_check
      _
    $region50: #{_lambda_.71} parent=5 // pred_check_branch
      %330 = sbr.rel (%p327) target = $region52
    $region51: #{_lambda_.71} parent=5 // pred_region
      %s331 = ssub.s32 %s16, 1
      %p332 = scmp.lt.s32.totalorder %s25, 1
      %s333 = scalar_select %p332, %s25, 1
      %p334 = scmp.lt.s32.totalorder %s26, 7
      %s335 = scalar_select %p334, %s26, 7
      %s336 = smul.addr %s333, 8
      %s337 = sadd.s32 %s335, %s336
      %s338 = smul.addr %s337, 2
      %s339 = scalar_lea.vmem %s0, %s338
      %p340 = pneg %p56
      %p341 = pneg %p53
      %p342 = scmp.lt.s32.totalorder %s25, 1
      %s343 = scalar_select %p342, %s25, 1
      %p344 = scmp.lt.s32.totalorder %s26, 7
      %s345 = scalar_select %p344, %s26, 7
      %s346 = smul.addr %s343, 8
      %s347 = sadd.s32 %s345, %s346
      %s348 = smul.addr %s347, 2
      %s349 = scalar_lea.vmem %s1, %s348
      %p350 = pneg %p84
      %p351 = pneg %p81
      %p352 = pneg %p105
      %p353 = pneg %p102
      %p354 = pneg %p126
      %p355 = pneg %p123
      %p356 = pneg %p147
      %p357 = pneg %p144
      %p358 = pneg %p168
      %p359 = pneg %p165
      %p360 = pneg %p189
      %p361 = pneg %p186
      %p362 = pneg %p210
      %p363 = pneg %p207
      %p364 = pneg %p238
      %p365 = pneg %p235
      %p366 = scmp.lt.s32.totalorder %s25, 1
      %s367 = scalar_select %p366, %s25, 1
      %p368 = scmp.lt.s32.totalorder %s26, 7
      %s369 = scalar_select %p368, %s26, 7
      %s370 = smul.addr %s367, 8
      %s371 = sadd.s32 %s369, %s370
      %s372 = smul.addr %s371, 2
      %s373 = scalar_lea.vmem %s8, %s372
      %p374 = pneg %p266
      %p375 = pneg %p263
      %p376 = scmp.lt.s32.totalorder %s25, 1
      %s377 = scalar_select %p376, %s25, 1
      %p378 = scmp.lt.s32.totalorder %s26, 7
      %s379 = scalar_select %p378, %s26, 7
      %s380 = smul.addr %s377, 8
      %s381 = sadd.s32 %s379, %s380
      %s382 = smul.addr %s381, 2
      %s383 = scalar_lea.vmem %s9, %s382
      %p384 = scmp.lt.s32.totalorder %s25, 1
      %s385 = scalar_select %p384, %s25, 1
      %p386 = scmp.lt.s32.totalorder %s26, 7
      %s387 = scalar_select %p386, %s26, 7
      %s388 = smul.addr %s385, 8
      %s389 = sadd.s32 %s387, %s388
      %s390 = smul.addr %s389, 2
      %s391 = scalar_lea.vmem %s0, %s390
      %p392 = scmp.lt.s32.totalorder %s25, 1
      %s393 = scalar_select %p392, %s25, 1
      %p394 = scmp.lt.s32.totalorder %s26, 7
      %s395 = scalar_select %p394, %s26, 7
      %s396 = smul.addr %s393, 8
      %s397 = sadd.s32 %s395, %s396
      %s398 = smul.addr %s397, 2
      %s399 = scalar_lea.vmem %s1, %s398
      %p400 = scmp.lt.s32.totalorder %s25, 1
      %s401 = scalar_select %p400, %s25, 1
      %p402 = scmp.lt.s32.totalorder %s26, 7
      %s403 = scalar_select %p402, %s26, 7
      %s404 = smul.addr %s401, 8
      %s405 = sadd.s32 %s403, %s404
      %s406 = smul.addr %s405, 2
      %s407 = scalar_lea.vmem %s8, %s406
      %p408 = scmp.lt.s32.totalorder %s25, 1
      %s409 = scalar_select %p408, %s25, 1
      %p410 = scmp.lt.s32.totalorder %s26, 7
      %s411 = scalar_select %p410, %s26, 7
      %s412 = smul.addr %s409, 8
      %s413 = sadd.s32 %s411, %s412
      %s414 = smul.addr %s413, 2
      %s415 = scalar_lea.vmem %s9, %s414
      %v417 = vld [vmem:[%s391] sm:$0x3]
      %v418 = vld [vmem:[%s399] sm:$0x3]
      %v419 = vld [vmem:[%s2] sm:$0xff]
      %v420 = vld [vmem:[%s2 + $0x8] sm:$0xff]
      %v421 = vpack.c.bf16 %v417, %v417
      %v422 = vpack.c.bf16 %v420, %v419
      %v423 = vld [vmem:[%s3] sm:$0x1]
      %v425 = vlaneseq
      %v426 = vshrl.u32 %v425, 7
      %v427 = vsub.s32 0, %v426
      %v428 = vrot.slane %v423, %v427
      %vm430 = vcmask 130048
      %v432 = vsel %vm430, %v421, 0
      %434 = vmatprep.subr.bf16.mxu0 0
      %435 = vmatpush1.bf16.msra.mxu0 0
      %436 = vmatprep.subr.bf16.mxu0 0
      %437 = vmatpush1.bf16.msra.mxu0 0
      %438 = vmatprep.subr.bf16.mxu0 0
      %439 = vmatpush1.bf16.msra.mxu0 0
      %440 = vmatprep.subr.bf16.mxu0 0
      %441 = vmatpush1.bf16.msra.mxu0 0
      %442 = vmatprep.subr.bf16.mxu0 0
      %443 = vmatpush1.bf16.msra.mxu0 0
      %444 = vmatprep.subr.bf16.mxu0 0
      %445 = vmatpush1.bf16.msra.mxu0 0
      %446 = vmatprep.subr.bf16.mxu0 0
      %447 = vmatpush1.bf16.msra.mxu0 0
      %448 = vmatprep.subr.bf16.mxu0 0
      %449 = vmatpush1.bf16.msra.mxu0 %v422
      %450 = vmatprep.subr.bf16.mxu0 0
      %451 = vmatpush2.bf16.msra.mxu0 0
      %452 = vmatprep.subr.bf16.mxu0 0
      %453 = vmatpush2.bf16.msra.mxu0 0
      %454 = vmatprep.subr.bf16.mxu0 0
      %455 = vmatpush2.bf16.msra.mxu0 0
      %456 = vmatprep.subr.bf16.mxu0 0
      %457 = vmatpush2.bf16.msra.mxu0 0
      %458 = vmatprep.subr.bf16.mxu0 0
      %459 = vmatpush2.bf16.msra.mxu0 0
      %460 = vmatprep.subr.bf16.mxu0 0
      %461 = vmatpush2.bf16.msra.mxu0 0
      %462 = vmatprep.subr.bf16.mxu0 0
      %463 = vmatpush2.bf16.msra.mxu0 0
      %464 = vmatprep.subr.bf16.mxu0 0
      %465 = vmatpush2.bf16.msra.mxu0 0
      %466 = vmatprep.mubr.bf16.mxu0 0
      %467 = vmatmul.mubr.bf16.gmra.mxu0 %v432
      %v468 = vpop.f32.mrf.mxu0
      %v469 = vadd.f32 %v428, %v468
      %v470 = vpop.f32.mrf.mxu0
      %v471 = vpop.f32.mrf.mxu0
      %v472 = vpop.f32.mrf.mxu0
      %473 = vdwg.mxu0
      %s474 = scalar_lea.vmem %s2, 16
      %v475 = vld [vmem:[%s474] sm:$0xff]
      %v476 = vld [vmem:[%s474 + $0x8] sm:$0xff]
      %v477 = vpack.c.bf16 %v418, %v418
      %v478 = vpack.c.bf16 %v476, %v475
      %s479 = scalar_lea.vmem %s3, 1
      %v480 = vld [vmem:[%s479] sm:$0x1]
      %v482 = vlaneseq
      %v483 = vshrl.u32 %v482, 7
      %v484 = vsub.s32 0, %v483
      %v485 = vrot.slane %v480, %v484
      %v488 = vsel %vm430, %v477, 0
      %490 = vmatprep.subr.bf16.mxu0 0
      %491 = vmatpush1.bf16.msra.mxu0 0
      %492 = vmatprep.subr.bf16.mxu0 0
      %493 = vmatpush1.bf16.msra.mxu0 0
      %494 = vmatprep.subr.bf16.mxu0 0
      %495 = vmatpush1.bf16.msra.mxu0 0
      %496 = vmatprep.subr.bf16.mxu0 0
      %497 = vmatpush1.bf16.msra.mxu0 0
      %498 = vmatprep.subr.bf16.mxu0 0
      %499 = vmatpush1.bf16.msra.mxu0 0
      %500 = vmatprep.subr.bf16.mxu0 0
      %501 = vmatpush1.bf16.msra.mxu0 0
      %502 = vmatprep.subr.bf16.mxu0 0
      %503 = vmatpush1.bf16.msra.mxu0 0
      %504 = vmatprep.subr.bf16.mxu0 0
      %505 = vmatpush1.bf16.msra.mxu0 %v478
      %506 = vmatprep.subr.bf16.mxu0 0
      %507 = vmatpush2.bf16.msra.mxu0 0
      %508 = vmatprep.subr.bf16.mxu0 0
      %509 = vmatpush2.bf16.msra.mxu0 0
      %510 = vmatprep.subr.bf16.mxu0 0
      %511 = vmatpush2.bf16.msra.mxu0 0
      %512 = vmatprep.subr.bf16.mxu0 0
      %513 = vmatpush2.bf16.msra.mxu0 0
      %514 = vmatprep.subr.bf16.mxu0 0
      %515 = vmatpush2.bf16.msra.mxu0 0
      %516 = vmatprep.subr.bf16.mxu0 0
      %517 = vmatpush2.bf16.msra.mxu0 0
      %518 = vmatprep.subr.bf16.mxu0 0
      %519 = vmatpush2.bf16.msra.mxu0 0
      %520 = vmatprep.subr.bf16.mxu0 0
      %521 = vmatpush2.bf16.msra.mxu0 0
      %522 = vmatprep.mubr.bf16.mxu0 0
      %523 = vmatmul.mubr.bf16.gmra.mxu0 %v488
      %v524 = vpop.f32.mrf.mxu0
      %v525 = vadd.f32 %v485, %v524
      %v526 = vpop.f32.mrf.mxu0
      %v527 = vpop.f32.mrf.mxu0
      %v528 = vpop.f32.mrf.mxu0
      %529 = vdwg.mxu0
      %v530 = vpack.c.bf16 %v469, %v469
      %v531 = vpack.c.bf16 %v525, %v525
      %533 = vrot.lane.b32.xlu0 %v531, 112
      %v534 = vpop.permute.xlu0 %533
      %vm535 = vcmask 31744
      %v537 = vsel %vm535, %v530, 0
      %v540 = vsel %vm535, %v534, 0
      %542 = vmatprep.subr.bf16.mxu0 0
      %543 = vmatpush1.bf16.xpose.msra.mxu0 0
      %544 = vmatprep.subr.bf16.mxu0 0
      %545 = vmatpush1.bf16.xpose.msra.mxu0 0
      %546 = vmatprep.subr.bf16.mxu0 0
      %547 = vmatpush1.bf16.xpose.msra.mxu0 0
      %548 = vmatprep.subr.bf16.mxu0 0
      %549 = vmatpush1.bf16.xpose.msra.mxu0 0
      %550 = vmatprep.subr.bf16.mxu0 0
      %551 = vmatpush1.bf16.xpose.msra.mxu0 0
      %552 = vmatprep.subr.bf16.mxu0 0
      %553 = vmatpush1.bf16.xpose.msra.mxu0 0
      %554 = vmatprep.subr.bf16.mxu0 0
      %555 = vmatpush1.bf16.xpose.msra.mxu0 0
      %556 = vmatprep.subr.bf16.mxu0 0
      %557 = vmatpush1.bf16.xpose.msra.mxu0 %v540
      %558 = vmatprep.subr.bf16.mxu0 0
      %559 = vmatpush2.bf16.xpose.msra.mxu0 0
      %560 = vmatprep.subr.bf16.mxu0 0
      %561 = vmatpush2.bf16.xpose.msra.mxu0 0
      %562 = vmatprep.subr.bf16.mxu0 0
      %563 = vmatpush2.bf16.xpose.msra.mxu0 0
      %564 = vmatprep.subr.bf16.mxu0 0
      %565 = vmatpush2.bf16.xpose.msra.mxu0 0
      %566 = vmatprep.subr.bf16.mxu0 0
      %567 = vmatpush2.bf16.xpose.msra.mxu0 0
      %568 = vmatprep.subr.bf16.mxu0 0
      %569 = vmatpush2.bf16.xpose.msra.mxu0 0
      %570 = vmatprep.subr.bf16.mxu0 0
      %571 = vmatpush2.bf16.xpose.msra.mxu0 0
      %572 = vmatprep.subr.bf16.mxu0 0
      %573 = vmatpush2.bf16.xpose.msra.mxu0 0
      %574 = vmatprep.mubr.bf16.mxu0 0
      %575 = vmatmul.mubr.bf16.gmra.mxu0 %v537
      %v576 = vpop.f32.mrf.mxu0
      %v577 = vadd.f32 0.0, %v576
      %v578 = vpop.f32.mrf.mxu0
      %v579 = vpop.f32.mrf.mxu0
      %v580 = vpop.f32.mrf.mxu0
      %581 = vdwg.mxu0
      %v582 = vmul.f32 %v577, 0.5
      %vm583 = vcmask 9216
      %v584 = vsel %vm583, %v582, -inf
      %585 = vmax.xlane.f32.xlu0 %v584
      %v586 = vpop.xlane.xlu0 %585
      %v587 = vsub.f32 %v582, %v586
      %v588 = vmul.f32 %v587, 1.442695
      %v589 = vpow.pop %v588
      %v590 = vsel %vm583, %v589, 0.0
      %591 = vadd.xlane.f32.xlu0 %v590
      %v592 = vpop.xlane.xlu0 %591
      %v593 = vrcp.pop %v592
      %v594 = vmul.f32 %v589, %v593
      %v595 = vpack.c.bf16 %v594, %v594
      %596 = vrot.lane.b32.xlu0 %v531, 96
      %v597 = vpop.permute.xlu0 %596
      %vm598 = vcmask 15360
      %v600 = vsel %vm598, %v595, 0
      %vm602 = vcmask 1040384
      %v604 = vsel %vm602, %v597, 0
      %606 = vmatprep.subr.bf16.mxu0 0
      %607 = vmatpush1.bf16.msra.mxu0 0
      %608 = vmatprep.subr.bf16.mxu0 0
      %609 = vmatpush1.bf16.msra.mxu0 0
      %610 = vmatprep.subr.bf16.mxu0 0
      %611 = vmatpush1.bf16.msra.mxu0 0
      %612 = vmatprep.subr.bf16.mxu0 0
      %613 = vmatpush1.bf16.msra.mxu0 0
      %614 = vmatprep.subr.bf16.mxu0 0
      %615 = vmatpush1.bf16.msra.mxu0 0
      %616 = vmatprep.subr.bf16.mxu0 0
      %617 = vmatpush1.bf16.msra.mxu0 0
      %618 = vmatprep.subr.bf16.mxu0 0
      %619 = vmatpush1.bf16.msra.mxu0 0
      %620 = vmatprep.subr.bf16.mxu0 0
      %621 = vmatpush1.bf16.msra.mxu0 %v604
      %622 = vmatprep.subr.bf16.mxu0 0
      %623 = vmatpush2.bf16.msra.mxu0 0
      %624 = vmatprep.subr.bf16.mxu0 0
      %625 = vmatpush2.bf16.msra.mxu0 0
      %626 = vmatprep.subr.bf16.mxu0 0
      %627 = vmatpush2.bf16.msra.mxu0 0
      %628 = vmatprep.subr.bf16.mxu0 0
      %629 = vmatpush2.bf16.msra.mxu0 0
      %630 = vmatprep.subr.bf16.mxu0 0
      %631 = vmatpush2.bf16.msra.mxu0 0
      %632 = vmatprep.subr.bf16.mxu0 0
      %633 = vmatpush2.bf16.msra.mxu0 0
      %634 = vmatprep.subr.bf16.mxu0 0
      %635 = vmatpush2.bf16.msra.mxu0 0
      %636 = vmatprep.subr.bf16.mxu0 0
      %637 = vmatpush2.bf16.msra.mxu0 0
      %638 = vmatprep.mubr.bf16.mxu0 0
      %639 = vmatmul.mubr.bf16.gmra.mxu0 %v600
      %v640 = vpop.f32.mrf.mxu0
      %v641 = vadd.f32 0.0, %v640
      %v642 = vpop.f32.mrf.mxu0
      %v643 = vpop.f32.mrf.mxu0
      %v644 = vpop.f32.mrf.mxu0
      %645 = vdwg.mxu0
      %647 = vrot.lane.b32.xlu0 %v530, 124
      %v648 = vpop.permute.xlu0 %647
      %649 = vrot.lane.b32.xlu0 %v531, 108
      %v650 = vpop.permute.xlu0 %649
      %v652 = vsel %vm535, %v648, 0
      %v655 = vsel %vm535, %v650, 0
      %657 = vmatprep.subr.bf16.mxu0 0
      %658 = vmatpush1.bf16.xpose.msra.mxu0 0
      %659 = vmatprep.subr.bf16.mxu0 0
      %660 = vmatpush1.bf16.xpose.msra.mxu0 0
      %661 = vmatprep.subr.bf16.mxu0 0
      %662 = vmatpush1.bf16.xpose.msra.mxu0 0
      %663 = vmatprep.subr.bf16.mxu0 0
      %664 = vmatpush1.bf16.xpose.msra.mxu0 0
      %665 = vmatprep.subr.bf16.mxu0 0
      %666 = vmatpush1.bf16.xpose.msra.mxu0 0
      %667 = vmatprep.subr.bf16.mxu0 0
      %668 = vmatpush1.bf16.xpose.msra.mxu0 0
      %669 = vmatprep.subr.bf16.mxu0 0
      %670 = vmatpush1.bf16.xpose.msra.mxu0 0
      %671 = vmatprep.subr.bf16.mxu0 0
      %672 = vmatpush1.bf16.xpose.msra.mxu0 %v655
      %673 = vmatprep.subr.bf16.mxu0 0
      %674 = vmatpush2.bf16.xpose.msra.mxu0 0
      %675 = vmatprep.subr.bf16.mxu0 0
      %676 = vmatpush2.bf16.xpose.msra.mxu0 0
      %677 = vmatprep.subr.bf16.mxu0 0
      %678 = vmatpush2.bf16.xpose.msra.mxu0 0
      %679 = vmatprep.subr.bf16.mxu0 0
      %680 = vmatpush2.bf16.xpose.msra.mxu0 0
      %681 = vmatprep.subr.bf16.mxu0 0
      %682 = vmatpush2.bf16.xpose.msra.mxu0 0
      %683 = vmatprep.subr.bf16.mxu0 0
      %684 = vmatpush2.bf16.xpose.msra.mxu0 0
      %685 = vmatprep.subr.bf16.mxu0 0
      %686 = vmatpush2.bf16.xpose.msra.mxu0 0
      %687 = vmatprep.subr.bf16.mxu0 0
      %688 = vmatpush2.bf16.xpose.msra.mxu0 0
      %689 = vmatprep.mubr.bf16.mxu0 0
      %690 = vmatmul.mubr.bf16.gmra.mxu0 %v652
      %v691 = vpop.f32.mrf.mxu0
      %v692 = vadd.f32 0.0, %v691
      %v693 = vpop.f32.mrf.mxu0
      %v694 = vpop.f32.mrf.mxu0
      %v695 = vpop.f32.mrf.mxu0
      %696 = vdwg.mxu0
      %v697 = vmul.f32 %v692, 0.5
      %v698 = vsel %vm583, %v697, -inf
      %699 = vmax.xlane.f32.xlu0 %v698
      %v700 = vpop.xlane.xlu0 %699
      %v701 = vsub.f32 %v697, %v700
      %v702 = vmul.f32 %v701, 1.442695
      %v703 = vpow.pop %v702
      %v704 = vsel %vm583, %v703, 0.0
      %705 = vadd.xlane.f32.xlu0 %v704
      %v706 = vpop.xlane.xlu0 %705
      %v707 = vrcp.pop %v706
      %v708 = vmul.f32 %v703, %v707
      %v709 = vpack.c.bf16 %v708, %v708
      %710 = vrot.lane.b32.xlu0 %v531, 92
      %v711 = vpop.permute.xlu0 %710
      %v713 = vsel %vm598, %v709, 0
      %v716 = vsel %vm602, %v711, 0
      %718 = vmatprep.subr.bf16.mxu0 0
      %719 = vmatpush1.bf16.msra.mxu0 0
      %720 = vmatprep.subr.bf16.mxu0 0
      %721 = vmatpush1.bf16.msra.mxu0 0
      %722 = vmatprep.subr.bf16.mxu0 0
      %723 = vmatpush1.bf16.msra.mxu0 0
      %724 = vmatprep.subr.bf16.mxu0 0
      %725 = vmatpush1.bf16.msra.mxu0 0
      %726 = vmatprep.subr.bf16.mxu0 0
      %727 = vmatpush1.bf16.msra.mxu0 0
      %728 = vmatprep.subr.bf16.mxu0 0
      %729 = vmatpush1.bf16.msra.mxu0 0
      %730 = vmatprep.subr.bf16.mxu0 0
      %731 = vmatpush1.bf16.msra.mxu0 0
      %732 = vmatprep.subr.bf16.mxu0 0
      %733 = vmatpush1.bf16.msra.mxu0 %v716
      %734 = vmatprep.subr.bf16.mxu0 0
      %735 = vmatpush2.bf16.msra.mxu0 0
      %736 = vmatprep.subr.bf16.mxu0 0
      %737 = vmatpush2.bf16.msra.mxu0 0
      %738 = vmatprep.subr.bf16.mxu0 0
      %739 = vmatpush2.bf16.msra.mxu0 0
      %740 = vmatprep.subr.bf16.mxu0 0
      %741 = vmatpush2.bf16.msra.mxu0 0
      %742 = vmatprep.subr.bf16.mxu0 0
      %743 = vmatpush2.bf16.msra.mxu0 0
      %744 = vmatprep.subr.bf16.mxu0 0
      %745 = vmatpush2.bf16.msra.mxu0 0
      %746 = vmatprep.subr.bf16.mxu0 0
      %747 = vmatpush2.bf16.msra.mxu0 0
      %748 = vmatprep.subr.bf16.mxu0 0
      %749 = vmatpush2.bf16.msra.mxu0 0
      %750 = vmatprep.mubr.bf16.mxu0 0
      %751 = vmatmul.mubr.bf16.gmra.mxu0 %v713
      %v752 = vpop.f32.mrf.mxu0
      %v753 = vadd.f32 0.0, %v752
      %v754 = vpop.f32.mrf.mxu0
      %v755 = vpop.f32.mrf.mxu0
      %v756 = vpop.f32.mrf.mxu0
      %757 = vdwg.mxu0
      %758 = vrot.lane.b32.xlu0 %v530, 120
      %v759 = vpop.permute.xlu0 %758
      %760 = vrot.lane.b32.xlu0 %v531, 104
      %v761 = vpop.permute.xlu0 %760
      %v763 = vsel %vm535, %v759, 0
      %v766 = vsel %vm535, %v761, 0
      %768 = vmatprep.subr.bf16.mxu0 0
      %769 = vmatpush1.bf16.xpose.msra.mxu0 0
      %770 = vmatprep.subr.bf16.mxu0 0
      %771 = vmatpush1.bf16.xpose.msra.mxu0 0
      %772 = vmatprep.subr.bf16.mxu0 0
      %773 = vmatpush1.bf16.xpose.msra.mxu0 0
      %774 = vmatprep.subr.bf16.mxu0 0
      %775 = vmatpush1.bf16.xpose.msra.mxu0 0
      %776 = vmatprep.subr.bf16.mxu0 0
      %777 = vmatpush1.bf16.xpose.msra.mxu0 0
      %778 = vmatprep.subr.bf16.mxu0 0
      %779 = vmatpush1.bf16.xpose.msra.mxu0 0
      %780 = vmatprep.subr.bf16.mxu0 0
      %781 = vmatpush1.bf16.xpose.msra.mxu0 0
      %782 = vmatprep.subr.bf16.mxu0 0
      %783 = vmatpush1.bf16.xpose.msra.mxu0 %v766
      %784 = vmatprep.subr.bf16.mxu0 0
      %785 = vmatpush2.bf16.xpose.msra.mxu0 0
      %786 = vmatprep.subr.bf16.mxu0 0
      %787 = vmatpush2.bf16.xpose.msra.mxu0 0
      %788 = vmatprep.subr.bf16.mxu0 0
      %789 = vmatpush2.bf16.xpose.msra.mxu0 0
      %790 = vmatprep.subr.bf16.mxu0 0
      %791 = vmatpush2.bf16.xpose.msra.mxu0 0
      %792 = vmatprep.subr.bf16.mxu0 0
      %793 = vmatpush2.bf16.xpose.msra.mxu0 0
      %794 = vmatprep.subr.bf16.mxu0 0
      %795 = vmatpush2.bf16.xpose.msra.mxu0 0
      %796 = vmatprep.subr.bf16.mxu0 0
      %797 = vmatpush2.bf16.xpose.msra.mxu0 0
      %798 = vmatprep.subr.bf16.mxu0 0
      %799 = vmatpush2.bf16.xpose.msra.mxu0 0
      %800 = vmatprep.mubr.bf16.mxu0 0
      %801 = vmatmul.mubr.bf16.gmra.mxu0 %v763
      %v802 = vpop.f32.mrf.mxu0
      %v803 = vadd.f32 0.0, %v802
      %v804 = vpop.f32.mrf.mxu0
      %v805 = vpop.f32.mrf.mxu0
      %v806 = vpop.f32.mrf.mxu0
      %807 = vdwg.mxu0
      %v808 = vmul.f32 %v803, 0.5
      %v809 = vsel %vm583, %v808, -inf
      %810 = vmax.xlane.f32.xlu0 %v809
      %v811 = vpop.xlane.xlu0 %810
      %v812 = vsub.f32 %v808, %v811
      %v813 = vmul.f32 %v812, 1.442695
      %v814 = vpow.pop %v813
      %v815 = vsel %vm583, %v814, 0.0
      %816 = vadd.xlane.f32.xlu0 %v815
      %v817 = vpop.xlane.xlu0 %816
      %v818 = vrcp.pop %v817
      %v819 = vmul.f32 %v814, %v818
      %v820 = vpack.c.bf16 %v819, %v819
      %821 = vrot.lane.b32.xlu0 %v531, 88
      %v822 = vpop.permute.xlu0 %821
      %v824 = vsel %vm598, %v820, 0
      %v827 = vsel %vm602, %v822, 0
      %829 = vmatprep.subr.bf16.mxu0 0
      %830 = vmatpush1.bf16.msra.mxu0 0
      %831 = vmatprep.subr.bf16.mxu0 0
      %832 = vmatpush1.bf16.msra.mxu0 0
      %833 = vmatprep.subr.bf16.mxu0 0
      %834 = vmatpush1.bf16.msra.mxu0 0
      %835 = vmatprep.subr.bf16.mxu0 0
      %836 = vmatpush1.bf16.msra.mxu0 0
      %837 = vmatprep.subr.bf16.mxu0 0
      %838 = vmatpush1.bf16.msra.mxu0 0
      %839 = vmatprep.subr.bf16.mxu0 0
      %840 = vmatpush1.bf16.msra.mxu0 0
      %841 = vmatprep.subr.bf16.mxu0 0
      %842 = vmatpush1.bf16.msra.mxu0 0
      %843 = vmatprep.subr.bf16.mxu0 0
      %844 = vmatpush1.bf16.msra.mxu0 %v827
      %845 = vmatprep.subr.bf16.mxu0 0
      %846 = vmatpush2.bf16.msra.mxu0 0
      %847 = vmatprep.subr.bf16.mxu0 0
      %848 = vmatpush2.bf16.msra.mxu0 0
      %849 = vmatprep.subr.bf16.mxu0 0
      %850 = vmatpush2.bf16.msra.mxu0 0
      %851 = vmatprep.subr.bf16.mxu0 0
      %852 = vmatpush2.bf16.msra.mxu0 0
      %853 = vmatprep.subr.bf16.mxu0 0
      %854 = vmatpush2.bf16.msra.mxu0 0
      %855 = vmatprep.subr.bf16.mxu0 0
      %856 = vmatpush2.bf16.msra.mxu0 0
      %857 = vmatprep.subr.bf16.mxu0 0
      %858 = vmatpush2.bf16.msra.mxu0 0
      %859 = vmatprep.subr.bf16.mxu0 0
      %860 = vmatpush2.bf16.msra.mxu0 0
      %861 = vmatprep.mubr.bf16.mxu0 0
      %862 = vmatmul.mubr.bf16.gmra.mxu0 %v824
      %v863 = vpop.f32.mrf.mxu0
      %v864 = vadd.f32 0.0, %v863
      %v865 = vpop.f32.mrf.mxu0
      %v866 = vpop.f32.mrf.mxu0
      %v867 = vpop.f32.mrf.mxu0
      %868 = vdwg.mxu0
      %869 = vrot.lane.b32.xlu0 %v530, 116
      %v870 = vpop.permute.xlu0 %869
      %871 = vrot.lane.b32.xlu0 %v531, 100
      %v872 = vpop.permute.xlu0 %871
      %v874 = vsel %vm535, %v870, 0
      %v877 = vsel %vm535, %v872, 0
      %879 = vmatprep.subr.bf16.mxu0 0
      %880 = vmatpush1.bf16.xpose.msra.mxu0 0
      %881 = vmatprep.subr.bf16.mxu0 0
      %882 = vmatpush1.bf16.xpose.msra.mxu0 0
      %883 = vmatprep.subr.bf16.mxu0 0
      %884 = vmatpush1.bf16.xpose.msra.mxu0 0
      %885 = vmatprep.subr.bf16.mxu0 0
      %886 = vmatpush1.bf16.xpose.msra.mxu0 0
      %887 = vmatprep.subr.bf16.mxu0 0
      %888 = vmatpush1.bf16.xpose.msra.mxu0 0
      %889 = vmatprep.subr.bf16.mxu0 0
      %890 = vmatpush1.bf16.xpose.msra.mxu0 0
      %891 = vmatprep.subr.bf16.mxu0 0
      %892 = vmatpush1.bf16.xpose.msra.mxu0 0
      %893 = vmatprep.subr.bf16.mxu0 0
      %894 = vmatpush1.bf16.xpose.msra.mxu0 %v877
      %895 = vmatprep.subr.bf16.mxu0 0
      %896 = vmatpush2.bf16.xpose.msra.mxu0 0
      %897 = vmatprep.subr.bf16.mxu0 0
      %898 = vmatpush2.bf16.xpose.msra.mxu0 0
      %899 = vmatprep.subr.bf16.mxu0 0
      %900 = vmatpush2.bf16.xpose.msra.mxu0 0
      %901 = vmatprep.subr.bf16.mxu0 0
      %902 = vmatpush2.bf16.xpose.msra.mxu0 0
      %903 = vmatprep.subr.bf16.mxu0 0
      %904 = vmatpush2.bf16.xpose.msra.mxu0 0
      %905 = vmatprep.subr.bf16.mxu0 0
      %906 = vmatpush2.bf16.xpose.msra.mxu0 0
      %907 = vmatprep.subr.bf16.mxu0 0
      %908 = vmatpush2.bf16.xpose.msra.mxu0 0
      %909 = vmatprep.subr.bf16.mxu0 0
      %910 = vmatpush2.bf16.xpose.msra.mxu0 0
      %911 = vmatprep.mubr.bf16.mxu0 0
      %912 = vmatmul.mubr.bf16.gmra.mxu0 %v874
      %v913 = vpop.f32.mrf.mxu0
      %v914 = vadd.f32 0.0, %v913
      %v915 = vpop.f32.mrf.mxu0
      %v916 = vpop.f32.mrf.mxu0
      %v917 = vpop.f32.mrf.mxu0
      %918 = vdwg.mxu0
      %v919 = vmul.f32 %v914, 0.5
      %v920 = vsel %vm583, %v919, -inf
      %921 = vmax.xlane.f32.xlu0 %v920
      %v922 = vpop.xlane.xlu0 %921
      %v923 = vsub.f32 %v919, %v922
      %v924 = vmul.f32 %v923, 1.442695
      %v925 = vpow.pop %v924
      %v926 = vsel %vm583, %v925, 0.0
      %927 = vadd.xlane.f32.xlu0 %v926
      %v928 = vpop.xlane.xlu0 %927
      %v929 = vrcp.pop %v928
      %v930 = vmul.f32 %v925, %v929
      %v931 = vpack.c.bf16 %v930, %v930
      %932 = vrot.lane.b32.xlu0 %v531, 84
      %v933 = vpop.permute.xlu0 %932
      %v935 = vsel %vm598, %v931, 0
      %v938 = vsel %vm602, %v933, 0
      %940 = vmatprep.subr.bf16.mxu0 0
      %941 = vmatpush1.bf16.msra.mxu0 0
      %942 = vmatprep.subr.bf16.mxu0 0
      %943 = vmatpush1.bf16.msra.mxu0 0
      %944 = vmatprep.subr.bf16.mxu0 0
      %945 = vmatpush1.bf16.msra.mxu0 0
      %946 = vmatprep.subr.bf16.mxu0 0
      %947 = vmatpush1.bf16.msra.mxu0 0
      %948 = vmatprep.subr.bf16.mxu0 0
      %949 = vmatpush1.bf16.msra.mxu0 0
      %950 = vmatprep.subr.bf16.mxu0 0
      %951 = vmatpush1.bf16.msra.mxu0 0
      %952 = vmatprep.subr.bf16.mxu0 0
      %953 = vmatpush1.bf16.msra.mxu0 0
      %954 = vmatprep.subr.bf16.mxu0 0
      %955 = vmatpush1.bf16.msra.mxu0 %v938
      %956 = vmatprep.subr.bf16.mxu0 0
      %957 = vmatpush2.bf16.msra.mxu0 0
      %958 = vmatprep.subr.bf16.mxu0 0
      %959 = vmatpush2.bf16.msra.mxu0 0
      %960 = vmatprep.subr.bf16.mxu0 0
      %961 = vmatpush2.bf16.msra.mxu0 0
      %962 = vmatprep.subr.bf16.mxu0 0
      %963 = vmatpush2.bf16.msra.mxu0 0
      %964 = vmatprep.subr.bf16.mxu0 0
      %965 = vmatpush2.bf16.msra.mxu0 0
      %966 = vmatprep.subr.bf16.mxu0 0
      %967 = vmatpush2.bf16.msra.mxu0 0
      %968 = vmatprep.subr.bf16.mxu0 0
      %969 = vmatpush2.bf16.msra.mxu0 0
      %970 = vmatprep.subr.bf16.mxu0 0
      %971 = vmatpush2.bf16.msra.mxu0 0
      %972 = vmatprep.mubr.bf16.mxu0 0
      %973 = vmatmul.mubr.bf16.gmra.mxu0 %v935
      %v974 = vpop.f32.mrf.mxu0
      %v975 = vadd.f32 0.0, %v974
      %v976 = vpop.f32.mrf.mxu0
      %v977 = vpop.f32.mrf.mxu0
      %v978 = vpop.f32.mrf.mxu0
      %979 = vdwg.mxu0
      %981 = vrot.lane.b32.xlu0 %v753, 4
      %v982 = vpop.permute.xlu0 %981
      %985 = vrot.lane.b32.xlu0 %v864, 8
      %v986 = vpop.permute.xlu0 %985
      %989 = vrot.lane.b32.xlu0 %v975, 12
      %v990 = vpop.permute.xlu0 %989
      %v992 = vsel %vm535, %v641, %v982
      %vm993 = vcmask 64512
      %v994 = vsel %vm993, %v992, %v986
      %vm995 = vcmask 97280
      %v996 = vsel %vm995, %v994, %v990
      %997 = vrot.lane.b32.xlu0 %v530, 112
      %v998 = vpop.permute.xlu0 %997
      %v1000 = vsel %vm535, %v531, 0
      %v1003 = vsel %vm535, %v998, 0
      %1005 = vmatprep.subr.bf16.mxu0 0
      %1006 = vmatpush1.bf16.xpose.msra.mxu0 0
      %1007 = vmatprep.subr.bf16.mxu0 0
      %1008 = vmatpush1.bf16.xpose.msra.mxu0 0
      %1009 = vmatprep.subr.bf16.mxu0 0
      %1010 = vmatpush1.bf16.xpose.msra.mxu0 0
      %1011 = vmatprep.subr.bf16.mxu0 0
      %1012 = vmatpush1.bf16.xpose.msra.mxu0 0
      %1013 = vmatprep.subr.bf16.mxu0 0
      %1014 = vmatpush1.bf16.xpose.msra.mxu0 0
      %1015 = vmatprep.subr.bf16.mxu0 0
      %1016 = vmatpush1.bf16.xpose.msra.mxu0 0
      %1017 = vmatprep.subr.bf16.mxu0 0
      %1018 = vmatpush1.bf16.xpose.msra.mxu0 0
      %1019 = vmatprep.subr.bf16.mxu0 0
      %1020 = vmatpush1.bf16.xpose.msra.mxu0 %v1003
      %1021 = vmatprep.subr.bf16.mxu0 0
      %1022 = vmatpush2.bf16.xpose.msra.mxu0 0
      %1023 = vmatprep.subr.bf16.mxu0 0
      %1024 = vmatpush2.bf16.xpose.msra.mxu0 0
      %1025 = vmatprep.subr.bf16.mxu0 0
      %1026 = vmatpush2.bf16.xpose.msra.mxu0 0
      %1027 = vmatprep.subr.bf16.mxu0 0
      %1028 = vmatpush2.bf16.xpose.msra.mxu0 0
      %1029 = vmatprep.subr.bf16.mxu0 0
      %1030 = vmatpush2.bf16.xpose.msra.mxu0 0
      %1031 = vmatprep.subr.bf16.mxu0 0
      %1032 = vmatpush2.bf16.xpose.msra.mxu0 0
      %1033 = vmatprep.subr.bf16.mxu0 0
      %1034 = vmatpush2.bf16.xpose.msra.mxu0 0
      %1035 = vmatprep.subr.bf16.mxu0 0
      %1036 = vmatpush2.bf16.xpose.msra.mxu0 0
      %1037 = vmatprep.mubr.bf16.mxu0 0
      %1038 = vmatmul.mubr.bf16.gmra.mxu0 %v1000
      %v1039 = vpop.f32.mrf.mxu0
      %v1040 = vadd.f32 0.0, %v1039
      %v1041 = vpop.f32.mrf.mxu0
      %v1042 = vpop.f32.mrf.mxu0
      %v1043 = vpop.f32.mrf.mxu0
      %1044 = vdwg.mxu0
      %v1045 = vmul.f32 %v1040, 0.5
      %v1046 = vsel %vm583, %v1045, -inf
      %1047 = vmax.xlane.f32.xlu0 %v1046
      %v1048 = vpop.xlane.xlu0 %1047
      %v1049 = vsub.f32 %v1045, %v1048
      %v1050 = vmul.f32 %v1049, 1.442695
      %v1051 = vpow.pop %v1050
      %v1052 = vsel %vm583, %v1051, 0.0
      %1053 = vadd.xlane.f32.xlu0 %v1052
      %v1054 = vpop.xlane.xlu0 %1053
      %v1055 = vrcp.pop %v1054
      %v1056 = vmul.f32 %v1051, %v1055
      %v1057 = vpack.c.bf16 %v1056, %v1056
      %1058 = vrot.lane.b32.xlu0 %v530, 96
      %v1059 = vpop.permute.xlu0 %1058
      %v1061 = vsel %vm598, %v1057, 0
      %v1064 = vsel %vm602, %v1059, 0
      %1066 = vmatprep.subr.bf16.mxu0 0
      %1067 = vmatpush1.bf16.msra.mxu0 0
      %1068 = vmatprep.subr.bf16.mxu0 0
      %1069 = vmatpush1.bf16.msra.mxu0 0
      %1070 = vmatprep.subr.bf16.mxu0 0
      %1071 = vmatpush1.bf16.msra.mxu0 0
      %1072 = vmatprep.subr.bf16.mxu0 0
      %1073 = vmatpush1.bf16.msra.mxu0 0
      %1074 = vmatprep.subr.bf16.mxu0 0
      %1075 = vmatpush1.bf16.msra.mxu0 0
      %1076 = vmatprep.subr.bf16.mxu0 0
      %1077 = vmatpush1.bf16.msra.mxu0 0
      %1078 = vmatprep.subr.bf16.mxu0 0
      %1079 = vmatpush1.bf16.msra.mxu0 0
      %1080 = vmatprep.subr.bf16.mxu0 0
      %1081 = vmatpush1.bf16.msra.mxu0 %v1064
      %1082 = vmatprep.subr.bf16.mxu0 0
      %1083 = vmatpush2.bf16.msra.mxu0 0
      %1084 = vmatprep.subr.bf16.mxu0 0
      %1085 = vmatpush2.bf16.msra.mxu0 0
      %1086 = vmatprep.subr.bf16.mxu0 0
      %1087 = vmatpush2.bf16.msra.mxu0 0
      %1088 = vmatprep.subr.bf16.mxu0 0
      %1089 = vmatpush2.bf16.msra.mxu0 0
      %1090 = vmatprep.subr.bf16.mxu0 0
      %1091 = vmatpush2.bf16.msra.mxu0 0
      %1092 = vmatprep.subr.bf16.mxu0 0
      %1093 = vmatpush2.bf16.msra.mxu0 0
      %1094 = vmatprep.subr.bf16.mxu0 0
      %1095 = vmatpush2.bf16.msra.mxu0 0
      %1096 = vmatprep.subr.bf16.mxu0 0
      %1097 = vmatpush2.bf16.msra.mxu0 0
      %1098 = vmatprep.mubr.bf16.mxu0 0
      %1099 = vmatmul.mubr.bf16.gmra.mxu0 %v1061
      %v1100 = vpop.f32.mrf.mxu0
      %v1101 = vadd.f32 0.0, %v1100
      %v1102 = vpop.f32.mrf.mxu0
      %v1103 = vpop.f32.mrf.mxu0
      %v1104 = vpop.f32.mrf.mxu0
      %1105 = vdwg.mxu0
      %1106 = vrot.lane.b32.xlu0 %v531, 124
      %v1107 = vpop.permute.xlu0 %1106
      %1108 = vrot.lane.b32.xlu0 %v530, 108
      %v1109 = vpop.permute.xlu0 %1108
      %v1111 = vsel %vm535, %v1107, 0
      %v1114 = vsel %vm535, %v1109, 0
      %1116 = vmatprep.subr.bf16.mxu0 0
      %1117 = vmatpush1.bf16.xpose.msra.mxu0 0
      %1118 = vmatprep.subr.bf16.mxu0 0
      %1119 = vmatpush1.bf16.xpose.msra.mxu0 0
      %1120 = vmatprep.subr.bf16.mxu0 0
      %1121 = vmatpush1.bf16.xpose.msra.mxu0 0
      %1122 = vmatprep.subr.bf16.mxu0 0
      %1123 = vmatpush1.bf16.xpose.msra.mxu0 0
      %1124 = vmatprep.subr.bf16.mxu0 0
      %1125 = vmatpush1.bf16.xpose.msra.mxu0 0
      %1126 = vmatprep.subr.bf16.mxu0 0
      %1127 = vmatpush1.bf16.xpose.msra.mxu0 0
      %1128 = vmatprep.subr.bf16.mxu0 0
      %1129 = vmatpush1.bf16.xpose.msra.mxu0 0
      %1130 = vmatprep.subr.bf16.mxu0 0
      %1131 = vmatpush1.bf16.xpose.msra.mxu0 %v1114
      %1132 = vmatprep.subr.bf16.mxu0 0
      %1133 = vmatpush2.bf16.xpose.msra.mxu0 0
      %1134 = vmatprep.subr.bf16.mxu0 0
      %1135 = vmatpush2.bf16.xpose.msra.mxu0 0
      %1136 = vmatprep.subr.bf16.mxu0 0
      %1137 = vmatpush2.bf16.xpose.msra.mxu0 0
      %1138 = vmatprep.subr.bf16.mxu0 0
      %1139 = vmatpush2.bf16.xpose.msra.mxu0 0
      %1140 = vmatprep.subr.bf16.mxu0 0
      %1141 = vmatpush2.bf16.xpose.msra.mxu0 0
      %1142 = vmatprep.subr.bf16.mxu0 0
      %1143 = vmatpush2.bf16.xpose.msra.mxu0 0
      %1144 = vmatprep.subr.bf16.mxu0 0
      %1145 = vmatpush2.bf16.xpose.msra.mxu0 0
      %1146 = vmatprep.subr.bf16.mxu0 0
      %1147 = vmatpush2.bf16.xpose.msra.mxu0 0
      %1148 = vmatprep.mubr.bf16.mxu0 0
      %1149 = vmatmul.mubr.bf16.gmra.mxu0 %v1111
      %v1150 = vpop.f32.mrf.mxu0
      %v1151 = vadd.f32 0.0, %v1150
      %v1152 = vpop.f32.mrf.mxu0
      %v1153 = vpop.f32.mrf.mxu0
      %v1154 = vpop.f32.mrf.mxu0
      %1155 = vdwg.mxu0
      %v1156 = vmul.f32 %v1151, 0.5
      %v1157 = vsel %vm583, %v1156, -inf
      %1158 = vmax.xlane.f32.xlu0 %v1157
      %v1159 = vpop.xlane.xlu0 %1158
      %v1160 = vsub.f32 %v1156, %v1159
      %v1161 = vmul.f32 %v1160, 1.442695
      %v1162 = vpow.pop %v1161
      %v1163 = vsel %vm583, %v1162, 0.0
      %1164 = vadd.xlane.f32.xlu0 %v1163
      %v1165 = vpop.xlane.xlu0 %1164
      %v1166 = vrcp.pop %v1165
      %v1167 = vmul.f32 %v1162, %v1166
      %v1168 = vpack.c.bf16 %v1167, %v1167
      %1169 = vrot.lane.b32.xlu0 %v530, 92
      %v1170 = vpop.permute.xlu0 %1169
      %v1172 = vsel %vm598, %v1168, 0
      %v1175 = vsel %vm602, %v1170, 0
      %1177 = vmatprep.subr.bf16.mxu0 0
      %1178 = vmatpush1.bf16.msra.mxu0 0
      %1179 = vmatprep.subr.bf16.mxu0 0
      %1180 = vmatpush1.bf16.msra.mxu0 0
      %1181 = vmatprep.subr.bf16.mxu0 0
      %1182 = vmatpush1.bf16.msra.mxu0 0
      %1183 = vmatprep.subr.bf16.mxu0 0
      %1184 = vmatpush1.bf16.msra.mxu0 0
      %1185 = vmatprep.subr.bf16.mxu0 0
      %1186 = vmatpush1.bf16.msra.mxu0 0
      %1187 = vmatprep.subr.bf16.mxu0 0
      %1188 = vmatpush1.bf16.msra.mxu0 0
      %1189 = vmatprep.subr.bf16.mxu0 0
      %1190 = vmatpush1.bf16.msra.mxu0 0
      %1191 = vmatprep.subr.bf16.mxu0 0
      %1192 = vmatpush1.bf16.msra.mxu0 %v1175
      %1193 = vmatprep.subr.bf16.mxu0 0
      %1194 = vmatpush2.bf16.msra.mxu0 0
      %1195 = vmatprep.subr.bf16.mxu0 0
      %1196 = vmatpush2.bf16.msra.mxu0 0
      %1197 = vmatprep.subr.bf16.mxu0 0
      %1198 = vmatpush2.bf16.msra.mxu0 0
      %1199 = vmatprep.subr.bf16.mxu0 0
      %1200 = vmatpush2.bf16.msra.mxu0 0
      %1201 = vmatprep.subr.bf16.mxu0 0
      %1202 = vmatpush2.bf16.msra.mxu0 0
      %1203 = vmatprep.subr.bf16.mxu0 0
      %1204 = vmatpush2.bf16.msra.mxu0 0
      %1205 = vmatprep.subr.bf16.mxu0 0
      %1206 = vmatpush2.bf16.msra.mxu0 0
      %1207 = vmatprep.subr.bf16.mxu0 0
      %1208 = vmatpush2.bf16.msra.mxu0 0
      %1209 = vmatprep.mubr.bf16.mxu0 0
      %1210 = vmatmul.mubr.bf16.gmra.mxu0 %v1172
      %v1211 = vpop.f32.mrf.mxu0
      %v1212 = vadd.f32 0.0, %v1211
      %v1213 = vpop.f32.mrf.mxu0
      %v1214 = vpop.f32.mrf.mxu0
      %v1215 = vpop.f32.mrf.mxu0
      %1216 = vdwg.mxu0
      %1217 = vrot.lane.b32.xlu0 %v531, 120
      %v1218 = vpop.permute.xlu0 %1217
      %1219 = vrot.lane.b32.xlu0 %v530, 104
      %v1220 = vpop.permute.xlu0 %1219
      %v1222 = vsel %vm535, %v1218, 0
      %v1225 = vsel %vm535, %v1220, 0
      %1227 = vmatprep.subr.bf16.mxu0 0
      %1228 = vmatpush1.bf16.xpose.msra.mxu0 0
      %1229 = vmatprep.subr.bf16.mxu0 0
      %1230 = vmatpush1.bf16.xpose.msra.mxu0 0
      %1231 = vmatprep.subr.bf16.mxu0 0
      %1232 = vmatpush1.bf16.xpose.msra.mxu0 0
      %1233 = vmatprep.subr.bf16.mxu0 0
      %1234 = vmatpush1.bf16.xpose.msra.mxu0 0
      %1235 = vmatprep.subr.bf16.mxu0 0
      %1236 = vmatpush1.bf16.xpose.msra.mxu0 0
      %1237 = vmatprep.subr.bf16.mxu0 0
      %1238 = vmatpush1.bf16.xpose.msra.mxu0 0
      %1239 = vmatprep.subr.bf16.mxu0 0
      %1240 = vmatpush1.bf16.xpose.msra.mxu0 0
      %1241 = vmatprep.subr.bf16.mxu0 0
      %1242 = vmatpush1.bf16.xpose.msra.mxu0 %v1225
      %1243 = vmatprep.subr.bf16.mxu0 0
      %1244 = vmatpush2.bf16.xpose.msra.mxu0 0
      %1245 = vmatprep.subr.bf16.mxu0 0
      %1246 = vmatpush2.bf16.xpose.msra.mxu0 0
      %1247 = vmatprep.subr.bf16.mxu0 0
      %1248 = vmatpush2.bf16.xpose.msra.mxu0 0
      %1249 = vmatprep.subr.bf16.mxu0 0
      %1250 = vmatpush2.bf16.xpose.msra.mxu0 0
      %1251 = vmatprep.subr.bf16.mxu0 0
      %1252 = vmatpush2.bf16.xpose.msra.mxu0 0
      %1253 = vmatprep.subr.bf16.mxu0 0
      %1254 = vmatpush2.bf16.xpose.msra.mxu0 0
      %1255 = vmatprep.subr.bf16.mxu0 0
      %1256 = vmatpush2.bf16.xpose.msra.mxu0 0
      %1257 = vmatprep.subr.bf16.mxu0 0
      %1258 = vmatpush2.bf16.xpose.msra.mxu0 0
      %1259 = vmatprep.mubr.bf16.mxu0 0
      %1260 = vmatmul.mubr.bf16.gmra.mxu0 %v1222
      %v1261 = vpop.f32.mrf.mxu0
      %v1262 = vadd.f32 0.0, %v1261
      %v1263 = vpop.f32.mrf.mxu0
      %v1264 = vpop.f32.mrf.mxu0
      %v1265 = vpop.f32.mrf.mxu0
      %1266 = vdwg.mxu0
      %v1267 = vmul.f32 %v1262, 0.5
      %v1268 = vsel %vm583, %v1267, -inf
      %1269 = vmax.xlane.f32.xlu0 %v1268
      %v1270 = vpop.xlane.xlu0 %1269
      %v1271 = vsub.f32 %v1267, %v1270
      %v1272 = vmul.f32 %v1271, 1.442695
      %v1273 = vpow.pop %v1272
      %v1274 = vsel %vm583, %v1273, 0.0
      %1275 = vadd.xlane.f32.xlu0 %v1274
      %v1276 = vpop.xlane.xlu0 %1275
      %v1277 = vrcp.pop %v1276
      %v1278 = vmul.f32 %v1273, %v1277
      %v1279 = vpack.c.bf16 %v1278, %v1278
      %1280 = vrot.lane.b32.xlu0 %v530, 88
      %v1281 = vpop.permute.xlu0 %1280
      %v1283 = vsel %vm598, %v1279, 0
      %v1286 = vsel %vm602, %v1281, 0
      %1288 = vmatprep.subr.bf16.mxu0 0
      %1289 = vmatpush1.bf16.msra.mxu0 0
      %1290 = vmatprep.subr.bf16.mxu0 0
      %1291 = vmatpush1.bf16.msra.mxu0 0
      %1292 = vmatprep.subr.bf16.mxu0 0
      %1293 = vmatpush1.bf16.msra.mxu0 0
      %1294 = vmatprep.subr.bf16.mxu0 0
      %1295 = vmatpush1.bf16.msra.mxu0 0
      %1296 = vmatprep.subr.bf16.mxu0 0
      %1297 = vmatpush1.bf16.msra.mxu0 0
      %1298 = vmatprep.subr.bf16.mxu0 0
      %1299 = vmatpush1.bf16.msra.mxu0 0
      %1300 = vmatprep.subr.bf16.mxu0 0
      %1301 = vmatpush1.bf16.msra.mxu0 0
      %1302 = vmatprep.subr.bf16.mxu0 0
      %1303 = vmatpush1.bf16.msra.mxu0 %v1286
      %1304 = vmatprep.subr.bf16.mxu0 0
      %1305 = vmatpush2.bf16.msra.mxu0 0
      %1306 = vmatprep.subr.bf16.mxu0 0
      %1307 = vmatpush2.bf16.msra.mxu0 0
      %1308 = vmatprep.subr.bf16.mxu0 0
      %1309 = vmatpush2.bf16.msra.mxu0 0
      %1310 = vmatprep.subr.bf16.mxu0 0
      %1311 = vmatpush2.bf16.msra.mxu0 0
      %1312 = vmatprep.subr.bf16.mxu0 0
      %1313 = vmatpush2.bf16.msra.mxu0 0
      %1314 = vmatprep.subr.bf16.mxu0 0
      %1315 = vmatpush2.bf16.msra.mxu0 0
      %1316 = vmatprep.subr.bf16.mxu0 0
      %1317 = vmatpush2.bf16.msra.mxu0 0
      %1318 = vmatprep.subr.bf16.mxu0 0
      %1319 = vmatpush2.bf16.msra.mxu0 0
      %1320 = vmatprep.mubr.bf16.mxu0 0
      %1321 = vmatmul.mubr.bf16.gmra.mxu0 %v1283
      %v1322 = vpop.f32.mrf.mxu0
      %v1323 = vadd.f32 0.0, %v1322
      %v1324 = vpop.f32.mrf.mxu0
      %v1325 = vpop.f32.mrf.mxu0
      %v1326 = vpop.f32.mrf.mxu0
      %1327 = vdwg.mxu0
      %1328 = vrot.lane.b32.xlu0 %v531, 116
      %v1329 = vpop.permute.xlu0 %1328
      %1330 = vrot.lane.b32.xlu0 %v530, 100
      %v1331 = vpop.permute.xlu0 %1330
      %v1333 = vsel %vm535, %v1329, 0
      %v1336 = vsel %vm535, %v1331, 0
      %1338 = vmatprep.subr.bf16.mxu0 0
      %1339 = vmatpush1.bf16.xpose.msra.mxu0 0
      %1340 = vmatprep.subr.bf16.mxu0 0
      %1341 = vmatpush1.bf16.xpose.msra.mxu0 0
      %1342 = vmatprep.subr.bf16.mxu0 0
      %1343 = vmatpush1.bf16.xpose.msra.mxu0 0
      %1344 = vmatprep.subr.bf16.mxu0 0
      %1345 = vmatpush1.bf16.xpose.msra.mxu0 0
      %1346 = vmatprep.subr.bf16.mxu0 0
      %1347 = vmatpush1.bf16.xpose.msra.mxu0 0
      %1348 = vmatprep.subr.bf16.mxu0 0
      %1349 = vmatpush1.bf16.xpose.msra.mxu0 0
      %1350 = vmatprep.subr.bf16.mxu0 0
      %1351 = vmatpush1.bf16.xpose.msra.mxu0 0
      %1352 = vmatprep.subr.bf16.mxu0 0
      %1353 = vmatpush1.bf16.xpose.msra.mxu0 %v1336
      %1354 = vmatprep.subr.bf16.mxu0 0
      %1355 = vmatpush2.bf16.xpose.msra.mxu0 0
      %1356 = vmatprep.subr.bf16.mxu0 0
      %1357 = vmatpush2.bf16.xpose.msra.mxu0 0
      %1358 = vmatprep.subr.bf16.mxu0 0
      %1359 = vmatpush2.bf16.xpose.msra.mxu0 0
      %1360 = vmatprep.subr.bf16.mxu0 0
      %1361 = vmatpush2.bf16.xpose.msra.mxu0 0
      %1362 = vmatprep.subr.bf16.mxu0 0
      %1363 = vmatpush2.bf16.xpose.msra.mxu0 0
      %1364 = vmatprep.subr.bf16.mxu0 0
      %1365 = vmatpush2.bf16.xpose.msra.mxu0 0
      %1366 = vmatprep.subr.bf16.mxu0 0
      %1367 = vmatpush2.bf16.xpose.msra.mxu0 0
      %1368 = vmatprep.subr.bf16.mxu0 0
      %1369 = vmatpush2.bf16.xpose.msra.mxu0 0
      %1370 = vmatprep.mubr.bf16.mxu0 0
      %1371 = vmatmul.mubr.bf16.gmra.mxu0 %v1333
      %v1372 = vpop.f32.mrf.mxu0
      %v1373 = vadd.f32 0.0, %v1372
      %v1374 = vpop.f32.mrf.mxu0
      %v1375 = vpop.f32.mrf.mxu0
      %v1376 = vpop.f32.mrf.mxu0
      %1377 = vdwg.mxu0
      %v1378 = vmul.f32 %v1373, 0.5
      %v1379 = vsel %vm583, %v1378, -inf
      %1380 = vmax.xlane.f32.xlu0 %v1379
      %v1381 = vpop.xlane.xlu0 %1380
      %v1382 = vsub.f32 %v1378, %v1381
      %v1383 = vmul.f32 %v1382, 1.442695
      %v1384 = vpow.pop %v1383
      %v1385 = vsel %vm583, %v1384, 0.0
      %1386 = vadd.xlane.f32.xlu0 %v1385
      %v1387 = vpop.xlane.xlu0 %1386
      %v1388 = vrcp.pop %v1387
      %v1389 = vmul.f32 %v1384, %v1388
      %v1390 = vpack.c.bf16 %v1389, %v1389
      %1391 = vrot.lane.b32.xlu0 %v530, 84
      %v1392 = vpop.permute.xlu0 %1391
      %v1394 = vsel %vm598, %v1390, 0
      %v1397 = vsel %vm602, %v1392, 0
      %1399 = vmatprep.subr.bf16.mxu0 0
      %1400 = vmatpush1.bf16.msra.mxu0 0
      %1401 = vmatprep.subr.bf16.mxu0 0
      %1402 = vmatpush1.bf16.msra.mxu0 0
      %1403 = vmatprep.subr.bf16.mxu0 0
      %1404 = vmatpush1.bf16.msra.mxu0 0
      %1405 = vmatprep.subr.bf16.mxu0 0
      %1406 = vmatpush1.bf16.msra.mxu0 0
      %1407 = vmatprep.subr.bf16.mxu0 0
      %1408 = vmatpush1.bf16.msra.mxu0 0
      %1409 = vmatprep.subr.bf16.mxu0 0
      %1410 = vmatpush1.bf16.msra.mxu0 0
      %1411 = vmatprep.subr.bf16.mxu0 0
      %1412 = vmatpush1.bf16.msra.mxu0 0
      %1413 = vmatprep.subr.bf16.mxu0 0
      %1414 = vmatpush1.bf16.msra.mxu0 %v1397
      %1415 = vmatprep.subr.bf16.mxu0 0
      %1416 = vmatpush2.bf16.msra.mxu0 0
      %1417 = vmatprep.subr.bf16.mxu0 0
      %1418 = vmatpush2.bf16.msra.mxu0 0
      %1419 = vmatprep.subr.bf16.mxu0 0
      %1420 = vmatpush2.bf16.msra.mxu0 0
      %1421 = vmatprep.subr.bf16.mxu0 0
      %1422 = vmatpush2.bf16.msra.mxu0 0
      %1423 = vmatprep.subr.bf16.mxu0 0
      %1424 = vmatpush2.bf16.msra.mxu0 0
      %1425 = vmatprep.subr.bf16.mxu0 0
      %1426 = vmatpush2.bf16.msra.mxu0 0
      %1427 = vmatprep.subr.bf16.mxu0 0
      %1428 = vmatpush2.bf16.msra.mxu0 0
      %1429 = vmatprep.subr.bf16.mxu0 0
      %1430 = vmatpush2.bf16.msra.mxu0 0
      %1431 = vmatprep.mubr.bf16.mxu0 0
      %1432 = vmatmul.mubr.bf16.gmra.mxu0 %v1394
      %v1433 = vpop.f32.mrf.mxu0
      %v1434 = vadd.f32 0.0, %v1433
      %v1435 = vpop.f32.mrf.mxu0
      %v1436 = vpop.f32.mrf.mxu0
      %v1437 = vpop.f32.mrf.mxu0
      %1438 = vdwg.mxu0
      %1440 = vrot.lane.b32.xlu0 %v1212, 4
      %v1441 = vpop.permute.xlu0 %1440
      %1444 = vrot.lane.b32.xlu0 %v1323, 8
      %v1445 = vpop.permute.xlu0 %1444
      %1448 = vrot.lane.b32.xlu0 %v1434, 12
      %v1449 = vpop.permute.xlu0 %1448
      %v1451 = vsel %vm535, %v1101, %v1441
      %v1452 = vsel %vm993, %v1451, %v1445
      %v1453 = vsel %vm995, %v1452, %v1449
      %v1454 = vld [vmem:[%s4] sm:$0xff]
      %v1455 = vld [vmem:[%s4 + $0x8] sm:$0xff]
      %v1456 = vpack.c.bf16 %v996, %v996
      %v1457 = vpack.c.bf16 %v1455, %v1454
      %v1458 = vld [vmem:[%s5] sm:$0x1]
      %v1460 = vlaneseq
      %v1461 = vshrl.u32 %v1460, 7
      %v1462 = vsub.s32 0, %v1461
      %v1463 = vrot.slane %v1458, %v1462
      %v1466 = vsel %vm430, %v1456, 0
      %1468 = vmatprep.subr.bf16.mxu0 0
      %1469 = vmatpush1.bf16.msra.mxu0 0
      %1470 = vmatprep.subr.bf16.mxu0 0
      %1471 = vmatpush1.bf16.msra.mxu0 0
      %1472 = vmatprep.subr.bf16.mxu0 0
      %1473 = vmatpush1.bf16.msra.mxu0 0
      %1474 = vmatprep.subr.bf16.mxu0 0
      %1475 = vmatpush1.bf16.msra.mxu0 0
      %1476 = vmatprep.subr.bf16.mxu0 0
      %1477 = vmatpush1.bf16.msra.mxu0 0
      %1478 = vmatprep.subr.bf16.mxu0 0
      %1479 = vmatpush1.bf16.msra.mxu0 0
      %1480 = vmatprep.subr.bf16.mxu0 0
      %1481 = vmatpush1.bf16.msra.mxu0 0
      %1482 = vmatprep.subr.bf16.mxu0 0
      %1483 = vmatpush1.bf16.msra.mxu0 %v1457
      %1484 = vmatprep.subr.bf16.mxu0 0
      %1485 = vmatpush2.bf16.msra.mxu0 0
      %1486 = vmatprep.subr.bf16.mxu0 0
      %1487 = vmatpush2.bf16.msra.mxu0 0
      %1488 = vmatprep.subr.bf16.mxu0 0
      %1489 = vmatpush2.bf16.msra.mxu0 0
      %1490 = vmatprep.subr.bf16.mxu0 0
      %1491 = vmatpush2.bf16.msra.mxu0 0
      %1492 = vmatprep.subr.bf16.mxu0 0
      %1493 = vmatpush2.bf16.msra.mxu0 0
      %1494 = vmatprep.subr.bf16.mxu0 0
      %1495 = vmatpush2.bf16.msra.mxu0 0
      %1496 = vmatprep.subr.bf16.mxu0 0
      %1497 = vmatpush2.bf16.msra.mxu0 0
      %1498 = vmatprep.subr.bf16.mxu0 0
      %1499 = vmatpush2.bf16.msra.mxu0 0
      %1500 = vmatprep.mubr.bf16.mxu0 0
      %1501 = vmatmul.mubr.bf16.gmra.mxu0 %v1466
      %v1502 = vpop.f32.mrf.mxu0
      %v1503 = vadd.f32 %v1463, %v1502
      %v1504 = vpop.f32.mrf.mxu0
      %v1505 = vpop.f32.mrf.mxu0
      %v1506 = vpop.f32.mrf.mxu0
      %1507 = vdwg.mxu0
      %v1508 = vadd.f32 %v1503, %v417
      %s1509 = scalar_lea.vmem %s4, 16
      %v1510 = vld [vmem:[%s1509] sm:$0xff]
      %v1511 = vld [vmem:[%s1509 + $0x8] sm:$0xff]
      %v1512 = vpack.c.bf16 %v1453, %v1453
      %v1513 = vpack.c.bf16 %v1511, %v1510
      %s1514 = scalar_lea.vmem %s5, 1
      %v1515 = vld [vmem:[%s1514] sm:$0x1]
      %v1517 = vlaneseq
      %v1518 = vshrl.u32 %v1517, 7
      %v1519 = vsub.s32 0, %v1518
      %v1520 = vrot.slane %v1515, %v1519
      %v1523 = vsel %vm430, %v1512, 0
      %1525 = vmatprep.subr.bf16.mxu0 0
      %1526 = vmatpush1.bf16.msra.mxu0 0
      %1527 = vmatprep.subr.bf16.mxu0 0
      %1528 = vmatpush1.bf16.msra.mxu0 0
      %1529 = vmatprep.subr.bf16.mxu0 0
      %1530 = vmatpush1.bf16.msra.mxu0 0
      %1531 = vmatprep.subr.bf16.mxu0 0
      %1532 = vmatpush1.bf16.msra.mxu0 0
      %1533 = vmatprep.subr.bf16.mxu0 0
      %1534 = vmatpush1.bf16.msra.mxu0 0
      %1535 = vmatprep.subr.bf16.mxu0 0
      %1536 = vmatpush1.bf16.msra.mxu0 0
      %1537 = vmatprep.subr.bf16.mxu0 0
      %1538 = vmatpush1.bf16.msra.mxu0 0
      %1539 = vmatprep.subr.bf16.mxu0 0
      %1540 = vmatpush1.bf16.msra.mxu0 %v1513
      %1541 = vmatprep.subr.bf16.mxu0 0
      %1542 = vmatpush2.bf16.msra.mxu0 0
      %1543 = vmatprep.subr.bf16.mxu0 0
      %1544 = vmatpush2.bf16.msra.mxu0 0
      %1545 = vmatprep.subr.bf16.mxu0 0
      %1546 = vmatpush2.bf16.msra.mxu0 0
      %1547 = vmatprep.subr.bf16.mxu0 0
      %1548 = vmatpush2.bf16.msra.mxu0 0
      %1549 = vmatprep.subr.bf16.mxu0 0
      %1550 = vmatpush2.bf16.msra.mxu0 0
      %1551 = vmatprep.subr.bf16.mxu0 0
      %1552 = vmatpush2.bf16.msra.mxu0 0
      %1553 = vmatprep.subr.bf16.mxu0 0
      %1554 = vmatpush2.bf16.msra.mxu0 0
      %1555 = vmatprep.subr.bf16.mxu0 0
      %1556 = vmatpush2.bf16.msra.mxu0 0
      %1557 = vmatprep.mubr.bf16.mxu0 0
      %1558 = vmatmul.mubr.bf16.gmra.mxu0 %v1523
      %v1559 = vpop.f32.mrf.mxu0
      %v1560 = vadd.f32 %v1520, %v1559
      %v1561 = vpop.f32.mrf.mxu0
      %v1562 = vpop.f32.mrf.mxu0
      %v1563 = vpop.f32.mrf.mxu0
      %1564 = vdwg.mxu0
      %v1565 = vadd.f32 %v1560, %v418
      %v1566 = vld [vmem:[%s6] sm:$0x1]
      %v1567 = vld [vmem:[%s7] sm:$0x1]
      %vm1568 = vcmask 123904
      %v1569 = vsel %vm1568, %v1508, 0.0
      %1570 = vadd.xlane.f32.xlu0 %v1569
      %v1571 = vpop.xlane.xlu0 %1570
      %v1572 = vrcp.pop 16.0
      %v1573 = vmul.f32 %v1571, %v1572
      %v1574 = vsub.f32 %v1508, %v1573
      %v1575 = vmul.f32 %v1574, %v1574
      %v1576 = vsel %vm1568, %v1575, 0.0
      %1577 = vadd.xlane.f32.xlu0 %v1576
      %v1578 = vpop.xlane.xlu0 %1577
      %v1579 = vmul.f32 %v1578, %v1572
      %v1580 = vadd.f32 %v1579, 1e-05
      %v1581 = vrsqrt.pop %v1580
      %v1582 = vmul.f32 %v1574, %v1581
      %v1584 = vlaneseq
      %v1585 = vshrl.u32 %v1584, 7
      %v1586 = vsub.s32 0, %v1585
      %v1587 = vrot.slane %v1566, %v1586
      %v1589 = vmul.f32 %v1582, %v1587
      %v1591 = vlaneseq
      %v1592 = vshrl.u32 %v1591, 7
      %v1593 = vsub.s32 0, %v1592
      %v1594 = vrot.slane %v1567, %v1593
      %v1596 = vadd.f32 %v1589, %v1594
      %1597 = vst.msk [vmem:[%s407] sm:$0x3] %vm1568, %v1596
      %s1598 = scalar_lea.vmem %s6, 1
      %v1599 = vld [vmem:[%s1598] sm:$0x1]
      %s1600 = scalar_lea.vmem %s7, 1
      %v1601 = vld [vmem:[%s1600] sm:$0x1]
      %v1602 = vsel %vm1568, %v1565, 0.0
      %1603 = vadd.xlane.f32.xlu0 %v1602
      %v1604 = vpop.xlane.xlu0 %1603
      %v1605 = vmul.f32 %v1604, %v1572
      %v1606 = vsub.f32 %v1565, %v1605
      %v1607 = vmul.f32 %v1606, %v1606
      %v1608 = vsel %vm1568, %v1607, 0.0
      %1609 = vadd.xlane.f32.xlu0 %v1608
      %v1610 = vpop.xlane.xlu0 %1609
      %v1611 = vmul.f32 %v1610, %v1572
      %v1612 = vadd.f32 %v1611, 1e-05
      %v1613 = vrsqrt.pop %v1612
      %v1614 = vmul.f32 %v1606, %v1613
      %v1616 = vlaneseq
      %v1617 = vshrl.u32 %v1616, 7
      %v1618 = vsub.s32 0, %v1617
      %v1619 = vrot.slane %v1599, %v1618
      %v1621 = vmul.f32 %v1614, %v1619
      %v1623 = vlaneseq
      %v1624 = vshrl.u32 %v1623, 7
      %v1625 = vsub.s32 0, %v1624
      %v1626 = vrot.slane %v1601, %v1625
      %v1628 = vadd.f32 %v1621, %v1626
      %1629 = vst.msk [vmem:[%s415] sm:$0x3] %vm1568, %v1628
      %p1630 = scmp.lt.s32.totalorder %s25, 1
      %s1631 = scalar_select %p1630, %s25, 1
      %p1632 = scmp.lt.s32.totalorder %s26, 7
      %s1633 = scalar_select %p1632, %s26, 7
      %s1634 = smul.addr %s1631, 8
      %s1635 = sadd.s32 %s1633, %s1634
      %s1636 = smul.addr %s1635, 2
      %s1637 = scalar_lea.vmem %s8, %s1636
      %p1638 = scmp.lt.s32.totalorder %s25, 1
      %s1639 = scalar_select %p1638, %s25, 1
      %p1640 = scmp.lt.s32.totalorder %s26, 7
      %s1641 = scalar_select %p1640, %s26, 7
      %s1642 = smul.addr %s1639, 8
      %s1643 = sadd.s32 %s1641, %s1642
      %s1644 = smul.addr %s1643, 2
      %s1645 = scalar_lea.vmem %s9, %s1644
      // Predicated region
      $region53: #{_lambda_.71} parent=51 // pred_check
        %p1646 = pneg %p235
      $region54: #{_lambda_.71} parent=51 // pred_check_branch
        %1648 = sbr.rel (%p1646) target = $region56
      $region55: #{_lambda_.71} parent=51 // pred_region
        _
      $region56: #{_lambda_.71} parent=51 // pred_fallthru
        _
      // Predicated region
      $region57: #{_lambda_.71} parent=51 // pred_check
        %p1649 = pneg %p263
      $region58: #{_lambda_.71} parent=51 // pred_check_branch
        %1651 = sbr.rel (%p1649) target = $region60
      $region59: #{_lambda_.71} parent=51 // pred_region
        _
      $region60: #{_lambda_.71} parent=51 // pred_fallthru
        _
    $region52: #{_lambda_.71} parent=5 // pred_fallthru
      _
    %p1652 = scmp.le.s32.totalorder 2, %s16
    // Predicated region
    $region61: #{_lambda_.71} parent=5 // pred_check
      %p1653 = pneg %p1652
    $region62: #{_lambda_.71} parent=5 // pred_check_branch
      %1655 = sbr.rel (%p1653) target = $region64
    $region63: #{_lambda_.71} parent=5 // pred_region
      %s1656 = ssub.s32 %s16, 2
      // Predicated region
      $region65: #{_lambda_.71} parent=63 // pred_check
        %p1657 = pneg %p241
      $region66: #{_lambda_.71} parent=63 // pred_check_branch
        %1659 = sbr.rel (%p1657) target = $region68
      $region67: #{_lambda_.71} parent=63 // pred_region
        %p1660 = scmp.lt.s32.totalorder %s27, 1
        %s1661 = scalar_select %p1660, %s27, 1
        %p1662 = scmp.lt.s32.totalorder %s28, 7
        %s1663 = scalar_select %p1662, %s28, 7
        %s1664 = smul.addr %s1661, 8
        %s1665 = sadd.s32 %s1663, %s1664
        %s1666 = smul.addr %s1665, 2
        %s1667 = scalar_lea.vmem %s8, %s1666
      $region68: #{_lambda_.71} parent=63 // pred_fallthru
        _
      // Predicated region
      $region69: #{_lambda_.71} parent=63 // pred_check
        %p1668 = pneg %p269
      $region70: #{_lambda_.71} parent=63 // pred_check_branch
        %1670 = sbr.rel (%p1668) target = $region72
      $region71: #{_lambda_.71} parent=63 // pred_region
        %p1671 = scmp.lt.s32.totalorder %s27, 1
        %s1672 = scalar_select %p1671, %s27, 1
        %p1673 = scmp.lt.s32.totalorder %s28, 7
        %s1674 = scalar_select %p1673, %s28, 7
        %s1675 = smul.addr %s1672, 8
        %s1676 = sadd.s32 %s1674, %s1675
        %s1677 = smul.addr %s1676, 2
        %s1678 = scalar_lea.vmem %s9, %s1677
      $region72: #{_lambda_.71} parent=63 // pred_fallthru
        _
    $region64: #{_lambda_.71} parent=5 // pred_fallthru
      _
  $region6: #{_lambda_.71} parent=0 // loop_footer
    %s20 = sadd.s32 1, %s16
  $region7: #{_lambda_.71} parent=0 // loop_footer_branch
    %15 = sbr.rel target = $region3
  $region8: #{_lambda_.71} parent=0 // loop_exit
    _

// kernel: _lambda_.99
$region0: #{_lambda_.99}
  #allocation0 [shape = 'u32[]', space=smem, size = 0x4, offset = 0x4, fixed_abs, tag = 'smem constant byte address 0x4 - core index']
  #allocation1 [shape = 'u32[144,128]{1,0:T(1,128)}', space=vmem, size = 0x12000, scoped, tag = 'internal scratch']
  %s0 = inlined_call_operand.vmem [shape: f32[80,16], index: 0, kind: input, shape index: {}]
  %s1 = inlined_call_operand.vmem [shape: f32[16,16], index: 1, kind: input, shape index: {}]
  %s2 = inlined_call_operand.vmem [shape: f32[1,16], index: 2, kind: input, shape index: {}]
  %s3 = inlined_call_operand.vmem [shape: f32[1,16], index: 3, kind: input, shape index: {}]
  %s4 = inlined_call_operand.vmem [shape: f32[1,16], index: 4, kind: input, shape index: {}]
  %s5 = inlined_call_operand.vmem [shape: f32[16,16], index: 5, kind: input, shape index: {}]
  %s6 = inlined_call_operand.vmem [shape: f32[80,16], index: 6, kind: output, shape index: {}]
  %s7 = sld [smem:[#allocation0]]
  $region34: #{_lambda_.99} parent=0
    _
  %s9 = ssub.s32 1, %s7
  %s10 = scalar_select 0, %s9, %s7
  // Predicated region
  $region2: #{_lambda_.99} parent=0 // pred_check
    _
  $region3: #{_lambda_.99} parent=0 // pred_check_branch
    %12 = sbr.rel (0) target = $region5
  $region4: #{_lambda_.99} parent=0 // pred_region
    _
  $region5: #{_lambda_.99} parent=0 // pred_fallthru
    _
  // Predicated region
  $region6: #{_lambda_.99} parent=0 // pred_check
    _
  $region7: #{_lambda_.99} parent=0 // pred_check_branch
    %14 = sbr.rel (0) target = $region9
  $region8: #{_lambda_.99} parent=0 // pred_region
    _
  $region9: #{_lambda_.99} parent=0 // pred_fallthru
    _
  // Predicated region
  $region10: #{_lambda_.99} parent=0 // pred_check
    _
  $region11: #{_lambda_.99} parent=0 // pred_check_branch
    %16 = sbr.rel (0) target = $region13
  $region12: #{_lambda_.99} parent=0 // pred_region
    _
  $region13: #{_lambda_.99} parent=0 // pred_fallthru
    _
  // Predicated region
  $region14: #{_lambda_.99} parent=0 // pred_check
    _
  $region15: #{_lambda_.99} parent=0 // pred_check_branch
    %18 = sbr.rel (0) target = $region17
  $region16: #{_lambda_.99} parent=0 // pred_region
    _
  $region17: #{_lambda_.99} parent=0 // pred_fallthru
    _
  // Predicated region
  $region18: #{_lambda_.99} parent=0 // pred_check
    _
  $region19: #{_lambda_.99} parent=0 // pred_check_branch
    %20 = sbr.rel (0) target = $region21
  $region20: #{_lambda_.99} parent=0 // pred_region
    _
  $region21: #{_lambda_.99} parent=0 // pred_fallthru
    _
  // Predicated region
  $region22: #{_lambda_.99} parent=0 // pred_check
    _
  $region23: #{_lambda_.99} parent=0 // pred_check_branch
    %22 = sbr.rel (0) target = $region25
  $region24: #{_lambda_.99} parent=0 // pred_region
    _
  $region25: #{_lambda_.99} parent=0 // pred_fallthru
    _
  %v24 = vld [vmem:[%s0] sm:$0xff]
  %v25 = vld [vmem:[%s0 + $0x8] sm:$0xff]
  %v26 = vld [vmem:[%s0 + $0x10] sm:$0xff]
  %v27 = vld [vmem:[%s0 + $0x18] sm:$0xff]
  %v28 = vld [vmem:[%s0 + $0x20] sm:$0xff]
  %v29 = vld [vmem:[%s0 + $0x28] sm:$0xff]
  %v30 = vld [vmem:[%s0 + $0x30] sm:$0xff]
  %v31 = vld [vmem:[%s0 + $0x38] sm:$0xff]
  %v32 = vld [vmem:[%s0 + $0x40] sm:$0xff]
  %v33 = vld [vmem:[%s0 + $0x48] sm:$0xff]
  %v34 = vld [vmem:[%s1] sm:$0xff]
  %v35 = vld [vmem:[%s1 + $0x8] sm:$0xff]
  %v36 = vpack.c.bf16 %v25, %v24
  %v37 = vpack.c.bf16 %v27, %v26
  %v38 = vpack.c.bf16 %v29, %v28
  %v39 = vpack.c.bf16 %v31, %v30
  %v40 = vpack.c.bf16 %v33, %v32
  %v41 = vpack.c.bf16 %v35, %v34
  %v42 = vld [vmem:[%s2] sm:$0x1]
  %v44 = vlaneseq
  %v45 = vshrl.u32 %v44, 7
  %v46 = vsub.s32 0, %v45
  %v47 = vrot.slane %v42, %v46
  %vm49 = vcmask 130048
  %v51 = vsel %vm49, %v36, 0
  %v54 = vsel %vm49, %v37, 0
  %v57 = vsel %vm49, %v38, 0
  %v60 = vsel %vm49, %v39, 0
  %v63 = vsel %vm49, %v40, 0
  %65 = vmatprep.subr.bf16.mxu0 0
  %66 = vmatpush1.bf16.msra.mxu0 0
  %67 = vmatprep.subr.bf16.mxu0 0
  %68 = vmatpush1.bf16.msra.mxu0 0
  %69 = vmatprep.subr.bf16.mxu0 0
  %70 = vmatpush1.bf16.msra.mxu0 0
  %71 = vmatprep.subr.bf16.mxu0 0
  %72 = vmatpush1.bf16.msra.mxu0 0
  %73 = vmatprep.subr.bf16.mxu0 0
  %74 = vmatpush1.bf16.msra.mxu0 0
  %75 = vmatprep.subr.bf16.mxu0 0
  %76 = vmatpush1.bf16.msra.mxu0 0
  %77 = vmatprep.subr.bf16.mxu0 0
  %78 = vmatpush1.bf16.msra.mxu0 0
  %79 = vmatprep.subr.bf16.mxu0 0
  %80 = vmatpush1.bf16.msra.mxu0 %v41
  %81 = vmatprep.subr.bf16.mxu0 0
  %82 = vmatpush2.bf16.msra.mxu0 0
  %83 = vmatprep.subr.bf16.mxu0 0
  %84 = vmatpush2.bf16.msra.mxu0 0
  %85 = vmatprep.subr.bf16.mxu0 0
  %86 = vmatpush2.bf16.msra.mxu0 0
  %87 = vmatprep.subr.bf16.mxu0 0
  %88 = vmatpush2.bf16.msra.mxu0 0
  %89 = vmatprep.subr.bf16.mxu0 0
  %90 = vmatpush2.bf16.msra.mxu0 0
  %91 = vmatprep.subr.bf16.mxu0 0
  %92 = vmatpush2.bf16.msra.mxu0 0
  %93 = vmatprep.subr.bf16.mxu0 0
  %94 = vmatpush2.bf16.msra.mxu0 0
  %95 = vmatprep.subr.bf16.mxu0 0
  %96 = vmatpush2.bf16.msra.mxu0 0
  %97 = vmatprep.mubr.bf16.mxu0 0
  %98 = vmatmul.mubr.bf16.gmra.mxu0 %v51
  %v99 = vpop.f32.mrf.mxu0
  %v100 = vadd.f32 %v47, %v99
  %v101 = vpop.f32.mrf.mxu0
  %v102 = vpop.f32.mrf.mxu0
  %v103 = vadd.f32 %v47, %v102
  %v104 = vpop.f32.mrf.mxu0
  %105 = vmatprep.mubr.bf16.mxu0 0
  %106 = vmatmul.mubr.bf16.gmra.mxu0 %v54
  %v107 = vpop.f32.mrf.mxu0
  %v108 = vadd.f32 %v47, %v107
  %v109 = vpop.f32.mrf.mxu0
  %v110 = vpop.f32.mrf.mxu0
  %v111 = vadd.f32 %v47, %v110
  %v112 = vpop.f32.mrf.mxu0
  %113 = vmatprep.mubr.bf16.mxu0 0
  %114 = vmatmul.mubr.bf16.gmra.mxu0 %v57
  %v115 = vpop.f32.mrf.mxu0
  %v116 = vadd.f32 %v47, %v115
  %v117 = vpop.f32.mrf.mxu0
  %v118 = vpop.f32.mrf.mxu0
  %v119 = vadd.f32 %v47, %v118
  %v120 = vpop.f32.mrf.mxu0
  %121 = vmatprep.mubr.bf16.mxu0 0
  %122 = vmatmul.mubr.bf16.gmra.mxu0 %v60
  %v123 = vpop.f32.mrf.mxu0
  %v124 = vadd.f32 %v47, %v123
  %v125 = vpop.f32.mrf.mxu0
  %v126 = vpop.f32.mrf.mxu0
  %v127 = vadd.f32 %v47, %v126
  %v128 = vpop.f32.mrf.mxu0
  %129 = vmatprep.mubr.bf16.mxu0 0
  %130 = vmatmul.mubr.bf16.gmra.mxu0 %v63
  %v131 = vpop.f32.mrf.mxu0
  %v132 = vadd.f32 %v47, %v131
  %v133 = vpop.f32.mrf.mxu0
  %v134 = vpop.f32.mrf.mxu0
  %v135 = vadd.f32 %v47, %v134
  %v136 = vpop.f32.mrf.mxu0
  %137 = vdwg.mxu0
  %v138 = vtanh.pop %v100
  %v139 = vtanh.pop %v103
  %v140 = vtanh.pop %v108
  %v141 = vtanh.pop %v111
  %v142 = vtanh.pop %v116
  %v143 = vtanh.pop %v119
  %v144 = vtanh.pop %v124
  %v145 = vtanh.pop %v127
  %v146 = vtanh.pop %v132
  %v147 = vtanh.pop %v135
  %v148 = vld [vmem:[%s3] sm:$0x1]
  %v150 = vlaneseq
  %v151 = vshrl.u32 %v150, 7
  %v152 = vsub.s32 0, %v151
  %v153 = vrot.slane %v148, %v152
  %v155 = vmul.f32 %v24, %v153
  %v156 = vmul.f32 %v25, %v153
  %v157 = vmul.f32 %v26, %v153
  %v158 = vmul.f32 %v27, %v153
  %v159 = vmul.f32 %v28, %v153
  %v160 = vmul.f32 %v29, %v153
  %v161 = vmul.f32 %v30, %v153
  %v162 = vmul.f32 %v31, %v153
  %v163 = vmul.f32 %v32, %v153
  %v164 = vmul.f32 %v33, %v153
  %v165 = vld [vmem:[%s4] sm:$0x1]
  %v167 = vlaneseq
  %v168 = vshrl.u32 %v167, 7
  %v169 = vsub.s32 0, %v168
  %v170 = vrot.slane %v165, %v169
  %v172 = vadd.f32 %v155, %v170
  %v173 = vadd.f32 %v156, %v170
  %v174 = vadd.f32 %v157, %v170
  %v175 = vadd.f32 %v158, %v170
  %v176 = vadd.f32 %v159, %v170
  %v177 = vadd.f32 %v160, %v170
  %v178 = vadd.f32 %v161, %v170
  %v179 = vadd.f32 %v162, %v170
  %v180 = vadd.f32 %v163, %v170
  %v181 = vadd.f32 %v164, %v170
  %v182 = vxor.u32 %v172, 2147483648
  %v183 = vxor.u32 %v173, 2147483648
  %v184 = vxor.u32 %v174, 2147483648
  %v185 = vxor.u32 %v175, 2147483648
  %v186 = vxor.u32 %v176, 2147483648
  %v187 = vxor.u32 %v177, 2147483648
  %v188 = vxor.u32 %v178, 2147483648
  %v189 = vxor.u32 %v179, 2147483648
  %v190 = vxor.u32 %v180, 2147483648
  %v191 = vxor.u32 %v181, 2147483648
  %v192 = vmul.f32 %v182, 1.442695
  %v193 = vpow.pop %v192
  %v194 = vmul.f32 %v183, 1.442695
  %v195 = vpow.pop %v194
  %v196 = vmul.f32 %v184, 1.442695
  %v197 = vpow.pop %v196
  %v198 = vmul.f32 %v185, 1.442695
  %v199 = vpow.pop %v198
  %v200 = vmul.f32 %v186, 1.442695
  %v201 = vpow.pop %v200
  %v202 = vmul.f32 %v187, 1.442695
  %v203 = vpow.pop %v202
  %v204 = vmul.f32 %v188, 1.442695
  %v205 = vpow.pop %v204
  %v206 = vmul.f32 %v189, 1.442695
  %v207 = vpow.pop %v206
  %v208 = vmul.f32 %v190, 1.442695
  %v209 = vpow.pop %v208
  %v210 = vmul.f32 %v191, 1.442695
  %v211 = vpow.pop %v210
  %v212 = vadd.f32 %v193, 1.0
  %v213 = vadd.f32 %v195, 1.0
  %v214 = vadd.f32 %v197, 1.0
  %v215 = vadd.f32 %v199, 1.0
  %v216 = vadd.f32 %v201, 1.0
  %v217 = vadd.f32 %v203, 1.0
  %v218 = vadd.f32 %v205, 1.0
  %v219 = vadd.f32 %v207, 1.0
  %v220 = vadd.f32 %v209, 1.0
  %v221 = vadd.f32 %v211, 1.0
  %v222 = vrcp.pop %v212
  %v223 = vmul.f32 1.0, %v222
  %v224 = vrcp.pop %v213
  %v225 = vmul.f32 1.0, %v224
  %v226 = vrcp.pop %v214
  %v227 = vmul.f32 1.0, %v226
  %v228 = vrcp.pop %v215
  %v229 = vmul.f32 1.0, %v228
  %v230 = vrcp.pop %v216
  %v231 = vmul.f32 1.0, %v230
  %v232 = vrcp.pop %v217
  %v233 = vmul.f32 1.0, %v232
  %v234 = vrcp.pop %v218
  %v235 = vmul.f32 1.0, %v234
  %v236 = vrcp.pop %v219
  %v237 = vmul.f32 1.0, %v236
  %v238 = vrcp.pop %v220
  %v239 = vmul.f32 1.0, %v238
  %v240 = vrcp.pop %v221
  %v241 = vmul.f32 1.0, %v240
  %v242 = vmul.f32 %v138, %v223
  %v243 = vmul.f32 %v139, %v225
  %v244 = vmul.f32 %v140, %v227
  %v245 = vmul.f32 %v141, %v229
  %v246 = vmul.f32 %v142, %v231
  %v247 = vmul.f32 %v143, %v233
  %v248 = vmul.f32 %v144, %v235
  %v249 = vmul.f32 %v145, %v237
  %v250 = vmul.f32 %v146, %v239
  %v251 = vmul.f32 %v147, %v241
  %v252 = vld [vmem:[%s5] sm:$0xff]
  %v253 = vld [vmem:[%s5 + $0x8] sm:$0xff]
  %v254 = vpack.c.bf16 %v243, %v242
  %v255 = vpack.c.bf16 %v245, %v244
  %v256 = vpack.c.bf16 %v247, %v246
  %v257 = vpack.c.bf16 %v249, %v248
  %v258 = vpack.c.bf16 %v251, %v250
  %v259 = vpack.c.bf16 %v253, %v252
  %v261 = vsel %vm49, %v254, 0
  %v264 = vsel %vm49, %v255, 0
  %v267 = vsel %vm49, %v256, 0
  %v270 = vsel %vm49, %v257, 0
  %v273 = vsel %vm49, %v258, 0
  %275 = vmatprep.subr.bf16.mxu0 0
  %276 = vmatpush1.bf16.msra.mxu0 0
  %277 = vmatprep.subr.bf16.mxu0 0
  %278 = vmatpush1.bf16.msra.mxu0 0
  %279 = vmatprep.subr.bf16.mxu0 0
  %280 = vmatpush1.bf16.msra.mxu0 0
  %281 = vmatprep.subr.bf16.mxu0 0
  %282 = vmatpush1.bf16.msra.mxu0 0
  %283 = vmatprep.subr.bf16.mxu0 0
  %284 = vmatpush1.bf16.msra.mxu0 0
  %285 = vmatprep.subr.bf16.mxu0 0
  %286 = vmatpush1.bf16.msra.mxu0 0
  %287 = vmatprep.subr.bf16.mxu0 0
  %288 = vmatpush1.bf16.msra.mxu0 0
  %289 = vmatprep.subr.bf16.mxu0 0
  %290 = vmatpush1.bf16.msra.mxu0 %v259
  %291 = vmatprep.subr.bf16.mxu0 0
  %292 = vmatpush2.bf16.msra.mxu0 0
  %293 = vmatprep.subr.bf16.mxu0 0
  %294 = vmatpush2.bf16.msra.mxu0 0
  %295 = vmatprep.subr.bf16.mxu0 0
  %296 = vmatpush2.bf16.msra.mxu0 0
  %297 = vmatprep.subr.bf16.mxu0 0
  %298 = vmatpush2.bf16.msra.mxu0 0
  %299 = vmatprep.subr.bf16.mxu0 0
  %300 = vmatpush2.bf16.msra.mxu0 0
  %301 = vmatprep.subr.bf16.mxu0 0
  %302 = vmatpush2.bf16.msra.mxu0 0
  %303 = vmatprep.subr.bf16.mxu0 0
  %304 = vmatpush2.bf16.msra.mxu0 0
  %305 = vmatprep.subr.bf16.mxu0 0
  %306 = vmatpush2.bf16.msra.mxu0 0
  %307 = vmatprep.mubr.bf16.mxu0 0
  %308 = vmatmul.mubr.bf16.gmra.mxu0 %v261
  %v309 = vpop.f32.mrf.mxu0
  %v310 = vadd.f32 0.0, %v309
  %v311 = vpop.f32.mrf.mxu0
  %v312 = vpop.f32.mrf.mxu0
  %v313 = vadd.f32 0.0, %v312
  %v314 = vpop.f32.mrf.mxu0
  %315 = vmatprep.mubr.bf16.mxu0 0
  %316 = vmatmul.mubr.bf16.gmra.mxu0 %v264
  %v317 = vpop.f32.mrf.mxu0
  %v318 = vadd.f32 0.0, %v317
  %v319 = vpop.f32.mrf.mxu0
  %v320 = vpop.f32.mrf.mxu0
  %v321 = vadd.f32 0.0, %v320
  %v322 = vpop.f32.mrf.mxu0
  %323 = vmatprep.mubr.bf16.mxu0 0
  %324 = vmatmul.mubr.bf16.gmra.mxu0 %v267
  %v325 = vpop.f32.mrf.mxu0
  %v326 = vadd.f32 0.0, %v325
  %v327 = vpop.f32.mrf.mxu0
  %v328 = vpop.f32.mrf.mxu0
  %v329 = vadd.f32 0.0, %v328
  %v330 = vpop.f32.mrf.mxu0
  %331 = vmatprep.mubr.bf16.mxu0 0
  %332 = vmatmul.mubr.bf16.gmra.mxu0 %v270
  %v333 = vpop.f32.mrf.mxu0
  %v334 = vadd.f32 0.0, %v333
  %v335 = vpop.f32.mrf.mxu0
  %v336 = vpop.f32.mrf.mxu0
  %v337 = vadd.f32 0.0, %v336
  %v338 = vpop.f32.mrf.mxu0
  %339 = vmatprep.mubr.bf16.mxu0 0
  %340 = vmatmul.mubr.bf16.gmra.mxu0 %v273
  %v341 = vpop.f32.mrf.mxu0
  %v342 = vadd.f32 0.0, %v341
  %v343 = vpop.f32.mrf.mxu0
  %v344 = vpop.f32.mrf.mxu0
  %v345 = vadd.f32 0.0, %v344
  %v346 = vpop.f32.mrf.mxu0
  %347 = vdwg.mxu0
  %v348 = vmax.f32 %v310, 0.0
  %v349 = vmax.f32 %v313, 0.0
  %v350 = vmax.f32 %v318, 0.0
  %v351 = vmax.f32 %v321, 0.0
  %v352 = vmax.f32 %v326, 0.0
  %v353 = vmax.f32 %v329, 0.0
  %v354 = vmax.f32 %v334, 0.0
  %v355 = vmax.f32 %v337, 0.0
  %v356 = vmax.f32 %v342, 0.0
  %v357 = vmax.f32 %v345, 0.0
  %358 = vst.msk [vmem:[%s6] sm:$0xff] %vm49, %v348
  %359 = vst.msk [vmem:[%s6 + $0x8] sm:$0xff] %vm49, %v349
  %360 = vst.msk [vmem:[%s6 + $0x10] sm:$0xff] %vm49, %v350
  %361 = vst.msk [vmem:[%s6 + $0x18] sm:$0xff] %vm49, %v351
  %362 = vst.msk [vmem:[%s6 + $0x20] sm:$0xff] %vm49, %v352
  %363 = vst.msk [vmem:[%s6 + $0x28] sm:$0xff] %vm49, %v353
  %364 = vst.msk [vmem:[%s6 + $0x30] sm:$0xff] %vm49, %v354
  %365 = vst.msk [vmem:[%s6 + $0x38] sm:$0xff] %vm49, %v355
  %366 = vst.msk [vmem:[%s6 + $0x40] sm:$0xff] %vm49, %v356
  %367 = vst.msk [vmem:[%s6 + $0x48] sm:$0xff] %vm49, %v357
  // Predicated region
  $region26: #{_lambda_.99} parent=0 // pred_check
    _
  $region27: #{_lambda_.99} parent=0 // pred_check_branch
    %369 = sbr.rel (0) target = $region29
  $region28: #{_lambda_.99} parent=0 // pred_region
    _
  $region29: #{_lambda_.99} parent=0 // pred_fallthru
    _
  // Predicated region
  $region30: #{_lambda_.99} parent=0 // pred_check
    _
  $region31: #{_lambda_.99} parent=0 // pred_check_branch
    %371 = sbr.rel (0) target = $region33
  $region32: #{_lambda_.99} parent=0 // pred_region
    _
  $region33: #{_lambda_.99} parent=0 // pred_fallthru
    _

</llo_original>
